<compile_context>
chip_gen: v7x
topology: tpu7x:2x2x1
jax: 0.10.0
libtpu: 0.0.40
codegen_flags: <defaults>
</compile_context>

<pallas_src>
import jax
import jax.numpy as jnp
from jax import lax
from jax.experimental import pallas as pl
from jax.experimental.pallas import tpu as pltpu

LEAKY_SLOPE = 0.2
BN_EPS = 1e-5
LANE = 128


def _residual_band_kernel(
    x_ref,            # (H, W, C) f32 — full image (batch dim squeezed)
    s1_ref, t1_ref,   # (1, C) f32 folded BN1 scale / shift
    w1_ref,           # (9, C, C) compute-dtype conv1 weight, k = dy*3 + dx
    s2_ref, t2_ref,   # (1, C) f32 folded BN2 scale / shift (conv1 bias folded in)
    w2_ref,           # (9, C, C) compute-dtype conv2 weight
    b2_ref,           # (1, C) f32 conv2 bias
    o_ref,            # (BH, W, C) output row band
    pad1_ref,         # (BH+4, W+2, C) compute-dtype: zero-padded conv1 input
    pad2_ref,         # (BH+2, W+2, C) compute-dtype: zero-padded conv2 input
):
    b = pl.program_id(1)
    nb = pl.num_programs(1)
    BH, W, C = o_ref.shape
    r0 = pl.multiple_of(b * BH, BH)         # first image row of this band

    def act1(x_rows):                       # BN1 + LeakyReLU(0.2), f32 math
        t = x_rows * s1_ref[...] + t1_ref[...]
        t = jnp.where(t > 0, t, LEAKY_SLOPE * t)
        return t.astype(pad1_ref.dtype)

    # ---- pad1 = zero-padded LeakyReLU(BN1(x)) covering rows [r0-2, r0+BH+2) ----
    zc1 = jnp.zeros((BH + 4, 1, C), pad1_ref.dtype)
    pad1_ref[:, 0:1, :] = zc1               # left / right zero columns
    pad1_ref[:, W + 1:W + 2, :] = zc1
    # centre rows (always inside the image)
    pad1_ref[2:2 + BH, 1:1 + W, :] = act1(x_ref[pl.ds(r0, BH)])

    # top halo: neighbour rows, or the conv 'same' zero padding at the image top
    @pl.when(b == 0)
    def _():
        pad1_ref[0:2, 1:1 + W, :] = jnp.zeros((2, W, C), pad1_ref.dtype)

    @pl.when(b > 0)
    def _():
        pad1_ref[0:2, 1:1 + W, :] = act1(x_ref[pl.ds(r0 - 2, 2)])

    # bottom halo
    @pl.when(b == nb - 1)
    def _():
        pad1_ref[BH + 2:BH + 4, 1:1 + W, :] = jnp.zeros((2, W, C), pad1_ref.dtype)

    @pl.when(b < nb - 1)
    def _():
        pad1_ref[BH + 2:BH + 4, 1:1 + W, :] = act1(x_ref[pl.ds(r0 + BH, 2)])

    # ---- 3x3 conv: 9 accumulated MXU dots straight out of the pad buffer ----
    def conv3x3(pad_ref, w_ref, out_rows):
        acc = None
        for k in range(9):
            dy, dx = divmod(k, 3)
            patch = pad_ref[dy:dy + out_rows, dx:dx + W, :].reshape(out_rows * W, C)
            d = jnp.dot(patch, w_ref[k], preferred_element_type=jnp.float32)
            acc = d if acc is None else acc + d
        return acc                                     # (out_rows*W, C) f32

    # conv1 over BH+2 rows (global rows r0-1 .. r0+BH): 1-row halo recompute
    y1 = conv3x3(pad1_ref, w1_ref, BH + 2)

    # ---- BN2 fused into the pad2 refill (conv1 bias already folded into t2) ----
    zc2 = jnp.zeros((BH + 2, 1, C), pad2_ref.dtype)
    pad2_ref[:, 0:1, :] = zc2
    pad2_ref[:, W + 1:W + 2, :] = zc2
    v = y1 * s2_ref[...] + t2_ref[...]
    pad2_ref[:, 1:1 + W, :] = v.reshape(BH + 2, W, C).astype(pad2_ref.dtype)

    # conv2 'same' zero-padding rows at the image top / bottom
    @pl.when(b == 0)
    def _():
        pad2_ref[0:1, 1:1 + W, :] = jnp.zeros((1, W, C), pad2_ref.dtype)

    @pl.when(b == nb - 1)
    def _():
        pad2_ref[BH + 1:BH + 2, 1:1 + W, :] = jnp.zeros((1, W, C), pad2_ref.dtype)

    # ---- conv2 over the BH output rows + bias + residual add ----
    y2 = conv3x3(pad2_ref, w2_ref, BH)
    x_band = x_ref[pl.ds(r0, BH)].reshape(BH * W, C)   # re-read (already in VMEM)
    out = x_band + y2 + b2_ref[...]
    o_ref[...] = out.reshape(BH, W, C).astype(o_ref.dtype)


def _round_up(v, m):
    return (v + m - 1) // m * m


def _vmem_estimate(H, W, Cp, bh, itemsize):
    return (2 * H * W * Cp * 4                               # x block (double-buffered)
            + 2 * bh * W * Cp * 4                            # out block
            + 2 * (2 * 9 * Cp * Cp * itemsize + 5 * Cp * 4)  # params (double-buffered)
            + (bh + 4) * (W + 2) * Cp * itemsize             # pad1
            + (bh + 2) * (W + 2) * Cp * itemsize             # pad2
            + 2 * (bh + 2) * W * Cp * 4)                     # f32 matmul temps (rough)


def _pick_band_height(H, W, Cp, itemsize, budget):
    divisors = [d for d in range(H, 0, -1) if H % d == 0 and (d >= 2 or d == H)]
    for d in divisors:
        if _vmem_estimate(H, W, Cp, d, itemsize) <= budget:
            return d
    return divisors[-1]


def residual_block_v2_nhwc(x_nhwc, params, *, compute_dtype=jnp.bfloat16,
                           band_height=None):
    """NHWC (lane-friendly) entry point.  x_nhwc: (N, H, W, C); returns f32."""
    N, H, W, C = x_nhwc.shape
    Cp = _round_up(C, LANE)              # lane-aligned channels (zero padded)
    itemsize = jnp.dtype(compute_dtype).itemsize

    # ---- fold inference-mode BatchNorm into per-channel scale / shift ----
    def fold(g, bta, m, v):
        s = (g / jnp.sqrt(v + BN_EPS)).astype(jnp.float32)
        return s.reshape(1, C), (bta - m * s).reshape(1, C).astype(jnp.float32)

    s1, t1 = fold(params["bn1_gamma"], params["bn1_beta"],
                  params["bn1_mean"], params["bn1_var"])
    s2, t2 = fold(params["bn2_gamma"], params["bn2_beta"],
                  params["bn2_mean"], params["bn2_var"])
    # conv1 bias folds into BN2's shift: BN2(conv1_nb + b1) = conv1_nb*s2 + (t2 + s2*b1)
    t2 = t2 + s2 * params["conv1_b"].reshape(1, C).astype(jnp.float32)
    b2 = params["conv2_b"].reshape(1, C).astype(jnp.float32)

    def pad_c(a):                        # zero-pad channel (last) axis to Cp
        return jnp.pad(a, [(0, 0)] * (a.ndim - 1) + [(0, Cp - C)])

    # PyTorch conv weight (Cout, Cin, kh, kw) -> (9, Cin, Cout), k = dy*3 + dx
    def conv_w(w):
        w9 = jnp.transpose(w, (2, 3, 1, 0)).reshape(9, C, C)
        return jnp.pad(w9, ((0, 0), (0, Cp - C), (0, Cp - C))).astype(compute_dtype)

    s1, t1, s2, t2, b2 = (pad_c(a) for a in (s1, t1, s2, t2, b2))
    w1 = conv_w(params["conv1_w"])
    w2 = conv_w(params["conv2_w"])
    x = pad_c(x_nhwc.astype(jnp.float32))

    # ---- band height / VMEM budget (generation aware) ----
    try:
        cap = int(pltpu.get_tpu_info().vmem_capacity_bytes)
    except Exception:
        cap = 64 * 2 ** 20               # conservative fallback (v7x per-TC)
    if band_height is None:
        BH = _pick_band_height(H, W, Cp, itemsize, int(0.6 * cap))
    else:
        BH = int(band_height)
        if H % BH != 0 or (BH < 2 and BH != H):
            raise ValueError(f"band_height={BH} must divide H={H} and be >= 2")
    nb = H // BH
    est = _vmem_estimate(H, W, Cp, BH, itemsize)
    vmem_limit = int(min(max(int(est * 1.25) + (8 << 20), 32 << 20),
                         int(0.75 * cap)))

    def pspec(shape):                    # grid-invariant parameter spec
        return pl.BlockSpec(shape, lambda n, b: (0,) * len(shape))

    # advisory cost (kernel-side traffic only; the NHWC entry has no transposes)
    flops = 2 * N * W * 9 * Cp * Cp * (nb * (BH + 2) + H)
    bytes_accessed = (2 * N * H * W * Cp * 4
                      + 2 * 9 * Cp * Cp * itemsize + 5 * Cp * 4)

    out = pl.pallas_call(
        _residual_band_kernel,
        out_shape=jax.ShapeDtypeStruct((N, H, W, Cp), jnp.float32),
        grid_spec=pltpu.PrefetchScalarGridSpec(
            num_scalar_prefetch=0,
            grid=(N, nb),
            in_specs=[
                # full image; block index ignores the band axis -> DMA'd once / image
                pl.BlockSpec((None, H, W, Cp), lambda n, b: (n, 0, 0, 0)),
                pspec((1, Cp)), pspec((1, Cp)),
                pspec((9, Cp, Cp)),
                pspec((1, Cp)), pspec((1, Cp)),
                pspec((9, Cp, Cp)),
                pspec((1, Cp)),
            ],
            out_specs=pl.BlockSpec((None, BH, W, Cp), lambda n, b: (n, b, 0, 0)),
            scratch_shapes=[
                pltpu.VMEM((BH + 4, W + 2, Cp), compute_dtype),
                pltpu.VMEM((BH + 2, W + 2, Cp), compute_dtype),
            ],
        ),
        compiler_params=pltpu.CompilerParams(
            dimension_semantics=("parallel", "arbitrary"),
            vmem_limit_bytes=vmem_limit,
        ),
        cost_estimate=pl.CostEstimate(
            flops=int(flops), transcendentals=0,
            bytes_accessed=int(bytes_accessed)),
    )(x, s1, t1, w1, s2, t2, w2, b2)

    return out[..., :C]


def residual_block_v2(x_nchw, params, *, compute_dtype=jnp.bfloat16,
                      band_height=None):
    """NCHW adapter matching the PyTorch module's layout.

    Prefer residual_block_v2_nhwc at the model boundary: the two transposes
    here each add a full HBM read+write, which dominates on memory-bound
    channel counts (v6e).
    """
    x = jnp.transpose(x_nchw, (0, 2, 3, 1))
    y = residual_block_v2_nhwc(x, params, compute_dtype=compute_dtype,
                               band_height=band_height)
    return jnp.transpose(y, (0, 3, 1, 2)).astype(x_nchw.dtype)


def _reference(x, p):
    """Pure-JAX (lax.conv) reference of the same inference-mode forward."""
    def bn(z, g, b, m, v):
        g, b, m, v = (a[None, :, None, None] for a in (g, b, m, v))
        return (z - m) / jnp.sqrt(v + BN_EPS) * g + b

    def conv(z, w, b):
        y = lax.conv_general_dilated(
            z, w, window_strides=(1, 1), padding=((1, 1), (1, 1)),
            dimension_numbers=("NCHW", "OIHW", "NCHW"))
        return y + b[None, :, None, None]

    t = bn(x, p["bn1_gamma"], p["bn1_beta"], p["bn1_mean"], p["bn1_var"])
    t = jnp.where(t > 0, t, LEAKY_SLOPE * t)
    t = conv(t, p["conv1_w"], p["conv1_b"])
    t = bn(t, p["bn2_gamma"], p["bn2_beta"], p["bn2_mean"], p["bn2_var"])
    t = conv(t, p["conv2_w"], p["conv2_b"])
    return x + t


if __name__ == "__main__":
    dim, N, H, W = 4, 2, 16, 16
    key = jax.random.PRNGKey(0)
    ks = jax.random.split(key, 16)

    params = {
        "bn1_gamma": jax.random.uniform(ks[0], (dim,), minval=0.5, maxval=1.5),
        "bn1_beta":  0.1 * jax.random.normal(ks[1], (dim,)),
        "bn1_mean":  0.1 * jax.random.normal(ks[2], (dim,)),
        "bn1_var":   jax.random.uniform(ks[3], (dim,), minval=0.5, maxval=1.5),
        "conv1_w":   0.1 * jax.random.normal(ks[4], (dim, dim, 3, 3)),
        "conv1_b":   0.1 * jax.random.normal(ks[5], (dim,)),
        "bn2_gamma": jax.random.uniform(ks[6], (dim,), minval=0.5, maxval=1.5),
        "bn2_beta":  0.1 * jax.random.normal(ks[7], (dim,)),
        "bn2_mean":  0.1 * jax.random.normal(ks[8], (dim,)),
        "bn2_var":   jax.random.uniform(ks[9], (dim,), minval=0.5, maxval=1.5),
        "conv2_w":   0.1 * jax.random.normal(ks[10], (dim, dim, 3, 3)),
        "conv2_b":   0.1 * jax.random.normal(ks[11], (dim,)),
    }
    params = {k: v.astype(jnp.float32) for k, v in params.items()}

    x = jax.random.normal(ks[15], (N, dim, H, W), dtype=jnp.float32)
    y_ref = _reference(x, params)

    # f32-compute, auto (single) band: tight check of the kernel math / layout.
    y_f32 = jax.block_until_ready(
        residual_block_v2(x, params, compute_dtype=jnp.float32))
    assert y_f32.shape == x.shape
    err = float(jnp.max(jnp.abs(y_f32 - y_ref)))
    if err > 1e-3:
        raise AssertionError(f"f32 kernel mismatch vs reference: {err}")

    # f32-compute, 4 row bands: checks the halo-recompute band tiling.
    y_band = jax.block_until_ready(
        residual_block_v2(x, params, compute_dtype=jnp.float32, band_height=4))
    err = float(jnp.max(jnp.abs(y_band - y_ref)))
    if err > 1e-3:
        raise AssertionError(f"banded f32 kernel mismatch vs reference: {err}")

    # bf16 matmul path (default), 2 row bands: relative check vs the f32 kernel.
    y_bf16 = jax.block_until_ready(residual_block_v2(x, params, band_height=8))
    rel = float(jnp.max(jnp.abs(y_bf16 - y_f32)) /
                (jnp.max(jnp.abs(y_f32)) + 1e-6))
    if rel > 3e-2:
        raise AssertionError(f"bf16 kernel relative mismatch vs f32 kernel: {rel}")
    err = float(jnp.max(jnp.abs(y_bf16 - y_ref)))
    if err > 1e-1:
        raise AssertionError(f"bf16 kernel mismatch vs reference: {err}")

    print("KERNEL_OK")
</pallas_src>

<mosaic_0001>
module attributes {stable_mosaic.version = 11 : i64} {
  func.func @_residual_band_kernel(%arg0: i32, %arg1: i32, %arg2: memref<1x16x16x128xf32, #tpu.memory_space<vmem>>, %arg3: memref<1x128xf32, #tpu.memory_space<vmem>>, %arg4: memref<1x128xf32, #tpu.memory_space<vmem>>, %arg5: memref<9x128x128xf32, #tpu.memory_space<vmem>>, %arg6: memref<1x128xf32, #tpu.memory_space<vmem>>, %arg7: memref<1x128xf32, #tpu.memory_space<vmem>>, %arg8: memref<9x128x128xf32, #tpu.memory_space<vmem>>, %arg9: memref<1x128xf32, #tpu.memory_space<vmem>>, %arg10: memref<1x16x16x128xf32, #tpu.memory_space<vmem>>, %arg11: memref<20x18x128xf32, #tpu.memory_space<vmem>>, %arg12: memref<18x18x128xf32, #tpu.memory_space<vmem>>) attributes {dimension_semantics = [#tpu.dimension_semantics<parallel>, #tpu.dimension_semantics<arbitrary>], iteration_bounds = array<i64: 2, 1>, scalar_prefetch = 0 : i64, scratch_operands = 2 : i64, tpu.core_type = #tpu.core_type<tc>, window_params = [{transform_indices = @transform_0, window_bounds = array<i64: 1, 16, 16, 128>}, {pipeline_mode = #tpu.pipeline_mode<synchronous>, transform_indices = @transform_1, window_bounds = array<i64: 1, 128>}, {pipeline_mode = #tpu.pipeline_mode<synchronous>, transform_indices = @transform_2, window_bounds = array<i64: 1, 128>}, {pipeline_mode = #tpu.pipeline_mode<synchronous>, transform_indices = @transform_3, window_bounds = array<i64: 9, 128, 128>}, {pipeline_mode = #tpu.pipeline_mode<synchronous>, transform_indices = @transform_4, window_bounds = array<i64: 1, 128>}, {pipeline_mode = #tpu.pipeline_mode<synchronous>, transform_indices = @transform_5, window_bounds = array<i64: 1, 128>}, {pipeline_mode = #tpu.pipeline_mode<synchronous>, transform_indices = @transform_6, window_bounds = array<i64: 9, 128, 128>}, {pipeline_mode = #tpu.pipeline_mode<synchronous>, transform_indices = @transform_7, window_bounds = array<i64: 1, 128>}, {transform_indices = @transform_8, window_bounds = array<i64: 1, 16, 16, 128>}]} {
    %c16_i32 = arith.constant 16 : i32
    %0 = arith.muli %arg1, %c16_i32 : i32
    %1 = tpu.assume_multiple %0, 16 : i32
    %cst = arith.constant 0.000000e+00 : f32
    %2 = vector.broadcast %cst : f32 to vector<20x1x128xf32>
    %c0 = arith.constant 0 : index
    %c0_0 = arith.constant 0 : index
    %c0_1 = arith.constant 0 : index
    %3 = vector.load %arg11[%c0, %c0_0, %c0_1] : memref<20x18x128xf32, #tpu.memory_space<vmem>>, vector<20x1x128xf32>
    tpu.vector_store %arg11[%c0, %c0_0, %c0_1], %2 {strides = array<i32>} : memref<20x18x128xf32, #tpu.memory_space<vmem>>, vector<20x1x128xf32>,
    %c0_2 = arith.constant 0 : index
    %c17 = arith.constant 17 : index
    %c0_3 = arith.constant 0 : index
    %4 = vector.load %arg11[%c0_2, %c17, %c0_3] : memref<20x18x128xf32, #tpu.memory_space<vmem>>, vector<20x1x128xf32>
    tpu.vector_store %arg11[%c0_2, %c17, %c0_3], %2 {strides = array<i32>} : memref<20x18x128xf32, #tpu.memory_space<vmem>>, vector<20x1x128xf32>,
    %c0_4 = arith.constant 0 : index
    %5 = arith.index_cast %1 : i32 to index
    %c0_5 = arith.constant 0 : index
    %c0_6 = arith.constant 0 : index
    %6 = vector.load %arg2[%c0_4, %5, %c0_5, %c0_6] : memref<1x16x16x128xf32, #tpu.memory_space<vmem>>, vector<1x16x16x128xf32>
    %7 = vector.shape_cast %6 : vector<1x16x16x128xf32> to vector<16x16x128xf32>
    %c0_7 = arith.constant 0 : index
    %c0_8 = arith.constant 0 : index
    %8 = vector.load %arg3[%c0_7, %c0_8] : memref<1x128xf32, #tpu.memory_space<vmem>>, vector<1x128xf32>
    %9 = vector.shape_cast %8 : vector<1x128xf32> to vector<1x1x128xf32>
    %10 = vector.broadcast %9 : vector<1x1x128xf32> to vector<16x16x128xf32>
    %11 = arith.mulf %7, %10 : vector<16x16x128xf32>
    %c0_9 = arith.constant 0 : index
    %c0_10 = arith.constant 0 : index
    %12 = vector.load %arg4[%c0_9, %c0_10] : memref<1x128xf32, #tpu.memory_space<vmem>>, vector<1x128xf32>
    %13 = vector.shape_cast %12 : vector<1x128xf32> to vector<1x1x128xf32>
    %14 = vector.broadcast %13 : vector<1x1x128xf32> to vector<16x16x128xf32>
    %15 = arith.addf %11, %14 : vector<16x16x128xf32>
    %cst_11 = arith.constant 0.000000e+00 : f32
    %16 = vector.broadcast %cst_11 : f32 to vector<16x16x128xf32>
    %17 = arith.cmpf ogt, %15, %16 : vector<16x16x128xf32>
    %cst_12 = arith.constant 2.000000e-01 : f32
    %18 = vector.broadcast %cst_12 : f32 to vector<16x16x128xf32>
    %19 = arith.mulf %18, %15 : vector<16x16x128xf32>
    %20 = arith.select %17, %15, %19 : vector<16x16x128xi1>, vector<16x16x128xf32>
    %c2 = arith.constant 2 : index
    %c1 = arith.constant 1 : index
    %c0_13 = arith.constant 0 : index
    %21 = vector.load %arg11[%c2, %c1, %c0_13] : memref<20x18x128xf32, #tpu.memory_space<vmem>>, vector<16x16x128xf32>
    tpu.vector_store %arg11[%c2, %c1, %c0_13], %20 {strides = array<i32>} : memref<20x18x128xf32, #tpu.memory_space<vmem>>, vector<16x16x128xf32>,
    %c0_i32 = arith.constant 0 : i32
    %22 = arith.cmpi eq, %arg1, %c0_i32 : i32
    %23 = arith.extui %22 : i1 to i32
    %c0_i32_14 = arith.constant 0 : i32
    %24 = arith.cmpi ne, %23, %c0_i32_14 : i32
    scf.if %24 {
      %cst_168 = arith.constant 0.000000e+00 : f32
      %169 = vector.broadcast %cst_168 : f32 to vector<2x16x128xf32>
      %c0_169 = arith.constant 0 : index
      %c1_170 = arith.constant 1 : index
      %c0_171 = arith.constant 0 : index
      %170 = vector.load %arg11[%c0_169, %c1_170, %c0_171] : memref<20x18x128xf32, #tpu.memory_space<vmem>>, vector<2x16x128xf32>
      tpu.vector_store %arg11[%c0_169, %c1_170, %c0_171], %169 {strides = array<i32>} : memref<20x18x128xf32, #tpu.memory_space<vmem>>, vector<2x16x128xf32>,
    } else {
    }
    %c0_i32_15 = arith.constant 0 : i32
    %25 = arith.cmpi sgt, %arg1, %c0_i32_15 : i32
    %26 = arith.extui %25 : i1 to i32
    %c0_i32_16 = arith.constant 0 : i32
    %27 = arith.cmpi ne, %26, %c0_i32_16 : i32
    scf.if %27 {
      %c2_i32 = arith.constant 2 : i32
      %169 = arith.subi %1, %c2_i32 : i32
      %c0_168 = arith.constant 0 : index
      %170 = arith.index_cast %169 : i32 to index
      %c0_169 = arith.constant 0 : index
      %c0_170 = arith.constant 0 : index
      %171 = vector.load %arg2[%c0_168, %170, %c0_169, %c0_170] : memref<1x16x16x128xf32, #tpu.memory_space<vmem>>, vector<1x2x16x128xf32>
      %172 = vector.shape_cast %171 : vector<1x2x16x128xf32> to vector<2x16x128xf32>
      %c0_171 = arith.constant 0 : index
      %c0_172 = arith.constant 0 : index
      %173 = vector.load %arg3[%c0_171, %c0_172] : memref<1x128xf32, #tpu.memory_space<vmem>>, vector<1x128xf32>
      %174 = vector.shape_cast %173 : vector<1x128xf32> to vector<1x1x128xf32>
      %175 = vector.broadcast %174 : vector<1x1x128xf32> to vector<2x16x128xf32>
      %176 = arith.mulf %172, %175 : vector<2x16x128xf32>
      %c0_173 = arith.constant 0 : index
      %c0_174 = arith.constant 0 : index
      %177 = vector.load %arg4[%c0_173, %c0_174] : memref<1x128xf32, #tpu.memory_space<vmem>>, vector<1x128xf32>
      %178 = vector.shape_cast %177 : vector<1x128xf32> to vector<1x1x128xf32>
      %179 = vector.broadcast %178 : vector<1x1x128xf32> to vector<2x16x128xf32>
      %180 = arith.addf %176, %179 : vector<2x16x128xf32>
      %cst_175 = arith.constant 0.000000e+00 : f32
      %181 = vector.broadcast %cst_175 : f32 to vector<2x16x128xf32>
      %182 = arith.cmpf ogt, %180, %181 : vector<2x16x128xf32>
      %cst_176 = arith.constant 2.000000e-01 : f32
      %183 = vector.broadcast %cst_176 : f32 to vector<2x16x128xf32>
      %184 = arith.mulf %183, %180 : vector<2x16x128xf32>
      %185 = arith.select %182, %180, %184 : vector<2x16x128xi1>, vector<2x16x128xf32>
      %c0_177 = arith.constant 0 : index
      %c1_178 = arith.constant 1 : index
      %c0_179 = arith.constant 0 : index
      %186 = vector.load %arg11[%c0_177, %c1_178, %c0_179] : memref<20x18x128xf32, #tpu.memory_space<vmem>>, vector<2x16x128xf32>
      tpu.vector_store %arg11[%c0_177, %c1_178, %c0_179], %185 {strides = array<i32>} : memref<20x18x128xf32, #tpu.memory_space<vmem>>, vector<2x16x128xf32>,
    } else {
    }
    %c0_i32_17 = arith.constant 0 : i32
    %28 = arith.cmpi eq, %arg1, %c0_i32_17 : i32
    %29 = arith.extui %28 : i1 to i32
    %c0_i32_18 = arith.constant 0 : i32
    %30 = arith.cmpi ne, %29, %c0_i32_18 : i32
    scf.if %30 {
      %cst_168 = arith.constant 0.000000e+00 : f32
      %169 = vector.broadcast %cst_168 : f32 to vector<2x16x128xf32>
      %c18 = arith.constant 18 : index
      %c1_169 = arith.constant 1 : index
      %c0_170 = arith.constant 0 : index
      %170 = vector.load %arg11[%c18, %c1_169, %c0_170] : memref<20x18x128xf32, #tpu.memory_space<vmem>>, vector<2x16x128xf32>
      tpu.vector_store %arg11[%c18, %c1_169, %c0_170], %169 {strides = array<i32>} : memref<20x18x128xf32, #tpu.memory_space<vmem>>, vector<2x16x128xf32>,
    } else {
    }
    %c0_i32_19 = arith.constant 0 : i32
    %31 = arith.cmpi slt, %arg1, %c0_i32_19 : i32
    %32 = arith.extui %31 : i1 to i32
    %c0_i32_20 = arith.constant 0 : i32
    %33 = arith.cmpi ne, %32, %c0_i32_20 : i32
    scf.if %33 {
      %c16_i32_168 = arith.constant 16 : i32
      %169 = arith.addi %1, %c16_i32_168 : i32
      %c0_169 = arith.constant 0 : index
      %170 = arith.index_cast %169 : i32 to index
      %c0_170 = arith.constant 0 : index
      %c0_171 = arith.constant 0 : index
      %171 = vector.load %arg2[%c0_169, %170, %c0_170, %c0_171] : memref<1x16x16x128xf32, #tpu.memory_space<vmem>>, vector<1x2x16x128xf32>
      %172 = vector.shape_cast %171 : vector<1x2x16x128xf32> to vector<2x16x128xf32>
      %c0_172 = arith.constant 0 : index
      %c0_173 = arith.constant 0 : index
      %173 = vector.load %arg3[%c0_172, %c0_173] : memref<1x128xf32, #tpu.memory_space<vmem>>, vector<1x128xf32>
      %174 = vector.shape_cast %173 : vector<1x128xf32> to vector<1x1x128xf32>
      %175 = vector.broadcast %174 : vector<1x1x128xf32> to vector<2x16x128xf32>
      %176 = arith.mulf %172, %175 : vector<2x16x128xf32>
      %c0_174 = arith.constant 0 : index
      %c0_175 = arith.constant 0 : index
      %177 = vector.load %arg4[%c0_174, %c0_175] : memref<1x128xf32, #tpu.memory_space<vmem>>, vector<1x128xf32>
      %178 = vector.shape_cast %177 : vector<1x128xf32> to vector<1x1x128xf32>
      %179 = vector.broadcast %178 : vector<1x1x128xf32> to vector<2x16x128xf32>
      %180 = arith.addf %176, %179 : vector<2x16x128xf32>
      %cst_176 = arith.constant 0.000000e+00 : f32
      %181 = vector.broadcast %cst_176 : f32 to vector<2x16x128xf32>
      %182 = arith.cmpf ogt, %180, %181 : vector<2x16x128xf32>
      %cst_177 = arith.constant 2.000000e-01 : f32
      %183 = vector.broadcast %cst_177 : f32 to vector<2x16x128xf32>
      %184 = arith.mulf %183, %180 : vector<2x16x128xf32>
      %185 = arith.select %182, %180, %184 : vector<2x16x128xi1>, vector<2x16x128xf32>
      %c18 = arith.constant 18 : index
      %c1_178 = arith.constant 1 : index
      %c0_179 = arith.constant 0 : index
      %186 = vector.load %arg11[%c18, %c1_178, %c0_179] : memref<20x18x128xf32, #tpu.memory_space<vmem>>, vector<2x16x128xf32>
      tpu.vector_store %arg11[%c18, %c1_178, %c0_179], %185 {strides = array<i32>} : memref<20x18x128xf32, #tpu.memory_space<vmem>>, vector<2x16x128xf32>,
    } else {
    }
    %c0_21 = arith.constant 0 : index
    %c0_22 = arith.constant 0 : index
    %c0_23 = arith.constant 0 : index
    %34 = vector.load %arg11[%c0_21, %c0_22, %c0_23] : memref<20x18x128xf32, #tpu.memory_space<vmem>>, vector<18x16x128xf32>
    %35 = vector.shape_cast %34 : vector<18x16x128xf32> to vector<288x128xf32>
    %c0_24 = arith.constant 0 : index
    %c0_25 = arith.constant 0 : index
    %c0_26 = arith.constant 0 : index
    %36 = vector.load %arg5[%c0_24, %c0_25, %c0_26] : memref<9x128x128xf32, #tpu.memory_space<vmem>>, vector<1x128x128xf32>
    %37 = vector.shape_cast %36 : vector<1x128x128xf32> to vector<128x128xf32>
    %cst_27 = arith.constant dense<0.000000e+00> : vector<288x128xf32>
    %38 = tpu.matmul %35, %37, %cst_27 {dimension_numbers = #tpu.dot_dimension_numbers<[1], [0], [0], [1], [0, 0, 1, 1], [], []>} : vector<288x128xf32>, vector<128x128xf32>, vector<288x128xf32> -> vector<288x128xf32>
    %c0_28 = arith.constant 0 : index
    %c1_29 = arith.constant 1 : index
    %c0_30 = arith.constant 0 : index
    %39 = vector.load %arg11[%c0_28, %c1_29, %c0_30] : memref<20x18x128xf32, #tpu.memory_space<vmem>>, vector<18x16x128xf32>
    %40 = vector.shape_cast %39 : vector<18x16x128xf32> to vector<288x128xf32>
    %c1_31 = arith.constant 1 : index
    %c0_32 = arith.constant 0 : index
    %c0_33 = arith.constant 0 : index
    %41 = vector.load %arg5[%c1_31, %c0_32, %c0_33] : memref<9x128x128xf32, #tpu.memory_space<vmem>>, vector<1x128x128xf32>
    %42 = vector.shape_cast %41 : vector<1x128x128xf32> to vector<128x128xf32>
    %cst_34 = arith.constant dense<0.000000e+00> : vector<288x128xf32>
    %43 = tpu.matmul %40, %42, %cst_34 {dimension_numbers = #tpu.dot_dimension_numbers<[1], [0], [0], [1], [0, 0, 1, 1], [], []>} : vector<288x128xf32>, vector<128x128xf32>, vector<288x128xf32> -> vector<288x128xf32>
    %44 = arith.addf %38, %43 : vector<288x128xf32>
    %c0_35 = arith.constant 0 : index
    %c2_36 = arith.constant 2 : index
    %c0_37 = arith.constant 0 : index
    %45 = vector.load %arg11[%c0_35, %c2_36, %c0_37] : memref<20x18x128xf32, #tpu.memory_space<vmem>>, vector<18x16x128xf32>
    %46 = vector.shape_cast %45 : vector<18x16x128xf32> to vector<288x128xf32>
    %c2_38 = arith.constant 2 : index
    %c0_39 = arith.constant 0 : index
    %c0_40 = arith.constant 0 : index
    %47 = vector.load %arg5[%c2_38, %c0_39, %c0_40] : memref<9x128x128xf32, #tpu.memory_space<vmem>>, vector<1x128x128xf32>
    %48 = vector.shape_cast %47 : vector<1x128x128xf32> to vector<128x128xf32>
    %cst_41 = arith.constant dense<0.000000e+00> : vector<288x128xf32>
    %49 = tpu.matmul %46, %48, %cst_41 {dimension_numbers = #tpu.dot_dimension_numbers<[1], [0], [0], [1], [0, 0, 1, 1], [], []>} : vector<288x128xf32>, vector<128x128xf32>, vector<288x128xf32> -> vector<288x128xf32>
    %50 = arith.addf %44, %49 : vector<288x128xf32>
    %c1_42 = arith.constant 1 : index
    %c0_43 = arith.constant 0 : index
    %c0_44 = arith.constant 0 : index
    %51 = vector.load %arg11[%c1_42, %c0_43, %c0_44] : memref<20x18x128xf32, #tpu.memory_space<vmem>>, vector<18x16x128xf32>
    %52 = vector.shape_cast %51 : vector<18x16x128xf32> to vector<288x128xf32>
    %c3 = arith.constant 3 : index
    %c0_45 = arith.constant 0 : index
    %c0_46 = arith.constant 0 : index
    %53 = vector.load %arg5[%c3, %c0_45, %c0_46] : memref<9x128x128xf32, #tpu.memory_space<vmem>>, vector<1x128x128xf32>
    %54 = vector.shape_cast %53 : vector<1x128x128xf32> to vector<128x128xf32>
    %cst_47 = arith.constant dense<0.000000e+00> : vector<288x128xf32>
    %55 = tpu.matmul %52, %54, %cst_47 {dimension_numbers = #tpu.dot_dimension_numbers<[1], [0], [0], [1], [0, 0, 1, 1], [], []>} : vector<288x128xf32>, vector<128x128xf32>, vector<288x128xf32> -> vector<288x128xf32>
    %56 = arith.addf %50, %55 : vector<288x128xf32>
    %c1_48 = arith.constant 1 : index
    %c1_49 = arith.constant 1 : index
    %c0_50 = arith.constant 0 : index
    %57 = vector.load %arg11[%c1_48, %c1_49, %c0_50] : memref<20x18x128xf32, #tpu.memory_space<vmem>>, vector<18x16x128xf32>
    %58 = vector.shape_cast %57 : vector<18x16x128xf32> to vector<288x128xf32>
    %c4 = arith.constant 4 : index
    %c0_51 = arith.constant 0 : index
    %c0_52 = arith.constant 0 : index
    %59 = vector.load %arg5[%c4, %c0_51, %c0_52] : memref<9x128x128xf32, #tpu.memory_space<vmem>>, vector<1x128x128xf32>
    %60 = vector.shape_cast %59 : vector<1x128x128xf32> to vector<128x128xf32>
    %cst_53 = arith.constant dense<0.000000e+00> : vector<288x128xf32>
    %61 = tpu.matmul %58, %60, %cst_53 {dimension_numbers = #tpu.dot_dimension_numbers<[1], [0], [0], [1], [0, 0, 1, 1], [], []>} : vector<288x128xf32>, vector<128x128xf32>, vector<288x128xf32> -> vector<288x128xf32>
    %62 = arith.addf %56, %61 : vector<288x128xf32>
    %c1_54 = arith.constant 1 : index
    %c2_55 = arith.constant 2 : index
    %c0_56 = arith.constant 0 : index
    %63 = vector.load %arg11[%c1_54, %c2_55, %c0_56] : memref<20x18x128xf32, #tpu.memory_space<vmem>>, vector<18x16x128xf32>
    %64 = vector.shape_cast %63 : vector<18x16x128xf32> to vector<288x128xf32>
    %c5 = arith.constant 5 : index
    %c0_57 = arith.constant 0 : index
    %c0_58 = arith.constant 0 : index
    %65 = vector.load %arg5[%c5, %c0_57, %c0_58] : memref<9x128x128xf32, #tpu.memory_space<vmem>>, vector<1x128x128xf32>
    %66 = vector.shape_cast %65 : vector<1x128x128xf32> to vector<128x128xf32>
    %cst_59 = arith.constant dense<0.000000e+00> : vector<288x128xf32>
    %67 = tpu.matmul %64, %66, %cst_59 {dimension_numbers = #tpu.dot_dimension_numbers<[1], [0], [0], [1], [0, 0, 1, 1], [], []>} : vector<288x128xf32>, vector<128x128xf32>, vector<288x128xf32> -> vector<288x128xf32>
    %68 = arith.addf %62, %67 : vector<288x128xf32>
    %c2_60 = arith.constant 2 : index
    %c0_61 = arith.constant 0 : index
    %c0_62 = arith.constant 0 : index
    %69 = vector.load %arg11[%c2_60, %c0_61, %c0_62] : memref<20x18x128xf32, #tpu.memory_space<vmem>>, vector<18x16x128xf32>
    %70 = vector.shape_cast %69 : vector<18x16x128xf32> to vector<288x128xf32>
    %c6 = arith.constant 6 : index
    %c0_63 = arith.constant 0 : index
    %c0_64 = arith.constant 0 : index
    %71 = vector.load %arg5[%c6, %c0_63, %c0_64] : memref<9x128x128xf32, #tpu.memory_space<vmem>>, vector<1x128x128xf32>
    %72 = vector.shape_cast %71 : vector<1x128x128xf32> to vector<128x128xf32>
    %cst_65 = arith.constant dense<0.000000e+00> : vector<288x128xf32>
    %73 = tpu.matmul %70, %72, %cst_65 {dimension_numbers = #tpu.dot_dimension_numbers<[1], [0], [0], [1], [0, 0, 1, 1], [], []>} : vector<288x128xf32>, vector<128x128xf32>, vector<288x128xf32> -> vector<288x128xf32>
    %74 = arith.addf %68, %73 : vector<288x128xf32>
    %c2_66 = arith.constant 2 : index
    %c1_67 = arith.constant 1 : index
    %c0_68 = arith.constant 0 : index
    %75 = vector.load %arg11[%c2_66, %c1_67, %c0_68] : memref<20x18x128xf32, #tpu.memory_space<vmem>>, vector<18x16x128xf32>
    %76 = vector.shape_cast %75 : vector<18x16x128xf32> to vector<288x128xf32>
    %c7 = arith.constant 7 : index
    %c0_69 = arith.constant 0 : index
    %c0_70 = arith.constant 0 : index
    %77 = vector.load %arg5[%c7, %c0_69, %c0_70] : memref<9x128x128xf32, #tpu.memory_space<vmem>>, vector<1x128x128xf32>
    %78 = vector.shape_cast %77 : vector<1x128x128xf32> to vector<128x128xf32>
    %cst_71 = arith.constant dense<0.000000e+00> : vector<288x128xf32>
    %79 = tpu.matmul %76, %78, %cst_71 {dimension_numbers = #tpu.dot_dimension_numbers<[1], [0], [0], [1], [0, 0, 1, 1], [], []>} : vector<288x128xf32>, vector<128x128xf32>, vector<288x128xf32> -> vector<288x128xf32>
    %80 = arith.addf %74, %79 : vector<288x128xf32>
    %c2_72 = arith.constant 2 : index
    %c2_73 = arith.constant 2 : index
    %c0_74 = arith.constant 0 : index
    %81 = vector.load %arg11[%c2_72, %c2_73, %c0_74] : memref<20x18x128xf32, #tpu.memory_space<vmem>>, vector<18x16x128xf32>
    %82 = vector.shape_cast %81 : vector<18x16x128xf32> to vector<288x128xf32>
    %c8 = arith.constant 8 : index
    %c0_75 = arith.constant 0 : index
    %c0_76 = arith.constant 0 : index
    %83 = vector.load %arg5[%c8, %c0_75, %c0_76] : memref<9x128x128xf32, #tpu.memory_space<vmem>>, vector<1x128x128xf32>
    %84 = vector.shape_cast %83 : vector<1x128x128xf32> to vector<128x128xf32>
    %cst_77 = arith.constant dense<0.000000e+00> : vector<288x128xf32>
    %85 = tpu.matmul %82, %84, %cst_77 {dimension_numbers = #tpu.dot_dimension_numbers<[1], [0], [0], [1], [0, 0, 1, 1], [], []>} : vector<288x128xf32>, vector<128x128xf32>, vector<288x128xf32> -> vector<288x128xf32>
    %86 = arith.addf %80, %85 : vector<288x128xf32>
    %cst_78 = arith.constant 0.000000e+00 : f32
    %87 = vector.broadcast %cst_78 : f32 to vector<18x1x128xf32>
    %c0_79 = arith.constant 0 : index
    %c0_80 = arith.constant 0 : index
    %c0_81 = arith.constant 0 : index
    %88 = vector.load %arg12[%c0_79, %c0_80, %c0_81] : memref<18x18x128xf32, #tpu.memory_space<vmem>>, vector<18x1x128xf32>
    tpu.vector_store %arg12[%c0_79, %c0_80, %c0_81], %87 {strides = array<i32>} : memref<18x18x128xf32, #tpu.memory_space<vmem>>, vector<18x1x128xf32>,
    %c0_82 = arith.constant 0 : index
    %c17_83 = arith.constant 17 : index
    %c0_84 = arith.constant 0 : index
    %89 = vector.load %arg12[%c0_82, %c17_83, %c0_84] : memref<18x18x128xf32, #tpu.memory_space<vmem>>, vector<18x1x128xf32>
    tpu.vector_store %arg12[%c0_82, %c17_83, %c0_84], %87 {strides = array<i32>} : memref<18x18x128xf32, #tpu.memory_space<vmem>>, vector<18x1x128xf32>,
    %c0_85 = arith.constant 0 : index
    %c0_86 = arith.constant 0 : index
    %90 = vector.load %arg6[%c0_85, %c0_86] : memref<1x128xf32, #tpu.memory_space<vmem>>, vector<1x128xf32>
    %91 = vector.broadcast %90 : vector<1x128xf32> to vector<288x128xf32>
    %92 = arith.mulf %86, %91 : vector<288x128xf32>
    %c0_87 = arith.constant 0 : index
    %c0_88 = arith.constant 0 : index
    %93 = vector.load %arg7[%c0_87, %c0_88] : memref<1x128xf32, #tpu.memory_space<vmem>>, vector<1x128xf32>
    %94 = vector.broadcast %93 : vector<1x128xf32> to vector<288x128xf32>
    %95 = arith.addf %92, %94 : vector<288x128xf32>
    %96 = vector.shape_cast %95 : vector<288x128xf32> to vector<18x16x128xf32>
    %c0_89 = arith.constant 0 : index
    %c1_90 = arith.constant 1 : index
    %c0_91 = arith.constant 0 : index
    %97 = vector.load %arg12[%c0_89, %c1_90, %c0_91] : memref<18x18x128xf32, #tpu.memory_space<vmem>>, vector<18x16x128xf32>
    tpu.vector_store %arg12[%c0_89, %c1_90, %c0_91], %96 {strides = array<i32>} : memref<18x18x128xf32, #tpu.memory_space<vmem>>, vector<18x16x128xf32>,
    %c0_i32_92 = arith.constant 0 : i32
    %98 = arith.cmpi eq, %arg1, %c0_i32_92 : i32
    %99 = arith.extui %98 : i1 to i32
    %c0_i32_93 = arith.constant 0 : i32
    %100 = arith.cmpi ne, %99, %c0_i32_93 : i32
    scf.if %100 {
      %cst_168 = arith.constant 0.000000e+00 : f32
      %169 = vector.broadcast %cst_168 : f32 to vector<1x16x128xf32>
      %c0_169 = arith.constant 0 : index
      %c1_170 = arith.constant 1 : index
      %c0_171 = arith.constant 0 : index
      %170 = vector.load %arg12[%c0_169, %c1_170, %c0_171] : memref<18x18x128xf32, #tpu.memory_space<vmem>>, vector<1x16x128xf32>
      tpu.vector_store %arg12[%c0_169, %c1_170, %c0_171], %169 {strides = array<i32>} : memref<18x18x128xf32, #tpu.memory_space<vmem>>, vector<1x16x128xf32>,
    } else {
    }
    %c0_i32_94 = arith.constant 0 : i32
    %101 = arith.cmpi eq, %arg1, %c0_i32_94 : i32
    %102 = arith.extui %101 : i1 to i32
    %c0_i32_95 = arith.constant 0 : i32
    %103 = arith.cmpi ne, %102, %c0_i32_95 : i32
    scf.if %103 {
      %cst_168 = arith.constant 0.000000e+00 : f32
      %169 = vector.broadcast %cst_168 : f32 to vector<1x16x128xf32>
      %c17_169 = arith.constant 17 : index
      %c1_170 = arith.constant 1 : index
      %c0_171 = arith.constant 0 : index
      %170 = vector.load %arg12[%c17_169, %c1_170, %c0_171] : memref<18x18x128xf32, #tpu.memory_space<vmem>>, vector<1x16x128xf32>
      tpu.vector_store %arg12[%c17_169, %c1_170, %c0_171], %169 {strides = array<i32>} : memref<18x18x128xf32, #tpu.memory_space<vmem>>, vector<1x16x128xf32>,
    } else {
    }
    %c0_96 = arith.constant 0 : index
    %c0_97 = arith.constant 0 : index
    %c0_98 = arith.constant 0 : index
    %104 = vector.load %arg12[%c0_96, %c0_97, %c0_98] : memref<18x18x128xf32, #tpu.memory_space<vmem>>, vector<16x16x128xf32>
    %105 = vector.shape_cast %104 : vector<16x16x128xf32> to vector<256x128xf32>
    %c0_99 = arith.constant 0 : index
    %c0_100 = arith.constant 0 : index
    %c0_101 = arith.constant 0 : index
    %106 = vector.load %arg8[%c0_99, %c0_100, %c0_101] : memref<9x128x128xf32, #tpu.memory_space<vmem>>, vector<1x128x128xf32>
    %107 = vector.shape_cast %106 : vector<1x128x128xf32> to vector<128x128xf32>
    %cst_102 = arith.constant dense<0.000000e+00> : vector<256x128xf32>
    %108 = tpu.matmul %105, %107, %cst_102 {dimension_numbers = #tpu.dot_dimension_numbers<[1], [0], [0], [1], [0, 0, 1, 1], [], []>} : vector<256x128xf32>, vector<128x128xf32>, vector<256x128xf32> -> vector<256x128xf32>
    %c0_103 = arith.constant 0 : index
    %c1_104 = arith.constant 1 : index
    %c0_105 = arith.constant 0 : index
    %109 = vector.load %arg12[%c0_103, %c1_104, %c0_105] : memref<18x18x128xf32, #tpu.memory_space<vmem>>, vector<16x16x128xf32>
    %110 = vector.shape_cast %109 : vector<16x16x128xf32> to vector<256x128xf32>
    %c1_106 = arith.constant 1 : index
    %c0_107 = arith.constant 0 : index
    %c0_108 = arith.constant 0 : index
    %111 = vector.load %arg8[%c1_106, %c0_107, %c0_108] : memref<9x128x128xf32, #tpu.memory_space<vmem>>, vector<1x128x128xf32>
    %112 = vector.shape_cast %111 : vector<1x128x128xf32> to vector<128x128xf32>
    %cst_109 = arith.constant dense<0.000000e+00> : vector<256x128xf32>
    %113 = tpu.matmul %110, %112, %cst_109 {dimension_numbers = #tpu.dot_dimension_numbers<[1], [0], [0], [1], [0, 0, 1, 1], [], []>} : vector<256x128xf32>, vector<128x128xf32>, vector<256x128xf32> -> vector<256x128xf32>
    %114 = arith.addf %108, %113 : vector<256x128xf32>
    %c0_110 = arith.constant 0 : index
    %c2_111 = arith.constant 2 : index
    %c0_112 = arith.constant 0 : index
    %115 = vector.load %arg12[%c0_110, %c2_111, %c0_112] : memref<18x18x128xf32, #tpu.memory_space<vmem>>, vector<16x16x128xf32>
    %116 = vector.shape_cast %115 : vector<16x16x128xf32> to vector<256x128xf32>
    %c2_113 = arith.constant 2 : index
    %c0_114 = arith.constant 0 : index
    %c0_115 = arith.constant 0 : index
    %117 = vector.load %arg8[%c2_113, %c0_114, %c0_115] : memref<9x128x128xf32, #tpu.memory_space<vmem>>, vector<1x128x128xf32>
    %118 = vector.shape_cast %117 : vector<1x128x128xf32> to vector<128x128xf32>
    %cst_116 = arith.constant dense<0.000000e+00> : vector<256x128xf32>
    %119 = tpu.matmul %116, %118, %cst_116 {dimension_numbers = #tpu.dot_dimension_numbers<[1], [0], [0], [1], [0, 0, 1, 1], [], []>} : vector<256x128xf32>, vector<128x128xf32>, vector<256x128xf32> -> vector<256x128xf32>
    %120 = arith.addf %114, %119 : vector<256x128xf32>
    %c1_117 = arith.constant 1 : index
    %c0_118 = arith.constant 0 : index
    %c0_119 = arith.constant 0 : index
    %121 = vector.load %arg12[%c1_117, %c0_118, %c0_119] : memref<18x18x128xf32, #tpu.memory_space<vmem>>, vector<16x16x128xf32>
    %122 = vector.shape_cast %121 : vector<16x16x128xf32> to vector<256x128xf32>
    %c3_120 = arith.constant 3 : index
    %c0_121 = arith.constant 0 : index
    %c0_122 = arith.constant 0 : index
    %123 = vector.load %arg8[%c3_120, %c0_121, %c0_122] : memref<9x128x128xf32, #tpu.memory_space<vmem>>, vector<1x128x128xf32>
    %124 = vector.shape_cast %123 : vector<1x128x128xf32> to vector<128x128xf32>
    %cst_123 = arith.constant dense<0.000000e+00> : vector<256x128xf32>
    %125 = tpu.matmul %122, %124, %cst_123 {dimension_numbers = #tpu.dot_dimension_numbers<[1], [0], [0], [1], [0, 0, 1, 1], [], []>} : vector<256x128xf32>, vector<128x128xf32>, vector<256x128xf32> -> vector<256x128xf32>
    %126 = arith.addf %120, %125 : vector<256x128xf32>
    %c1_124 = arith.constant 1 : index
    %c1_125 = arith.constant 1 : index
    %c0_126 = arith.constant 0 : index
    %127 = vector.load %arg12[%c1_124, %c1_125, %c0_126] : memref<18x18x128xf32, #tpu.memory_space<vmem>>, vector<16x16x128xf32>
    %128 = vector.shape_cast %127 : vector<16x16x128xf32> to vector<256x128xf32>
    %c4_127 = arith.constant 4 : index
    %c0_128 = arith.constant 0 : index
    %c0_129 = arith.constant 0 : index
    %129 = vector.load %arg8[%c4_127, %c0_128, %c0_129] : memref<9x128x128xf32, #tpu.memory_space<vmem>>, vector<1x128x128xf32>
    %130 = vector.shape_cast %129 : vector<1x128x128xf32> to vector<128x128xf32>
    %cst_130 = arith.constant dense<0.000000e+00> : vector<256x128xf32>
    %131 = tpu.matmul %128, %130, %cst_130 {dimension_numbers = #tpu.dot_dimension_numbers<[1], [0], [0], [1], [0, 0, 1, 1], [], []>} : vector<256x128xf32>, vector<128x128xf32>, vector<256x128xf32> -> vector<256x128xf32>
    %132 = arith.addf %126, %131 : vector<256x128xf32>
    %c1_131 = arith.constant 1 : index
    %c2_132 = arith.constant 2 : index
    %c0_133 = arith.constant 0 : index
    %133 = vector.load %arg12[%c1_131, %c2_132, %c0_133] : memref<18x18x128xf32, #tpu.memory_space<vmem>>, vector<16x16x128xf32>
    %134 = vector.shape_cast %133 : vector<16x16x128xf32> to vector<256x128xf32>
    %c5_134 = arith.constant 5 : index
    %c0_135 = arith.constant 0 : index
    %c0_136 = arith.constant 0 : index
    %135 = vector.load %arg8[%c5_134, %c0_135, %c0_136] : memref<9x128x128xf32, #tpu.memory_space<vmem>>, vector<1x128x128xf32>
    %136 = vector.shape_cast %135 : vector<1x128x128xf32> to vector<128x128xf32>
    %cst_137 = arith.constant dense<0.000000e+00> : vector<256x128xf32>
    %137 = tpu.matmul %134, %136, %cst_137 {dimension_numbers = #tpu.dot_dimension_numbers<[1], [0], [0], [1], [0, 0, 1, 1], [], []>} : vector<256x128xf32>, vector<128x128xf32>, vector<256x128xf32> -> vector<256x128xf32>
    %138 = arith.addf %132, %137 : vector<256x128xf32>
    %c2_138 = arith.constant 2 : index
    %c0_139 = arith.constant 0 : index
    %c0_140 = arith.constant 0 : index
    %139 = vector.load %arg12[%c2_138, %c0_139, %c0_140] : memref<18x18x128xf32, #tpu.memory_space<vmem>>, vector<16x16x128xf32>
    %140 = vector.shape_cast %139 : vector<16x16x128xf32> to vector<256x128xf32>
    %c6_141 = arith.constant 6 : index
    %c0_142 = arith.constant 0 : index
    %c0_143 = arith.constant 0 : index
    %141 = vector.load %arg8[%c6_141, %c0_142, %c0_143] : memref<9x128x128xf32, #tpu.memory_space<vmem>>, vector<1x128x128xf32>
    %142 = vector.shape_cast %141 : vector<1x128x128xf32> to vector<128x128xf32>
    %cst_144 = arith.constant dense<0.000000e+00> : vector<256x128xf32>
    %143 = tpu.matmul %140, %142, %cst_144 {dimension_numbers = #tpu.dot_dimension_numbers<[1], [0], [0], [1], [0, 0, 1, 1], [], []>} : vector<256x128xf32>, vector<128x128xf32>, vector<256x128xf32> -> vector<256x128xf32>
    %144 = arith.addf %138, %143 : vector<256x128xf32>
    %c2_145 = arith.constant 2 : index
    %c1_146 = arith.constant 1 : index
    %c0_147 = arith.constant 0 : index
    %145 = vector.load %arg12[%c2_145, %c1_146, %c0_147] : memref<18x18x128xf32, #tpu.memory_space<vmem>>, vector<16x16x128xf32>
    %146 = vector.shape_cast %145 : vector<16x16x128xf32> to vector<256x128xf32>
    %c7_148 = arith.constant 7 : index
    %c0_149 = arith.constant 0 : index
    %c0_150 = arith.constant 0 : index
    %147 = vector.load %arg8[%c7_148, %c0_149, %c0_150] : memref<9x128x128xf32, #tpu.memory_space<vmem>>, vector<1x128x128xf32>
    %148 = vector.shape_cast %147 : vector<1x128x128xf32> to vector<128x128xf32>
    %cst_151 = arith.constant dense<0.000000e+00> : vector<256x128xf32>
    %149 = tpu.matmul %146, %148, %cst_151 {dimension_numbers = #tpu.dot_dimension_numbers<[1], [0], [0], [1], [0, 0, 1, 1], [], []>} : vector<256x128xf32>, vector<128x128xf32>, vector<256x128xf32> -> vector<256x128xf32>
    %150 = arith.addf %144, %149 : vector<256x128xf32>
    %c2_152 = arith.constant 2 : index
    %c2_153 = arith.constant 2 : index
    %c0_154 = arith.constant 0 : index
    %151 = vector.load %arg12[%c2_152, %c2_153, %c0_154] : memref<18x18x128xf32, #tpu.memory_space<vmem>>, vector<16x16x128xf32>
    %152 = vector.shape_cast %151 : vector<16x16x128xf32> to vector<256x128xf32>
    %c8_155 = arith.constant 8 : index
    %c0_156 = arith.constant 0 : index
    %c0_157 = arith.constant 0 : index
    %153 = vector.load %arg8[%c8_155, %c0_156, %c0_157] : memref<9x128x128xf32, #tpu.memory_space<vmem>>, vector<1x128x128xf32>
    %154 = vector.shape_cast %153 : vector<1x128x128xf32> to vector<128x128xf32>
    %cst_158 = arith.constant dense<0.000000e+00> : vector<256x128xf32>
    %155 = tpu.matmul %152, %154, %cst_158 {dimension_numbers = #tpu.dot_dimension_numbers<[1], [0], [0], [1], [0, 0, 1, 1], [], []>} : vector<256x128xf32>, vector<128x128xf32>, vector<256x128xf32> -> vector<256x128xf32>
    %156 = arith.addf %150, %155 : vector<256x128xf32>
    %c0_159 = arith.constant 0 : index
    %157 = arith.index_cast %1 : i32 to index
    %c0_160 = arith.constant 0 : index
    %c0_161 = arith.constant 0 : index
    %158 = vector.load %arg2[%c0_159, %157, %c0_160, %c0_161] : memref<1x16x16x128xf32, #tpu.memory_space<vmem>>, vector<1x16x16x128xf32>
    %159 = vector.shape_cast %158 : vector<1x16x16x128xf32> to vector<16x16x128xf32>
    %160 = vector.shape_cast %159 : vector<16x16x128xf32> to vector<256x128xf32>
    %161 = arith.addf %160, %156 : vector<256x128xf32>
    %c0_162 = arith.constant 0 : index
    %c0_163 = arith.constant 0 : index
    %162 = vector.load %arg9[%c0_162, %c0_163] : memref<1x128xf32, #tpu.memory_space<vmem>>, vector<1x128xf32>
    %163 = vector.broadcast %162 : vector<1x128xf32> to vector<256x128xf32>
    %164 = arith.addf %161, %163 : vector<256x128xf32>
    %165 = vector.shape_cast %164 : vector<256x128xf32> to vector<16x16x128xf32>
    %c0_164 = arith.constant 0 : index
    %c0_165 = arith.constant 0 : index
    %c0_166 = arith.constant 0 : index
    %c0_167 = arith.constant 0 : index
    %166 = vector.load %arg10[%c0_164, %c0_165, %c0_166, %c0_167] : memref<1x16x16x128xf32, #tpu.memory_space<vmem>>, vector<1x16x16x128xf32>
    %167 = vector.shape_cast %166 : vector<1x16x16x128xf32> to vector<16x16x128xf32>
    %168 = vector.shape_cast %165 : vector<16x16x128xf32> to vector<1x16x16x128xf32>
    tpu.vector_store %arg10[%c0_164, %c0_165, %c0_166, %c0_167], %168 {strides = array<i32>} : memref<1x16x16x128xf32, #tpu.memory_space<vmem>>, vector<1x16x16x128xf32>,
    return
  }
  func.func @transform_0(%arg0: i32, %arg1: i32) -> (i32, i32, i32, i32) {
    %c0_i32 = arith.constant 0 : i32
    %c0_i32_0 = arith.constant 0 : i32
    %c0_i32_1 = arith.constant 0 : i32
    %c0_i32_2 = arith.constant 0 : i32
    return %arg0, %c0_i32, %c0_i32_0, %c0_i32_1 : i32, i32, i32, i32
  }
  func.func @transform_1(%arg0: i32, %arg1: i32) -> (i32, i32) {
    %c0_i32 = arith.constant 0 : i32
    %c0_i32_0 = arith.constant 0 : i32
    %c0_i32_1 = arith.constant 0 : i32
    return %c0_i32, %c0_i32_0 : i32, i32
  }
  func.func @transform_2(%arg0: i32, %arg1: i32) -> (i32, i32) {
    %c0_i32 = arith.constant 0 : i32
    %c0_i32_0 = arith.constant 0 : i32
    %c0_i32_1 = arith.constant 0 : i32
    return %c0_i32, %c0_i32_0 : i32, i32
  }
  func.func @transform_3(%arg0: i32, %arg1: i32) -> (i32, i32, i32) {
    %c0_i32 = arith.constant 0 : i32
    %c0_i32_0 = arith.constant 0 : i32
    %c0_i32_1 = arith.constant 0 : i32
    %c0_i32_2 = arith.constant 0 : i32
    return %c0_i32, %c0_i32_0, %c0_i32_1 : i32, i32, i32
  }
  func.func @transform_4(%arg0: i32, %arg1: i32) -> (i32, i32) {
    %c0_i32 = arith.constant 0 : i32
    %c0_i32_0 = arith.constant 0 : i32
    %c0_i32_1 = arith.constant 0 : i32
    return %c0_i32, %c0_i32_0 : i32, i32
  }
  func.func @transform_5(%arg0: i32, %arg1: i32) -> (i32, i32) {
    %c0_i32 = arith.constant 0 : i32
    %c0_i32_0 = arith.constant 0 : i32
    %c0_i32_1 = arith.constant 0 : i32
    return %c0_i32, %c0_i32_0 : i32, i32
  }
  func.func @transform_6(%arg0: i32, %arg1: i32) -> (i32, i32, i32) {
    %c0_i32 = arith.constant 0 : i32
    %c0_i32_0 = arith.constant 0 : i32
    %c0_i32_1 = arith.constant 0 : i32
    %c0_i32_2 = arith.constant 0 : i32
    return %c0_i32, %c0_i32_0, %c0_i32_1 : i32, i32, i32
  }
  func.func @transform_7(%arg0: i32, %arg1: i32) -> (i32, i32) {
    %c0_i32 = arith.constant 0 : i32
    %c0_i32_0 = arith.constant 0 : i32
    %c0_i32_1 = arith.constant 0 : i32
    return %c0_i32, %c0_i32_0 : i32, i32
  }
  func.func @transform_8(%arg0: i32, %arg1: i32) -> (i32, i32, i32, i32) {
    %c0_i32 = arith.constant 0 : i32
    %c0_i32_0 = arith.constant 0 : i32
    %c0_i32_1 = arith.constant 0 : i32
    return %arg0, %arg1, %c0_i32, %c0_i32_0 : i32, i32, i32, i32
  }
}

</mosaic_0001>

<llo_original>
// kernel: tpu_custom_call.1
$region0: #{tpu_custom_call.1}
  #allocation0 [shape = 'u32[]', space=smem, size = 0x4, offset = 0x4, fixed_abs, tag = 'smem constant byte address 0x4 - core index']
  #allocation1 [shape = 'u32[144,128]{1,0:T(1,128)}', space=vmem, size = 0x12000, scoped, tag = 'internal scratch']
  #allocation2 [shape = 'f32[20,18,128]{2,1,0:T(8,128)}', space=vmem, size = 0x3c000, scoped, tag = 'scratch operand']
  #allocation3 [shape = 'f32[18,18,128]{2,1,0:T(8,128)}', space=vmem, size = 0x36000, scoped, tag = 'scratch operand']
  %s0 = inlined_call_operand.hbm [shape: f32[2,16,16,128], index: 0, kind: input, shape index: {}]
  %s1 = inlined_call_operand.vmem [shape: f32[1,128], index: 1, kind: input, shape index: {}]
  %s2 = inlined_call_operand.vmem [shape: f32[1,128], index: 2, kind: input, shape index: {}]
  %s3 = inlined_call_operand.hbm [shape: f32[9,128,128], index: 3, kind: input, shape index: {}]
  %s4 = inlined_call_operand.vmem [shape: f32[1,128], index: 4, kind: input, shape index: {}]
  %s5 = inlined_call_operand.vmem [shape: f32[1,128], index: 5, kind: input, shape index: {}]
  %s6 = inlined_call_operand.hbm [shape: f32[9,128,128], index: 6, kind: input, shape index: {}]
  %s7 = inlined_call_operand.vmem [shape: f32[1,128], index: 7, kind: input, shape index: {}]
  %s8 = inlined_call_operand.hbm [shape: f32[2,16,16,128], index: 8, kind: output, shape index: {}]
  %s9 = sld [smem:[#allocation0]]
  $region97: #{tpu_custom_call.1} parent=0
    _
  %s11 = ssub.s32 1, %s9
  %s12 = scalar_select 0, %s11, %s9
  $region1: #{tpu_custom_call.1} parent=0
    #allocation4 [shape = 'u8[262144]{0}', space=vmem, size = 0x40000, scoped, tag = 'input window, operand 0']
    #allocation5 [shape = 's32[2]{0}', space=sflag, size = 0x8, scoped, tag = 'scoped memory for tpu_custom_call.1']
    #allocation6 [shape = 's32[2]{0}', space=sflag, size = 0x8, scoped, tag = 'scoped memory for tpu_custom_call.1']
    #allocation7 [shape = 'u8[589824]{0}', space=vmem, size = 0x90000, scoped, tag = 'input window, operand 3, single buffered']
    #allocation8 [shape = 's32[1]{0}', space=sflag, size = 0x4, scoped, tag = 'scoped memory for tpu_custom_call.1']
    #allocation9 [shape = 'u8[589824]{0}', space=vmem, size = 0x90000, scoped, tag = 'input window, operand 6, single buffered']
    #allocation10 [shape = 'u8[262144]{0}', space=vmem, size = 0x40000, scoped, tag = 'output window, operand 0']
    %13 = vsyncpa [#allocation5], 0
    %s14 = scalar_lea.sflag [#allocation5], 1
    %15 = vsyncpa %s14, 0
    %16 = vsyncpa [#allocation8], 0
    %17 = vsyncpa [#allocation6], 0
    %s18 = scalar_lea.sflag [#allocation6], 1
    %19 = vsyncpa %s18, 0
    loop: start=0, step=1, limit=4
    $region2: #{tpu_custom_call.1} parent=1 // loop_pre_header
      _
    $region3: #{tpu_custom_call.1} parent=1 // loop_header
      %s21 = sphi 0, %s25
      %p22 = scmp.ge.s32.totalorder %s21, 4
      %s28 = sphi 0, %s40
      %s29 = sphi 0, %s36
      %s30 = sphi 0, %s28
      %s31 = sphi 0, %s29
      %s32 = sphi 0, %s30
      %s33 = sphi 0, %s31
      %s43 = sphi 0, %s45
      %s46 = sphi 0, %s43
      %s47 = sphi 0, %s46
      %s63 = sphi 0, %s47
      %s67 = sphi 0, %s67
      %s69 = sphi 0, %s67
      %s70 = sphi 0, %s69
      %s84 = sphi 0, %s70
      %s88 = sphi 0, %s88
      %s90 = sphi 0, %s88
      %s91 = sphi 0, %s90
      %s105 = sphi 0, %s91
      %s109 = sphi 0, %s109
      %s111 = sphi 0, %s109
      %s112 = sphi 0, %s111
      %s126 = sphi 0, %s112
      %s130 = sphi 0, %s130
      %s132 = sphi 0, %s130
      %s133 = sphi 0, %s132
      %s147 = sphi 0, %s133
      %s151 = sphi 0, %s151
      %s153 = sphi 0, %s151
      %s154 = sphi 0, %s153
      %s168 = sphi 0, %s154
      %s172 = sphi 0, %s172
      %s174 = sphi 0, %s172
      %s175 = sphi 0, %s174
      %s189 = sphi 0, %s175
      %s193 = sphi 0, %s193
      %s195 = sphi 0, %s193
      %s196 = sphi 0, %s195
      %s210 = sphi 0, %s196
      %s218 = sphi 0, %s220
      %s221 = sphi 0, %s218
      %s222 = sphi 0, %s221
      %s238 = sphi 0, %s222
    $region4: #{tpu_custom_call.1} parent=1 // loop_header_branch
      %24 = sbr.rel (%p22) target = $region8
    $region5: #{tpu_custom_call.1} parent=1 // loop_body
      %s26 = ssub.s32 %s21, 1
      %s27 = ssub.s32 %s21, 2
      %s34 = sadd.s32 1, %s29
      %p35 = scmp.ge.s32.totalorder %s34, 1
      %s36 = scalar_select %p35, 0, %s34
      %s37 = sadd.s32 1, %s28
      %s38 = scalar_select %p35, %s37, %s28
      %p39 = scmp.ge.s32.totalorder %s38, 2
      %s40 = scalar_select %p39, 0, %s38
      %s41 = ssub.s32 %s28, %s40
      %p42 = scmp.eq.s32.totalorder %s41, 0
      %s44 = sadd.s32 %s43, 1
      %s45 = scalar_select %p42, %s43, %s44
      %p48 = pneg %p42
      %p49 = scmp.eq.s32.totalorder %s21, 1
      %p50 = por %p48, %p49
      %p51 = scmp.ne.s32.totalorder %s43, %s46
      %p52 = scmp.eq.s32.totalorder %s21, 0
      %p53 = por %p51, %p52
      %p54 = scmp.ne.s32.totalorder %s43, %s46
      %p55 = scmp.eq.s32.totalorder %s26, 1
      %p56 = por %p54, %p55
      %p57 = scmp.ne.s32.totalorder %s46, %s47
      %p58 = scmp.eq.s32.totalorder %s26, 0
      %p59 = por %p57, %p58
      %p60 = scmp.ne.s32.totalorder %s46, %s47
      %p61 = scmp.eq.s32.totalorder %s27, 1
      %p62 = por %p60, %p61
      %p64 = scmp.ne.s32.totalorder %s47, %s63
      %p65 = scmp.eq.s32.totalorder %s27, 0
      %p66 = por %p64, %p65
      %s68 = sadd.s32 %s67, 1
      %p71 = scmp.eq.s32.totalorder %s21, 1
      %p72 = scmp.ne.s32.totalorder %s67, %s69
      %p73 = scmp.eq.s32.totalorder %s21, 0
      %p74 = por %p72, %p73
      %p75 = scmp.ne.s32.totalorder %s67, %s69
      %p76 = scmp.eq.s32.totalorder %s26, 1
      %p77 = por %p75, %p76
      %p78 = scmp.ne.s32.totalorder %s69, %s70
      %p79 = scmp.eq.s32.totalorder %s26, 0
      %p80 = por %p78, %p79
      %p81 = scmp.ne.s32.totalorder %s69, %s70
      %p82 = scmp.eq.s32.totalorder %s27, 1
      %p83 = por %p81, %p82
      %p85 = scmp.ne.s32.totalorder %s70, %s84
      %p86 = scmp.eq.s32.totalorder %s27, 0
      %p87 = por %p85, %p86
      %s89 = sadd.s32 %s88, 1
      %p92 = scmp.eq.s32.totalorder %s21, 1
      %p93 = scmp.ne.s32.totalorder %s88, %s90
      %p94 = scmp.eq.s32.totalorder %s21, 0
      %p95 = por %p93, %p94
      %p96 = scmp.ne.s32.totalorder %s88, %s90
      %p97 = scmp.eq.s32.totalorder %s26, 1
      %p98 = por %p96, %p97
      %p99 = scmp.ne.s32.totalorder %s90, %s91
      %p100 = scmp.eq.s32.totalorder %s26, 0
      %p101 = por %p99, %p100
      %p102 = scmp.ne.s32.totalorder %s90, %s91
      %p103 = scmp.eq.s32.totalorder %s27, 1
      %p104 = por %p102, %p103
      %p106 = scmp.ne.s32.totalorder %s91, %s105
      %p107 = scmp.eq.s32.totalorder %s27, 0
      %p108 = por %p106, %p107
      %s110 = sadd.s32 %s109, 1
      %p113 = scmp.eq.s32.totalorder %s21, 1
      %p114 = scmp.ne.s32.totalorder %s109, %s111
      %p115 = scmp.eq.s32.totalorder %s21, 0
      %p116 = por %p114, %p115
      %p117 = scmp.ne.s32.totalorder %s109, %s111
      %p118 = scmp.eq.s32.totalorder %s26, 1
      %p119 = por %p117, %p118
      %p120 = scmp.ne.s32.totalorder %s111, %s112
      %p121 = scmp.eq.s32.totalorder %s26, 0
      %p122 = por %p120, %p121
      %p123 = scmp.ne.s32.totalorder %s111, %s112
      %p124 = scmp.eq.s32.totalorder %s27, 1
      %p125 = por %p123, %p124
      %p127 = scmp.ne.s32.totalorder %s112, %s126
      %p128 = scmp.eq.s32.totalorder %s27, 0
      %p129 = por %p127, %p128
      %s131 = sadd.s32 %s130, 1
      %p134 = scmp.eq.s32.totalorder %s21, 1
      %p135 = scmp.ne.s32.totalorder %s130, %s132
      %p136 = scmp.eq.s32.totalorder %s21, 0
      %p137 = por %p135, %p136
      %p138 = scmp.ne.s32.totalorder %s130, %s132
      %p139 = scmp.eq.s32.totalorder %s26, 1
      %p140 = por %p138, %p139
      %p141 = scmp.ne.s32.totalorder %s132, %s133
      %p142 = scmp.eq.s32.totalorder %s26, 0
      %p143 = por %p141, %p142
      %p144 = scmp.ne.s32.totalorder %s132, %s133
      %p145 = scmp.eq.s32.totalorder %s27, 1
      %p146 = por %p144, %p145
      %p148 = scmp.ne.s32.totalorder %s133, %s147
      %p149 = scmp.eq.s32.totalorder %s27, 0
      %p150 = por %p148, %p149
      %s152 = sadd.s32 %s151, 1
      %p155 = scmp.eq.s32.totalorder %s21, 1
      %p156 = scmp.ne.s32.totalorder %s151, %s153
      %p157 = scmp.eq.s32.totalorder %s21, 0
      %p158 = por %p156, %p157
      %p159 = scmp.ne.s32.totalorder %s151, %s153
      %p160 = scmp.eq.s32.totalorder %s26, 1
      %p161 = por %p159, %p160
      %p162 = scmp.ne.s32.totalorder %s153, %s154
      %p163 = scmp.eq.s32.totalorder %s26, 0
      %p164 = por %p162, %p163
      %p165 = scmp.ne.s32.totalorder %s153, %s154
      %p166 = scmp.eq.s32.totalorder %s27, 1
      %p167 = por %p165, %p166
      %p169 = scmp.ne.s32.totalorder %s154, %s168
      %p170 = scmp.eq.s32.totalorder %s27, 0
      %p171 = por %p169, %p170
      %s173 = sadd.s32 %s172, 1
      %p176 = scmp.eq.s32.totalorder %s21, 1
      %p177 = scmp.ne.s32.totalorder %s172, %s174
      %p178 = scmp.eq.s32.totalorder %s21, 0
      %p179 = por %p177, %p178
      %p180 = scmp.ne.s32.totalorder %s172, %s174
      %p181 = scmp.eq.s32.totalorder %s26, 1
      %p182 = por %p180, %p181
      %p183 = scmp.ne.s32.totalorder %s174, %s175
      %p184 = scmp.eq.s32.totalorder %s26, 0
      %p185 = por %p183, %p184
      %p186 = scmp.ne.s32.totalorder %s174, %s175
      %p187 = scmp.eq.s32.totalorder %s27, 1
      %p188 = por %p186, %p187
      %p190 = scmp.ne.s32.totalorder %s175, %s189
      %p191 = scmp.eq.s32.totalorder %s27, 0
      %p192 = por %p190, %p191
      %s194 = sadd.s32 %s193, 1
      %p197 = scmp.eq.s32.totalorder %s21, 1
      %p198 = scmp.ne.s32.totalorder %s193, %s195
      %p199 = scmp.eq.s32.totalorder %s21, 0
      %p200 = por %p198, %p199
      %p201 = scmp.ne.s32.totalorder %s193, %s195
      %p202 = scmp.eq.s32.totalorder %s26, 1
      %p203 = por %p201, %p202
      %p204 = scmp.ne.s32.totalorder %s195, %s196
      %p205 = scmp.eq.s32.totalorder %s26, 0
      %p206 = por %p204, %p205
      %p207 = scmp.ne.s32.totalorder %s195, %s196
      %p208 = scmp.eq.s32.totalorder %s27, 1
      %p209 = por %p207, %p208
      %p211 = scmp.ne.s32.totalorder %s196, %s210
      %p212 = scmp.eq.s32.totalorder %s27, 0
      %p213 = por %p211, %p212
      %s214 = ssub.s32 %s28, %s40
      %s215 = ssub.s32 %s29, %s36
      %s216 = sor.u32 %s214, %s215
      %p217 = scmp.eq.s32.totalorder %s216, 0
      %s219 = sadd.s32 %s218, 1
      %s220 = scalar_select %p217, %s218, %s219
      %p223 = pneg %p217
      %p224 = scmp.eq.s32.totalorder %s21, 1
      %p225 = por %p223, %p224
      %p226 = scmp.ne.s32.totalorder %s218, %s221
      %p227 = scmp.eq.s32.totalorder %s21, 0
      %p228 = por %p226, %p227
      %p229 = scmp.ne.s32.totalorder %s218, %s221
      %p230 = scmp.eq.s32.totalorder %s26, 1
      %p231 = por %p229, %p230
      %p232 = scmp.ne.s32.totalorder %s221, %s222
      %p233 = scmp.eq.s32.totalorder %s26, 0
      %p234 = por %p232, %p233
      %p235 = scmp.ne.s32.totalorder %s221, %s222
      %p236 = scmp.eq.s32.totalorder %s27, 1
      %p237 = por %p235, %p236
      %p239 = scmp.ne.s32.totalorder %s222, %s238
      %p240 = scmp.eq.s32.totalorder %s27, 0
      %p241 = por %p239, %p240
      %p242 = scmp.le.s32.totalorder 1, %s21
      %p243 = scmp.lt.s32.totalorder %s21, 3
      %p244 = pnand %p242, %p243
      %p245 = pneg %p244
      // Predicated region
      $region9: #{tpu_custom_call.1} parent=5 // pred_check
        _
      $region10: #{tpu_custom_call.1} parent=5 // pred_check_branch
        %247 = sbr.rel (%p244) target = $region12
      $region11: #{tpu_custom_call.1} parent=5 // pred_region
        %s248 = ssub.s32 %s21, 1
        // Predicated region
        $region13: #{tpu_custom_call.1} parent=11 // pred_check
          %p249 = pneg %p80
        $region14: #{tpu_custom_call.1} parent=11 // pred_check_branch
          %251 = sbr.rel (%p249) target = $region16
        $region15: #{tpu_custom_call.1} parent=11 // pred_region
          _
        $region16: #{tpu_custom_call.1} parent=11 // pred_fallthru
          _
        // Predicated region
        $region17: #{tpu_custom_call.1} parent=11 // pred_check
          %p252 = pneg %p101
        $region18: #{tpu_custom_call.1} parent=11 // pred_check_branch
          %254 = sbr.rel (%p252) target = $region20
        $region19: #{tpu_custom_call.1} parent=11 // pred_region
          _
        $region20: #{tpu_custom_call.1} parent=11 // pred_fallthru
          _
        // Predicated region
        $region21: #{tpu_custom_call.1} parent=11 // pred_check
          %p255 = pneg %p122
        $region22: #{tpu_custom_call.1} parent=11 // pred_check_branch
          %257 = sbr.rel (%p255) target = $region24
        $region23: #{tpu_custom_call.1} parent=11 // pred_region
          %s259 = ssub.s32 18432, 18432
          %260 = vsyncadd [#allocation8], %s259
          %s261 = sshll.u32 [#allocation7], 4
          %s262 = int_to_ptr.vmem [resolvable:$true] %s261
          %267 = dma.hbm_to_vmem [thread:$0]  %s3, 18432, %s262, [#allocation8], 128, 128, 8
        $region24: #{tpu_custom_call.1} parent=11 // pred_fallthru
          _
        // Predicated region
        $region25: #{tpu_custom_call.1} parent=11 // pred_check
          %p268 = pneg %p143
        $region26: #{tpu_custom_call.1} parent=11 // pred_check_branch
          %270 = sbr.rel (%p268) target = $region28
        $region27: #{tpu_custom_call.1} parent=11 // pred_region
          _
        $region28: #{tpu_custom_call.1} parent=11 // pred_fallthru
          _
        // Predicated region
        $region29: #{tpu_custom_call.1} parent=11 // pred_check
          %p271 = pneg %p164
        $region30: #{tpu_custom_call.1} parent=11 // pred_check_branch
          %273 = sbr.rel (%p271) target = $region32
        $region31: #{tpu_custom_call.1} parent=11 // pred_region
          _
        $region32: #{tpu_custom_call.1} parent=11 // pred_fallthru
          _
        // Predicated region
        $region33: #{tpu_custom_call.1} parent=11 // pred_check
          %p274 = pneg %p185
        $region34: #{tpu_custom_call.1} parent=11 // pred_check_branch
          %276 = sbr.rel (%p274) target = $region36
        $region35: #{tpu_custom_call.1} parent=11 // pred_region
          %s278 = ssub.s32 18432, 18432
          %279 = vsyncadd [#allocation8], %s278
          %s280 = sshll.u32 [#allocation9], 4
          %s281 = int_to_ptr.vmem [resolvable:$true] %s280
          %286 = dma.hbm_to_vmem [thread:$0]  %s6, 18432, %s281, [#allocation8], 128, 128, 8
        $region36: #{tpu_custom_call.1} parent=11 // pred_fallthru
          _
        // Predicated region
        $region37: #{tpu_custom_call.1} parent=11 // pred_check
          %p287 = pneg %p206
        $region38: #{tpu_custom_call.1} parent=11 // pred_check_branch
          %289 = sbr.rel (%p287) target = $region40
        $region39: #{tpu_custom_call.1} parent=11 // pred_region
          _
        $region40: #{tpu_custom_call.1} parent=11 // pred_fallthru
          _
      $region12: #{tpu_custom_call.1} parent=5 // pred_fallthru
        _
      %p290 = scmp.lt.s32.totalorder %s21, 2
      // Predicated region
      $region41: #{tpu_custom_call.1} parent=5 // pred_check
        %p291 = pneg %p290
      $region42: #{tpu_custom_call.1} parent=5 // pred_check_branch
        %293 = sbr.rel (%p291) target = $region44
      $region43: #{tpu_custom_call.1} parent=5 // pred_region
        // Predicated region
        $region45: #{tpu_custom_call.1} parent=43 // pred_check
          %p294 = pneg %p53
        $region46: #{tpu_custom_call.1} parent=43 // pred_check_branch
          %296 = sbr.rel (%p294) target = $region48
        $region47: #{tpu_custom_call.1} parent=43 // pred_region
          %s297 = sand.u32 %s43, 1
          %s298 = scalar_lea.sflag [#allocation5], %s297
          %s299 = sand.u32 %s43, 1
          %s300 = smul.addr %s299, 256
          %s301 = scalar_lea.vmem [#allocation4], %s300
          %s303 = ssub.s32 4096, 4096
          %304 = vsyncadd %s298, %s303
          %s305 = smul.addr %s28, 32
          %s306 = smul.addr %s305, 128
          %s307 = scalar_lea.hbm %s0, %s306
          %s308 = sshll.u32 %s301, 4
          %s309 = int_to_ptr.vmem [resolvable:$true] %s308
          %314 = dma.hbm_to_vmem [thread:$0]  %s307, 4096, %s309, %s298, 128, 128, 8
        $region48: #{tpu_custom_call.1} parent=43 // pred_fallthru
          _
      $region44: #{tpu_custom_call.1} parent=5 // pred_fallthru
        _
      %p315 = scmp.le.s32.totalorder 1, %s21
      %p316 = scmp.lt.s32.totalorder %s21, 3
      %p317 = pnand %p315, %p316
      %p318 = pneg %p317
      // Predicated region
      $region49: #{tpu_custom_call.1} parent=5 // pred_check
        _
      $region50: #{tpu_custom_call.1} parent=5 // pred_check_branch
        %320 = sbr.rel (%p317) target = $region52
      $region51: #{tpu_custom_call.1} parent=5 // pred_region
        %s321 = ssub.s32 %s21, 1
        %s322 = sand.u32 %s46, 1
        %s323 = scalar_lea.sflag [#allocation5], %s322
        %s324 = sand.u32 %s46, 1
        %s325 = smul.addr %s324, 256
        %s326 = scalar_lea.vmem [#allocation4], %s325
        // Predicated region
        $region53: #{tpu_custom_call.1} parent=51 // pred_check
          %p327 = pneg %p59
        $region54: #{tpu_custom_call.1} parent=51 // pred_check_branch
          %329 = sbr.rel (%p327) target = $region56
        $region55: #{tpu_custom_call.1} parent=51 // pred_region
          %330 = dma.done %s323, 4096
        $region56: #{tpu_custom_call.1} parent=51 // pred_fallthru
          _
        // Predicated region
        $region57: #{tpu_custom_call.1} parent=51 // pred_check
          %p331 = pneg %p122
        $region58: #{tpu_custom_call.1} parent=51 // pred_check_branch
          %333 = sbr.rel (%p331) target = $region60
        $region59: #{tpu_custom_call.1} parent=51 // pred_region
          %334 = dma.done [#allocation8], 18432
        $region60: #{tpu_custom_call.1} parent=51 // pred_fallthru
          _
        // Predicated region
        $region61: #{tpu_custom_call.1} parent=51 // pred_check
          %p335 = pneg %p185
        $region62: #{tpu_custom_call.1} parent=51 // pred_check_branch
          %337 = sbr.rel (%p335) target = $region64
        $region63: #{tpu_custom_call.1} parent=51 // pred_region
          %338 = dma.done [#allocation8], 18432
        $region64: #{tpu_custom_call.1} parent=51 // pred_fallthru
          _
        %s339 = sand.u32 %s46, 1
        %s340 = scalar_lea.sflag [#allocation5], %s339
        %s341 = sand.u32 %s46, 1
        %s342 = smul.addr %s341, 256
        %s343 = scalar_lea.vmem [#allocation4], %s342
        %p344 = pneg %p59
        %p345 = pneg %p56
        %p346 = pneg %p80
        %p347 = pneg %p77
        %p348 = pneg %p101
        %p349 = pneg %p98
        %p350 = pneg %p122
        %p351 = pneg %p119
        %p352 = pneg %p143
        %p353 = pneg %p140
        %p354 = pneg %p164
        %p355 = pneg %p161
        %p356 = pneg %p185
        %p357 = pneg %p182
        %p358 = pneg %p206
        %p359 = pneg %p203
        %p360 = pneg %p234
        %p361 = pneg %p231
        %s362 = sand.u32 %s221, 1
        %s363 = scalar_lea.sflag [#allocation6], %s362
        %s364 = sand.u32 %s221, 1
        %s365 = smul.addr %s364, 256
        %s366 = scalar_lea.vmem [#allocation10], %s365
        %s367 = smul.u32 16, %s31
        %s368 = smul.u32 %s31, 16
        %369 = vst [vmem:[#allocation2] sm:$0x1] 0.0
        %370 = vst [vmem:[#allocation2 + $0x18] sm:$0x1] 0.0
        %371 = vst [vmem:[#allocation2 + $0x30] sm:$0x1] 0.0
        %372 = vst [vmem:[#allocation2 + $0x48] sm:$0x1] 0.0
        %373 = vst [vmem:[#allocation2 + $0x60] sm:$0x1] 0.0
        %374 = vst [vmem:[#allocation2 + $0x78] sm:$0x1] 0.0
        %375 = vst [vmem:[#allocation2 + $0x90] sm:$0x1] 0.0
        %376 = vst [vmem:[#allocation2 + $0xa8] sm:$0x1] 0.0
        %377 = vst [vmem:[#allocation2 + $0xc0] sm:$0x1] 0.0
        %378 = vst [vmem:[#allocation2 + $0xd8] sm:$0x1] 0.0
        %379 = vst [vmem:[#allocation2 + $0xf0] sm:$0x1] 0.0
        %380 = vst [vmem:[#allocation2 + $0x108] sm:$0x1] 0.0
        %381 = vst [vmem:[#allocation2 + $0x120] sm:$0x1] 0.0
        %382 = vst [vmem:[#allocation2 + $0x138] sm:$0x1] 0.0
        %383 = vst [vmem:[#allocation2 + $0x150] sm:$0x1] 0.0
        %384 = vst [vmem:[#allocation2 + $0x168] sm:$0x1] 0.0
        %385 = vst [vmem:[#allocation2 + $0x180] sm:$0x1] 0.0
        %386 = vst [vmem:[#allocation2 + $0x198] sm:$0x1] 0.0
        %387 = vst [vmem:[#allocation2 + $0x1b0] sm:$0x1] 0.0
        %388 = vst [vmem:[#allocation2 + $0x1c8] sm:$0x1] 0.0
        %389 = vst [vmem:[#allocation2 + $0x11] sm:$0x1] 0.0
        %390 = vst [vmem:[#allocation2 + $0x29] sm:$0x1] 0.0
        %391 = vst [vmem:[#allocation2 + $0x41] sm:$0x1] 0.0
        %392 = vst [vmem:[#allocation2 + $0x59] sm:$0x1] 0.0
        %393 = vst [vmem:[#allocation2 + $0x71] sm:$0x1] 0.0
        %394 = vst [vmem:[#allocation2 + $0x89] sm:$0x1] 0.0
        %395 = vst [vmem:[#allocation2 + $0xa1] sm:$0x1] 0.0
        %396 = vst [vmem:[#allocation2 + $0xb9] sm:$0x1] 0.0
        %397 = vst [vmem:[#allocation2 + $0xd1] sm:$0x1] 0.0
        %398 = vst [vmem:[#allocation2 + $0xe9] sm:$0x1] 0.0
        %399 = vst [vmem:[#allocation2 + $0x101] sm:$0x1] 0.0
        %400 = vst [vmem:[#allocation2 + $0x119] sm:$0x1] 0.0
        %401 = vst [vmem:[#allocation2 + $0x131] sm:$0x1] 0.0
        %402 = vst [vmem:[#allocation2 + $0x149] sm:$0x1] 0.0
        %403 = vst [vmem:[#allocation2 + $0x161] sm:$0x1] 0.0
        %404 = vst [vmem:[#allocation2 + $0x179] sm:$0x1] 0.0
        %405 = vst [vmem:[#allocation2 + $0x191] sm:$0x1] 0.0
        %406 = vst [vmem:[#allocation2 + $0x1a9] sm:$0x1] 0.0
        %407 = vst [vmem:[#allocation2 + $0x1c1] sm:$0x1] 0.0
        %408 = vst [vmem:[#allocation2 + $0x1d9] sm:$0x1] 0.0
        %s409 = smul.u32 %s368, 16
        %s410 = scalar_lea.vmem %s326, %s409 [#allocation4]
        %v411 = vld [vmem:[%s410] sm:$0xff]
        %v412 = vld [vmem:[%s410 + $0x8] sm:$0xff]
        %v413 = vld [vmem:[%s410 + $0x10] sm:$0xff]
        %v414 = vld [vmem:[%s410 + $0x18] sm:$0xff]
        %v415 = vld [vmem:[%s410 + $0x20] sm:$0xff]
        %v416 = vld [vmem:[%s410 + $0x28] sm:$0xff]
        %v417 = vld [vmem:[%s410 + $0x30] sm:$0xff]
        %v418 = vld [vmem:[%s410 + $0x38] sm:$0xff]
        %v419 = vld [vmem:[%s410 + $0x40] sm:$0xff]
        %v420 = vld [vmem:[%s410 + $0x48] sm:$0xff]
        %v421 = vld [vmem:[%s410 + $0x50] sm:$0xff]
        %v422 = vld [vmem:[%s410 + $0x58] sm:$0xff]
        %v423 = vld [vmem:[%s410 + $0x60] sm:$0xff]
        %v424 = vld [vmem:[%s410 + $0x68] sm:$0xff]
        %v425 = vld [vmem:[%s410 + $0x70] sm:$0xff]
        %v426 = vld [vmem:[%s410 + $0x78] sm:$0xff]
        %v427 = vld [vmem:[%s410 + $0x80] sm:$0xff]
        %v428 = vld [vmem:[%s410 + $0x88] sm:$0xff]
        %v429 = vld [vmem:[%s410 + $0x90] sm:$0xff]
        %v430 = vld [vmem:[%s410 + $0x98] sm:$0xff]
        %v431 = vld [vmem:[%s410 + $0xa0] sm:$0xff]
        %v432 = vld [vmem:[%s410 + $0xa8] sm:$0xff]
        %v433 = vld [vmem:[%s410 + $0xb0] sm:$0xff]
        %v434 = vld [vmem:[%s410 + $0xb8] sm:$0xff]
        %v435 = vld [vmem:[%s410 + $0xc0] sm:$0xff]
        %v436 = vld [vmem:[%s410 + $0xc8] sm:$0xff]
        %v437 = vld [vmem:[%s410 + $0xd0] sm:$0xff]
        %v438 = vld [vmem:[%s410 + $0xd8] sm:$0xff]
        %v439 = vld [vmem:[%s410 + $0xe0] sm:$0xff]
        %v440 = vld [vmem:[%s410 + $0xe8] sm:$0xff]
        %v441 = vld [vmem:[%s410 + $0xf0] sm:$0xff]
        %v442 = vld [vmem:[%s410 + $0xf8] sm:$0xff]
        %v443 = vld [vmem:[%s1] sm:$0x1]
        %v445 = vlaneseq
        %v446 = vshrl.u32 %v445, 7
        %v447 = vsub.s32 0, %v446
        %v448 = vrot.slane %v443, %v447
        %v450 = vmul.f32 %v411, %v448
        %v451 = vmul.f32 %v412, %v448
        %v452 = vmul.f32 %v413, %v448
        %v453 = vmul.f32 %v414, %v448
        %v454 = vmul.f32 %v415, %v448
        %v455 = vmul.f32 %v416, %v448
        %v456 = vmul.f32 %v417, %v448
        %v457 = vmul.f32 %v418, %v448
        %v458 = vmul.f32 %v419, %v448
        %v459 = vmul.f32 %v420, %v448
        %v460 = vmul.f32 %v421, %v448
        %v461 = vmul.f32 %v422, %v448
        %v462 = vmul.f32 %v423, %v448
        %v463 = vmul.f32 %v424, %v448
        %v464 = vmul.f32 %v425, %v448
        %v465 = vmul.f32 %v426, %v448
        %v466 = vmul.f32 %v427, %v448
        %v467 = vmul.f32 %v428, %v448
        %v468 = vmul.f32 %v429, %v448
        %v469 = vmul.f32 %v430, %v448
        %v470 = vmul.f32 %v431, %v448
        %v471 = vmul.f32 %v432, %v448
        %v472 = vmul.f32 %v433, %v448
        %v473 = vmul.f32 %v434, %v448
        %v474 = vmul.f32 %v435, %v448
        %v475 = vmul.f32 %v436, %v448
        %v476 = vmul.f32 %v437, %v448
        %v477 = vmul.f32 %v438, %v448
        %v478 = vmul.f32 %v439, %v448
        %v479 = vmul.f32 %v440, %v448
        %v480 = vmul.f32 %v441, %v448
        %v481 = vmul.f32 %v442, %v448
        %v482 = vld [vmem:[%s2] sm:$0x1]
        %v484 = vlaneseq
        %v485 = vshrl.u32 %v484, 7
        %v486 = vsub.s32 0, %v485
        %v487 = vrot.slane %v482, %v486
        %v489 = vadd.f32 %v450, %v487
        %v490 = vadd.f32 %v451, %v487
        %v491 = vadd.f32 %v452, %v487
        %v492 = vadd.f32 %v453, %v487
        %v493 = vadd.f32 %v454, %v487
        %v494 = vadd.f32 %v455, %v487
        %v495 = vadd.f32 %v456, %v487
        %v496 = vadd.f32 %v457, %v487
        %v497 = vadd.f32 %v458, %v487
        %v498 = vadd.f32 %v459, %v487
        %v499 = vadd.f32 %v460, %v487
        %v500 = vadd.f32 %v461, %v487
        %v501 = vadd.f32 %v462, %v487
        %v502 = vadd.f32 %v463, %v487
        %v503 = vadd.f32 %v464, %v487
        %v504 = vadd.f32 %v465, %v487
        %v505 = vadd.f32 %v466, %v487
        %v506 = vadd.f32 %v467, %v487
        %v507 = vadd.f32 %v468, %v487
        %v508 = vadd.f32 %v469, %v487
        %v509 = vadd.f32 %v470, %v487
        %v510 = vadd.f32 %v471, %v487
        %v511 = vadd.f32 %v472, %v487
        %v512 = vadd.f32 %v473, %v487
        %v513 = vadd.f32 %v474, %v487
        %v514 = vadd.f32 %v475, %v487
        %v515 = vadd.f32 %v476, %v487
        %v516 = vadd.f32 %v477, %v487
        %v517 = vadd.f32 %v478, %v487
        %v518 = vadd.f32 %v479, %v487
        %v519 = vadd.f32 %v480, %v487
        %v520 = vadd.f32 %v481, %v487
        %vm521 = vcmp.gt.f32.partialorder %v489, 0.0
        %vm522 = vcmp.gt.f32.partialorder %v490, 0.0
        %vm523 = vcmp.gt.f32.partialorder %v491, 0.0
        %vm524 = vcmp.gt.f32.partialorder %v492, 0.0
        %vm525 = vcmp.gt.f32.partialorder %v493, 0.0
        %vm526 = vcmp.gt.f32.partialorder %v494, 0.0
        %vm527 = vcmp.gt.f32.partialorder %v495, 0.0
        %vm528 = vcmp.gt.f32.partialorder %v496, 0.0
        %vm529 = vcmp.gt.f32.partialorder %v497, 0.0
        %vm530 = vcmp.gt.f32.partialorder %v498, 0.0
        %vm531 = vcmp.gt.f32.partialorder %v499, 0.0
        %vm532 = vcmp.gt.f32.partialorder %v500, 0.0
        %vm533 = vcmp.gt.f32.partialorder %v501, 0.0
        %vm534 = vcmp.gt.f32.partialorder %v502, 0.0
        %vm535 = vcmp.gt.f32.partialorder %v503, 0.0
        %vm536 = vcmp.gt.f32.partialorder %v504, 0.0
        %vm537 = vcmp.gt.f32.partialorder %v505, 0.0
        %vm538 = vcmp.gt.f32.partialorder %v506, 0.0
        %vm539 = vcmp.gt.f32.partialorder %v507, 0.0
        %vm540 = vcmp.gt.f32.partialorder %v508, 0.0
        %vm541 = vcmp.gt.f32.partialorder %v509, 0.0
        %vm542 = vcmp.gt.f32.partialorder %v510, 0.0
        %vm543 = vcmp.gt.f32.partialorder %v511, 0.0
        %vm544 = vcmp.gt.f32.partialorder %v512, 0.0
        %vm545 = vcmp.gt.f32.partialorder %v513, 0.0
        %vm546 = vcmp.gt.f32.partialorder %v514, 0.0
        %vm547 = vcmp.gt.f32.partialorder %v515, 0.0
        %vm548 = vcmp.gt.f32.partialorder %v516, 0.0
        %vm549 = vcmp.gt.f32.partialorder %v517, 0.0
        %vm550 = vcmp.gt.f32.partialorder %v518, 0.0
        %vm551 = vcmp.gt.f32.partialorder %v519, 0.0
        %vm552 = vcmp.gt.f32.partialorder %v520, 0.0
        %v553 = vmul.f32 %v489, 0.2
        %v554 = vmul.f32 %v490, 0.2
        %v555 = vmul.f32 %v491, 0.2
        %v556 = vmul.f32 %v492, 0.2
        %v557 = vmul.f32 %v493, 0.2
        %v558 = vmul.f32 %v494, 0.2
        %v559 = vmul.f32 %v495, 0.2
        %v560 = vmul.f32 %v496, 0.2
        %v561 = vmul.f32 %v497, 0.2
        %v562 = vmul.f32 %v498, 0.2
        %v563 = vmul.f32 %v499, 0.2
        %v564 = vmul.f32 %v500, 0.2
        %v565 = vmul.f32 %v501, 0.2
        %v566 = vmul.f32 %v502, 0.2
        %v567 = vmul.f32 %v503, 0.2
        %v568 = vmul.f32 %v504, 0.2
        %v569 = vmul.f32 %v505, 0.2
        %v570 = vmul.f32 %v506, 0.2
        %v571 = vmul.f32 %v507, 0.2
        %v572 = vmul.f32 %v508, 0.2
        %v573 = vmul.f32 %v509, 0.2
        %v574 = vmul.f32 %v510, 0.2
        %v575 = vmul.f32 %v511, 0.2
        %v576 = vmul.f32 %v512, 0.2
        %v577 = vmul.f32 %v513, 0.2
        %v578 = vmul.f32 %v514, 0.2
        %v579 = vmul.f32 %v515, 0.2
        %v580 = vmul.f32 %v516, 0.2
        %v581 = vmul.f32 %v517, 0.2
        %v582 = vmul.f32 %v518, 0.2
        %v583 = vmul.f32 %v519, 0.2
        %v584 = vmul.f32 %v520, 0.2
        %v585 = vsel %vm521, %v489, %v553
        %v586 = vsel %vm522, %v490, %v554
        %v587 = vsel %vm523, %v491, %v555
        %v588 = vsel %vm524, %v492, %v556
        %v589 = vsel %vm525, %v493, %v557
        %v590 = vsel %vm526, %v494, %v558
        %v591 = vsel %vm527, %v495, %v559
        %v592 = vsel %vm528, %v496, %v560
        %v593 = vsel %vm529, %v497, %v561
        %v594 = vsel %vm530, %v498, %v562
        %v595 = vsel %vm531, %v499, %v563
        %v596 = vsel %vm532, %v500, %v564
        %v597 = vsel %vm533, %v501, %v565
        %v598 = vsel %vm534, %v502, %v566
        %v599 = vsel %vm535, %v503, %v567
        %v600 = vsel %vm536, %v504, %v568
        %v601 = vsel %vm537, %v505, %v569
        %v602 = vsel %vm538, %v506, %v570
        %v603 = vsel %vm539, %v507, %v571
        %v604 = vsel %vm540, %v508, %v572
        %v605 = vsel %vm541, %v509, %v573
        %v606 = vsel %vm542, %v510, %v574
        %v607 = vsel %vm543, %v511, %v575
        %v608 = vsel %vm544, %v512, %v576
        %v609 = vsel %vm545, %v513, %v577
        %v610 = vsel %vm546, %v514, %v578
        %v611 = vsel %vm547, %v515, %v579
        %v612 = vsel %vm548, %v516, %v580
        %v613 = vsel %vm549, %v517, %v581
        %v614 = vsel %vm550, %v518, %v582
        %v615 = vsel %vm551, %v519, %v583
        %v616 = vsel %vm552, %v520, %v584
        %s617 = scalar_lea.vmem [#allocation2], 48
        %618 = vst [vmem:[%s617 + $0x1] sm:$0xff] %v585
        %619 = vst [vmem:[%s617 + $0x9] sm:$0xff] %v586
        %620 = vst [vmem:[%s617 + $0x19] sm:$0xff] %v587
        %621 = vst [vmem:[%s617 + $0x21] sm:$0xff] %v588
        %622 = vst [vmem:[%s617 + $0x31] sm:$0xff] %v589
        %623 = vst [vmem:[%s617 + $0x39] sm:$0xff] %v590
        %624 = vst [vmem:[%s617 + $0x49] sm:$0xff] %v591
        %625 = vst [vmem:[%s617 + $0x51] sm:$0xff] %v592
        %626 = vst [vmem:[%s617 + $0x61] sm:$0xff] %v593
        %627 = vst [vmem:[%s617 + $0x69] sm:$0xff] %v594
        %628 = vst [vmem:[%s617 + $0x79] sm:$0xff] %v595
        %629 = vst [vmem:[%s617 + $0x81] sm:$0xff] %v596
        %630 = vst [vmem:[%s617 + $0x91] sm:$0xff] %v597
        %631 = vst [vmem:[%s617 + $0x99] sm:$0xff] %v598
        %632 = vst [vmem:[%s617 + $0xa9] sm:$0xff] %v599
        %633 = vst [vmem:[%s617 + $0xb1] sm:$0xff] %v600
        %634 = vst [vmem:[%s617 + $0xc1] sm:$0xff] %v601
        %635 = vst [vmem:[%s617 + $0xc9] sm:$0xff] %v602
        %636 = vst [vmem:[%s617 + $0xd9] sm:$0xff] %v603
        %637 = vst [vmem:[%s617 + $0xe1] sm:$0xff] %v604
        %638 = vst [vmem:[%s617 + $0xf1] sm:$0xff] %v605
        %639 = vst [vmem:[%s617 + $0xf9] sm:$0xff] %v606
        %640 = vst [vmem:[%s617 + $0x109] sm:$0xff] %v607
        %641 = vst [vmem:[%s617 + $0x111] sm:$0xff] %v608
        %642 = vst [vmem:[%s617 + $0x121] sm:$0xff] %v609
        %643 = vst [vmem:[%s617 + $0x129] sm:$0xff] %v610
        %644 = vst [vmem:[%s617 + $0x139] sm:$0xff] %v611
        %645 = vst [vmem:[%s617 + $0x141] sm:$0xff] %v612
        %646 = vst [vmem:[%s617 + $0x151] sm:$0xff] %v613
        %647 = vst [vmem:[%s617 + $0x159] sm:$0xff] %v614
        %648 = vst [vmem:[%s617 + $0x169] sm:$0xff] %v615
        %649 = vst [vmem:[%s617 + $0x171] sm:$0xff] %v616
        %p650 = scmp.eq.s32.totalorder %s31, 0
        // Predicated region
        $region65: #{tpu_custom_call.1} parent=51 // pred_check
          %p651 = pneg %p650
        $region66: #{tpu_custom_call.1} parent=51 // pred_check_branch
          %653 = sbr.rel (%p651) target = $region68
        $region67: #{tpu_custom_call.1} parent=51 // pred_region
          %654 = vst [vmem:[#allocation2 + $0x1] sm:$0xff] 0.0
          %655 = vst [vmem:[#allocation2 + $0x9] sm:$0xff] 0.0
          %656 = vst [vmem:[#allocation2 + $0x19] sm:$0xff] 0.0
          %657 = vst [vmem:[#allocation2 + $0x21] sm:$0xff] 0.0
        $region68: #{tpu_custom_call.1} parent=51 // pred_fallthru
          _
        %p658 = scmp.gt.s32.totalorder %s31, 0
        // Predicated region
        $region69: #{tpu_custom_call.1} parent=51 // pred_check
          %p659 = pneg %p658
        $region70: #{tpu_custom_call.1} parent=51 // pred_check_branch
          %661 = sbr.rel (%p659) target = $region72
        $region71: #{tpu_custom_call.1} parent=51 // pred_region
          %s662 = ssub.s32 %s368, 2
          %s663 = smul.u32 %s662, 16
          %s664 = scalar_lea.vmem %s326, %s663 [#allocation4]
          %v665 = vld [vmem:[%s664] sm:$0xff]
          %v666 = vld [vmem:[%s664 + $0x8] sm:$0xff]
          %v667 = vld [vmem:[%s664 + $0x10] sm:$0xff]
          %v668 = vld [vmem:[%s664 + $0x18] sm:$0xff]
          %v669 = vld [vmem:[%s1] sm:$0x1]
          %v671 = vlaneseq
          %v672 = vshrl.u32 %v671, 7
          %v673 = vsub.s32 0, %v672
          %v674 = vrot.slane %v669, %v673
          %v676 = vmul.f32 %v665, %v674
          %v677 = vmul.f32 %v666, %v674
          %v678 = vmul.f32 %v667, %v674
          %v679 = vmul.f32 %v668, %v674
          %v680 = vld [vmem:[%s2] sm:$0x1]
          %v682 = vlaneseq
          %v683 = vshrl.u32 %v682, 7
          %v684 = vsub.s32 0, %v683
          %v685 = vrot.slane %v680, %v684
          %v687 = vadd.f32 %v676, %v685
          %v688 = vadd.f32 %v677, %v685
          %v689 = vadd.f32 %v678, %v685
          %v690 = vadd.f32 %v679, %v685
          %vm691 = vcmp.gt.f32.partialorder %v687, 0.0
          %vm692 = vcmp.gt.f32.partialorder %v688, 0.0
          %vm693 = vcmp.gt.f32.partialorder %v689, 0.0
          %vm694 = vcmp.gt.f32.partialorder %v690, 0.0
          %v695 = vmul.f32 %v687, 0.2
          %v696 = vmul.f32 %v688, 0.2
          %v697 = vmul.f32 %v689, 0.2
          %v698 = vmul.f32 %v690, 0.2
          %v699 = vsel %vm691, %v687, %v695
          %v700 = vsel %vm692, %v688, %v696
          %v701 = vsel %vm693, %v689, %v697
          %v702 = vsel %vm694, %v690, %v698
          %703 = vst [vmem:[#allocation2 + $0x1] sm:$0xff] %v699
          %704 = vst [vmem:[#allocation2 + $0x9] sm:$0xff] %v700
          %705 = vst [vmem:[#allocation2 + $0x19] sm:$0xff] %v701
          %706 = vst [vmem:[#allocation2 + $0x21] sm:$0xff] %v702
        $region72: #{tpu_custom_call.1} parent=51 // pred_fallthru
          _
        // Predicated region
        $region73: #{tpu_custom_call.1} parent=51 // pred_check
          %p707 = pneg %p650
        $region74: #{tpu_custom_call.1} parent=51 // pred_check_branch
          %709 = sbr.rel (%p707) target = $region76
        $region75: #{tpu_custom_call.1} parent=51 // pred_region
          %s710 = scalar_lea.vmem [#allocation2], 432
          %711 = vst [vmem:[%s710 + $0x1] sm:$0xff] 0.0
          %712 = vst [vmem:[%s710 + $0x9] sm:$0xff] 0.0
          %713 = vst [vmem:[%s710 + $0x19] sm:$0xff] 0.0
          %714 = vst [vmem:[%s710 + $0x21] sm:$0xff] 0.0
        $region76: #{tpu_custom_call.1} parent=51 // pred_fallthru
          _
        %p715 = scmp.lt.s32.totalorder %s31, 0
        // Predicated region
        $region77: #{tpu_custom_call.1} parent=51 // pred_check
          %p716 = pneg %p715
        $region78: #{tpu_custom_call.1} parent=51 // pred_check_branch
          %718 = sbr.rel (%p716) target = $region80
        $region79: #{tpu_custom_call.1} parent=51 // pred_region
          %s719 = sadd.s32 %s368, 16
          %s720 = smul.u32 %s719, 16
          %s721 = scalar_lea.vmem %s326, %s720 [#allocation4]
          %v722 = vld [vmem:[%s721] sm:$0xff]
          %v723 = vld [vmem:[%s721 + $0x8] sm:$0xff]
          %v724 = vld [vmem:[%s721 + $0x10] sm:$0xff]
          %v725 = vld [vmem:[%s721 + $0x18] sm:$0xff]
          %v726 = vld [vmem:[%s1] sm:$0x1]
          %v728 = vlaneseq
          %v729 = vshrl.u32 %v728, 7
          %v730 = vsub.s32 0, %v729
          %v731 = vrot.slane %v726, %v730
          %v733 = vmul.f32 %v722, %v731
          %v734 = vmul.f32 %v723, %v731
          %v735 = vmul.f32 %v724, %v731
          %v736 = vmul.f32 %v725, %v731
          %v737 = vld [vmem:[%s2] sm:$0x1]
          %v739 = vlaneseq
          %v740 = vshrl.u32 %v739, 7
          %v741 = vsub.s32 0, %v740
          %v742 = vrot.slane %v737, %v741
          %v744 = vadd.f32 %v733, %v742
          %v745 = vadd.f32 %v734, %v742
          %v746 = vadd.f32 %v735, %v742
          %v747 = vadd.f32 %v736, %v742
          %vm748 = vcmp.gt.f32.partialorder %v744, 0.0
          %vm749 = vcmp.gt.f32.partialorder %v745, 0.0
          %vm750 = vcmp.gt.f32.partialorder %v746, 0.0
          %vm751 = vcmp.gt.f32.partialorder %v747, 0.0
          %v752 = vmul.f32 %v744, 0.2
          %v753 = vmul.f32 %v745, 0.2
          %v754 = vmul.f32 %v746, 0.2
          %v755 = vmul.f32 %v747, 0.2
          %v756 = vsel %vm748, %v744, %v752
          %v757 = vsel %vm749, %v745, %v753
          %v758 = vsel %vm750, %v746, %v754
          %v759 = vsel %vm751, %v747, %v755
          %s760 = scalar_lea.vmem [#allocation2], 432
          %761 = vst [vmem:[%s760 + $0x1] sm:$0xff] %v756
          %762 = vst [vmem:[%s760 + $0x9] sm:$0xff] %v757
          %763 = vst [vmem:[%s760 + $0x19] sm:$0xff] %v758
          %764 = vst [vmem:[%s760 + $0x21] sm:$0xff] %v759
        $region80: #{tpu_custom_call.1} parent=51 // pred_fallthru
          _
        %v765 = vld [vmem:[#allocation2] sm:$0xff]
        %v766 = vld [vmem:[#allocation2 + $0x8] sm:$0xff]
        %v767 = vld [vmem:[#allocation2 + $0x18] sm:$0xff]
        %v768 = vld [vmem:[#allocation2 + $0x20] sm:$0xff]
        %v769 = vld [vmem:[#allocation2 + $0x30] sm:$0xff]
        %v770 = vld [vmem:[#allocation2 + $0x38] sm:$0xff]
        %v771 = vld [vmem:[#allocation2 + $0x48] sm:$0xff]
        %v772 = vld [vmem:[#allocation2 + $0x50] sm:$0xff]
        %v773 = vld [vmem:[#allocation2 + $0x60] sm:$0xff]
        %v774 = vld [vmem:[#allocation2 + $0x68] sm:$0xff]
        %v775 = vld [vmem:[#allocation2 + $0x78] sm:$0xff]
        %v776 = vld [vmem:[#allocation2 + $0x80] sm:$0xff]
        %v777 = vld [vmem:[#allocation2 + $0x90] sm:$0xff]
        %v778 = vld [vmem:[#allocation2 + $0x98] sm:$0xff]
        %v779 = vld [vmem:[#allocation2 + $0xa8] sm:$0xff]
        %v780 = vld [vmem:[#allocation2 + $0xb0] sm:$0xff]
        %v781 = vld [vmem:[#allocation2 + $0xc0] sm:$0xff]
        %v782 = vld [vmem:[#allocation2 + $0xc8] sm:$0xff]
        %v783 = vld [vmem:[#allocation2 + $0xd8] sm:$0xff]
        %v784 = vld [vmem:[#allocation2 + $0xe0] sm:$0xff]
        %v785 = vld [vmem:[#allocation2 + $0xf0] sm:$0xff]
        %v786 = vld [vmem:[#allocation2 + $0xf8] sm:$0xff]
        %v787 = vld [vmem:[#allocation2 + $0x108] sm:$0xff]
        %v788 = vld [vmem:[#allocation2 + $0x110] sm:$0xff]
        %v789 = vld [vmem:[#allocation2 + $0x120] sm:$0xff]
        %v790 = vld [vmem:[#allocation2 + $0x128] sm:$0xff]
        %v791 = vld [vmem:[#allocation2 + $0x138] sm:$0xff]
        %v792 = vld [vmem:[#allocation2 + $0x140] sm:$0xff]
        %v793 = vld [vmem:[#allocation2 + $0x150] sm:$0xff]
        %v794 = vld [vmem:[#allocation2 + $0x158] sm:$0xff]
        %v795 = vld [vmem:[#allocation2 + $0x168] sm:$0xff]
        %v796 = vld [vmem:[#allocation2 + $0x170] sm:$0xff]
        %v797 = vld [vmem:[#allocation2 + $0x180] sm:$0xff]
        %v798 = vld [vmem:[#allocation2 + $0x188] sm:$0xff]
        %v799 = vld [vmem:[#allocation2 + $0x198] sm:$0xff]
        %v800 = vld [vmem:[#allocation2 + $0x1a0] sm:$0xff]
        %v801 = vld [vmem:[#allocation7] sm:$0xff]
        %v802 = vld [vmem:[#allocation7 + $0x8] sm:$0xff]
        %v803 = vld [vmem:[#allocation7 + $0x10] sm:$0xff]
        %v804 = vld [vmem:[#allocation7 + $0x18] sm:$0xff]
        %v805 = vld [vmem:[#allocation7 + $0x20] sm:$0xff]
        %v806 = vld [vmem:[#allocation7 + $0x28] sm:$0xff]
        %v807 = vld [vmem:[#allocation7 + $0x30] sm:$0xff]
        %v808 = vld [vmem:[#allocation7 + $0x38] sm:$0xff]
        %v809 = vld [vmem:[#allocation7 + $0x40] sm:$0xff]
        %v810 = vld [vmem:[#allocation7 + $0x48] sm:$0xff]
        %v811 = vld [vmem:[#allocation7 + $0x50] sm:$0xff]
        %v812 = vld [vmem:[#allocation7 + $0x58] sm:$0xff]
        %v813 = vld [vmem:[#allocation7 + $0x60] sm:$0xff]
        %v814 = vld [vmem:[#allocation7 + $0x68] sm:$0xff]
        %v815 = vld [vmem:[#allocation7 + $0x70] sm:$0xff]
        %v816 = vld [vmem:[#allocation7 + $0x78] sm:$0xff]
        %v817 = vld [vmem:[#allocation2 + $0x1] sm:$0xff]
        %v818 = vld [vmem:[#allocation2 + $0x9] sm:$0xff]
        %v819 = vld [vmem:[#allocation2 + $0x19] sm:$0xff]
        %v820 = vld [vmem:[#allocation2 + $0x21] sm:$0xff]
        %v821 = vld [vmem:[#allocation2 + $0x31] sm:$0xff]
        %v822 = vld [vmem:[#allocation2 + $0x39] sm:$0xff]
        %v823 = vld [vmem:[#allocation2 + $0x49] sm:$0xff]
        %v824 = vld [vmem:[#allocation2 + $0x51] sm:$0xff]
        %v825 = vld [vmem:[#allocation2 + $0x61] sm:$0xff]
        %v826 = vld [vmem:[#allocation2 + $0x69] sm:$0xff]
        %v827 = vld [vmem:[#allocation2 + $0x79] sm:$0xff]
        %v828 = vld [vmem:[#allocation2 + $0x81] sm:$0xff]
        %v829 = vld [vmem:[#allocation2 + $0x91] sm:$0xff]
        %v830 = vld [vmem:[#allocation2 + $0x99] sm:$0xff]
        %v831 = vld [vmem:[#allocation2 + $0xa9] sm:$0xff]
        %v832 = vld [vmem:[#allocation2 + $0xb1] sm:$0xff]
        %v833 = vld [vmem:[#allocation2 + $0xc1] sm:$0xff]
        %v834 = vld [vmem:[#allocation2 + $0xc9] sm:$0xff]
        %v835 = vld [vmem:[#allocation2 + $0xd9] sm:$0xff]
        %v836 = vld [vmem:[#allocation2 + $0xe1] sm:$0xff]
        %v837 = vld [vmem:[#allocation2 + $0xf1] sm:$0xff]
        %v838 = vld [vmem:[#allocation2 + $0xf9] sm:$0xff]
        %v839 = vld [vmem:[#allocation2 + $0x109] sm:$0xff]
        %v840 = vld [vmem:[#allocation2 + $0x111] sm:$0xff]
        %v841 = vld [vmem:[#allocation2 + $0x121] sm:$0xff]
        %v842 = vld [vmem:[#allocation2 + $0x129] sm:$0xff]
        %v843 = vld [vmem:[#allocation2 + $0x139] sm:$0xff]
        %v844 = vld [vmem:[#allocation2 + $0x141] sm:$0xff]
        %v845 = vld [vmem:[#allocation2 + $0x151] sm:$0xff]
        %v846 = vld [vmem:[#allocation2 + $0x159] sm:$0xff]
        %v847 = vld [vmem:[#allocation2 + $0x169] sm:$0xff]
        %v848 = vld [vmem:[#allocation2 + $0x171] sm:$0xff]
        %v849 = vld [vmem:[#allocation2 + $0x181] sm:$0xff]
        %v850 = vld [vmem:[#allocation2 + $0x189] sm:$0xff]
        %v851 = vld [vmem:[#allocation2 + $0x199] sm:$0xff]
        %v852 = vld [vmem:[#allocation2 + $0x1a1] sm:$0xff]
        %s853 = scalar_lea.vmem [#allocation7], 128
        %v854 = vld [vmem:[%s853] sm:$0xff]
        %v855 = vld [vmem:[%s853 + $0x8] sm:$0xff]
        %v856 = vld [vmem:[%s853 + $0x10] sm:$0xff]
        %v857 = vld [vmem:[%s853 + $0x18] sm:$0xff]
        %v858 = vld [vmem:[%s853 + $0x20] sm:$0xff]
        %v859 = vld [vmem:[%s853 + $0x28] sm:$0xff]
        %v860 = vld [vmem:[%s853 + $0x30] sm:$0xff]
        %v861 = vld [vmem:[%s853 + $0x38] sm:$0xff]
        %v862 = vld [vmem:[%s853 + $0x40] sm:$0xff]
        %v863 = vld [vmem:[%s853 + $0x48] sm:$0xff]
        %v864 = vld [vmem:[%s853 + $0x50] sm:$0xff]
        %v865 = vld [vmem:[%s853 + $0x58] sm:$0xff]
        %v866 = vld [vmem:[%s853 + $0x60] sm:$0xff]
        %v867 = vld [vmem:[%s853 + $0x68] sm:$0xff]
        %v868 = vld [vmem:[%s853 + $0x70] sm:$0xff]
        %v869 = vld [vmem:[%s853 + $0x78] sm:$0xff]
        %870 = vmatprep.subr.mxu0 0.0
        %871 = vmatpush1.msra.mxu0 %v854
        %872 = vmatprep.subr.mxu0 0.0
        %873 = vmatpush1.msra.mxu0 %v855
        %874 = vmatprep.subr.mxu0 0.0
        %875 = vmatpush1.msra.mxu0 %v856
        %876 = vmatprep.subr.mxu0 0.0
        %877 = vmatpush1.msra.mxu0 %v857
        %878 = vmatprep.subr.mxu0 0.0
        %879 = vmatpush1.msra.mxu0 %v858
        %880 = vmatprep.subr.mxu0 0.0
        %881 = vmatpush1.msra.mxu0 %v859
        %882 = vmatprep.subr.mxu0 0.0
        %883 = vmatpush1.msra.mxu0 %v860
        %884 = vmatprep.subr.mxu0 0.0
        %885 = vmatpush1.msra.mxu0 %v861
        %886 = vmatprep.subr.mxu0 0.0
        %887 = vmatpush1.msra.mxu0 %v862
        %888 = vmatprep.subr.mxu0 0.0
        %889 = vmatpush1.msra.mxu0 %v863
        %890 = vmatprep.subr.mxu0 0.0
        %891 = vmatpush1.msra.mxu0 %v864
        %892 = vmatprep.subr.mxu0 0.0
        %893 = vmatpush1.msra.mxu0 %v865
        %894 = vmatprep.subr.mxu0 0.0
        %895 = vmatpush1.msra.mxu0 %v866
        %896 = vmatprep.subr.mxu0 0.0
        %897 = vmatpush1.msra.mxu0 %v867
        %898 = vmatprep.subr.mxu0 0.0
        %899 = vmatpush1.msra.mxu0 %v868
        %900 = vmatprep.subr.mxu0 0.0
        %901 = vmatpush1.msra.mxu0 %v869
        %902 = vmatprep.subr.mxu0 0.0
        %903 = vmatpush1.msra.mxu0 0.0
        %904 = vmatprep.subr.mxu0 0.0
        %905 = vmatpush1.msra.mxu0 0.0
        %906 = vmatprep.subr.mxu0 0.0
        %907 = vmatpush1.msra.mxu0 0.0
        %908 = vmatprep.subr.mxu0 0.0
        %909 = vmatpush1.msra.mxu0 0.0
        %910 = vmatprep.subr.mxu0 0.0
        %911 = vmatpush1.msra.mxu0 0.0
        %912 = vmatprep.subr.mxu0 0.0
        %913 = vmatpush1.msra.mxu0 0.0
        %914 = vmatprep.subr.mxu0 0.0
        %915 = vmatpush1.msra.mxu0 0.0
        %916 = vmatprep.subr.mxu0 0.0
        %917 = vmatpush1.msra.mxu0 0.0
        %918 = vmatprep.subr.mxu0 0.0
        %919 = vmatpush1.msra.mxu0 0.0
        %920 = vmatprep.subr.mxu0 0.0
        %921 = vmatpush1.msra.mxu0 0.0
        %922 = vmatprep.subr.mxu0 0.0
        %923 = vmatpush1.msra.mxu0 0.0
        %924 = vmatprep.subr.mxu0 0.0
        %925 = vmatpush1.msra.mxu0 0.0
        %926 = vmatprep.subr.mxu0 0.0
        %927 = vmatpush1.msra.mxu0 0.0
        %928 = vmatprep.subr.mxu0 0.0
        %929 = vmatpush1.msra.mxu0 0.0
        %930 = vmatprep.subr.mxu0 0.0
        %931 = vmatpush1.msra.mxu0 0.0
        %932 = vmatprep.subr.mxu0 0.0
        %933 = vmatpush1.msra.mxu0 0.0
        %934 = vmatprep.mubr.f32.mxu0 0.0
        %935 = vmatmul.mubr.f32.gmra.mrb[0].mxu0 %v817
        %v936 = vpop.f32.mrb[0].mxu0
        %v937 = vadd.f32 0.0, %v936
        %v938 = vpop.f32.mrb[0].mxu0
        %939 = vmatprep.mubr.f32.mxu0 0.0
        %940 = vmatmul.mubr.f32.gmra.mrb[0].mxu0 %v818
        %v941 = vpop.f32.mrb[0].mxu0
        %v942 = vadd.f32 0.0, %v941
        %v943 = vpop.f32.mrb[0].mxu0
        %944 = vmatprep.mubr.f32.mxu0 0.0
        %945 = vmatmul.mubr.f32.gmra.mrb[0].mxu0 %v819
        %v946 = vpop.f32.mrb[0].mxu0
        %v947 = vadd.f32 0.0, %v946
        %v948 = vpop.f32.mrb[0].mxu0
        %949 = vmatprep.mubr.f32.mxu0 0.0
        %950 = vmatmul.mubr.f32.gmra.mrb[0].mxu0 %v820
        %v951 = vpop.f32.mrb[0].mxu0
        %v952 = vadd.f32 0.0, %v951
        %v953 = vpop.f32.mrb[0].mxu0
        %954 = vmatprep.mubr.f32.mxu0 0.0
        %955 = vmatmul.mubr.f32.gmra.mrb[0].mxu0 %v821
        %v956 = vpop.f32.mrb[0].mxu0
        %v957 = vadd.f32 0.0, %v956
        %v958 = vpop.f32.mrb[0].mxu0
        %959 = vmatprep.mubr.f32.mxu0 0.0
        %960 = vmatmul.mubr.f32.gmra.mrb[0].mxu0 %v822
        %v961 = vpop.f32.mrb[0].mxu0
        %v962 = vadd.f32 0.0, %v961
        %v963 = vpop.f32.mrb[0].mxu0
        %964 = vmatprep.mubr.f32.mxu0 0.0
        %965 = vmatmul.mubr.f32.gmra.mrb[0].mxu0 %v823
        %v966 = vpop.f32.mrb[0].mxu0
        %v967 = vadd.f32 0.0, %v966
        %v968 = vpop.f32.mrb[0].mxu0
        %969 = vmatprep.mubr.f32.mxu0 0.0
        %970 = vmatmul.mubr.f32.gmra.mrb[0].mxu0 %v824
        %v971 = vpop.f32.mrb[0].mxu0
        %v972 = vadd.f32 0.0, %v971
        %v973 = vpop.f32.mrb[0].mxu0
        %974 = vmatprep.mubr.f32.mxu0 0.0
        %975 = vmatmul.mubr.f32.gmra.mrb[0].mxu0 %v825
        %v976 = vpop.f32.mrb[0].mxu0
        %v977 = vadd.f32 0.0, %v976
        %v978 = vpop.f32.mrb[0].mxu0
        %979 = vmatprep.mubr.f32.mxu0 0.0
        %980 = vmatmul.mubr.f32.gmra.mrb[0].mxu0 %v826
        %v981 = vpop.f32.mrb[0].mxu0
        %v982 = vadd.f32 0.0, %v981
        %v983 = vpop.f32.mrb[0].mxu0
        %984 = vmatprep.mubr.f32.mxu0 0.0
        %985 = vmatmul.mubr.f32.gmra.mrb[0].mxu0 %v827
        %v986 = vpop.f32.mrb[0].mxu0
        %v987 = vadd.f32 0.0, %v986
        %v988 = vpop.f32.mrb[0].mxu0
        %989 = vmatprep.mubr.f32.mxu0 0.0
        %990 = vmatmul.mubr.f32.gmra.mrb[0].mxu0 %v828
        %v991 = vpop.f32.mrb[0].mxu0
        %v992 = vadd.f32 0.0, %v991
        %v993 = vpop.f32.mrb[0].mxu0
        %994 = vmatprep.mubr.f32.mxu0 0.0
        %995 = vmatmul.mubr.f32.gmra.mrb[0].mxu0 %v829
        %v996 = vpop.f32.mrb[0].mxu0
        %v997 = vadd.f32 0.0, %v996
        %v998 = vpop.f32.mrb[0].mxu0
        %999 = vmatprep.mubr.f32.mxu0 0.0
        %1000 = vmatmul.mubr.f32.gmra.mrb[0].mxu0 %v830
        %v1001 = vpop.f32.mrb[0].mxu0
        %v1002 = vadd.f32 0.0, %v1001
        %v1003 = vpop.f32.mrb[0].mxu0
        %1004 = vmatprep.mubr.f32.mxu0 0.0
        %1005 = vmatmul.mubr.f32.gmra.mrb[0].mxu0 %v831
        %v1006 = vpop.f32.mrb[0].mxu0
        %v1007 = vadd.f32 0.0, %v1006
        %v1008 = vpop.f32.mrb[0].mxu0
        %1009 = vmatprep.mubr.f32.mxu0 0.0
        %1010 = vmatmul.mubr.f32.gmra.mrb[0].mxu0 %v832
        %v1011 = vpop.f32.mrb[0].mxu0
        %v1012 = vadd.f32 0.0, %v1011
        %v1013 = vpop.f32.mrb[0].mxu0
        %1014 = vmatprep.mubr.f32.mxu0 0.0
        %1015 = vmatmul.mubr.f32.gmra.mrb[0].mxu0 %v833
        %v1016 = vpop.f32.mrb[0].mxu0
        %v1017 = vadd.f32 0.0, %v1016
        %v1018 = vpop.f32.mrb[0].mxu0
        %1019 = vmatprep.mubr.f32.mxu0 0.0
        %1020 = vmatmul.mubr.f32.gmra.mrb[0].mxu0 %v834
        %v1021 = vpop.f32.mrb[0].mxu0
        %v1022 = vadd.f32 0.0, %v1021
        %v1023 = vpop.f32.mrb[0].mxu0
        %1024 = vmatprep.mubr.f32.mxu0 0.0
        %1025 = vmatmul.mubr.f32.gmra.mrb[0].mxu0 %v835
        %v1026 = vpop.f32.mrb[0].mxu0
        %v1027 = vadd.f32 0.0, %v1026
        %v1028 = vpop.f32.mrb[0].mxu0
        %1029 = vmatprep.mubr.f32.mxu0 0.0
        %1030 = vmatmul.mubr.f32.gmra.mrb[0].mxu0 %v836
        %v1031 = vpop.f32.mrb[0].mxu0
        %v1032 = vadd.f32 0.0, %v1031
        %v1033 = vpop.f32.mrb[0].mxu0
        %1034 = vmatprep.mubr.f32.mxu0 0.0
        %1035 = vmatmul.mubr.f32.gmra.mrb[0].mxu0 %v837
        %v1036 = vpop.f32.mrb[0].mxu0
        %v1037 = vadd.f32 0.0, %v1036
        %v1038 = vpop.f32.mrb[0].mxu0
        %1039 = vmatprep.mubr.f32.mxu0 0.0
        %1040 = vmatmul.mubr.f32.gmra.mrb[0].mxu0 %v838
        %v1041 = vpop.f32.mrb[0].mxu0
        %v1042 = vadd.f32 0.0, %v1041
        %v1043 = vpop.f32.mrb[0].mxu0
        %1044 = vmatprep.mubr.f32.mxu0 0.0
        %1045 = vmatmul.mubr.f32.gmra.mrb[0].mxu0 %v839
        %v1046 = vpop.f32.mrb[0].mxu0
        %v1047 = vadd.f32 0.0, %v1046
        %v1048 = vpop.f32.mrb[0].mxu0
        %1049 = vmatprep.mubr.f32.mxu0 0.0
        %1050 = vmatmul.mubr.f32.gmra.mrb[0].mxu0 %v840
        %v1051 = vpop.f32.mrb[0].mxu0
        %v1052 = vadd.f32 0.0, %v1051
        %v1053 = vpop.f32.mrb[0].mxu0
        %1054 = vmatprep.mubr.f32.mxu0 0.0
        %1055 = vmatmul.mubr.f32.gmra.mrb[0].mxu0 %v841
        %v1056 = vpop.f32.mrb[0].mxu0
        %v1057 = vadd.f32 0.0, %v1056
        %v1058 = vpop.f32.mrb[0].mxu0
        %1059 = vmatprep.mubr.f32.mxu0 0.0
        %1060 = vmatmul.mubr.f32.gmra.mrb[0].mxu0 %v842
        %v1061 = vpop.f32.mrb[0].mxu0
        %v1062 = vadd.f32 0.0, %v1061
        %v1063 = vpop.f32.mrb[0].mxu0
        %1064 = vmatprep.mubr.f32.mxu0 0.0
        %1065 = vmatmul.mubr.f32.gmra.mrb[0].mxu0 %v843
        %v1066 = vpop.f32.mrb[0].mxu0
        %v1067 = vadd.f32 0.0, %v1066
        %v1068 = vpop.f32.mrb[0].mxu0
        %1069 = vmatprep.mubr.f32.mxu0 0.0
        %1070 = vmatmul.mubr.f32.gmra.mrb[0].mxu0 %v844
        %v1071 = vpop.f32.mrb[0].mxu0
        %v1072 = vadd.f32 0.0, %v1071
        %v1073 = vpop.f32.mrb[0].mxu0
        %1074 = vmatprep.mubr.f32.mxu0 0.0
        %1075 = vmatmul.mubr.f32.gmra.mrb[0].mxu0 %v845
        %v1076 = vpop.f32.mrb[0].mxu0
        %v1077 = vadd.f32 0.0, %v1076
        %v1078 = vpop.f32.mrb[0].mxu0
        %1079 = vmatprep.mubr.f32.mxu0 0.0
        %1080 = vmatmul.mubr.f32.gmra.mrb[0].mxu0 %v846
        %v1081 = vpop.f32.mrb[0].mxu0
        %v1082 = vadd.f32 0.0, %v1081
        %v1083 = vpop.f32.mrb[0].mxu0
        %1084 = vmatprep.mubr.f32.mxu0 0.0
        %1085 = vmatmul.mubr.f32.gmra.mrb[0].mxu0 %v847
        %v1086 = vpop.f32.mrb[0].mxu0
        %v1087 = vadd.f32 0.0, %v1086
        %v1088 = vpop.f32.mrb[0].mxu0
        %1089 = vmatprep.mubr.f32.mxu0 0.0
        %1090 = vmatmul.mubr.f32.gmra.mrb[0].mxu0 %v848
        %v1091 = vpop.f32.mrb[0].mxu0
        %v1092 = vadd.f32 0.0, %v1091
        %v1093 = vpop.f32.mrb[0].mxu0
        %1094 = vmatprep.mubr.f32.mxu0 0.0
        %1095 = vmatmul.mubr.f32.gmra.mrb[0].mxu0 %v849
        %v1096 = vpop.f32.mrb[0].mxu0
        %v1097 = vadd.f32 0.0, %v1096
        %v1098 = vpop.f32.mrb[0].mxu0
        %1099 = vmatprep.mubr.f32.mxu0 0.0
        %1100 = vmatmul.mubr.f32.gmra.mrb[0].mxu0 %v850
        %v1101 = vpop.f32.mrb[0].mxu0
        %v1102 = vadd.f32 0.0, %v1101
        %v1103 = vpop.f32.mrb[0].mxu0
        %1104 = vmatprep.mubr.f32.mxu0 0.0
        %1105 = vmatmul.mubr.f32.gmra.mrb[0].mxu0 %v851
        %v1106 = vpop.f32.mrb[0].mxu0
        %v1107 = vadd.f32 0.0, %v1106
        %v1108 = vpop.f32.mrb[0].mxu0
        %1109 = vmatprep.mubr.f32.mxu0 0.0
        %1110 = vmatmul.mubr.f32.gmra.mrb[0].mxu0 %v852
        %v1111 = vpop.f32.mrb[0].mxu0
        %v1112 = vadd.f32 0.0, %v1111
        %v1113 = vpop.f32.mrb[0].mxu0
        %1114 = vdwg.mxu0
        %1115 = vmatprep.subr.mxu0 0.0
        %1116 = vmatpush1.msra.mxu0 %v801
        %1117 = vmatprep.subr.mxu0 0.0
        %1118 = vmatpush1.msra.mxu0 %v802
        %1119 = vmatprep.subr.mxu0 0.0
        %1120 = vmatpush1.msra.mxu0 %v803
        %1121 = vmatprep.subr.mxu0 0.0
        %1122 = vmatpush1.msra.mxu0 %v804
        %1123 = vmatprep.subr.mxu0 0.0
        %1124 = vmatpush1.msra.mxu0 %v805
        %1125 = vmatprep.subr.mxu0 0.0
        %1126 = vmatpush1.msra.mxu0 %v806
        %1127 = vmatprep.subr.mxu0 0.0
        %1128 = vmatpush1.msra.mxu0 %v807
        %1129 = vmatprep.subr.mxu0 0.0
        %1130 = vmatpush1.msra.mxu0 %v808
        %1131 = vmatprep.subr.mxu0 0.0
        %1132 = vmatpush1.msra.mxu0 %v809
        %1133 = vmatprep.subr.mxu0 0.0
        %1134 = vmatpush1.msra.mxu0 %v810
        %1135 = vmatprep.subr.mxu0 0.0
        %1136 = vmatpush1.msra.mxu0 %v811
        %1137 = vmatprep.subr.mxu0 0.0
        %1138 = vmatpush1.msra.mxu0 %v812
        %1139 = vmatprep.subr.mxu0 0.0
        %1140 = vmatpush1.msra.mxu0 %v813
        %1141 = vmatprep.subr.mxu0 0.0
        %1142 = vmatpush1.msra.mxu0 %v814
        %1143 = vmatprep.subr.mxu0 0.0
        %1144 = vmatpush1.msra.mxu0 %v815
        %1145 = vmatprep.subr.mxu0 0.0
        %1146 = vmatpush1.msra.mxu0 %v816
        %1147 = vmatprep.subr.mxu0 0.0
        %1148 = vmatpush1.msra.mxu0 0.0
        %1149 = vmatprep.subr.mxu0 0.0
        %1150 = vmatpush1.msra.mxu0 0.0
        %1151 = vmatprep.subr.mxu0 0.0
        %1152 = vmatpush1.msra.mxu0 0.0
        %1153 = vmatprep.subr.mxu0 0.0
        %1154 = vmatpush1.msra.mxu0 0.0
        %1155 = vmatprep.subr.mxu0 0.0
        %1156 = vmatpush1.msra.mxu0 0.0
        %1157 = vmatprep.subr.mxu0 0.0
        %1158 = vmatpush1.msra.mxu0 0.0
        %1159 = vmatprep.subr.mxu0 0.0
        %1160 = vmatpush1.msra.mxu0 0.0
        %1161 = vmatprep.subr.mxu0 0.0
        %1162 = vmatpush1.msra.mxu0 0.0
        %1163 = vmatprep.subr.mxu0 0.0
        %1164 = vmatpush1.msra.mxu0 0.0
        %1165 = vmatprep.subr.mxu0 0.0
        %1166 = vmatpush1.msra.mxu0 0.0
        %1167 = vmatprep.subr.mxu0 0.0
        %1168 = vmatpush1.msra.mxu0 0.0
        %1169 = vmatprep.subr.mxu0 0.0
        %1170 = vmatpush1.msra.mxu0 0.0
        %1171 = vmatprep.subr.mxu0 0.0
        %1172 = vmatpush1.msra.mxu0 0.0
        %1173 = vmatprep.subr.mxu0 0.0
        %1174 = vmatpush1.msra.mxu0 0.0
        %1175 = vmatprep.subr.mxu0 0.0
        %1176 = vmatpush1.msra.mxu0 0.0
        %1177 = vmatprep.subr.mxu0 0.0
        %1178 = vmatpush1.msra.mxu0 0.0
        %1179 = vmatprep.mubr.f32.mxu0 0.0
        %1180 = vmatmul.mubr.f32.gmra.mrb[0].mxu0 %v765
        %v1181 = vpop.f32.mrb[0].mxu0
        %v1182 = vadd.f32 %v937, %v1181
        %v1183 = vpop.f32.mrb[0].mxu0
        %1184 = vmatprep.mubr.f32.mxu0 0.0
        %1185 = vmatmul.mubr.f32.gmra.mrb[0].mxu0 %v766
        %v1186 = vpop.f32.mrb[0].mxu0
        %v1187 = vadd.f32 %v942, %v1186
        %v1188 = vpop.f32.mrb[0].mxu0
        %1189 = vmatprep.mubr.f32.mxu0 0.0
        %1190 = vmatmul.mubr.f32.gmra.mrb[0].mxu0 %v767
        %v1191 = vpop.f32.mrb[0].mxu0
        %v1192 = vadd.f32 %v947, %v1191
        %v1193 = vpop.f32.mrb[0].mxu0
        %1194 = vmatprep.mubr.f32.mxu0 0.0
        %1195 = vmatmul.mubr.f32.gmra.mrb[0].mxu0 %v768
        %v1196 = vpop.f32.mrb[0].mxu0
        %v1197 = vadd.f32 %v952, %v1196
        %v1198 = vpop.f32.mrb[0].mxu0
        %1199 = vmatprep.mubr.f32.mxu0 0.0
        %1200 = vmatmul.mubr.f32.gmra.mrb[0].mxu0 %v769
        %v1201 = vpop.f32.mrb[0].mxu0
        %v1202 = vadd.f32 %v957, %v1201
        %v1203 = vpop.f32.mrb[0].mxu0
        %1204 = vmatprep.mubr.f32.mxu0 0.0
        %1205 = vmatmul.mubr.f32.gmra.mrb[0].mxu0 %v770
        %v1206 = vpop.f32.mrb[0].mxu0
        %v1207 = vadd.f32 %v962, %v1206
        %v1208 = vpop.f32.mrb[0].mxu0
        %1209 = vmatprep.mubr.f32.mxu0 0.0
        %1210 = vmatmul.mubr.f32.gmra.mrb[0].mxu0 %v771
        %v1211 = vpop.f32.mrb[0].mxu0
        %v1212 = vadd.f32 %v967, %v1211
        %v1213 = vpop.f32.mrb[0].mxu0
        %1214 = vmatprep.mubr.f32.mxu0 0.0
        %1215 = vmatmul.mubr.f32.gmra.mrb[0].mxu0 %v772
        %v1216 = vpop.f32.mrb[0].mxu0
        %v1217 = vadd.f32 %v972, %v1216
        %v1218 = vpop.f32.mrb[0].mxu0
        %1219 = vmatprep.mubr.f32.mxu0 0.0
        %1220 = vmatmul.mubr.f32.gmra.mrb[0].mxu0 %v773
        %v1221 = vpop.f32.mrb[0].mxu0
        %v1222 = vadd.f32 %v977, %v1221
        %v1223 = vpop.f32.mrb[0].mxu0
        %1224 = vmatprep.mubr.f32.mxu0 0.0
        %1225 = vmatmul.mubr.f32.gmra.mrb[0].mxu0 %v774
        %v1226 = vpop.f32.mrb[0].mxu0
        %v1227 = vadd.f32 %v982, %v1226
        %v1228 = vpop.f32.mrb[0].mxu0
        %1229 = vmatprep.mubr.f32.mxu0 0.0
        %1230 = vmatmul.mubr.f32.gmra.mrb[0].mxu0 %v775
        %v1231 = vpop.f32.mrb[0].mxu0
        %v1232 = vadd.f32 %v987, %v1231
        %v1233 = vpop.f32.mrb[0].mxu0
        %1234 = vmatprep.mubr.f32.mxu0 0.0
        %1235 = vmatmul.mubr.f32.gmra.mrb[0].mxu0 %v776
        %v1236 = vpop.f32.mrb[0].mxu0
        %v1237 = vadd.f32 %v992, %v1236
        %v1238 = vpop.f32.mrb[0].mxu0
        %1239 = vmatprep.mubr.f32.mxu0 0.0
        %1240 = vmatmul.mubr.f32.gmra.mrb[0].mxu0 %v777
        %v1241 = vpop.f32.mrb[0].mxu0
        %v1242 = vadd.f32 %v997, %v1241
        %v1243 = vpop.f32.mrb[0].mxu0
        %1244 = vmatprep.mubr.f32.mxu0 0.0
        %1245 = vmatmul.mubr.f32.gmra.mrb[0].mxu0 %v778
        %v1246 = vpop.f32.mrb[0].mxu0
        %v1247 = vadd.f32 %v1002, %v1246
        %v1248 = vpop.f32.mrb[0].mxu0
        %1249 = vmatprep.mubr.f32.mxu0 0.0
        %1250 = vmatmul.mubr.f32.gmra.mrb[0].mxu0 %v779
        %v1251 = vpop.f32.mrb[0].mxu0
        %v1252 = vadd.f32 %v1007, %v1251
        %v1253 = vpop.f32.mrb[0].mxu0
        %1254 = vmatprep.mubr.f32.mxu0 0.0
        %1255 = vmatmul.mubr.f32.gmra.mrb[0].mxu0 %v780
        %v1256 = vpop.f32.mrb[0].mxu0
        %v1257 = vadd.f32 %v1012, %v1256
        %v1258 = vpop.f32.mrb[0].mxu0
        %1259 = vmatprep.mubr.f32.mxu0 0.0
        %1260 = vmatmul.mubr.f32.gmra.mrb[0].mxu0 %v781
        %v1261 = vpop.f32.mrb[0].mxu0
        %v1262 = vadd.f32 %v1017, %v1261
        %v1263 = vpop.f32.mrb[0].mxu0
        %1264 = vmatprep.mubr.f32.mxu0 0.0
        %1265 = vmatmul.mubr.f32.gmra.mrb[0].mxu0 %v782
        %v1266 = vpop.f32.mrb[0].mxu0
        %v1267 = vadd.f32 %v1022, %v1266
        %v1268 = vpop.f32.mrb[0].mxu0
        %1269 = vmatprep.mubr.f32.mxu0 0.0
        %1270 = vmatmul.mubr.f32.gmra.mrb[0].mxu0 %v783
        %v1271 = vpop.f32.mrb[0].mxu0
        %v1272 = vadd.f32 %v1027, %v1271
        %v1273 = vpop.f32.mrb[0].mxu0
        %1274 = vmatprep.mubr.f32.mxu0 0.0
        %1275 = vmatmul.mubr.f32.gmra.mrb[0].mxu0 %v784
        %v1276 = vpop.f32.mrb[0].mxu0
        %v1277 = vadd.f32 %v1032, %v1276
        %v1278 = vpop.f32.mrb[0].mxu0
        %1279 = vmatprep.mubr.f32.mxu0 0.0
        %1280 = vmatmul.mubr.f32.gmra.mrb[0].mxu0 %v785
        %v1281 = vpop.f32.mrb[0].mxu0
        %v1282 = vadd.f32 %v1037, %v1281
        %v1283 = vpop.f32.mrb[0].mxu0
        %1284 = vmatprep.mubr.f32.mxu0 0.0
        %1285 = vmatmul.mubr.f32.gmra.mrb[0].mxu0 %v786
        %v1286 = vpop.f32.mrb[0].mxu0
        %v1287 = vadd.f32 %v1042, %v1286
        %v1288 = vpop.f32.mrb[0].mxu0
        %1289 = vmatprep.mubr.f32.mxu0 0.0
        %1290 = vmatmul.mubr.f32.gmra.mrb[0].mxu0 %v787
        %v1291 = vpop.f32.mrb[0].mxu0
        %v1292 = vadd.f32 %v1047, %v1291
        %v1293 = vpop.f32.mrb[0].mxu0
        %1294 = vmatprep.mubr.f32.mxu0 0.0
        %1295 = vmatmul.mubr.f32.gmra.mrb[0].mxu0 %v788
        %v1296 = vpop.f32.mrb[0].mxu0
        %v1297 = vadd.f32 %v1052, %v1296
        %v1298 = vpop.f32.mrb[0].mxu0
        %1299 = vmatprep.mubr.f32.mxu0 0.0
        %1300 = vmatmul.mubr.f32.gmra.mrb[0].mxu0 %v789
        %v1301 = vpop.f32.mrb[0].mxu0
        %v1302 = vadd.f32 %v1057, %v1301
        %v1303 = vpop.f32.mrb[0].mxu0
        %1304 = vmatprep.mubr.f32.mxu0 0.0
        %1305 = vmatmul.mubr.f32.gmra.mrb[0].mxu0 %v790
        %v1306 = vpop.f32.mrb[0].mxu0
        %v1307 = vadd.f32 %v1062, %v1306
        %v1308 = vpop.f32.mrb[0].mxu0
        %1309 = vmatprep.mubr.f32.mxu0 0.0
        %1310 = vmatmul.mubr.f32.gmra.mrb[0].mxu0 %v791
        %v1311 = vpop.f32.mrb[0].mxu0
        %v1312 = vadd.f32 %v1067, %v1311
        %v1313 = vpop.f32.mrb[0].mxu0
        %1314 = vmatprep.mubr.f32.mxu0 0.0
        %1315 = vmatmul.mubr.f32.gmra.mrb[0].mxu0 %v792
        %v1316 = vpop.f32.mrb[0].mxu0
        %v1317 = vadd.f32 %v1072, %v1316
        %v1318 = vpop.f32.mrb[0].mxu0
        %1319 = vmatprep.mubr.f32.mxu0 0.0
        %1320 = vmatmul.mubr.f32.gmra.mrb[0].mxu0 %v793
        %v1321 = vpop.f32.mrb[0].mxu0
        %v1322 = vadd.f32 %v1077, %v1321
        %v1323 = vpop.f32.mrb[0].mxu0
        %1324 = vmatprep.mubr.f32.mxu0 0.0
        %1325 = vmatmul.mubr.f32.gmra.mrb[0].mxu0 %v794
        %v1326 = vpop.f32.mrb[0].mxu0
        %v1327 = vadd.f32 %v1082, %v1326
        %v1328 = vpop.f32.mrb[0].mxu0
        %1329 = vmatprep.mubr.f32.mxu0 0.0
        %1330 = vmatmul.mubr.f32.gmra.mrb[0].mxu0 %v795
        %v1331 = vpop.f32.mrb[0].mxu0
        %v1332 = vadd.f32 %v1087, %v1331
        %v1333 = vpop.f32.mrb[0].mxu0
        %1334 = vmatprep.mubr.f32.mxu0 0.0
        %1335 = vmatmul.mubr.f32.gmra.mrb[0].mxu0 %v796
        %v1336 = vpop.f32.mrb[0].mxu0
        %v1337 = vadd.f32 %v1092, %v1336
        %v1338 = vpop.f32.mrb[0].mxu0
        %1339 = vmatprep.mubr.f32.mxu0 0.0
        %1340 = vmatmul.mubr.f32.gmra.mrb[0].mxu0 %v797
        %v1341 = vpop.f32.mrb[0].mxu0
        %v1342 = vadd.f32 %v1097, %v1341
        %v1343 = vpop.f32.mrb[0].mxu0
        %1344 = vmatprep.mubr.f32.mxu0 0.0
        %1345 = vmatmul.mubr.f32.gmra.mrb[0].mxu0 %v798
        %v1346 = vpop.f32.mrb[0].mxu0
        %v1347 = vadd.f32 %v1102, %v1346
        %v1348 = vpop.f32.mrb[0].mxu0
        %1349 = vmatprep.mubr.f32.mxu0 0.0
        %1350 = vmatmul.mubr.f32.gmra.mrb[0].mxu0 %v799
        %v1351 = vpop.f32.mrb[0].mxu0
        %v1352 = vadd.f32 %v1107, %v1351
        %v1353 = vpop.f32.mrb[0].mxu0
        %1354 = vmatprep.mubr.f32.mxu0 0.0
        %1355 = vmatmul.mubr.f32.gmra.mrb[0].mxu0 %v800
        %v1356 = vpop.f32.mrb[0].mxu0
        %v1357 = vadd.f32 %v1112, %v1356
        %v1358 = vpop.f32.mrb[0].mxu0
        %1359 = vdwg.mxu0
        %v1360 = vld [vmem:[#allocation2 + $0x2] sm:$0xff]
        %v1361 = vld [vmem:[#allocation2 + $0xa] sm:$0xff]
        %v1362 = vld [vmem:[#allocation2 + $0x1a] sm:$0xff]
        %v1363 = vld [vmem:[#allocation2 + $0x22] sm:$0xff]
        %v1364 = vld [vmem:[#allocation2 + $0x32] sm:$0xff]
        %v1365 = vld [vmem:[#allocation2 + $0x3a] sm:$0xff]
        %v1366 = vld [vmem:[#allocation2 + $0x4a] sm:$0xff]
        %v1367 = vld [vmem:[#allocation2 + $0x52] sm:$0xff]
        %v1368 = vld [vmem:[#allocation2 + $0x62] sm:$0xff]
        %v1369 = vld [vmem:[#allocation2 + $0x6a] sm:$0xff]
        %v1370 = vld [vmem:[#allocation2 + $0x7a] sm:$0xff]
        %v1371 = vld [vmem:[#allocation2 + $0x82] sm:$0xff]
        %v1372 = vld [vmem:[#allocation2 + $0x92] sm:$0xff]
        %v1373 = vld [vmem:[#allocation2 + $0x9a] sm:$0xff]
        %v1374 = vld [vmem:[#allocation2 + $0xaa] sm:$0xff]
        %v1375 = vld [vmem:[#allocation2 + $0xb2] sm:$0xff]
        %v1376 = vld [vmem:[#allocation2 + $0xc2] sm:$0xff]
        %v1377 = vld [vmem:[#allocation2 + $0xca] sm:$0xff]
        %v1378 = vld [vmem:[#allocation2 + $0xda] sm:$0xff]
        %v1379 = vld [vmem:[#allocation2 + $0xe2] sm:$0xff]
        %v1380 = vld [vmem:[#allocation2 + $0xf2] sm:$0xff]
        %v1381 = vld [vmem:[#allocation2 + $0xfa] sm:$0xff]
        %v1382 = vld [vmem:[#allocation2 + $0x10a] sm:$0xff]
        %v1383 = vld [vmem:[#allocation2 + $0x112] sm:$0xff]
        %v1384 = vld [vmem:[#allocation2 + $0x122] sm:$0xff]
        %v1385 = vld [vmem:[#allocation2 + $0x12a] sm:$0xff]
        %v1386 = vld [vmem:[#allocation2 + $0x13a] sm:$0xff]
        %v1387 = vld [vmem:[#allocation2 + $0x142] sm:$0xff]
        %v1388 = vld [vmem:[#allocation2 + $0x152] sm:$0xff]
        %v1389 = vld [vmem:[#allocation2 + $0x15a] sm:$0xff]
        %v1390 = vld [vmem:[#allocation2 + $0x16a] sm:$0xff]
        %v1391 = vld [vmem:[#allocation2 + $0x172] sm:$0xff]
        %v1392 = vld [vmem:[#allocation2 + $0x182] sm:$0xff]
        %v1393 = vld [vmem:[#allocation2 + $0x18a] sm:$0xff]
        %v1394 = vld [vmem:[#allocation2 + $0x19a] sm:$0xff]
        %v1395 = vld [vmem:[#allocation2 + $0x1a2] sm:$0xff]
        %s1396 = scalar_lea.vmem [#allocation7], 256
        %v1397 = vld [vmem:[%s1396] sm:$0xff]
        %v1398 = vld [vmem:[%s1396 + $0x8] sm:$0xff]
        %v1399 = vld [vmem:[%s1396 + $0x10] sm:$0xff]
        %v1400 = vld [vmem:[%s1396 + $0x18] sm:$0xff]
        %v1401 = vld [vmem:[%s1396 + $0x20] sm:$0xff]
        %v1402 = vld [vmem:[%s1396 + $0x28] sm:$0xff]
        %v1403 = vld [vmem:[%s1396 + $0x30] sm:$0xff]
        %v1404 = vld [vmem:[%s1396 + $0x38] sm:$0xff]
        %v1405 = vld [vmem:[%s1396 + $0x40] sm:$0xff]
        %v1406 = vld [vmem:[%s1396 + $0x48] sm:$0xff]
        %v1407 = vld [vmem:[%s1396 + $0x50] sm:$0xff]
        %v1408 = vld [vmem:[%s1396 + $0x58] sm:$0xff]
        %v1409 = vld [vmem:[%s1396 + $0x60] sm:$0xff]
        %v1410 = vld [vmem:[%s1396 + $0x68] sm:$0xff]
        %v1411 = vld [vmem:[%s1396 + $0x70] sm:$0xff]
        %v1412 = vld [vmem:[%s1396 + $0x78] sm:$0xff]
        %1413 = vmatprep.subr.mxu0 0.0
        %1414 = vmatpush1.msra.mxu0 %v1397
        %1415 = vmatprep.subr.mxu0 0.0
        %1416 = vmatpush1.msra.mxu0 %v1398
        %1417 = vmatprep.subr.mxu0 0.0
        %1418 = vmatpush1.msra.mxu0 %v1399
        %1419 = vmatprep.subr.mxu0 0.0
        %1420 = vmatpush1.msra.mxu0 %v1400
        %1421 = vmatprep.subr.mxu0 0.0
        %1422 = vmatpush1.msra.mxu0 %v1401
        %1423 = vmatprep.subr.mxu0 0.0
        %1424 = vmatpush1.msra.mxu0 %v1402
        %1425 = vmatprep.subr.mxu0 0.0
        %1426 = vmatpush1.msra.mxu0 %v1403
        %1427 = vmatprep.subr.mxu0 0.0
        %1428 = vmatpush1.msra.mxu0 %v1404
        %1429 = vmatprep.subr.mxu0 0.0
        %1430 = vmatpush1.msra.mxu0 %v1405
        %1431 = vmatprep.subr.mxu0 0.0
        %1432 = vmatpush1.msra.mxu0 %v1406
        %1433 = vmatprep.subr.mxu0 0.0
        %1434 = vmatpush1.msra.mxu0 %v1407
        %1435 = vmatprep.subr.mxu0 0.0
        %1436 = vmatpush1.msra.mxu0 %v1408
        %1437 = vmatprep.subr.mxu0 0.0
        %1438 = vmatpush1.msra.mxu0 %v1409
        %1439 = vmatprep.subr.mxu0 0.0
        %1440 = vmatpush1.msra.mxu0 %v1410
        %1441 = vmatprep.subr.mxu0 0.0
        %1442 = vmatpush1.msra.mxu0 %v1411
        %1443 = vmatprep.subr.mxu0 0.0
        %1444 = vmatpush1.msra.mxu0 %v1412
        %1445 = vmatprep.subr.mxu0 0.0
        %1446 = vmatpush1.msra.mxu0 0.0
        %1447 = vmatprep.subr.mxu0 0.0
        %1448 = vmatpush1.msra.mxu0 0.0
        %1449 = vmatprep.subr.mxu0 0.0
        %1450 = vmatpush1.msra.mxu0 0.0
        %1451 = vmatprep.subr.mxu0 0.0
        %1452 = vmatpush1.msra.mxu0 0.0
        %1453 = vmatprep.subr.mxu0 0.0
        %1454 = vmatpush1.msra.mxu0 0.0
        %1455 = vmatprep.subr.mxu0 0.0
        %1456 = vmatpush1.msra.mxu0 0.0
        %1457 = vmatprep.subr.mxu0 0.0
        %1458 = vmatpush1.msra.mxu0 0.0
        %1459 = vmatprep.subr.mxu0 0.0
        %1460 = vmatpush1.msra.mxu0 0.0
        %1461 = vmatprep.subr.mxu0 0.0
        %1462 = vmatpush1.msra.mxu0 0.0
        %1463 = vmatprep.subr.mxu0 0.0
        %1464 = vmatpush1.msra.mxu0 0.0
        %1465 = vmatprep.subr.mxu0 0.0
        %1466 = vmatpush1.msra.mxu0 0.0
        %1467 = vmatprep.subr.mxu0 0.0
        %1468 = vmatpush1.msra.mxu0 0.0
        %1469 = vmatprep.subr.mxu0 0.0
        %1470 = vmatpush1.msra.mxu0 0.0
        %1471 = vmatprep.subr.mxu0 0.0
        %1472 = vmatpush1.msra.mxu0 0.0
        %1473 = vmatprep.subr.mxu0 0.0
        %1474 = vmatpush1.msra.mxu0 0.0
        %1475 = vmatprep.subr.mxu0 0.0
        %1476 = vmatpush1.msra.mxu0 0.0
        %1477 = vmatprep.mubr.f32.mxu0 0.0
        %1478 = vmatmul.mubr.f32.gmra.mrb[0].mxu0 %v1360
        %v1479 = vpop.f32.mrb[0].mxu0
        %v1480 = vadd.f32 0.0, %v1479
        %v1481 = vpop.f32.mrb[0].mxu0
        %1482 = vmatprep.mubr.f32.mxu0 0.0
        %1483 = vmatmul.mubr.f32.gmra.mrb[0].mxu0 %v1361
        %v1484 = vpop.f32.mrb[0].mxu0
        %v1485 = vadd.f32 0.0, %v1484
        %v1486 = vpop.f32.mrb[0].mxu0
        %1487 = vmatprep.mubr.f32.mxu0 0.0
        %1488 = vmatmul.mubr.f32.gmra.mrb[0].mxu0 %v1362
        %v1489 = vpop.f32.mrb[0].mxu0
        %v1490 = vadd.f32 0.0, %v1489
        %v1491 = vpop.f32.mrb[0].mxu0
        %1492 = vmatprep.mubr.f32.mxu0 0.0
        %1493 = vmatmul.mubr.f32.gmra.mrb[0].mxu0 %v1363
        %v1494 = vpop.f32.mrb[0].mxu0
        %v1495 = vadd.f32 0.0, %v1494
        %v1496 = vpop.f32.mrb[0].mxu0
        %1497 = vmatprep.mubr.f32.mxu0 0.0
        %1498 = vmatmul.mubr.f32.gmra.mrb[0].mxu0 %v1364
        %v1499 = vpop.f32.mrb[0].mxu0
        %v1500 = vadd.f32 0.0, %v1499
        %v1501 = vpop.f32.mrb[0].mxu0
        %1502 = vmatprep.mubr.f32.mxu0 0.0
        %1503 = vmatmul.mubr.f32.gmra.mrb[0].mxu0 %v1365
        %v1504 = vpop.f32.mrb[0].mxu0
        %v1505 = vadd.f32 0.0, %v1504
        %v1506 = vpop.f32.mrb[0].mxu0
        %1507 = vmatprep.mubr.f32.mxu0 0.0
        %1508 = vmatmul.mubr.f32.gmra.mrb[0].mxu0 %v1366
        %v1509 = vpop.f32.mrb[0].mxu0
        %v1510 = vadd.f32 0.0, %v1509
        %v1511 = vpop.f32.mrb[0].mxu0
        %1512 = vmatprep.mubr.f32.mxu0 0.0
        %1513 = vmatmul.mubr.f32.gmra.mrb[0].mxu0 %v1367
        %v1514 = vpop.f32.mrb[0].mxu0
        %v1515 = vadd.f32 0.0, %v1514
        %v1516 = vpop.f32.mrb[0].mxu0
        %1517 = vmatprep.mubr.f32.mxu0 0.0
        %1518 = vmatmul.mubr.f32.gmra.mrb[0].mxu0 %v1368
        %v1519 = vpop.f32.mrb[0].mxu0
        %v1520 = vadd.f32 0.0, %v1519
        %v1521 = vpop.f32.mrb[0].mxu0
        %1522 = vmatprep.mubr.f32.mxu0 0.0
        %1523 = vmatmul.mubr.f32.gmra.mrb[0].mxu0 %v1369
        %v1524 = vpop.f32.mrb[0].mxu0
        %v1525 = vadd.f32 0.0, %v1524
        %v1526 = vpop.f32.mrb[0].mxu0
        %1527 = vmatprep.mubr.f32.mxu0 0.0
        %1528 = vmatmul.mubr.f32.gmra.mrb[0].mxu0 %v1370
        %v1529 = vpop.f32.mrb[0].mxu0
        %v1530 = vadd.f32 0.0, %v1529
        %v1531 = vpop.f32.mrb[0].mxu0
        %1532 = vmatprep.mubr.f32.mxu0 0.0
        %1533 = vmatmul.mubr.f32.gmra.mrb[0].mxu0 %v1371
        %v1534 = vpop.f32.mrb[0].mxu0
        %v1535 = vadd.f32 0.0, %v1534
        %v1536 = vpop.f32.mrb[0].mxu0
        %1537 = vmatprep.mubr.f32.mxu0 0.0
        %1538 = vmatmul.mubr.f32.gmra.mrb[0].mxu0 %v1372
        %v1539 = vpop.f32.mrb[0].mxu0
        %v1540 = vadd.f32 0.0, %v1539
        %v1541 = vpop.f32.mrb[0].mxu0
        %1542 = vmatprep.mubr.f32.mxu0 0.0
        %1543 = vmatmul.mubr.f32.gmra.mrb[0].mxu0 %v1373
        %v1544 = vpop.f32.mrb[0].mxu0
        %v1545 = vadd.f32 0.0, %v1544
        %v1546 = vpop.f32.mrb[0].mxu0
        %1547 = vmatprep.mubr.f32.mxu0 0.0
        %1548 = vmatmul.mubr.f32.gmra.mrb[0].mxu0 %v1374
        %v1549 = vpop.f32.mrb[0].mxu0
        %v1550 = vadd.f32 0.0, %v1549
        %v1551 = vpop.f32.mrb[0].mxu0
        %1552 = vmatprep.mubr.f32.mxu0 0.0
        %1553 = vmatmul.mubr.f32.gmra.mrb[0].mxu0 %v1375
        %v1554 = vpop.f32.mrb[0].mxu0
        %v1555 = vadd.f32 0.0, %v1554
        %v1556 = vpop.f32.mrb[0].mxu0
        %1557 = vmatprep.mubr.f32.mxu0 0.0
        %1558 = vmatmul.mubr.f32.gmra.mrb[0].mxu0 %v1376
        %v1559 = vpop.f32.mrb[0].mxu0
        %v1560 = vadd.f32 0.0, %v1559
        %v1561 = vpop.f32.mrb[0].mxu0
        %1562 = vmatprep.mubr.f32.mxu0 0.0
        %1563 = vmatmul.mubr.f32.gmra.mrb[0].mxu0 %v1377
        %v1564 = vpop.f32.mrb[0].mxu0
        %v1565 = vadd.f32 0.0, %v1564
        %v1566 = vpop.f32.mrb[0].mxu0
        %1567 = vmatprep.mubr.f32.mxu0 0.0
        %1568 = vmatmul.mubr.f32.gmra.mrb[0].mxu0 %v1378
        %v1569 = vpop.f32.mrb[0].mxu0
        %v1570 = vadd.f32 0.0, %v1569
        %v1571 = vpop.f32.mrb[0].mxu0
        %1572 = vmatprep.mubr.f32.mxu0 0.0
        %1573 = vmatmul.mubr.f32.gmra.mrb[0].mxu0 %v1379
        %v1574 = vpop.f32.mrb[0].mxu0
        %v1575 = vadd.f32 0.0, %v1574
        %v1576 = vpop.f32.mrb[0].mxu0
        %1577 = vmatprep.mubr.f32.mxu0 0.0
        %1578 = vmatmul.mubr.f32.gmra.mrb[0].mxu0 %v1380
        %v1579 = vpop.f32.mrb[0].mxu0
        %v1580 = vadd.f32 0.0, %v1579
        %v1581 = vpop.f32.mrb[0].mxu0
        %1582 = vmatprep.mubr.f32.mxu0 0.0
        %1583 = vmatmul.mubr.f32.gmra.mrb[0].mxu0 %v1381
        %v1584 = vpop.f32.mrb[0].mxu0
        %v1585 = vadd.f32 0.0, %v1584
        %v1586 = vpop.f32.mrb[0].mxu0
        %1587 = vmatprep.mubr.f32.mxu0 0.0
        %1588 = vmatmul.mubr.f32.gmra.mrb[0].mxu0 %v1382
        %v1589 = vpop.f32.mrb[0].mxu0
        %v1590 = vadd.f32 0.0, %v1589
        %v1591 = vpop.f32.mrb[0].mxu0
        %1592 = vmatprep.mubr.f32.mxu0 0.0
        %1593 = vmatmul.mubr.f32.gmra.mrb[0].mxu0 %v1383
        %v1594 = vpop.f32.mrb[0].mxu0
        %v1595 = vadd.f32 0.0, %v1594
        %v1596 = vpop.f32.mrb[0].mxu0
        %1597 = vmatprep.mubr.f32.mxu0 0.0
        %1598 = vmatmul.mubr.f32.gmra.mrb[0].mxu0 %v1384
        %v1599 = vpop.f32.mrb[0].mxu0
        %v1600 = vadd.f32 0.0, %v1599
        %v1601 = vpop.f32.mrb[0].mxu0
        %1602 = vmatprep.mubr.f32.mxu0 0.0
        %1603 = vmatmul.mubr.f32.gmra.mrb[0].mxu0 %v1385
        %v1604 = vpop.f32.mrb[0].mxu0
        %v1605 = vadd.f32 0.0, %v1604
        %v1606 = vpop.f32.mrb[0].mxu0
        %1607 = vmatprep.mubr.f32.mxu0 0.0
        %1608 = vmatmul.mubr.f32.gmra.mrb[0].mxu0 %v1386
        %v1609 = vpop.f32.mrb[0].mxu0
        %v1610 = vadd.f32 0.0, %v1609
        %v1611 = vpop.f32.mrb[0].mxu0
        %1612 = vmatprep.mubr.f32.mxu0 0.0
        %1613 = vmatmul.mubr.f32.gmra.mrb[0].mxu0 %v1387
        %v1614 = vpop.f32.mrb[0].mxu0
        %v1615 = vadd.f32 0.0, %v1614
        %v1616 = vpop.f32.mrb[0].mxu0
        %1617 = vmatprep.mubr.f32.mxu0 0.0
        %1618 = vmatmul.mubr.f32.gmra.mrb[0].mxu0 %v1388
        %v1619 = vpop.f32.mrb[0].mxu0
        %v1620 = vadd.f32 0.0, %v1619
        %v1621 = vpop.f32.mrb[0].mxu0
        %1622 = vmatprep.mubr.f32.mxu0 0.0
        %1623 = vmatmul.mubr.f32.gmra.mrb[0].mxu0 %v1389
        %v1624 = vpop.f32.mrb[0].mxu0
        %v1625 = vadd.f32 0.0, %v1624
        %v1626 = vpop.f32.mrb[0].mxu0
        %1627 = vmatprep.mubr.f32.mxu0 0.0
        %1628 = vmatmul.mubr.f32.gmra.mrb[0].mxu0 %v1390
        %v1629 = vpop.f32.mrb[0].mxu0
        %v1630 = vadd.f32 0.0, %v1629
        %v1631 = vpop.f32.mrb[0].mxu0
        %1632 = vmatprep.mubr.f32.mxu0 0.0
        %1633 = vmatmul.mubr.f32.gmra.mrb[0].mxu0 %v1391
        %v1634 = vpop.f32.mrb[0].mxu0
        %v1635 = vadd.f32 0.0, %v1634
        %v1636 = vpop.f32.mrb[0].mxu0
        %1637 = vmatprep.mubr.f32.mxu0 0.0
        %1638 = vmatmul.mubr.f32.gmra.mrb[0].mxu0 %v1392
        %v1639 = vpop.f32.mrb[0].mxu0
        %v1640 = vadd.f32 0.0, %v1639
        %v1641 = vpop.f32.mrb[0].mxu0
        %1642 = vmatprep.mubr.f32.mxu0 0.0
        %1643 = vmatmul.mubr.f32.gmra.mrb[0].mxu0 %v1393
        %v1644 = vpop.f32.mrb[0].mxu0
        %v1645 = vadd.f32 0.0, %v1644
        %v1646 = vpop.f32.mrb[0].mxu0
        %1647 = vmatprep.mubr.f32.mxu0 0.0
        %1648 = vmatmul.mubr.f32.gmra.mrb[0].mxu0 %v1394
        %v1649 = vpop.f32.mrb[0].mxu0
        %v1650 = vadd.f32 0.0, %v1649
        %v1651 = vpop.f32.mrb[0].mxu0
        %1652 = vmatprep.mubr.f32.mxu0 0.0
        %1653 = vmatmul.mubr.f32.gmra.mrb[0].mxu0 %v1395
        %v1654 = vpop.f32.mrb[0].mxu0
        %v1655 = vadd.f32 0.0, %v1654
        %v1656 = vpop.f32.mrb[0].mxu0
        %1657 = vdwg.mxu0
        %v1658 = vadd.f32 %v1182, %v1480
        %v1659 = vadd.f32 %v1187, %v1485
        %v1660 = vadd.f32 %v1192, %v1490
        %v1661 = vadd.f32 %v1197, %v1495
        %v1662 = vadd.f32 %v1202, %v1500
        %v1663 = vadd.f32 %v1207, %v1505
        %v1664 = vadd.f32 %v1212, %v1510
        %v1665 = vadd.f32 %v1217, %v1515
        %v1666 = vadd.f32 %v1222, %v1520
        %v1667 = vadd.f32 %v1227, %v1525
        %v1668 = vadd.f32 %v1232, %v1530
        %v1669 = vadd.f32 %v1237, %v1535
        %v1670 = vadd.f32 %v1242, %v1540
        %v1671 = vadd.f32 %v1247, %v1545
        %v1672 = vadd.f32 %v1252, %v1550
        %v1673 = vadd.f32 %v1257, %v1555
        %v1674 = vadd.f32 %v1262, %v1560
        %v1675 = vadd.f32 %v1267, %v1565
        %v1676 = vadd.f32 %v1272, %v1570
        %v1677 = vadd.f32 %v1277, %v1575
        %v1678 = vadd.f32 %v1282, %v1580
        %v1679 = vadd.f32 %v1287, %v1585
        %v1680 = vadd.f32 %v1292, %v1590
        %v1681 = vadd.f32 %v1297, %v1595
        %v1682 = vadd.f32 %v1302, %v1600
        %v1683 = vadd.f32 %v1307, %v1605
        %v1684 = vadd.f32 %v1312, %v1610
        %v1685 = vadd.f32 %v1317, %v1615
        %v1686 = vadd.f32 %v1322, %v1620
        %v1687 = vadd.f32 %v1327, %v1625
        %v1688 = vadd.f32 %v1332, %v1630
        %v1689 = vadd.f32 %v1337, %v1635
        %v1690 = vadd.f32 %v1342, %v1640
        %v1691 = vadd.f32 %v1347, %v1645
        %v1692 = vadd.f32 %v1352, %v1650
        %v1693 = vadd.f32 %v1357, %v1655
        %s1694 = scalar_lea.vmem [#allocation2], 24
        %v1695 = vld [vmem:[%s1694] sm:$0xff]
        %v1696 = vld [vmem:[%s1694 + $0x8] sm:$0xff]
        %v1697 = vld [vmem:[%s1694 + $0x18] sm:$0xff]
        %v1698 = vld [vmem:[%s1694 + $0x20] sm:$0xff]
        %v1699 = vld [vmem:[%s1694 + $0x30] sm:$0xff]
        %v1700 = vld [vmem:[%s1694 + $0x38] sm:$0xff]
        %v1701 = vld [vmem:[%s1694 + $0x48] sm:$0xff]
        %v1702 = vld [vmem:[%s1694 + $0x50] sm:$0xff]
        %v1703 = vld [vmem:[%s1694 + $0x60] sm:$0xff]
        %v1704 = vld [vmem:[%s1694 + $0x68] sm:$0xff]
        %v1705 = vld [vmem:[%s1694 + $0x78] sm:$0xff]
        %v1706 = vld [vmem:[%s1694 + $0x80] sm:$0xff]
        %v1707 = vld [vmem:[%s1694 + $0x90] sm:$0xff]
        %v1708 = vld [vmem:[%s1694 + $0x98] sm:$0xff]
        %v1709 = vld [vmem:[%s1694 + $0xa8] sm:$0xff]
        %v1710 = vld [vmem:[%s1694 + $0xb0] sm:$0xff]
        %v1711 = vld [vmem:[%s1694 + $0xc0] sm:$0xff]
        %v1712 = vld [vmem:[%s1694 + $0xc8] sm:$0xff]
        %v1713 = vld [vmem:[%s1694 + $0xd8] sm:$0xff]
        %v1714 = vld [vmem:[%s1694 + $0xe0] sm:$0xff]
        %v1715 = vld [vmem:[%s1694 + $0xf0] sm:$0xff]
        %v1716 = vld [vmem:[%s1694 + $0xf8] sm:$0xff]
        %v1717 = vld [vmem:[%s1694 + $0x108] sm:$0xff]
        %v1718 = vld [vmem:[%s1694 + $0x110] sm:$0xff]
        %v1719 = vld [vmem:[%s1694 + $0x120] sm:$0xff]
        %v1720 = vld [vmem:[%s1694 + $0x128] sm:$0xff]
        %v1721 = vld [vmem:[%s1694 + $0x138] sm:$0xff]
        %v1722 = vld [vmem:[%s1694 + $0x140] sm:$0xff]
        %v1723 = vld [vmem:[%s1694 + $0x150] sm:$0xff]
        %v1724 = vld [vmem:[%s1694 + $0x158] sm:$0xff]
        %v1725 = vld [vmem:[%s1694 + $0x168] sm:$0xff]
        %v1726 = vld [vmem:[%s1694 + $0x170] sm:$0xff]
        %v1727 = vld [vmem:[%s1694 + $0x180] sm:$0xff]
        %v1728 = vld [vmem:[%s1694 + $0x188] sm:$0xff]
        %v1729 = vld [vmem:[%s1694 + $0x198] sm:$0xff]
        %v1730 = vld [vmem:[%s1694 + $0x1a0] sm:$0xff]
        %s1731 = scalar_lea.vmem [#allocation7], 384
        %v1732 = vld [vmem:[%s1731] sm:$0xff]
        %v1733 = vld [vmem:[%s1731 + $0x8] sm:$0xff]
        %v1734 = vld [vmem:[%s1731 + $0x10] sm:$0xff]
        %v1735 = vld [vmem:[%s1731 + $0x18] sm:$0xff]
        %v1736 = vld [vmem:[%s1731 + $0x20] sm:$0xff]
        %v1737 = vld [vmem:[%s1731 + $0x28] sm:$0xff]
        %v1738 = vld [vmem:[%s1731 + $0x30] sm:$0xff]
        %v1739 = vld [vmem:[%s1731 + $0x38] sm:$0xff]
        %v1740 = vld [vmem:[%s1731 + $0x40] sm:$0xff]
        %v1741 = vld [vmem:[%s1731 + $0x48] sm:$0xff]
        %v1742 = vld [vmem:[%s1731 + $0x50] sm:$0xff]
        %v1743 = vld [vmem:[%s1731 + $0x58] sm:$0xff]
        %v1744 = vld [vmem:[%s1731 + $0x60] sm:$0xff]
        %v1745 = vld [vmem:[%s1731 + $0x68] sm:$0xff]
        %v1746 = vld [vmem:[%s1731 + $0x70] sm:$0xff]
        %v1747 = vld [vmem:[%s1731 + $0x78] sm:$0xff]
        %1748 = vmatprep.subr.mxu0 0.0
        %1749 = vmatpush1.msra.mxu0 %v1732
        %1750 = vmatprep.subr.mxu0 0.0
        %1751 = vmatpush1.msra.mxu0 %v1733
        %1752 = vmatprep.subr.mxu0 0.0
        %1753 = vmatpush1.msra.mxu0 %v1734
        %1754 = vmatprep.subr.mxu0 0.0
        %1755 = vmatpush1.msra.mxu0 %v1735
        %1756 = vmatprep.subr.mxu0 0.0
        %1757 = vmatpush1.msra.mxu0 %v1736
        %1758 = vmatprep.subr.mxu0 0.0
        %1759 = vmatpush1.msra.mxu0 %v1737
        %1760 = vmatprep.subr.mxu0 0.0
        %1761 = vmatpush1.msra.mxu0 %v1738
        %1762 = vmatprep.subr.mxu0 0.0
        %1763 = vmatpush1.msra.mxu0 %v1739
        %1764 = vmatprep.subr.mxu0 0.0
        %1765 = vmatpush1.msra.mxu0 %v1740
        %1766 = vmatprep.subr.mxu0 0.0
        %1767 = vmatpush1.msra.mxu0 %v1741
        %1768 = vmatprep.subr.mxu0 0.0
        %1769 = vmatpush1.msra.mxu0 %v1742
        %1770 = vmatprep.subr.mxu0 0.0
        %1771 = vmatpush1.msra.mxu0 %v1743
        %1772 = vmatprep.subr.mxu0 0.0
        %1773 = vmatpush1.msra.mxu0 %v1744
        %1774 = vmatprep.subr.mxu0 0.0
        %1775 = vmatpush1.msra.mxu0 %v1745
        %1776 = vmatprep.subr.mxu0 0.0
        %1777 = vmatpush1.msra.mxu0 %v1746
        %1778 = vmatprep.subr.mxu0 0.0
        %1779 = vmatpush1.msra.mxu0 %v1747
        %1780 = vmatprep.subr.mxu0 0.0
        %1781 = vmatpush1.msra.mxu0 0.0
        %1782 = vmatprep.subr.mxu0 0.0
        %1783 = vmatpush1.msra.mxu0 0.0
        %1784 = vmatprep.subr.mxu0 0.0
        %1785 = vmatpush1.msra.mxu0 0.0
        %1786 = vmatprep.subr.mxu0 0.0
        %1787 = vmatpush1.msra.mxu0 0.0
        %1788 = vmatprep.subr.mxu0 0.0
        %1789 = vmatpush1.msra.mxu0 0.0
        %1790 = vmatprep.subr.mxu0 0.0
        %1791 = vmatpush1.msra.mxu0 0.0
        %1792 = vmatprep.subr.mxu0 0.0
        %1793 = vmatpush1.msra.mxu0 0.0
        %1794 = vmatprep.subr.mxu0 0.0
        %1795 = vmatpush1.msra.mxu0 0.0
        %1796 = vmatprep.subr.mxu0 0.0
        %1797 = vmatpush1.msra.mxu0 0.0
        %1798 = vmatprep.subr.mxu0 0.0
        %1799 = vmatpush1.msra.mxu0 0.0
        %1800 = vmatprep.subr.mxu0 0.0
        %1801 = vmatpush1.msra.mxu0 0.0
        %1802 = vmatprep.subr.mxu0 0.0
        %1803 = vmatpush1.msra.mxu0 0.0
        %1804 = vmatprep.subr.mxu0 0.0
        %1805 = vmatpush1.msra.mxu0 0.0
        %1806 = vmatprep.subr.mxu0 0.0
        %1807 = vmatpush1.msra.mxu0 0.0
        %1808 = vmatprep.subr.mxu0 0.0
        %1809 = vmatpush1.msra.mxu0 0.0
        %1810 = vmatprep.subr.mxu0 0.0
        %1811 = vmatpush1.msra.mxu0 0.0
        %1812 = vmatprep.mubr.f32.mxu0 0.0
        %1813 = vmatmul.mubr.f32.gmra.mrb[0].mxu0 %v1695
        %v1814 = vpop.f32.mrb[0].mxu0
        %v1815 = vadd.f32 0.0, %v1814
        %v1816 = vpop.f32.mrb[0].mxu0
        %1817 = vmatprep.mubr.f32.mxu0 0.0
        %1818 = vmatmul.mubr.f32.gmra.mrb[0].mxu0 %v1696
        %v1819 = vpop.f32.mrb[0].mxu0
        %v1820 = vadd.f32 0.0, %v1819
        %v1821 = vpop.f32.mrb[0].mxu0
        %1822 = vmatprep.mubr.f32.mxu0 0.0
        %1823 = vmatmul.mubr.f32.gmra.mrb[0].mxu0 %v1697
        %v1824 = vpop.f32.mrb[0].mxu0
        %v1825 = vadd.f32 0.0, %v1824
        %v1826 = vpop.f32.mrb[0].mxu0
        %1827 = vmatprep.mubr.f32.mxu0 0.0
        %1828 = vmatmul.mubr.f32.gmra.mrb[0].mxu0 %v1698
        %v1829 = vpop.f32.mrb[0].mxu0
        %v1830 = vadd.f32 0.0, %v1829
        %v1831 = vpop.f32.mrb[0].mxu0
        %1832 = vmatprep.mubr.f32.mxu0 0.0
        %1833 = vmatmul.mubr.f32.gmra.mrb[0].mxu0 %v1699
        %v1834 = vpop.f32.mrb[0].mxu0
        %v1835 = vadd.f32 0.0, %v1834
        %v1836 = vpop.f32.mrb[0].mxu0
        %1837 = vmatprep.mubr.f32.mxu0 0.0
        %1838 = vmatmul.mubr.f32.gmra.mrb[0].mxu0 %v1700
        %v1839 = vpop.f32.mrb[0].mxu0
        %v1840 = vadd.f32 0.0, %v1839
        %v1841 = vpop.f32.mrb[0].mxu0
        %1842 = vmatprep.mubr.f32.mxu0 0.0
        %1843 = vmatmul.mubr.f32.gmra.mrb[0].mxu0 %v1701
        %v1844 = vpop.f32.mrb[0].mxu0
        %v1845 = vadd.f32 0.0, %v1844
        %v1846 = vpop.f32.mrb[0].mxu0
        %1847 = vmatprep.mubr.f32.mxu0 0.0
        %1848 = vmatmul.mubr.f32.gmra.mrb[0].mxu0 %v1702
        %v1849 = vpop.f32.mrb[0].mxu0
        %v1850 = vadd.f32 0.0, %v1849
        %v1851 = vpop.f32.mrb[0].mxu0
        %1852 = vmatprep.mubr.f32.mxu0 0.0
        %1853 = vmatmul.mubr.f32.gmra.mrb[0].mxu0 %v1703
        %v1854 = vpop.f32.mrb[0].mxu0
        %v1855 = vadd.f32 0.0, %v1854
        %v1856 = vpop.f32.mrb[0].mxu0
        %1857 = vmatprep.mubr.f32.mxu0 0.0
        %1858 = vmatmul.mubr.f32.gmra.mrb[0].mxu0 %v1704
        %v1859 = vpop.f32.mrb[0].mxu0
        %v1860 = vadd.f32 0.0, %v1859
        %v1861 = vpop.f32.mrb[0].mxu0
        %1862 = vmatprep.mubr.f32.mxu0 0.0
        %1863 = vmatmul.mubr.f32.gmra.mrb[0].mxu0 %v1705
        %v1864 = vpop.f32.mrb[0].mxu0
        %v1865 = vadd.f32 0.0, %v1864
        %v1866 = vpop.f32.mrb[0].mxu0
        %1867 = vmatprep.mubr.f32.mxu0 0.0
        %1868 = vmatmul.mubr.f32.gmra.mrb[0].mxu0 %v1706
        %v1869 = vpop.f32.mrb[0].mxu0
        %v1870 = vadd.f32 0.0, %v1869
        %v1871 = vpop.f32.mrb[0].mxu0
        %1872 = vmatprep.mubr.f32.mxu0 0.0
        %1873 = vmatmul.mubr.f32.gmra.mrb[0].mxu0 %v1707
        %v1874 = vpop.f32.mrb[0].mxu0
        %v1875 = vadd.f32 0.0, %v1874
        %v1876 = vpop.f32.mrb[0].mxu0
        %1877 = vmatprep.mubr.f32.mxu0 0.0
        %1878 = vmatmul.mubr.f32.gmra.mrb[0].mxu0 %v1708
        %v1879 = vpop.f32.mrb[0].mxu0
        %v1880 = vadd.f32 0.0, %v1879
        %v1881 = vpop.f32.mrb[0].mxu0
        %1882 = vmatprep.mubr.f32.mxu0 0.0
        %1883 = vmatmul.mubr.f32.gmra.mrb[0].mxu0 %v1709
        %v1884 = vpop.f32.mrb[0].mxu0
        %v1885 = vadd.f32 0.0, %v1884
        %v1886 = vpop.f32.mrb[0].mxu0
        %1887 = vmatprep.mubr.f32.mxu0 0.0
        %1888 = vmatmul.mubr.f32.gmra.mrb[0].mxu0 %v1710
        %v1889 = vpop.f32.mrb[0].mxu0
        %v1890 = vadd.f32 0.0, %v1889
        %v1891 = vpop.f32.mrb[0].mxu0
        %1892 = vmatprep.mubr.f32.mxu0 0.0
        %1893 = vmatmul.mubr.f32.gmra.mrb[0].mxu0 %v1711
        %v1894 = vpop.f32.mrb[0].mxu0
        %v1895 = vadd.f32 0.0, %v1894
        %v1896 = vpop.f32.mrb[0].mxu0
        %1897 = vmatprep.mubr.f32.mxu0 0.0
        %1898 = vmatmul.mubr.f32.gmra.mrb[0].mxu0 %v1712
        %v1899 = vpop.f32.mrb[0].mxu0
        %v1900 = vadd.f32 0.0, %v1899
        %v1901 = vpop.f32.mrb[0].mxu0
        %1902 = vmatprep.mubr.f32.mxu0 0.0
        %1903 = vmatmul.mubr.f32.gmra.mrb[0].mxu0 %v1713
        %v1904 = vpop.f32.mrb[0].mxu0
        %v1905 = vadd.f32 0.0, %v1904
        %v1906 = vpop.f32.mrb[0].mxu0
        %1907 = vmatprep.mubr.f32.mxu0 0.0
        %1908 = vmatmul.mubr.f32.gmra.mrb[0].mxu0 %v1714
        %v1909 = vpop.f32.mrb[0].mxu0
        %v1910 = vadd.f32 0.0, %v1909
        %v1911 = vpop.f32.mrb[0].mxu0
        %1912 = vmatprep.mubr.f32.mxu0 0.0
        %1913 = vmatmul.mubr.f32.gmra.mrb[0].mxu0 %v1715
        %v1914 = vpop.f32.mrb[0].mxu0
        %v1915 = vadd.f32 0.0, %v1914
        %v1916 = vpop.f32.mrb[0].mxu0
        %1917 = vmatprep.mubr.f32.mxu0 0.0
        %1918 = vmatmul.mubr.f32.gmra.mrb[0].mxu0 %v1716
        %v1919 = vpop.f32.mrb[0].mxu0
        %v1920 = vadd.f32 0.0, %v1919
        %v1921 = vpop.f32.mrb[0].mxu0
        %1922 = vmatprep.mubr.f32.mxu0 0.0
        %1923 = vmatmul.mubr.f32.gmra.mrb[0].mxu0 %v1717
        %v1924 = vpop.f32.mrb[0].mxu0
        %v1925 = vadd.f32 0.0, %v1924
        %v1926 = vpop.f32.mrb[0].mxu0
        %1927 = vmatprep.mubr.f32.mxu0 0.0
        %1928 = vmatmul.mubr.f32.gmra.mrb[0].mxu0 %v1718
        %v1929 = vpop.f32.mrb[0].mxu0
        %v1930 = vadd.f32 0.0, %v1929
        %v1931 = vpop.f32.mrb[0].mxu0
        %1932 = vmatprep.mubr.f32.mxu0 0.0
        %1933 = vmatmul.mubr.f32.gmra.mrb[0].mxu0 %v1719
        %v1934 = vpop.f32.mrb[0].mxu0
        %v1935 = vadd.f32 0.0, %v1934
        %v1936 = vpop.f32.mrb[0].mxu0
        %1937 = vmatprep.mubr.f32.mxu0 0.0
        %1938 = vmatmul.mubr.f32.gmra.mrb[0].mxu0 %v1720
        %v1939 = vpop.f32.mrb[0].mxu0
        %v1940 = vadd.f32 0.0, %v1939
        %v1941 = vpop.f32.mrb[0].mxu0
        %1942 = vmatprep.mubr.f32.mxu0 0.0
        %1943 = vmatmul.mubr.f32.gmra.mrb[0].mxu0 %v1721
        %v1944 = vpop.f32.mrb[0].mxu0
        %v1945 = vadd.f32 0.0, %v1944
        %v1946 = vpop.f32.mrb[0].mxu0
        %1947 = vmatprep.mubr.f32.mxu0 0.0
        %1948 = vmatmul.mubr.f32.gmra.mrb[0].mxu0 %v1722
        %v1949 = vpop.f32.mrb[0].mxu0
        %v1950 = vadd.f32 0.0, %v1949
        %v1951 = vpop.f32.mrb[0].mxu0
        %1952 = vmatprep.mubr.f32.mxu0 0.0
        %1953 = vmatmul.mubr.f32.gmra.mrb[0].mxu0 %v1723
        %v1954 = vpop.f32.mrb[0].mxu0
        %v1955 = vadd.f32 0.0, %v1954
        %v1956 = vpop.f32.mrb[0].mxu0
        %1957 = vmatprep.mubr.f32.mxu0 0.0
        %1958 = vmatmul.mubr.f32.gmra.mrb[0].mxu0 %v1724
        %v1959 = vpop.f32.mrb[0].mxu0
        %v1960 = vadd.f32 0.0, %v1959
        %v1961 = vpop.f32.mrb[0].mxu0
        %1962 = vmatprep.mubr.f32.mxu0 0.0
        %1963 = vmatmul.mubr.f32.gmra.mrb[0].mxu0 %v1725
        %v1964 = vpop.f32.mrb[0].mxu0
        %v1965 = vadd.f32 0.0, %v1964
        %v1966 = vpop.f32.mrb[0].mxu0
        %1967 = vmatprep.mubr.f32.mxu0 0.0
        %1968 = vmatmul.mubr.f32.gmra.mrb[0].mxu0 %v1726
        %v1969 = vpop.f32.mrb[0].mxu0
        %v1970 = vadd.f32 0.0, %v1969
        %v1971 = vpop.f32.mrb[0].mxu0
        %1972 = vmatprep.mubr.f32.mxu0 0.0
        %1973 = vmatmul.mubr.f32.gmra.mrb[0].mxu0 %v1727
        %v1974 = vpop.f32.mrb[0].mxu0
        %v1975 = vadd.f32 0.0, %v1974
        %v1976 = vpop.f32.mrb[0].mxu0
        %1977 = vmatprep.mubr.f32.mxu0 0.0
        %1978 = vmatmul.mubr.f32.gmra.mrb[0].mxu0 %v1728
        %v1979 = vpop.f32.mrb[0].mxu0
        %v1980 = vadd.f32 0.0, %v1979
        %v1981 = vpop.f32.mrb[0].mxu0
        %1982 = vmatprep.mubr.f32.mxu0 0.0
        %1983 = vmatmul.mubr.f32.gmra.mrb[0].mxu0 %v1729
        %v1984 = vpop.f32.mrb[0].mxu0
        %v1985 = vadd.f32 0.0, %v1984
        %v1986 = vpop.f32.mrb[0].mxu0
        %1987 = vmatprep.mubr.f32.mxu0 0.0
        %1988 = vmatmul.mubr.f32.gmra.mrb[0].mxu0 %v1730
        %v1989 = vpop.f32.mrb[0].mxu0
        %v1990 = vadd.f32 0.0, %v1989
        %v1991 = vpop.f32.mrb[0].mxu0
        %1992 = vdwg.mxu0
        %v1993 = vadd.f32 %v1658, %v1815
        %v1994 = vadd.f32 %v1659, %v1820
        %v1995 = vadd.f32 %v1660, %v1825
        %v1996 = vadd.f32 %v1661, %v1830
        %v1997 = vadd.f32 %v1662, %v1835
        %v1998 = vadd.f32 %v1663, %v1840
        %v1999 = vadd.f32 %v1664, %v1845
        %v2000 = vadd.f32 %v1665, %v1850
        %v2001 = vadd.f32 %v1666, %v1855
        %v2002 = vadd.f32 %v1667, %v1860
        %v2003 = vadd.f32 %v1668, %v1865
        %v2004 = vadd.f32 %v1669, %v1870
        %v2005 = vadd.f32 %v1670, %v1875
        %v2006 = vadd.f32 %v1671, %v1880
        %v2007 = vadd.f32 %v1672, %v1885
        %v2008 = vadd.f32 %v1673, %v1890
        %v2009 = vadd.f32 %v1674, %v1895
        %v2010 = vadd.f32 %v1675, %v1900
        %v2011 = vadd.f32 %v1676, %v1905
        %v2012 = vadd.f32 %v1677, %v1910
        %v2013 = vadd.f32 %v1678, %v1915
        %v2014 = vadd.f32 %v1679, %v1920
        %v2015 = vadd.f32 %v1680, %v1925
        %v2016 = vadd.f32 %v1681, %v1930
        %v2017 = vadd.f32 %v1682, %v1935
        %v2018 = vadd.f32 %v1683, %v1940
        %v2019 = vadd.f32 %v1684, %v1945
        %v2020 = vadd.f32 %v1685, %v1950
        %v2021 = vadd.f32 %v1686, %v1955
        %v2022 = vadd.f32 %v1687, %v1960
        %v2023 = vadd.f32 %v1688, %v1965
        %v2024 = vadd.f32 %v1689, %v1970
        %v2025 = vadd.f32 %v1690, %v1975
        %v2026 = vadd.f32 %v1691, %v1980
        %v2027 = vadd.f32 %v1692, %v1985
        %v2028 = vadd.f32 %v1693, %v1990
        %v2029 = vld [vmem:[%s1694 + $0x1] sm:$0xff]
        %v2030 = vld [vmem:[%s1694 + $0x9] sm:$0xff]
        %v2031 = vld [vmem:[%s1694 + $0x19] sm:$0xff]
        %v2032 = vld [vmem:[%s1694 + $0x21] sm:$0xff]
        %v2033 = vld [vmem:[%s1694 + $0x31] sm:$0xff]
        %v2034 = vld [vmem:[%s1694 + $0x39] sm:$0xff]
        %v2035 = vld [vmem:[%s1694 + $0x49] sm:$0xff]
        %v2036 = vld [vmem:[%s1694 + $0x51] sm:$0xff]
        %v2037 = vld [vmem:[%s1694 + $0x61] sm:$0xff]
        %v2038 = vld [vmem:[%s1694 + $0x69] sm:$0xff]
        %v2039 = vld [vmem:[%s1694 + $0x79] sm:$0xff]
        %v2040 = vld [vmem:[%s1694 + $0x81] sm:$0xff]
        %v2041 = vld [vmem:[%s1694 + $0x91] sm:$0xff]
        %v2042 = vld [vmem:[%s1694 + $0x99] sm:$0xff]
        %v2043 = vld [vmem:[%s1694 + $0xa9] sm:$0xff]
        %v2044 = vld [vmem:[%s1694 + $0xb1] sm:$0xff]
        %v2045 = vld [vmem:[%s1694 + $0xc1] sm:$0xff]
        %v2046 = vld [vmem:[%s1694 + $0xc9] sm:$0xff]
        %v2047 = vld [vmem:[%s1694 + $0xd9] sm:$0xff]
        %v2048 = vld [vmem:[%s1694 + $0xe1] sm:$0xff]
        %v2049 = vld [vmem:[%s1694 + $0xf1] sm:$0xff]
        %v2050 = vld [vmem:[%s1694 + $0xf9] sm:$0xff]
        %v2051 = vld [vmem:[%s1694 + $0x109] sm:$0xff]
        %v2052 = vld [vmem:[%s1694 + $0x111] sm:$0xff]
        %v2053 = vld [vmem:[%s1694 + $0x121] sm:$0xff]
        %v2054 = vld [vmem:[%s1694 + $0x129] sm:$0xff]
        %v2055 = vld [vmem:[%s1694 + $0x139] sm:$0xff]
        %v2056 = vld [vmem:[%s1694 + $0x141] sm:$0xff]
        %v2057 = vld [vmem:[%s1694 + $0x151] sm:$0xff]
        %v2058 = vld [vmem:[%s1694 + $0x159] sm:$0xff]
        %v2059 = vld [vmem:[%s1694 + $0x169] sm:$0xff]
        %v2060 = vld [vmem:[%s1694 + $0x171] sm:$0xff]
        %v2061 = vld [vmem:[%s1694 + $0x181] sm:$0xff]
        %v2062 = vld [vmem:[%s1694 + $0x189] sm:$0xff]
        %v2063 = vld [vmem:[%s1694 + $0x199] sm:$0xff]
        %v2064 = vld [vmem:[%s1694 + $0x1a1] sm:$0xff]
        %s2065 = scalar_lea.vmem [#allocation7], 512
        %v2066 = vld [vmem:[%s2065] sm:$0xff]
        %v2067 = vld [vmem:[%s2065 + $0x8] sm:$0xff]
        %v2068 = vld [vmem:[%s2065 + $0x10] sm:$0xff]
        %v2069 = vld [vmem:[%s2065 + $0x18] sm:$0xff]
        %v2070 = vld [vmem:[%s2065 + $0x20] sm:$0xff]
        %v2071 = vld [vmem:[%s2065 + $0x28] sm:$0xff]
        %v2072 = vld [vmem:[%s2065 + $0x30] sm:$0xff]
        %v2073 = vld [vmem:[%s2065 + $0x38] sm:$0xff]
        %v2074 = vld [vmem:[%s2065 + $0x40] sm:$0xff]
        %v2075 = vld [vmem:[%s2065 + $0x48] sm:$0xff]
        %v2076 = vld [vmem:[%s2065 + $0x50] sm:$0xff]
        %v2077 = vld [vmem:[%s2065 + $0x58] sm:$0xff]
        %v2078 = vld [vmem:[%s2065 + $0x60] sm:$0xff]
        %v2079 = vld [vmem:[%s2065 + $0x68] sm:$0xff]
        %v2080 = vld [vmem:[%s2065 + $0x70] sm:$0xff]
        %v2081 = vld [vmem:[%s2065 + $0x78] sm:$0xff]
        %2082 = vmatprep.subr.mxu0 0.0
        %2083 = vmatpush1.msra.mxu0 %v2066
        %2084 = vmatprep.subr.mxu0 0.0
        %2085 = vmatpush1.msra.mxu0 %v2067
        %2086 = vmatprep.subr.mxu0 0.0
        %2087 = vmatpush1.msra.mxu0 %v2068
        %2088 = vmatprep.subr.mxu0 0.0
        %2089 = vmatpush1.msra.mxu0 %v2069
        %2090 = vmatprep.subr.mxu0 0.0
        %2091 = vmatpush1.msra.mxu0 %v2070
        %2092 = vmatprep.subr.mxu0 0.0
        %2093 = vmatpush1.msra.mxu0 %v2071
        %2094 = vmatprep.subr.mxu0 0.0
        %2095 = vmatpush1.msra.mxu0 %v2072
        %2096 = vmatprep.subr.mxu0 0.0
        %2097 = vmatpush1.msra.mxu0 %v2073
        %2098 = vmatprep.subr.mxu0 0.0
        %2099 = vmatpush1.msra.mxu0 %v2074
        %2100 = vmatprep.subr.mxu0 0.0
        %2101 = vmatpush1.msra.mxu0 %v2075
        %2102 = vmatprep.subr.mxu0 0.0
        %2103 = vmatpush1.msra.mxu0 %v2076
        %2104 = vmatprep.subr.mxu0 0.0
        %2105 = vmatpush1.msra.mxu0 %v2077
        %2106 = vmatprep.subr.mxu0 0.0
        %2107 = vmatpush1.msra.mxu0 %v2078
        %2108 = vmatprep.subr.mxu0 0.0
        %2109 = vmatpush1.msra.mxu0 %v2079
        %2110 = vmatprep.subr.mxu0 0.0
        %2111 = vmatpush1.msra.mxu0 %v2080
        %2112 = vmatprep.subr.mxu0 0.0
        %2113 = vmatpush1.msra.mxu0 %v2081
        %2114 = vmatprep.subr.mxu0 0.0
        %2115 = vmatpush1.msra.mxu0 0.0
        %2116 = vmatprep.subr.mxu0 0.0
        %2117 = vmatpush1.msra.mxu0 0.0
        %2118 = vmatprep.subr.mxu0 0.0
        %2119 = vmatpush1.msra.mxu0 0.0
        %2120 = vmatprep.subr.mxu0 0.0
        %2121 = vmatpush1.msra.mxu0 0.0
        %2122 = vmatprep.subr.mxu0 0.0
        %2123 = vmatpush1.msra.mxu0 0.0
        %2124 = vmatprep.subr.mxu0 0.0
        %2125 = vmatpush1.msra.mxu0 0.0
        %2126 = vmatprep.subr.mxu0 0.0
        %2127 = vmatpush1.msra.mxu0 0.0
        %2128 = vmatprep.subr.mxu0 0.0
        %2129 = vmatpush1.msra.mxu0 0.0
        %2130 = vmatprep.subr.mxu0 0.0
        %2131 = vmatpush1.msra.mxu0 0.0
        %2132 = vmatprep.subr.mxu0 0.0
        %2133 = vmatpush1.msra.mxu0 0.0
        %2134 = vmatprep.subr.mxu0 0.0
        %2135 = vmatpush1.msra.mxu0 0.0
        %2136 = vmatprep.subr.mxu0 0.0
        %2137 = vmatpush1.msra.mxu0 0.0
        %2138 = vmatprep.subr.mxu0 0.0
        %2139 = vmatpush1.msra.mxu0 0.0
        %2140 = vmatprep.subr.mxu0 0.0
        %2141 = vmatpush1.msra.mxu0 0.0
        %2142 = vmatprep.subr.mxu0 0.0
        %2143 = vmatpush1.msra.mxu0 0.0
        %2144 = vmatprep.subr.mxu0 0.0
        %2145 = vmatpush1.msra.mxu0 0.0
        %2146 = vmatprep.mubr.f32.mxu0 0.0
        %2147 = vmatmul.mubr.f32.gmra.mrb[0].mxu0 %v2029
        %v2148 = vpop.f32.mrb[0].mxu0
        %v2149 = vadd.f32 0.0, %v2148
        %v2150 = vpop.f32.mrb[0].mxu0
        %2151 = vmatprep.mubr.f32.mxu0 0.0
        %2152 = vmatmul.mubr.f32.gmra.mrb[0].mxu0 %v2030
        %v2153 = vpop.f32.mrb[0].mxu0
        %v2154 = vadd.f32 0.0, %v2153
        %v2155 = vpop.f32.mrb[0].mxu0
        %2156 = vmatprep.mubr.f32.mxu0 0.0
        %2157 = vmatmul.mubr.f32.gmra.mrb[0].mxu0 %v2031
        %v2158 = vpop.f32.mrb[0].mxu0
        %v2159 = vadd.f32 0.0, %v2158
        %v2160 = vpop.f32.mrb[0].mxu0
        %2161 = vmatprep.mubr.f32.mxu0 0.0
        %2162 = vmatmul.mubr.f32.gmra.mrb[0].mxu0 %v2032
        %v2163 = vpop.f32.mrb[0].mxu0
        %v2164 = vadd.f32 0.0, %v2163
        %v2165 = vpop.f32.mrb[0].mxu0
        %2166 = vmatprep.mubr.f32.mxu0 0.0
        %2167 = vmatmul.mubr.f32.gmra.mrb[0].mxu0 %v2033
        %v2168 = vpop.f32.mrb[0].mxu0
        %v2169 = vadd.f32 0.0, %v2168
        %v2170 = vpop.f32.mrb[0].mxu0
        %2171 = vmatprep.mubr.f32.mxu0 0.0
        %2172 = vmatmul.mubr.f32.gmra.mrb[0].mxu0 %v2034
        %v2173 = vpop.f32.mrb[0].mxu0
        %v2174 = vadd.f32 0.0, %v2173
        %v2175 = vpop.f32.mrb[0].mxu0
        %2176 = vmatprep.mubr.f32.mxu0 0.0
        %2177 = vmatmul.mubr.f32.gmra.mrb[0].mxu0 %v2035
        %v2178 = vpop.f32.mrb[0].mxu0
        %v2179 = vadd.f32 0.0, %v2178
        %v2180 = vpop.f32.mrb[0].mxu0
        %2181 = vmatprep.mubr.f32.mxu0 0.0
        %2182 = vmatmul.mubr.f32.gmra.mrb[0].mxu0 %v2036
        %v2183 = vpop.f32.mrb[0].mxu0
        %v2184 = vadd.f32 0.0, %v2183
        %v2185 = vpop.f32.mrb[0].mxu0
        %2186 = vmatprep.mubr.f32.mxu0 0.0
        %2187 = vmatmul.mubr.f32.gmra.mrb[0].mxu0 %v2037
        %v2188 = vpop.f32.mrb[0].mxu0
        %v2189 = vadd.f32 0.0, %v2188
        %v2190 = vpop.f32.mrb[0].mxu0
        %2191 = vmatprep.mubr.f32.mxu0 0.0
        %2192 = vmatmul.mubr.f32.gmra.mrb[0].mxu0 %v2038
        %v2193 = vpop.f32.mrb[0].mxu0
        %v2194 = vadd.f32 0.0, %v2193
        %v2195 = vpop.f32.mrb[0].mxu0
        %2196 = vmatprep.mubr.f32.mxu0 0.0
        %2197 = vmatmul.mubr.f32.gmra.mrb[0].mxu0 %v2039
        %v2198 = vpop.f32.mrb[0].mxu0
        %v2199 = vadd.f32 0.0, %v2198
        %v2200 = vpop.f32.mrb[0].mxu0
        %2201 = vmatprep.mubr.f32.mxu0 0.0
        %2202 = vmatmul.mubr.f32.gmra.mrb[0].mxu0 %v2040
        %v2203 = vpop.f32.mrb[0].mxu0
        %v2204 = vadd.f32 0.0, %v2203
        %v2205 = vpop.f32.mrb[0].mxu0
        %2206 = vmatprep.mubr.f32.mxu0 0.0
        %2207 = vmatmul.mubr.f32.gmra.mrb[0].mxu0 %v2041
        %v2208 = vpop.f32.mrb[0].mxu0
        %v2209 = vadd.f32 0.0, %v2208
        %v2210 = vpop.f32.mrb[0].mxu0
        %2211 = vmatprep.mubr.f32.mxu0 0.0
        %2212 = vmatmul.mubr.f32.gmra.mrb[0].mxu0 %v2042
        %v2213 = vpop.f32.mrb[0].mxu0
        %v2214 = vadd.f32 0.0, %v2213
        %v2215 = vpop.f32.mrb[0].mxu0
        %2216 = vmatprep.mubr.f32.mxu0 0.0
        %2217 = vmatmul.mubr.f32.gmra.mrb[0].mxu0 %v2043
        %v2218 = vpop.f32.mrb[0].mxu0
        %v2219 = vadd.f32 0.0, %v2218
        %v2220 = vpop.f32.mrb[0].mxu0
        %2221 = vmatprep.mubr.f32.mxu0 0.0
        %2222 = vmatmul.mubr.f32.gmra.mrb[0].mxu0 %v2044
        %v2223 = vpop.f32.mrb[0].mxu0
        %v2224 = vadd.f32 0.0, %v2223
        %v2225 = vpop.f32.mrb[0].mxu0
        %2226 = vmatprep.mubr.f32.mxu0 0.0
        %2227 = vmatmul.mubr.f32.gmra.mrb[0].mxu0 %v2045
        %v2228 = vpop.f32.mrb[0].mxu0
        %v2229 = vadd.f32 0.0, %v2228
        %v2230 = vpop.f32.mrb[0].mxu0
        %2231 = vmatprep.mubr.f32.mxu0 0.0
        %2232 = vmatmul.mubr.f32.gmra.mrb[0].mxu0 %v2046
        %v2233 = vpop.f32.mrb[0].mxu0
        %v2234 = vadd.f32 0.0, %v2233
        %v2235 = vpop.f32.mrb[0].mxu0
        %2236 = vmatprep.mubr.f32.mxu0 0.0
        %2237 = vmatmul.mubr.f32.gmra.mrb[0].mxu0 %v2047
        %v2238 = vpop.f32.mrb[0].mxu0
        %v2239 = vadd.f32 0.0, %v2238
        %v2240 = vpop.f32.mrb[0].mxu0
        %2241 = vmatprep.mubr.f32.mxu0 0.0
        %2242 = vmatmul.mubr.f32.gmra.mrb[0].mxu0 %v2048
        %v2243 = vpop.f32.mrb[0].mxu0
        %v2244 = vadd.f32 0.0, %v2243
        %v2245 = vpop.f32.mrb[0].mxu0
        %2246 = vmatprep.mubr.f32.mxu0 0.0
        %2247 = vmatmul.mubr.f32.gmra.mrb[0].mxu0 %v2049
        %v2248 = vpop.f32.mrb[0].mxu0
        %v2249 = vadd.f32 0.0, %v2248
        %v2250 = vpop.f32.mrb[0].mxu0
        %2251 = vmatprep.mubr.f32.mxu0 0.0
        %2252 = vmatmul.mubr.f32.gmra.mrb[0].mxu0 %v2050
        %v2253 = vpop.f32.mrb[0].mxu0
        %v2254 = vadd.f32 0.0, %v2253
        %v2255 = vpop.f32.mrb[0].mxu0
        %2256 = vmatprep.mubr.f32.mxu0 0.0
        %2257 = vmatmul.mubr.f32.gmra.mrb[0].mxu0 %v2051
        %v2258 = vpop.f32.mrb[0].mxu0
        %v2259 = vadd.f32 0.0, %v2258
        %v2260 = vpop.f32.mrb[0].mxu0
        %2261 = vmatprep.mubr.f32.mxu0 0.0
        %2262 = vmatmul.mubr.f32.gmra.mrb[0].mxu0 %v2052
        %v2263 = vpop.f32.mrb[0].mxu0
        %v2264 = vadd.f32 0.0, %v2263
        %v2265 = vpop.f32.mrb[0].mxu0
        %2266 = vmatprep.mubr.f32.mxu0 0.0
        %2267 = vmatmul.mubr.f32.gmra.mrb[0].mxu0 %v2053
        %v2268 = vpop.f32.mrb[0].mxu0
        %v2269 = vadd.f32 0.0, %v2268
        %v2270 = vpop.f32.mrb[0].mxu0
        %2271 = vmatprep.mubr.f32.mxu0 0.0
        %2272 = vmatmul.mubr.f32.gmra.mrb[0].mxu0 %v2054
        %v2273 = vpop.f32.mrb[0].mxu0
        %v2274 = vadd.f32 0.0, %v2273
        %v2275 = vpop.f32.mrb[0].mxu0
        %2276 = vmatprep.mubr.f32.mxu0 0.0
        %2277 = vmatmul.mubr.f32.gmra.mrb[0].mxu0 %v2055
        %v2278 = vpop.f32.mrb[0].mxu0
        %v2279 = vadd.f32 0.0, %v2278
        %v2280 = vpop.f32.mrb[0].mxu0
        %2281 = vmatprep.mubr.f32.mxu0 0.0
        %2282 = vmatmul.mubr.f32.gmra.mrb[0].mxu0 %v2056
        %v2283 = vpop.f32.mrb[0].mxu0
        %v2284 = vadd.f32 0.0, %v2283
        %v2285 = vpop.f32.mrb[0].mxu0
        %2286 = vmatprep.mubr.f32.mxu0 0.0
        %2287 = vmatmul.mubr.f32.gmra.mrb[0].mxu0 %v2057
        %v2288 = vpop.f32.mrb[0].mxu0
        %v2289 = vadd.f32 0.0, %v2288
        %v2290 = vpop.f32.mrb[0].mxu0
        %2291 = vmatprep.mubr.f32.mxu0 0.0
        %2292 = vmatmul.mubr.f32.gmra.mrb[0].mxu0 %v2058
        %v2293 = vpop.f32.mrb[0].mxu0
        %v2294 = vadd.f32 0.0, %v2293
        %v2295 = vpop.f32.mrb[0].mxu0
        %2296 = vmatprep.mubr.f32.mxu0 0.0
        %2297 = vmatmul.mubr.f32.gmra.mrb[0].mxu0 %v2059
        %v2298 = vpop.f32.mrb[0].mxu0
        %v2299 = vadd.f32 0.0, %v2298
        %v2300 = vpop.f32.mrb[0].mxu0
        %2301 = vmatprep.mubr.f32.mxu0 0.0
        %2302 = vmatmul.mubr.f32.gmra.mrb[0].mxu0 %v2060
        %v2303 = vpop.f32.mrb[0].mxu0
        %v2304 = vadd.f32 0.0, %v2303
        %v2305 = vpop.f32.mrb[0].mxu0
        %2306 = vmatprep.mubr.f32.mxu0 0.0
        %2307 = vmatmul.mubr.f32.gmra.mrb[0].mxu0 %v2061
        %v2308 = vpop.f32.mrb[0].mxu0
        %v2309 = vadd.f32 0.0, %v2308
        %v2310 = vpop.f32.mrb[0].mxu0
        %2311 = vmatprep.mubr.f32.mxu0 0.0
        %2312 = vmatmul.mubr.f32.gmra.mrb[0].mxu0 %v2062
        %v2313 = vpop.f32.mrb[0].mxu0
        %v2314 = vadd.f32 0.0, %v2313
        %v2315 = vpop.f32.mrb[0].mxu0
        %2316 = vmatprep.mubr.f32.mxu0 0.0
        %2317 = vmatmul.mubr.f32.gmra.mrb[0].mxu0 %v2063
        %v2318 = vpop.f32.mrb[0].mxu0
        %v2319 = vadd.f32 0.0, %v2318
        %v2320 = vpop.f32.mrb[0].mxu0
        %2321 = vmatprep.mubr.f32.mxu0 0.0
        %2322 = vmatmul.mubr.f32.gmra.mrb[0].mxu0 %v2064
        %v2323 = vpop.f32.mrb[0].mxu0
        %v2324 = vadd.f32 0.0, %v2323
        %v2325 = vpop.f32.mrb[0].mxu0
        %2326 = vdwg.mxu0
        %v2327 = vadd.f32 %v1993, %v2149
        %v2328 = vadd.f32 %v1994, %v2154
        %v2329 = vadd.f32 %v1995, %v2159
        %v2330 = vadd.f32 %v1996, %v2164
        %v2331 = vadd.f32 %v1997, %v2169
        %v2332 = vadd.f32 %v1998, %v2174
        %v2333 = vadd.f32 %v1999, %v2179
        %v2334 = vadd.f32 %v2000, %v2184
        %v2335 = vadd.f32 %v2001, %v2189
        %v2336 = vadd.f32 %v2002, %v2194
        %v2337 = vadd.f32 %v2003, %v2199
        %v2338 = vadd.f32 %v2004, %v2204
        %v2339 = vadd.f32 %v2005, %v2209
        %v2340 = vadd.f32 %v2006, %v2214
        %v2341 = vadd.f32 %v2007, %v2219
        %v2342 = vadd.f32 %v2008, %v2224
        %v2343 = vadd.f32 %v2009, %v2229
        %v2344 = vadd.f32 %v2010, %v2234
        %v2345 = vadd.f32 %v2011, %v2239
        %v2346 = vadd.f32 %v2012, %v2244
        %v2347 = vadd.f32 %v2013, %v2249
        %v2348 = vadd.f32 %v2014, %v2254
        %v2349 = vadd.f32 %v2015, %v2259
        %v2350 = vadd.f32 %v2016, %v2264
        %v2351 = vadd.f32 %v2017, %v2269
        %v2352 = vadd.f32 %v2018, %v2274
        %v2353 = vadd.f32 %v2019, %v2279
        %v2354 = vadd.f32 %v2020, %v2284
        %v2355 = vadd.f32 %v2021, %v2289
        %v2356 = vadd.f32 %v2022, %v2294
        %v2357 = vadd.f32 %v2023, %v2299
        %v2358 = vadd.f32 %v2024, %v2304
        %v2359 = vadd.f32 %v2025, %v2309
        %v2360 = vadd.f32 %v2026, %v2314
        %v2361 = vadd.f32 %v2027, %v2319
        %v2362 = vadd.f32 %v2028, %v2324
        %v2363 = vld [vmem:[%s1694 + $0x2] sm:$0xff]
        %v2364 = vld [vmem:[%s1694 + $0xa] sm:$0xff]
        %v2365 = vld [vmem:[%s1694 + $0x1a] sm:$0xff]
        %v2366 = vld [vmem:[%s1694 + $0x22] sm:$0xff]
        %v2367 = vld [vmem:[%s1694 + $0x32] sm:$0xff]
        %v2368 = vld [vmem:[%s1694 + $0x3a] sm:$0xff]
        %v2369 = vld [vmem:[%s1694 + $0x4a] sm:$0xff]
        %v2370 = vld [vmem:[%s1694 + $0x52] sm:$0xff]
        %v2371 = vld [vmem:[%s1694 + $0x62] sm:$0xff]
        %v2372 = vld [vmem:[%s1694 + $0x6a] sm:$0xff]
        %v2373 = vld [vmem:[%s1694 + $0x7a] sm:$0xff]
        %v2374 = vld [vmem:[%s1694 + $0x82] sm:$0xff]
        %v2375 = vld [vmem:[%s1694 + $0x92] sm:$0xff]
        %v2376 = vld [vmem:[%s1694 + $0x9a] sm:$0xff]
        %v2377 = vld [vmem:[%s1694 + $0xaa] sm:$0xff]
        %v2378 = vld [vmem:[%s1694 + $0xb2] sm:$0xff]
        %v2379 = vld [vmem:[%s1694 + $0xc2] sm:$0xff]
        %v2380 = vld [vmem:[%s1694 + $0xca] sm:$0xff]
        %v2381 = vld [vmem:[%s1694 + $0xda] sm:$0xff]
        %v2382 = vld [vmem:[%s1694 + $0xe2] sm:$0xff]
        %v2383 = vld [vmem:[%s1694 + $0xf2] sm:$0xff]
        %v2384 = vld [vmem:[%s1694 + $0xfa] sm:$0xff]
        %v2385 = vld [vmem:[%s1694 + $0x10a] sm:$0xff]
        %v2386 = vld [vmem:[%s1694 + $0x112] sm:$0xff]
        %v2387 = vld [vmem:[%s1694 + $0x122] sm:$0xff]
        %v2388 = vld [vmem:[%s1694 + $0x12a] sm:$0xff]
        %v2389 = vld [vmem:[%s1694 + $0x13a] sm:$0xff]
        %v2390 = vld [vmem:[%s1694 + $0x142] sm:$0xff]
        %v2391 = vld [vmem:[%s1694 + $0x152] sm:$0xff]
        %v2392 = vld [vmem:[%s1694 + $0x15a] sm:$0xff]
        %v2393 = vld [vmem:[%s1694 + $0x16a] sm:$0xff]
        %v2394 = vld [vmem:[%s1694 + $0x172] sm:$0xff]
        %v2395 = vld [vmem:[%s1694 + $0x182] sm:$0xff]
        %v2396 = vld [vmem:[%s1694 + $0x18a] sm:$0xff]
        %v2397 = vld [vmem:[%s1694 + $0x19a] sm:$0xff]
        %v2398 = vld [vmem:[%s1694 + $0x1a2] sm:$0xff]
        %s2399 = scalar_lea.vmem [#allocation7], 640
        %v2400 = vld [vmem:[%s2399] sm:$0xff]
        %v2401 = vld [vmem:[%s2399 + $0x8] sm:$0xff]
        %v2402 = vld [vmem:[%s2399 + $0x10] sm:$0xff]
        %v2403 = vld [vmem:[%s2399 + $0x18] sm:$0xff]
        %v2404 = vld [vmem:[%s2399 + $0x20] sm:$0xff]
        %v2405 = vld [vmem:[%s2399 + $0x28] sm:$0xff]
        %v2406 = vld [vmem:[%s2399 + $0x30] sm:$0xff]
        %v2407 = vld [vmem:[%s2399 + $0x38] sm:$0xff]
        %v2408 = vld [vmem:[%s2399 + $0x40] sm:$0xff]
        %v2409 = vld [vmem:[%s2399 + $0x48] sm:$0xff]
        %v2410 = vld [vmem:[%s2399 + $0x50] sm:$0xff]
        %v2411 = vld [vmem:[%s2399 + $0x58] sm:$0xff]
        %v2412 = vld [vmem:[%s2399 + $0x60] sm:$0xff]
        %v2413 = vld [vmem:[%s2399 + $0x68] sm:$0xff]
        %v2414 = vld [vmem:[%s2399 + $0x70] sm:$0xff]
        %v2415 = vld [vmem:[%s2399 + $0x78] sm:$0xff]
        %2416 = vmatprep.subr.mxu0 0.0
        %2417 = vmatpush1.msra.mxu0 %v2400
        %2418 = vmatprep.subr.mxu0 0.0
        %2419 = vmatpush1.msra.mxu0 %v2401
        %2420 = vmatprep.subr.mxu0 0.0
        %2421 = vmatpush1.msra.mxu0 %v2402
        %2422 = vmatprep.subr.mxu0 0.0
        %2423 = vmatpush1.msra.mxu0 %v2403
        %2424 = vmatprep.subr.mxu0 0.0
        %2425 = vmatpush1.msra.mxu0 %v2404
        %2426 = vmatprep.subr.mxu0 0.0
        %2427 = vmatpush1.msra.mxu0 %v2405
        %2428 = vmatprep.subr.mxu0 0.0
        %2429 = vmatpush1.msra.mxu0 %v2406
        %2430 = vmatprep.subr.mxu0 0.0
        %2431 = vmatpush1.msra.mxu0 %v2407
        %2432 = vmatprep.subr.mxu0 0.0
        %2433 = vmatpush1.msra.mxu0 %v2408
        %2434 = vmatprep.subr.mxu0 0.0
        %2435 = vmatpush1.msra.mxu0 %v2409
        %2436 = vmatprep.subr.mxu0 0.0
        %2437 = vmatpush1.msra.mxu0 %v2410
        %2438 = vmatprep.subr.mxu0 0.0
        %2439 = vmatpush1.msra.mxu0 %v2411
        %2440 = vmatprep.subr.mxu0 0.0
        %2441 = vmatpush1.msra.mxu0 %v2412
        %2442 = vmatprep.subr.mxu0 0.0
        %2443 = vmatpush1.msra.mxu0 %v2413
        %2444 = vmatprep.subr.mxu0 0.0
        %2445 = vmatpush1.msra.mxu0 %v2414
        %2446 = vmatprep.subr.mxu0 0.0
        %2447 = vmatpush1.msra.mxu0 %v2415
        %2448 = vmatprep.subr.mxu0 0.0
        %2449 = vmatpush1.msra.mxu0 0.0
        %2450 = vmatprep.subr.mxu0 0.0
        %2451 = vmatpush1.msra.mxu0 0.0
        %2452 = vmatprep.subr.mxu0 0.0
        %2453 = vmatpush1.msra.mxu0 0.0
        %2454 = vmatprep.subr.mxu0 0.0
        %2455 = vmatpush1.msra.mxu0 0.0
        %2456 = vmatprep.subr.mxu0 0.0
        %2457 = vmatpush1.msra.mxu0 0.0
        %2458 = vmatprep.subr.mxu0 0.0
        %2459 = vmatpush1.msra.mxu0 0.0
        %2460 = vmatprep.subr.mxu0 0.0
        %2461 = vmatpush1.msra.mxu0 0.0
        %2462 = vmatprep.subr.mxu0 0.0
        %2463 = vmatpush1.msra.mxu0 0.0
        %2464 = vmatprep.subr.mxu0 0.0
        %2465 = vmatpush1.msra.mxu0 0.0
        %2466 = vmatprep.subr.mxu0 0.0
        %2467 = vmatpush1.msra.mxu0 0.0
        %2468 = vmatprep.subr.mxu0 0.0
        %2469 = vmatpush1.msra.mxu0 0.0
        %2470 = vmatprep.subr.mxu0 0.0
        %2471 = vmatpush1.msra.mxu0 0.0
        %2472 = vmatprep.subr.mxu0 0.0
        %2473 = vmatpush1.msra.mxu0 0.0
        %2474 = vmatprep.subr.mxu0 0.0
        %2475 = vmatpush1.msra.mxu0 0.0
        %2476 = vmatprep.subr.mxu0 0.0
        %2477 = vmatpush1.msra.mxu0 0.0
        %2478 = vmatprep.subr.mxu0 0.0
        %2479 = vmatpush1.msra.mxu0 0.0
        %2480 = vmatprep.mubr.f32.mxu0 0.0
        %2481 = vmatmul.mubr.f32.gmra.mrb[0].mxu0 %v2363
        %v2482 = vpop.f32.mrb[0].mxu0
        %v2483 = vadd.f32 0.0, %v2482
        %v2484 = vpop.f32.mrb[0].mxu0
        %2485 = vmatprep.mubr.f32.mxu0 0.0
        %2486 = vmatmul.mubr.f32.gmra.mrb[0].mxu0 %v2364
        %v2487 = vpop.f32.mrb[0].mxu0
        %v2488 = vadd.f32 0.0, %v2487
        %v2489 = vpop.f32.mrb[0].mxu0
        %2490 = vmatprep.mubr.f32.mxu0 0.0
        %2491 = vmatmul.mubr.f32.gmra.mrb[0].mxu0 %v2365
        %v2492 = vpop.f32.mrb[0].mxu0
        %v2493 = vadd.f32 0.0, %v2492
        %v2494 = vpop.f32.mrb[0].mxu0
        %2495 = vmatprep.mubr.f32.mxu0 0.0
        %2496 = vmatmul.mubr.f32.gmra.mrb[0].mxu0 %v2366
        %v2497 = vpop.f32.mrb[0].mxu0
        %v2498 = vadd.f32 0.0, %v2497
        %v2499 = vpop.f32.mrb[0].mxu0
        %2500 = vmatprep.mubr.f32.mxu0 0.0
        %2501 = vmatmul.mubr.f32.gmra.mrb[0].mxu0 %v2367
        %v2502 = vpop.f32.mrb[0].mxu0
        %v2503 = vadd.f32 0.0, %v2502
        %v2504 = vpop.f32.mrb[0].mxu0
        %2505 = vmatprep.mubr.f32.mxu0 0.0
        %2506 = vmatmul.mubr.f32.gmra.mrb[0].mxu0 %v2368
        %v2507 = vpop.f32.mrb[0].mxu0
        %v2508 = vadd.f32 0.0, %v2507
        %v2509 = vpop.f32.mrb[0].mxu0
        %2510 = vmatprep.mubr.f32.mxu0 0.0
        %2511 = vmatmul.mubr.f32.gmra.mrb[0].mxu0 %v2369
        %v2512 = vpop.f32.mrb[0].mxu0
        %v2513 = vadd.f32 0.0, %v2512
        %v2514 = vpop.f32.mrb[0].mxu0
        %2515 = vmatprep.mubr.f32.mxu0 0.0
        %2516 = vmatmul.mubr.f32.gmra.mrb[0].mxu0 %v2370
        %v2517 = vpop.f32.mrb[0].mxu0
        %v2518 = vadd.f32 0.0, %v2517
        %v2519 = vpop.f32.mrb[0].mxu0
        %2520 = vmatprep.mubr.f32.mxu0 0.0
        %2521 = vmatmul.mubr.f32.gmra.mrb[0].mxu0 %v2371
        %v2522 = vpop.f32.mrb[0].mxu0
        %v2523 = vadd.f32 0.0, %v2522
        %v2524 = vpop.f32.mrb[0].mxu0
        %2525 = vmatprep.mubr.f32.mxu0 0.0
        %2526 = vmatmul.mubr.f32.gmra.mrb[0].mxu0 %v2372
        %v2527 = vpop.f32.mrb[0].mxu0
        %v2528 = vadd.f32 0.0, %v2527
        %v2529 = vpop.f32.mrb[0].mxu0
        %2530 = vmatprep.mubr.f32.mxu0 0.0
        %2531 = vmatmul.mubr.f32.gmra.mrb[0].mxu0 %v2373
        %v2532 = vpop.f32.mrb[0].mxu0
        %v2533 = vadd.f32 0.0, %v2532
        %v2534 = vpop.f32.mrb[0].mxu0
        %2535 = vmatprep.mubr.f32.mxu0 0.0
        %2536 = vmatmul.mubr.f32.gmra.mrb[0].mxu0 %v2374
        %v2537 = vpop.f32.mrb[0].mxu0
        %v2538 = vadd.f32 0.0, %v2537
        %v2539 = vpop.f32.mrb[0].mxu0
        %2540 = vmatprep.mubr.f32.mxu0 0.0
        %2541 = vmatmul.mubr.f32.gmra.mrb[0].mxu0 %v2375
        %v2542 = vpop.f32.mrb[0].mxu0
        %v2543 = vadd.f32 0.0, %v2542
        %v2544 = vpop.f32.mrb[0].mxu0
        %2545 = vmatprep.mubr.f32.mxu0 0.0
        %2546 = vmatmul.mubr.f32.gmra.mrb[0].mxu0 %v2376
        %v2547 = vpop.f32.mrb[0].mxu0
        %v2548 = vadd.f32 0.0, %v2547
        %v2549 = vpop.f32.mrb[0].mxu0
        %2550 = vmatprep.mubr.f32.mxu0 0.0
        %2551 = vmatmul.mubr.f32.gmra.mrb[0].mxu0 %v2377
        %v2552 = vpop.f32.mrb[0].mxu0
        %v2553 = vadd.f32 0.0, %v2552
        %v2554 = vpop.f32.mrb[0].mxu0
        %2555 = vmatprep.mubr.f32.mxu0 0.0
        %2556 = vmatmul.mubr.f32.gmra.mrb[0].mxu0 %v2378
        %v2557 = vpop.f32.mrb[0].mxu0
        %v2558 = vadd.f32 0.0, %v2557
        %v2559 = vpop.f32.mrb[0].mxu0
        %2560 = vmatprep.mubr.f32.mxu0 0.0
        %2561 = vmatmul.mubr.f32.gmra.mrb[0].mxu0 %v2379
        %v2562 = vpop.f32.mrb[0].mxu0
        %v2563 = vadd.f32 0.0, %v2562
        %v2564 = vpop.f32.mrb[0].mxu0
        %2565 = vmatprep.mubr.f32.mxu0 0.0
        %2566 = vmatmul.mubr.f32.gmra.mrb[0].mxu0 %v2380
        %v2567 = vpop.f32.mrb[0].mxu0
        %v2568 = vadd.f32 0.0, %v2567
        %v2569 = vpop.f32.mrb[0].mxu0
        %2570 = vmatprep.mubr.f32.mxu0 0.0
        %2571 = vmatmul.mubr.f32.gmra.mrb[0].mxu0 %v2381
        %v2572 = vpop.f32.mrb[0].mxu0
        %v2573 = vadd.f32 0.0, %v2572
        %v2574 = vpop.f32.mrb[0].mxu0
        %2575 = vmatprep.mubr.f32.mxu0 0.0
        %2576 = vmatmul.mubr.f32.gmra.mrb[0].mxu0 %v2382
        %v2577 = vpop.f32.mrb[0].mxu0
        %v2578 = vadd.f32 0.0, %v2577
        %v2579 = vpop.f32.mrb[0].mxu0
        %2580 = vmatprep.mubr.f32.mxu0 0.0
        %2581 = vmatmul.mubr.f32.gmra.mrb[0].mxu0 %v2383
        %v2582 = vpop.f32.mrb[0].mxu0
        %v2583 = vadd.f32 0.0, %v2582
        %v2584 = vpop.f32.mrb[0].mxu0
        %2585 = vmatprep.mubr.f32.mxu0 0.0
        %2586 = vmatmul.mubr.f32.gmra.mrb[0].mxu0 %v2384
        %v2587 = vpop.f32.mrb[0].mxu0
        %v2588 = vadd.f32 0.0, %v2587
        %v2589 = vpop.f32.mrb[0].mxu0
        %2590 = vmatprep.mubr.f32.mxu0 0.0
        %2591 = vmatmul.mubr.f32.gmra.mrb[0].mxu0 %v2385
        %v2592 = vpop.f32.mrb[0].mxu0
        %v2593 = vadd.f32 0.0, %v2592
        %v2594 = vpop.f32.mrb[0].mxu0
        %2595 = vmatprep.mubr.f32.mxu0 0.0
        %2596 = vmatmul.mubr.f32.gmra.mrb[0].mxu0 %v2386
        %v2597 = vpop.f32.mrb[0].mxu0
        %v2598 = vadd.f32 0.0, %v2597
        %v2599 = vpop.f32.mrb[0].mxu0
        %2600 = vmatprep.mubr.f32.mxu0 0.0
        %2601 = vmatmul.mubr.f32.gmra.mrb[0].mxu0 %v2387
        %v2602 = vpop.f32.mrb[0].mxu0
        %v2603 = vadd.f32 0.0, %v2602
        %v2604 = vpop.f32.mrb[0].mxu0
        %2605 = vmatprep.mubr.f32.mxu0 0.0
        %2606 = vmatmul.mubr.f32.gmra.mrb[0].mxu0 %v2388
        %v2607 = vpop.f32.mrb[0].mxu0
        %v2608 = vadd.f32 0.0, %v2607
        %v2609 = vpop.f32.mrb[0].mxu0
        %2610 = vmatprep.mubr.f32.mxu0 0.0
        %2611 = vmatmul.mubr.f32.gmra.mrb[0].mxu0 %v2389
        %v2612 = vpop.f32.mrb[0].mxu0
        %v2613 = vadd.f32 0.0, %v2612
        %v2614 = vpop.f32.mrb[0].mxu0
        %2615 = vmatprep.mubr.f32.mxu0 0.0
        %2616 = vmatmul.mubr.f32.gmra.mrb[0].mxu0 %v2390
        %v2617 = vpop.f32.mrb[0].mxu0
        %v2618 = vadd.f32 0.0, %v2617
        %v2619 = vpop.f32.mrb[0].mxu0
        %2620 = vmatprep.mubr.f32.mxu0 0.0
        %2621 = vmatmul.mubr.f32.gmra.mrb[0].mxu0 %v2391
        %v2622 = vpop.f32.mrb[0].mxu0
        %v2623 = vadd.f32 0.0, %v2622
        %v2624 = vpop.f32.mrb[0].mxu0
        %2625 = vmatprep.mubr.f32.mxu0 0.0
        %2626 = vmatmul.mubr.f32.gmra.mrb[0].mxu0 %v2392
        %v2627 = vpop.f32.mrb[0].mxu0
        %v2628 = vadd.f32 0.0, %v2627
        %v2629 = vpop.f32.mrb[0].mxu0
        %2630 = vmatprep.mubr.f32.mxu0 0.0
        %2631 = vmatmul.mubr.f32.gmra.mrb[0].mxu0 %v2393
        %v2632 = vpop.f32.mrb[0].mxu0
        %v2633 = vadd.f32 0.0, %v2632
        %v2634 = vpop.f32.mrb[0].mxu0
        %2635 = vmatprep.mubr.f32.mxu0 0.0
        %2636 = vmatmul.mubr.f32.gmra.mrb[0].mxu0 %v2394
        %v2637 = vpop.f32.mrb[0].mxu0
        %v2638 = vadd.f32 0.0, %v2637
        %v2639 = vpop.f32.mrb[0].mxu0
        %2640 = vmatprep.mubr.f32.mxu0 0.0
        %2641 = vmatmul.mubr.f32.gmra.mrb[0].mxu0 %v2395
        %v2642 = vpop.f32.mrb[0].mxu0
        %v2643 = vadd.f32 0.0, %v2642
        %v2644 = vpop.f32.mrb[0].mxu0
        %2645 = vmatprep.mubr.f32.mxu0 0.0
        %2646 = vmatmul.mubr.f32.gmra.mrb[0].mxu0 %v2396
        %v2647 = vpop.f32.mrb[0].mxu0
        %v2648 = vadd.f32 0.0, %v2647
        %v2649 = vpop.f32.mrb[0].mxu0
        %2650 = vmatprep.mubr.f32.mxu0 0.0
        %2651 = vmatmul.mubr.f32.gmra.mrb[0].mxu0 %v2397
        %v2652 = vpop.f32.mrb[0].mxu0
        %v2653 = vadd.f32 0.0, %v2652
        %v2654 = vpop.f32.mrb[0].mxu0
        %2655 = vmatprep.mubr.f32.mxu0 0.0
        %2656 = vmatmul.mubr.f32.gmra.mrb[0].mxu0 %v2398
        %v2657 = vpop.f32.mrb[0].mxu0
        %v2658 = vadd.f32 0.0, %v2657
        %v2659 = vpop.f32.mrb[0].mxu0
        %2660 = vdwg.mxu0
        %v2661 = vadd.f32 %v2327, %v2483
        %v2662 = vadd.f32 %v2328, %v2488
        %v2663 = vadd.f32 %v2329, %v2493
        %v2664 = vadd.f32 %v2330, %v2498
        %v2665 = vadd.f32 %v2331, %v2503
        %v2666 = vadd.f32 %v2332, %v2508
        %v2667 = vadd.f32 %v2333, %v2513
        %v2668 = vadd.f32 %v2334, %v2518
        %v2669 = vadd.f32 %v2335, %v2523
        %v2670 = vadd.f32 %v2336, %v2528
        %v2671 = vadd.f32 %v2337, %v2533
        %v2672 = vadd.f32 %v2338, %v2538
        %v2673 = vadd.f32 %v2339, %v2543
        %v2674 = vadd.f32 %v2340, %v2548
        %v2675 = vadd.f32 %v2341, %v2553
        %v2676 = vadd.f32 %v2342, %v2558
        %v2677 = vadd.f32 %v2343, %v2563
        %v2678 = vadd.f32 %v2344, %v2568
        %v2679 = vadd.f32 %v2345, %v2573
        %v2680 = vadd.f32 %v2346, %v2578
        %v2681 = vadd.f32 %v2347, %v2583
        %v2682 = vadd.f32 %v2348, %v2588
        %v2683 = vadd.f32 %v2349, %v2593
        %v2684 = vadd.f32 %v2350, %v2598
        %v2685 = vadd.f32 %v2351, %v2603
        %v2686 = vadd.f32 %v2352, %v2608
        %v2687 = vadd.f32 %v2353, %v2613
        %v2688 = vadd.f32 %v2354, %v2618
        %v2689 = vadd.f32 %v2355, %v2623
        %v2690 = vadd.f32 %v2356, %v2628
        %v2691 = vadd.f32 %v2357, %v2633
        %v2692 = vadd.f32 %v2358, %v2638
        %v2693 = vadd.f32 %v2359, %v2643
        %v2694 = vadd.f32 %v2360, %v2648
        %v2695 = vadd.f32 %v2361, %v2653
        %v2696 = vadd.f32 %v2362, %v2658
        %v2697 = vld [vmem:[%s617] sm:$0xff]
        %v2698 = vld [vmem:[%s617 + $0x8] sm:$0xff]
        %v2699 = vld [vmem:[%s617 + $0x18] sm:$0xff]
        %v2700 = vld [vmem:[%s617 + $0x20] sm:$0xff]
        %v2701 = vld [vmem:[%s617 + $0x30] sm:$0xff]
        %v2702 = vld [vmem:[%s617 + $0x38] sm:$0xff]
        %v2703 = vld [vmem:[%s617 + $0x48] sm:$0xff]
        %v2704 = vld [vmem:[%s617 + $0x50] sm:$0xff]
        %v2705 = vld [vmem:[%s617 + $0x60] sm:$0xff]
        %v2706 = vld [vmem:[%s617 + $0x68] sm:$0xff]
        %v2707 = vld [vmem:[%s617 + $0x78] sm:$0xff]
        %v2708 = vld [vmem:[%s617 + $0x80] sm:$0xff]
        %v2709 = vld [vmem:[%s617 + $0x90] sm:$0xff]
        %v2710 = vld [vmem:[%s617 + $0x98] sm:$0xff]
        %v2711 = vld [vmem:[%s617 + $0xa8] sm:$0xff]
        %v2712 = vld [vmem:[%s617 + $0xb0] sm:$0xff]
        %v2713 = vld [vmem:[%s617 + $0xc0] sm:$0xff]
        %v2714 = vld [vmem:[%s617 + $0xc8] sm:$0xff]
        %v2715 = vld [vmem:[%s617 + $0xd8] sm:$0xff]
        %v2716 = vld [vmem:[%s617 + $0xe0] sm:$0xff]
        %v2717 = vld [vmem:[%s617 + $0xf0] sm:$0xff]
        %v2718 = vld [vmem:[%s617 + $0xf8] sm:$0xff]
        %v2719 = vld [vmem:[%s617 + $0x108] sm:$0xff]
        %v2720 = vld [vmem:[%s617 + $0x110] sm:$0xff]
        %v2721 = vld [vmem:[%s617 + $0x120] sm:$0xff]
        %v2722 = vld [vmem:[%s617 + $0x128] sm:$0xff]
        %v2723 = vld [vmem:[%s617 + $0x138] sm:$0xff]
        %v2724 = vld [vmem:[%s617 + $0x140] sm:$0xff]
        %v2725 = vld [vmem:[%s617 + $0x150] sm:$0xff]
        %v2726 = vld [vmem:[%s617 + $0x158] sm:$0xff]
        %v2727 = vld [vmem:[%s617 + $0x168] sm:$0xff]
        %v2728 = vld [vmem:[%s617 + $0x170] sm:$0xff]
        %v2729 = vld [vmem:[%s617 + $0x180] sm:$0xff]
        %v2730 = vld [vmem:[%s617 + $0x188] sm:$0xff]
        %v2731 = vld [vmem:[%s617 + $0x198] sm:$0xff]
        %v2732 = vld [vmem:[%s617 + $0x1a0] sm:$0xff]
        %s2733 = scalar_lea.vmem [#allocation7], 768
        %v2734 = vld [vmem:[%s2733] sm:$0xff]
        %v2735 = vld [vmem:[%s2733 + $0x8] sm:$0xff]
        %v2736 = vld [vmem:[%s2733 + $0x10] sm:$0xff]
        %v2737 = vld [vmem:[%s2733 + $0x18] sm:$0xff]
        %v2738 = vld [vmem:[%s2733 + $0x20] sm:$0xff]
        %v2739 = vld [vmem:[%s2733 + $0x28] sm:$0xff]
        %v2740 = vld [vmem:[%s2733 + $0x30] sm:$0xff]
        %v2741 = vld [vmem:[%s2733 + $0x38] sm:$0xff]
        %v2742 = vld [vmem:[%s2733 + $0x40] sm:$0xff]
        %v2743 = vld [vmem:[%s2733 + $0x48] sm:$0xff]
        %v2744 = vld [vmem:[%s2733 + $0x50] sm:$0xff]
        %v2745 = vld [vmem:[%s2733 + $0x58] sm:$0xff]
        %v2746 = vld [vmem:[%s2733 + $0x60] sm:$0xff]
        %v2747 = vld [vmem:[%s2733 + $0x68] sm:$0xff]
        %v2748 = vld [vmem:[%s2733 + $0x70] sm:$0xff]
        %v2749 = vld [vmem:[%s2733 + $0x78] sm:$0xff]
        %2750 = vmatprep.subr.mxu0 0.0
        %2751 = vmatpush1.msra.mxu0 %v2734
        %2752 = vmatprep.subr.mxu0 0.0
        %2753 = vmatpush1.msra.mxu0 %v2735
        %2754 = vmatprep.subr.mxu0 0.0
        %2755 = vmatpush1.msra.mxu0 %v2736
        %2756 = vmatprep.subr.mxu0 0.0
        %2757 = vmatpush1.msra.mxu0 %v2737
        %2758 = vmatprep.subr.mxu0 0.0
        %2759 = vmatpush1.msra.mxu0 %v2738
        %2760 = vmatprep.subr.mxu0 0.0
        %2761 = vmatpush1.msra.mxu0 %v2739
        %2762 = vmatprep.subr.mxu0 0.0
        %2763 = vmatpush1.msra.mxu0 %v2740
        %2764 = vmatprep.subr.mxu0 0.0
        %2765 = vmatpush1.msra.mxu0 %v2741
        %2766 = vmatprep.subr.mxu0 0.0
        %2767 = vmatpush1.msra.mxu0 %v2742
        %2768 = vmatprep.subr.mxu0 0.0
        %2769 = vmatpush1.msra.mxu0 %v2743
        %2770 = vmatprep.subr.mxu0 0.0
        %2771 = vmatpush1.msra.mxu0 %v2744
        %2772 = vmatprep.subr.mxu0 0.0
        %2773 = vmatpush1.msra.mxu0 %v2745
        %2774 = vmatprep.subr.mxu0 0.0
        %2775 = vmatpush1.msra.mxu0 %v2746
        %2776 = vmatprep.subr.mxu0 0.0
        %2777 = vmatpush1.msra.mxu0 %v2747
        %2778 = vmatprep.subr.mxu0 0.0
        %2779 = vmatpush1.msra.mxu0 %v2748
        %2780 = vmatprep.subr.mxu0 0.0
        %2781 = vmatpush1.msra.mxu0 %v2749
        %2782 = vmatprep.subr.mxu0 0.0
        %2783 = vmatpush1.msra.mxu0 0.0
        %2784 = vmatprep.subr.mxu0 0.0
        %2785 = vmatpush1.msra.mxu0 0.0
        %2786 = vmatprep.subr.mxu0 0.0
        %2787 = vmatpush1.msra.mxu0 0.0
        %2788 = vmatprep.subr.mxu0 0.0
        %2789 = vmatpush1.msra.mxu0 0.0
        %2790 = vmatprep.subr.mxu0 0.0
        %2791 = vmatpush1.msra.mxu0 0.0
        %2792 = vmatprep.subr.mxu0 0.0
        %2793 = vmatpush1.msra.mxu0 0.0
        %2794 = vmatprep.subr.mxu0 0.0
        %2795 = vmatpush1.msra.mxu0 0.0
        %2796 = vmatprep.subr.mxu0 0.0
        %2797 = vmatpush1.msra.mxu0 0.0
        %2798 = vmatprep.subr.mxu0 0.0
        %2799 = vmatpush1.msra.mxu0 0.0
        %2800 = vmatprep.subr.mxu0 0.0
        %2801 = vmatpush1.msra.mxu0 0.0
        %2802 = vmatprep.subr.mxu0 0.0
        %2803 = vmatpush1.msra.mxu0 0.0
        %2804 = vmatprep.subr.mxu0 0.0
        %2805 = vmatpush1.msra.mxu0 0.0
        %2806 = vmatprep.subr.mxu0 0.0
        %2807 = vmatpush1.msra.mxu0 0.0
        %2808 = vmatprep.subr.mxu0 0.0
        %2809 = vmatpush1.msra.mxu0 0.0
        %2810 = vmatprep.subr.mxu0 0.0
        %2811 = vmatpush1.msra.mxu0 0.0
        %2812 = vmatprep.subr.mxu0 0.0
        %2813 = vmatpush1.msra.mxu0 0.0
        %2814 = vmatprep.mubr.f32.mxu0 0.0
        %2815 = vmatmul.mubr.f32.gmra.mrb[0].mxu0 %v2697
        %v2816 = vpop.f32.mrb[0].mxu0
        %v2817 = vadd.f32 0.0, %v2816
        %v2818 = vpop.f32.mrb[0].mxu0
        %2819 = vmatprep.mubr.f32.mxu0 0.0
        %2820 = vmatmul.mubr.f32.gmra.mrb[0].mxu0 %v2698
        %v2821 = vpop.f32.mrb[0].mxu0
        %v2822 = vadd.f32 0.0, %v2821
        %v2823 = vpop.f32.mrb[0].mxu0
        %2824 = vmatprep.mubr.f32.mxu0 0.0
        %2825 = vmatmul.mubr.f32.gmra.mrb[0].mxu0 %v2699
        %v2826 = vpop.f32.mrb[0].mxu0
        %v2827 = vadd.f32 0.0, %v2826
        %v2828 = vpop.f32.mrb[0].mxu0
        %2829 = vmatprep.mubr.f32.mxu0 0.0
        %2830 = vmatmul.mubr.f32.gmra.mrb[0].mxu0 %v2700
        %v2831 = vpop.f32.mrb[0].mxu0
        %v2832 = vadd.f32 0.0, %v2831
        %v2833 = vpop.f32.mrb[0].mxu0
        %2834 = vmatprep.mubr.f32.mxu0 0.0
        %2835 = vmatmul.mubr.f32.gmra.mrb[0].mxu0 %v2701
        %v2836 = vpop.f32.mrb[0].mxu0
        %v2837 = vadd.f32 0.0, %v2836
        %v2838 = vpop.f32.mrb[0].mxu0
        %2839 = vmatprep.mubr.f32.mxu0 0.0
        %2840 = vmatmul.mubr.f32.gmra.mrb[0].mxu0 %v2702
        %v2841 = vpop.f32.mrb[0].mxu0
        %v2842 = vadd.f32 0.0, %v2841
        %v2843 = vpop.f32.mrb[0].mxu0
        %2844 = vmatprep.mubr.f32.mxu0 0.0
        %2845 = vmatmul.mubr.f32.gmra.mrb[0].mxu0 %v2703
        %v2846 = vpop.f32.mrb[0].mxu0
        %v2847 = vadd.f32 0.0, %v2846
        %v2848 = vpop.f32.mrb[0].mxu0
        %2849 = vmatprep.mubr.f32.mxu0 0.0
        %2850 = vmatmul.mubr.f32.gmra.mrb[0].mxu0 %v2704
        %v2851 = vpop.f32.mrb[0].mxu0
        %v2852 = vadd.f32 0.0, %v2851
        %v2853 = vpop.f32.mrb[0].mxu0
        %2854 = vmatprep.mubr.f32.mxu0 0.0
        %2855 = vmatmul.mubr.f32.gmra.mrb[0].mxu0 %v2705
        %v2856 = vpop.f32.mrb[0].mxu0
        %v2857 = vadd.f32 0.0, %v2856
        %v2858 = vpop.f32.mrb[0].mxu0
        %2859 = vmatprep.mubr.f32.mxu0 0.0
        %2860 = vmatmul.mubr.f32.gmra.mrb[0].mxu0 %v2706
        %v2861 = vpop.f32.mrb[0].mxu0
        %v2862 = vadd.f32 0.0, %v2861
        %v2863 = vpop.f32.mrb[0].mxu0
        %2864 = vmatprep.mubr.f32.mxu0 0.0
        %2865 = vmatmul.mubr.f32.gmra.mrb[0].mxu0 %v2707
        %v2866 = vpop.f32.mrb[0].mxu0
        %v2867 = vadd.f32 0.0, %v2866
        %v2868 = vpop.f32.mrb[0].mxu0
        %2869 = vmatprep.mubr.f32.mxu0 0.0
        %2870 = vmatmul.mubr.f32.gmra.mrb[0].mxu0 %v2708
        %v2871 = vpop.f32.mrb[0].mxu0
        %v2872 = vadd.f32 0.0, %v2871
        %v2873 = vpop.f32.mrb[0].mxu0
        %2874 = vmatprep.mubr.f32.mxu0 0.0
        %2875 = vmatmul.mubr.f32.gmra.mrb[0].mxu0 %v2709
        %v2876 = vpop.f32.mrb[0].mxu0
        %v2877 = vadd.f32 0.0, %v2876
        %v2878 = vpop.f32.mrb[0].mxu0
        %2879 = vmatprep.mubr.f32.mxu0 0.0
        %2880 = vmatmul.mubr.f32.gmra.mrb[0].mxu0 %v2710
        %v2881 = vpop.f32.mrb[0].mxu0
        %v2882 = vadd.f32 0.0, %v2881
        %v2883 = vpop.f32.mrb[0].mxu0
        %2884 = vmatprep.mubr.f32.mxu0 0.0
        %2885 = vmatmul.mubr.f32.gmra.mrb[0].mxu0 %v2711
        %v2886 = vpop.f32.mrb[0].mxu0
        %v2887 = vadd.f32 0.0, %v2886
        %v2888 = vpop.f32.mrb[0].mxu0
        %2889 = vmatprep.mubr.f32.mxu0 0.0
        %2890 = vmatmul.mubr.f32.gmra.mrb[0].mxu0 %v2712
        %v2891 = vpop.f32.mrb[0].mxu0
        %v2892 = vadd.f32 0.0, %v2891
        %v2893 = vpop.f32.mrb[0].mxu0
        %2894 = vmatprep.mubr.f32.mxu0 0.0
        %2895 = vmatmul.mubr.f32.gmra.mrb[0].mxu0 %v2713
        %v2896 = vpop.f32.mrb[0].mxu0
        %v2897 = vadd.f32 0.0, %v2896
        %v2898 = vpop.f32.mrb[0].mxu0
        %2899 = vmatprep.mubr.f32.mxu0 0.0
        %2900 = vmatmul.mubr.f32.gmra.mrb[0].mxu0 %v2714
        %v2901 = vpop.f32.mrb[0].mxu0
        %v2902 = vadd.f32 0.0, %v2901
        %v2903 = vpop.f32.mrb[0].mxu0
        %2904 = vmatprep.mubr.f32.mxu0 0.0
        %2905 = vmatmul.mubr.f32.gmra.mrb[0].mxu0 %v2715
        %v2906 = vpop.f32.mrb[0].mxu0
        %v2907 = vadd.f32 0.0, %v2906
        %v2908 = vpop.f32.mrb[0].mxu0
        %2909 = vmatprep.mubr.f32.mxu0 0.0
        %2910 = vmatmul.mubr.f32.gmra.mrb[0].mxu0 %v2716
        %v2911 = vpop.f32.mrb[0].mxu0
        %v2912 = vadd.f32 0.0, %v2911
        %v2913 = vpop.f32.mrb[0].mxu0
        %2914 = vmatprep.mubr.f32.mxu0 0.0
        %2915 = vmatmul.mubr.f32.gmra.mrb[0].mxu0 %v2717
        %v2916 = vpop.f32.mrb[0].mxu0
        %v2917 = vadd.f32 0.0, %v2916
        %v2918 = vpop.f32.mrb[0].mxu0
        %2919 = vmatprep.mubr.f32.mxu0 0.0
        %2920 = vmatmul.mubr.f32.gmra.mrb[0].mxu0 %v2718
        %v2921 = vpop.f32.mrb[0].mxu0
        %v2922 = vadd.f32 0.0, %v2921
        %v2923 = vpop.f32.mrb[0].mxu0
        %2924 = vmatprep.mubr.f32.mxu0 0.0
        %2925 = vmatmul.mubr.f32.gmra.mrb[0].mxu0 %v2719
        %v2926 = vpop.f32.mrb[0].mxu0
        %v2927 = vadd.f32 0.0, %v2926
        %v2928 = vpop.f32.mrb[0].mxu0
        %2929 = vmatprep.mubr.f32.mxu0 0.0
        %2930 = vmatmul.mubr.f32.gmra.mrb[0].mxu0 %v2720
        %v2931 = vpop.f32.mrb[0].mxu0
        %v2932 = vadd.f32 0.0, %v2931
        %v2933 = vpop.f32.mrb[0].mxu0
        %2934 = vmatprep.mubr.f32.mxu0 0.0
        %2935 = vmatmul.mubr.f32.gmra.mrb[0].mxu0 %v2721
        %v2936 = vpop.f32.mrb[0].mxu0
        %v2937 = vadd.f32 0.0, %v2936
        %v2938 = vpop.f32.mrb[0].mxu0
        %2939 = vmatprep.mubr.f32.mxu0 0.0
        %2940 = vmatmul.mubr.f32.gmra.mrb[0].mxu0 %v2722
        %v2941 = vpop.f32.mrb[0].mxu0
        %v2942 = vadd.f32 0.0, %v2941
        %v2943 = vpop.f32.mrb[0].mxu0
        %2944 = vmatprep.mubr.f32.mxu0 0.0
        %2945 = vmatmul.mubr.f32.gmra.mrb[0].mxu0 %v2723
        %v2946 = vpop.f32.mrb[0].mxu0
        %v2947 = vadd.f32 0.0, %v2946
        %v2948 = vpop.f32.mrb[0].mxu0
        %2949 = vmatprep.mubr.f32.mxu0 0.0
        %2950 = vmatmul.mubr.f32.gmra.mrb[0].mxu0 %v2724
        %v2951 = vpop.f32.mrb[0].mxu0
        %v2952 = vadd.f32 0.0, %v2951
        %v2953 = vpop.f32.mrb[0].mxu0
        %2954 = vmatprep.mubr.f32.mxu0 0.0
        %2955 = vmatmul.mubr.f32.gmra.mrb[0].mxu0 %v2725
        %v2956 = vpop.f32.mrb[0].mxu0
        %v2957 = vadd.f32 0.0, %v2956
        %v2958 = vpop.f32.mrb[0].mxu0
        %2959 = vmatprep.mubr.f32.mxu0 0.0
        %2960 = vmatmul.mubr.f32.gmra.mrb[0].mxu0 %v2726
        %v2961 = vpop.f32.mrb[0].mxu0
        %v2962 = vadd.f32 0.0, %v2961
        %v2963 = vpop.f32.mrb[0].mxu0
        %2964 = vmatprep.mubr.f32.mxu0 0.0
        %2965 = vmatmul.mubr.f32.gmra.mrb[0].mxu0 %v2727
        %v2966 = vpop.f32.mrb[0].mxu0
        %v2967 = vadd.f32 0.0, %v2966
        %v2968 = vpop.f32.mrb[0].mxu0
        %2969 = vmatprep.mubr.f32.mxu0 0.0
        %2970 = vmatmul.mubr.f32.gmra.mrb[0].mxu0 %v2728
        %v2971 = vpop.f32.mrb[0].mxu0
        %v2972 = vadd.f32 0.0, %v2971
        %v2973 = vpop.f32.mrb[0].mxu0
        %2974 = vmatprep.mubr.f32.mxu0 0.0
        %2975 = vmatmul.mubr.f32.gmra.mrb[0].mxu0 %v2729
        %v2976 = vpop.f32.mrb[0].mxu0
        %v2977 = vadd.f32 0.0, %v2976
        %v2978 = vpop.f32.mrb[0].mxu0
        %2979 = vmatprep.mubr.f32.mxu0 0.0
        %2980 = vmatmul.mubr.f32.gmra.mrb[0].mxu0 %v2730
        %v2981 = vpop.f32.mrb[0].mxu0
        %v2982 = vadd.f32 0.0, %v2981
        %v2983 = vpop.f32.mrb[0].mxu0
        %2984 = vmatprep.mubr.f32.mxu0 0.0
        %2985 = vmatmul.mubr.f32.gmra.mrb[0].mxu0 %v2731
        %v2986 = vpop.f32.mrb[0].mxu0
        %v2987 = vadd.f32 0.0, %v2986
        %v2988 = vpop.f32.mrb[0].mxu0
        %2989 = vmatprep.mubr.f32.mxu0 0.0
        %2990 = vmatmul.mubr.f32.gmra.mrb[0].mxu0 %v2732
        %v2991 = vpop.f32.mrb[0].mxu0
        %v2992 = vadd.f32 0.0, %v2991
        %v2993 = vpop.f32.mrb[0].mxu0
        %2994 = vdwg.mxu0
        %v2995 = vadd.f32 %v2661, %v2817
        %v2996 = vadd.f32 %v2662, %v2822
        %v2997 = vadd.f32 %v2663, %v2827
        %v2998 = vadd.f32 %v2664, %v2832
        %v2999 = vadd.f32 %v2665, %v2837
        %v3000 = vadd.f32 %v2666, %v2842
        %v3001 = vadd.f32 %v2667, %v2847
        %v3002 = vadd.f32 %v2668, %v2852
        %v3003 = vadd.f32 %v2669, %v2857
        %v3004 = vadd.f32 %v2670, %v2862
        %v3005 = vadd.f32 %v2671, %v2867
        %v3006 = vadd.f32 %v2672, %v2872
        %v3007 = vadd.f32 %v2673, %v2877
        %v3008 = vadd.f32 %v2674, %v2882
        %v3009 = vadd.f32 %v2675, %v2887
        %v3010 = vadd.f32 %v2676, %v2892
        %v3011 = vadd.f32 %v2677, %v2897
        %v3012 = vadd.f32 %v2678, %v2902
        %v3013 = vadd.f32 %v2679, %v2907
        %v3014 = vadd.f32 %v2680, %v2912
        %v3015 = vadd.f32 %v2681, %v2917
        %v3016 = vadd.f32 %v2682, %v2922
        %v3017 = vadd.f32 %v2683, %v2927
        %v3018 = vadd.f32 %v2684, %v2932
        %v3019 = vadd.f32 %v2685, %v2937
        %v3020 = vadd.f32 %v2686, %v2942
        %v3021 = vadd.f32 %v2687, %v2947
        %v3022 = vadd.f32 %v2688, %v2952
        %v3023 = vadd.f32 %v2689, %v2957
        %v3024 = vadd.f32 %v2690, %v2962
        %v3025 = vadd.f32 %v2691, %v2967
        %v3026 = vadd.f32 %v2692, %v2972
        %v3027 = vadd.f32 %v2693, %v2977
        %v3028 = vadd.f32 %v2694, %v2982
        %v3029 = vadd.f32 %v2695, %v2987
        %v3030 = vadd.f32 %v2696, %v2992
        %v3031 = vld [vmem:[%s617 + $0x1] sm:$0xff]
        %v3032 = vld [vmem:[%s617 + $0x9] sm:$0xff]
        %v3033 = vld [vmem:[%s617 + $0x19] sm:$0xff]
        %v3034 = vld [vmem:[%s617 + $0x21] sm:$0xff]
        %v3035 = vld [vmem:[%s617 + $0x31] sm:$0xff]
        %v3036 = vld [vmem:[%s617 + $0x39] sm:$0xff]
        %v3037 = vld [vmem:[%s617 + $0x49] sm:$0xff]
        %v3038 = vld [vmem:[%s617 + $0x51] sm:$0xff]
        %v3039 = vld [vmem:[%s617 + $0x61] sm:$0xff]
        %v3040 = vld [vmem:[%s617 + $0x69] sm:$0xff]
        %v3041 = vld [vmem:[%s617 + $0x79] sm:$0xff]
        %v3042 = vld [vmem:[%s617 + $0x81] sm:$0xff]
        %v3043 = vld [vmem:[%s617 + $0x91] sm:$0xff]
        %v3044 = vld [vmem:[%s617 + $0x99] sm:$0xff]
        %v3045 = vld [vmem:[%s617 + $0xa9] sm:$0xff]
        %v3046 = vld [vmem:[%s617 + $0xb1] sm:$0xff]
        %v3047 = vld [vmem:[%s617 + $0xc1] sm:$0xff]
        %v3048 = vld [vmem:[%s617 + $0xc9] sm:$0xff]
        %v3049 = vld [vmem:[%s617 + $0xd9] sm:$0xff]
        %v3050 = vld [vmem:[%s617 + $0xe1] sm:$0xff]
        %v3051 = vld [vmem:[%s617 + $0xf1] sm:$0xff]
        %v3052 = vld [vmem:[%s617 + $0xf9] sm:$0xff]
        %v3053 = vld [vmem:[%s617 + $0x109] sm:$0xff]
        %v3054 = vld [vmem:[%s617 + $0x111] sm:$0xff]
        %v3055 = vld [vmem:[%s617 + $0x121] sm:$0xff]
        %v3056 = vld [vmem:[%s617 + $0x129] sm:$0xff]
        %v3057 = vld [vmem:[%s617 + $0x139] sm:$0xff]
        %v3058 = vld [vmem:[%s617 + $0x141] sm:$0xff]
        %v3059 = vld [vmem:[%s617 + $0x151] sm:$0xff]
        %v3060 = vld [vmem:[%s617 + $0x159] sm:$0xff]
        %v3061 = vld [vmem:[%s617 + $0x169] sm:$0xff]
        %v3062 = vld [vmem:[%s617 + $0x171] sm:$0xff]
        %v3063 = vld [vmem:[%s617 + $0x181] sm:$0xff]
        %v3064 = vld [vmem:[%s617 + $0x189] sm:$0xff]
        %v3065 = vld [vmem:[%s617 + $0x199] sm:$0xff]
        %v3066 = vld [vmem:[%s617 + $0x1a1] sm:$0xff]
        %s3067 = scalar_lea.vmem [#allocation7], 896
        %v3068 = vld [vmem:[%s3067] sm:$0xff]
        %v3069 = vld [vmem:[%s3067 + $0x8] sm:$0xff]
        %v3070 = vld [vmem:[%s3067 + $0x10] sm:$0xff]
        %v3071 = vld [vmem:[%s3067 + $0x18] sm:$0xff]
        %v3072 = vld [vmem:[%s3067 + $0x20] sm:$0xff]
        %v3073 = vld [vmem:[%s3067 + $0x28] sm:$0xff]
        %v3074 = vld [vmem:[%s3067 + $0x30] sm:$0xff]
        %v3075 = vld [vmem:[%s3067 + $0x38] sm:$0xff]
        %v3076 = vld [vmem:[%s3067 + $0x40] sm:$0xff]
        %v3077 = vld [vmem:[%s3067 + $0x48] sm:$0xff]
        %v3078 = vld [vmem:[%s3067 + $0x50] sm:$0xff]
        %v3079 = vld [vmem:[%s3067 + $0x58] sm:$0xff]
        %v3080 = vld [vmem:[%s3067 + $0x60] sm:$0xff]
        %v3081 = vld [vmem:[%s3067 + $0x68] sm:$0xff]
        %v3082 = vld [vmem:[%s3067 + $0x70] sm:$0xff]
        %v3083 = vld [vmem:[%s3067 + $0x78] sm:$0xff]
        %3084 = vmatprep.subr.mxu0 0.0
        %3085 = vmatpush1.msra.mxu0 %v3068
        %3086 = vmatprep.subr.mxu0 0.0
        %3087 = vmatpush1.msra.mxu0 %v3069
        %3088 = vmatprep.subr.mxu0 0.0
        %3089 = vmatpush1.msra.mxu0 %v3070
        %3090 = vmatprep.subr.mxu0 0.0
        %3091 = vmatpush1.msra.mxu0 %v3071
        %3092 = vmatprep.subr.mxu0 0.0
        %3093 = vmatpush1.msra.mxu0 %v3072
        %3094 = vmatprep.subr.mxu0 0.0
        %3095 = vmatpush1.msra.mxu0 %v3073
        %3096 = vmatprep.subr.mxu0 0.0
        %3097 = vmatpush1.msra.mxu0 %v3074
        %3098 = vmatprep.subr.mxu0 0.0
        %3099 = vmatpush1.msra.mxu0 %v3075
        %3100 = vmatprep.subr.mxu0 0.0
        %3101 = vmatpush1.msra.mxu0 %v3076
        %3102 = vmatprep.subr.mxu0 0.0
        %3103 = vmatpush1.msra.mxu0 %v3077
        %3104 = vmatprep.subr.mxu0 0.0
        %3105 = vmatpush1.msra.mxu0 %v3078
        %3106 = vmatprep.subr.mxu0 0.0
        %3107 = vmatpush1.msra.mxu0 %v3079
        %3108 = vmatprep.subr.mxu0 0.0
        %3109 = vmatpush1.msra.mxu0 %v3080
        %3110 = vmatprep.subr.mxu0 0.0
        %3111 = vmatpush1.msra.mxu0 %v3081
        %3112 = vmatprep.subr.mxu0 0.0
        %3113 = vmatpush1.msra.mxu0 %v3082
        %3114 = vmatprep.subr.mxu0 0.0
        %3115 = vmatpush1.msra.mxu0 %v3083
        %3116 = vmatprep.subr.mxu0 0.0
        %3117 = vmatpush1.msra.mxu0 0.0
        %3118 = vmatprep.subr.mxu0 0.0
        %3119 = vmatpush1.msra.mxu0 0.0
        %3120 = vmatprep.subr.mxu0 0.0
        %3121 = vmatpush1.msra.mxu0 0.0
        %3122 = vmatprep.subr.mxu0 0.0
        %3123 = vmatpush1.msra.mxu0 0.0
        %3124 = vmatprep.subr.mxu0 0.0
        %3125 = vmatpush1.msra.mxu0 0.0
        %3126 = vmatprep.subr.mxu0 0.0
        %3127 = vmatpush1.msra.mxu0 0.0
        %3128 = vmatprep.subr.mxu0 0.0
        %3129 = vmatpush1.msra.mxu0 0.0
        %3130 = vmatprep.subr.mxu0 0.0
        %3131 = vmatpush1.msra.mxu0 0.0
        %3132 = vmatprep.subr.mxu0 0.0
        %3133 = vmatpush1.msra.mxu0 0.0
        %3134 = vmatprep.subr.mxu0 0.0
        %3135 = vmatpush1.msra.mxu0 0.0
        %3136 = vmatprep.subr.mxu0 0.0
        %3137 = vmatpush1.msra.mxu0 0.0
        %3138 = vmatprep.subr.mxu0 0.0
        %3139 = vmatpush1.msra.mxu0 0.0
        %3140 = vmatprep.subr.mxu0 0.0
        %3141 = vmatpush1.msra.mxu0 0.0
        %3142 = vmatprep.subr.mxu0 0.0
        %3143 = vmatpush1.msra.mxu0 0.0
        %3144 = vmatprep.subr.mxu0 0.0
        %3145 = vmatpush1.msra.mxu0 0.0
        %3146 = vmatprep.subr.mxu0 0.0
        %3147 = vmatpush1.msra.mxu0 0.0
        %3148 = vmatprep.mubr.f32.mxu0 0.0
        %3149 = vmatmul.mubr.f32.gmra.mrb[0].mxu0 %v3031
        %v3150 = vpop.f32.mrb[0].mxu0
        %v3151 = vadd.f32 0.0, %v3150
        %v3152 = vpop.f32.mrb[0].mxu0
        %3153 = vmatprep.mubr.f32.mxu0 0.0
        %3154 = vmatmul.mubr.f32.gmra.mrb[0].mxu0 %v3032
        %v3155 = vpop.f32.mrb[0].mxu0
        %v3156 = vadd.f32 0.0, %v3155
        %v3157 = vpop.f32.mrb[0].mxu0
        %3158 = vmatprep.mubr.f32.mxu0 0.0
        %3159 = vmatmul.mubr.f32.gmra.mrb[0].mxu0 %v3033
        %v3160 = vpop.f32.mrb[0].mxu0
        %v3161 = vadd.f32 0.0, %v3160
        %v3162 = vpop.f32.mrb[0].mxu0
        %3163 = vmatprep.mubr.f32.mxu0 0.0
        %3164 = vmatmul.mubr.f32.gmra.mrb[0].mxu0 %v3034
        %v3165 = vpop.f32.mrb[0].mxu0
        %v3166 = vadd.f32 0.0, %v3165
        %v3167 = vpop.f32.mrb[0].mxu0
        %3168 = vmatprep.mubr.f32.mxu0 0.0
        %3169 = vmatmul.mubr.f32.gmra.mrb[0].mxu0 %v3035
        %v3170 = vpop.f32.mrb[0].mxu0
        %v3171 = vadd.f32 0.0, %v3170
        %v3172 = vpop.f32.mrb[0].mxu0
        %3173 = vmatprep.mubr.f32.mxu0 0.0
        %3174 = vmatmul.mubr.f32.gmra.mrb[0].mxu0 %v3036
        %v3175 = vpop.f32.mrb[0].mxu0
        %v3176 = vadd.f32 0.0, %v3175
        %v3177 = vpop.f32.mrb[0].mxu0
        %3178 = vmatprep.mubr.f32.mxu0 0.0
        %3179 = vmatmul.mubr.f32.gmra.mrb[0].mxu0 %v3037
        %v3180 = vpop.f32.mrb[0].mxu0
        %v3181 = vadd.f32 0.0, %v3180
        %v3182 = vpop.f32.mrb[0].mxu0
        %3183 = vmatprep.mubr.f32.mxu0 0.0
        %3184 = vmatmul.mubr.f32.gmra.mrb[0].mxu0 %v3038
        %v3185 = vpop.f32.mrb[0].mxu0
        %v3186 = vadd.f32 0.0, %v3185
        %v3187 = vpop.f32.mrb[0].mxu0
        %3188 = vmatprep.mubr.f32.mxu0 0.0
        %3189 = vmatmul.mubr.f32.gmra.mrb[0].mxu0 %v3039
        %v3190 = vpop.f32.mrb[0].mxu0
        %v3191 = vadd.f32 0.0, %v3190
        %v3192 = vpop.f32.mrb[0].mxu0
        %3193 = vmatprep.mubr.f32.mxu0 0.0
        %3194 = vmatmul.mubr.f32.gmra.mrb[0].mxu0 %v3040
        %v3195 = vpop.f32.mrb[0].mxu0
        %v3196 = vadd.f32 0.0, %v3195
        %v3197 = vpop.f32.mrb[0].mxu0
        %3198 = vmatprep.mubr.f32.mxu0 0.0
        %3199 = vmatmul.mubr.f32.gmra.mrb[0].mxu0 %v3041
        %v3200 = vpop.f32.mrb[0].mxu0
        %v3201 = vadd.f32 0.0, %v3200
        %v3202 = vpop.f32.mrb[0].mxu0
        %3203 = vmatprep.mubr.f32.mxu0 0.0
        %3204 = vmatmul.mubr.f32.gmra.mrb[0].mxu0 %v3042
        %v3205 = vpop.f32.mrb[0].mxu0
        %v3206 = vadd.f32 0.0, %v3205
        %v3207 = vpop.f32.mrb[0].mxu0
        %3208 = vmatprep.mubr.f32.mxu0 0.0
        %3209 = vmatmul.mubr.f32.gmra.mrb[0].mxu0 %v3043
        %v3210 = vpop.f32.mrb[0].mxu0
        %v3211 = vadd.f32 0.0, %v3210
        %v3212 = vpop.f32.mrb[0].mxu0
        %3213 = vmatprep.mubr.f32.mxu0 0.0
        %3214 = vmatmul.mubr.f32.gmra.mrb[0].mxu0 %v3044
        %v3215 = vpop.f32.mrb[0].mxu0
        %v3216 = vadd.f32 0.0, %v3215
        %v3217 = vpop.f32.mrb[0].mxu0
        %3218 = vmatprep.mubr.f32.mxu0 0.0
        %3219 = vmatmul.mubr.f32.gmra.mrb[0].mxu0 %v3045
        %v3220 = vpop.f32.mrb[0].mxu0
        %v3221 = vadd.f32 0.0, %v3220
        %v3222 = vpop.f32.mrb[0].mxu0
        %3223 = vmatprep.mubr.f32.mxu0 0.0
        %3224 = vmatmul.mubr.f32.gmra.mrb[0].mxu0 %v3046
        %v3225 = vpop.f32.mrb[0].mxu0
        %v3226 = vadd.f32 0.0, %v3225
        %v3227 = vpop.f32.mrb[0].mxu0
        %3228 = vmatprep.mubr.f32.mxu0 0.0
        %3229 = vmatmul.mubr.f32.gmra.mrb[0].mxu0 %v3047
        %v3230 = vpop.f32.mrb[0].mxu0
        %v3231 = vadd.f32 0.0, %v3230
        %v3232 = vpop.f32.mrb[0].mxu0
        %3233 = vmatprep.mubr.f32.mxu0 0.0
        %3234 = vmatmul.mubr.f32.gmra.mrb[0].mxu0 %v3048
        %v3235 = vpop.f32.mrb[0].mxu0
        %v3236 = vadd.f32 0.0, %v3235
        %v3237 = vpop.f32.mrb[0].mxu0
        %3238 = vmatprep.mubr.f32.mxu0 0.0
        %3239 = vmatmul.mubr.f32.gmra.mrb[0].mxu0 %v3049
        %v3240 = vpop.f32.mrb[0].mxu0
        %v3241 = vadd.f32 0.0, %v3240
        %v3242 = vpop.f32.mrb[0].mxu0
        %3243 = vmatprep.mubr.f32.mxu0 0.0
        %3244 = vmatmul.mubr.f32.gmra.mrb[0].mxu0 %v3050
        %v3245 = vpop.f32.mrb[0].mxu0
        %v3246 = vadd.f32 0.0, %v3245
        %v3247 = vpop.f32.mrb[0].mxu0
        %3248 = vmatprep.mubr.f32.mxu0 0.0
        %3249 = vmatmul.mubr.f32.gmra.mrb[0].mxu0 %v3051
        %v3250 = vpop.f32.mrb[0].mxu0
        %v3251 = vadd.f32 0.0, %v3250
        %v3252 = vpop.f32.mrb[0].mxu0
        %3253 = vmatprep.mubr.f32.mxu0 0.0
        %3254 = vmatmul.mubr.f32.gmra.mrb[0].mxu0 %v3052
        %v3255 = vpop.f32.mrb[0].mxu0
        %v3256 = vadd.f32 0.0, %v3255
        %v3257 = vpop.f32.mrb[0].mxu0
        %3258 = vmatprep.mubr.f32.mxu0 0.0
        %3259 = vmatmul.mubr.f32.gmra.mrb[0].mxu0 %v3053
        %v3260 = vpop.f32.mrb[0].mxu0
        %v3261 = vadd.f32 0.0, %v3260
        %v3262 = vpop.f32.mrb[0].mxu0
        %3263 = vmatprep.mubr.f32.mxu0 0.0
        %3264 = vmatmul.mubr.f32.gmra.mrb[0].mxu0 %v3054
        %v3265 = vpop.f32.mrb[0].mxu0
        %v3266 = vadd.f32 0.0, %v3265
        %v3267 = vpop.f32.mrb[0].mxu0
        %3268 = vmatprep.mubr.f32.mxu0 0.0
        %3269 = vmatmul.mubr.f32.gmra.mrb[0].mxu0 %v3055
        %v3270 = vpop.f32.mrb[0].mxu0
        %v3271 = vadd.f32 0.0, %v3270
        %v3272 = vpop.f32.mrb[0].mxu0
        %3273 = vmatprep.mubr.f32.mxu0 0.0
        %3274 = vmatmul.mubr.f32.gmra.mrb[0].mxu0 %v3056
        %v3275 = vpop.f32.mrb[0].mxu0
        %v3276 = vadd.f32 0.0, %v3275
        %v3277 = vpop.f32.mrb[0].mxu0
        %3278 = vmatprep.mubr.f32.mxu0 0.0
        %3279 = vmatmul.mubr.f32.gmra.mrb[0].mxu0 %v3057
        %v3280 = vpop.f32.mrb[0].mxu0
        %v3281 = vadd.f32 0.0, %v3280
        %v3282 = vpop.f32.mrb[0].mxu0
        %3283 = vmatprep.mubr.f32.mxu0 0.0
        %3284 = vmatmul.mubr.f32.gmra.mrb[0].mxu0 %v3058
        %v3285 = vpop.f32.mrb[0].mxu0
        %v3286 = vadd.f32 0.0, %v3285
        %v3287 = vpop.f32.mrb[0].mxu0
        %3288 = vmatprep.mubr.f32.mxu0 0.0
        %3289 = vmatmul.mubr.f32.gmra.mrb[0].mxu0 %v3059
        %v3290 = vpop.f32.mrb[0].mxu0
        %v3291 = vadd.f32 0.0, %v3290
        %v3292 = vpop.f32.mrb[0].mxu0
        %3293 = vmatprep.mubr.f32.mxu0 0.0
        %3294 = vmatmul.mubr.f32.gmra.mrb[0].mxu0 %v3060
        %v3295 = vpop.f32.mrb[0].mxu0
        %v3296 = vadd.f32 0.0, %v3295
        %v3297 = vpop.f32.mrb[0].mxu0
        %3298 = vmatprep.mubr.f32.mxu0 0.0
        %3299 = vmatmul.mubr.f32.gmra.mrb[0].mxu0 %v3061
        %v3300 = vpop.f32.mrb[0].mxu0
        %v3301 = vadd.f32 0.0, %v3300
        %v3302 = vpop.f32.mrb[0].mxu0
        %3303 = vmatprep.mubr.f32.mxu0 0.0
        %3304 = vmatmul.mubr.f32.gmra.mrb[0].mxu0 %v3062
        %v3305 = vpop.f32.mrb[0].mxu0
        %v3306 = vadd.f32 0.0, %v3305
        %v3307 = vpop.f32.mrb[0].mxu0
        %3308 = vmatprep.mubr.f32.mxu0 0.0
        %3309 = vmatmul.mubr.f32.gmra.mrb[0].mxu0 %v3063
        %v3310 = vpop.f32.mrb[0].mxu0
        %v3311 = vadd.f32 0.0, %v3310
        %v3312 = vpop.f32.mrb[0].mxu0
        %3313 = vmatprep.mubr.f32.mxu0 0.0
        %3314 = vmatmul.mubr.f32.gmra.mrb[0].mxu0 %v3064
        %v3315 = vpop.f32.mrb[0].mxu0
        %v3316 = vadd.f32 0.0, %v3315
        %v3317 = vpop.f32.mrb[0].mxu0
        %3318 = vmatprep.mubr.f32.mxu0 0.0
        %3319 = vmatmul.mubr.f32.gmra.mrb[0].mxu0 %v3065
        %v3320 = vpop.f32.mrb[0].mxu0
        %v3321 = vadd.f32 0.0, %v3320
        %v3322 = vpop.f32.mrb[0].mxu0
        %3323 = vmatprep.mubr.f32.mxu0 0.0
        %3324 = vmatmul.mubr.f32.gmra.mrb[0].mxu0 %v3066
        %v3325 = vpop.f32.mrb[0].mxu0
        %v3326 = vadd.f32 0.0, %v3325
        %v3327 = vpop.f32.mrb[0].mxu0
        %3328 = vdwg.mxu0
        %v3329 = vadd.f32 %v2995, %v3151
        %v3330 = vadd.f32 %v2996, %v3156
        %v3331 = vadd.f32 %v2997, %v3161
        %v3332 = vadd.f32 %v2998, %v3166
        %v3333 = vadd.f32 %v2999, %v3171
        %v3334 = vadd.f32 %v3000, %v3176
        %v3335 = vadd.f32 %v3001, %v3181
        %v3336 = vadd.f32 %v3002, %v3186
        %v3337 = vadd.f32 %v3003, %v3191
        %v3338 = vadd.f32 %v3004, %v3196
        %v3339 = vadd.f32 %v3005, %v3201
        %v3340 = vadd.f32 %v3006, %v3206
        %v3341 = vadd.f32 %v3007, %v3211
        %v3342 = vadd.f32 %v3008, %v3216
        %v3343 = vadd.f32 %v3009, %v3221
        %v3344 = vadd.f32 %v3010, %v3226
        %v3345 = vadd.f32 %v3011, %v3231
        %v3346 = vadd.f32 %v3012, %v3236
        %v3347 = vadd.f32 %v3013, %v3241
        %v3348 = vadd.f32 %v3014, %v3246
        %v3349 = vadd.f32 %v3015, %v3251
        %v3350 = vadd.f32 %v3016, %v3256
        %v3351 = vadd.f32 %v3017, %v3261
        %v3352 = vadd.f32 %v3018, %v3266
        %v3353 = vadd.f32 %v3019, %v3271
        %v3354 = vadd.f32 %v3020, %v3276
        %v3355 = vadd.f32 %v3021, %v3281
        %v3356 = vadd.f32 %v3022, %v3286
        %v3357 = vadd.f32 %v3023, %v3291
        %v3358 = vadd.f32 %v3024, %v3296
        %v3359 = vadd.f32 %v3025, %v3301
        %v3360 = vadd.f32 %v3026, %v3306
        %v3361 = vadd.f32 %v3027, %v3311
        %v3362 = vadd.f32 %v3028, %v3316
        %v3363 = vadd.f32 %v3029, %v3321
        %v3364 = vadd.f32 %v3030, %v3326
        %v3365 = vld [vmem:[%s617 + $0x2] sm:$0xff]
        %v3366 = vld [vmem:[%s617 + $0xa] sm:$0xff]
        %v3367 = vld [vmem:[%s617 + $0x1a] sm:$0xff]
        %v3368 = vld [vmem:[%s617 + $0x22] sm:$0xff]
        %v3369 = vld [vmem:[%s617 + $0x32] sm:$0xff]
        %v3370 = vld [vmem:[%s617 + $0x3a] sm:$0xff]
        %v3371 = vld [vmem:[%s617 + $0x4a] sm:$0xff]
        %v3372 = vld [vmem:[%s617 + $0x52] sm:$0xff]
        %v3373 = vld [vmem:[%s617 + $0x62] sm:$0xff]
        %v3374 = vld [vmem:[%s617 + $0x6a] sm:$0xff]
        %v3375 = vld [vmem:[%s617 + $0x7a] sm:$0xff]
        %v3376 = vld [vmem:[%s617 + $0x82] sm:$0xff]
        %v3377 = vld [vmem:[%s617 + $0x92] sm:$0xff]
        %v3378 = vld [vmem:[%s617 + $0x9a] sm:$0xff]
        %v3379 = vld [vmem:[%s617 + $0xaa] sm:$0xff]
        %v3380 = vld [vmem:[%s617 + $0xb2] sm:$0xff]
        %v3381 = vld [vmem:[%s617 + $0xc2] sm:$0xff]
        %v3382 = vld [vmem:[%s617 + $0xca] sm:$0xff]
        %v3383 = vld [vmem:[%s617 + $0xda] sm:$0xff]
        %v3384 = vld [vmem:[%s617 + $0xe2] sm:$0xff]
        %v3385 = vld [vmem:[%s617 + $0xf2] sm:$0xff]
        %v3386 = vld [vmem:[%s617 + $0xfa] sm:$0xff]
        %v3387 = vld [vmem:[%s617 + $0x10a] sm:$0xff]
        %v3388 = vld [vmem:[%s617 + $0x112] sm:$0xff]
        %v3389 = vld [vmem:[%s617 + $0x122] sm:$0xff]
        %v3390 = vld [vmem:[%s617 + $0x12a] sm:$0xff]
        %v3391 = vld [vmem:[%s617 + $0x13a] sm:$0xff]
        %v3392 = vld [vmem:[%s617 + $0x142] sm:$0xff]
        %v3393 = vld [vmem:[%s617 + $0x152] sm:$0xff]
        %v3394 = vld [vmem:[%s617 + $0x15a] sm:$0xff]
        %v3395 = vld [vmem:[%s617 + $0x16a] sm:$0xff]
        %v3396 = vld [vmem:[%s617 + $0x172] sm:$0xff]
        %v3397 = vld [vmem:[%s617 + $0x182] sm:$0xff]
        %v3398 = vld [vmem:[%s617 + $0x18a] sm:$0xff]
        %v3399 = vld [vmem:[%s617 + $0x19a] sm:$0xff]
        %v3400 = vld [vmem:[%s617 + $0x1a2] sm:$0xff]
        %s3401 = scalar_lea.vmem [#allocation7], 1024
        %v3402 = vld [vmem:[%s3401] sm:$0xff]
        %v3403 = vld [vmem:[%s3401 + $0x8] sm:$0xff]
        %v3404 = vld [vmem:[%s3401 + $0x10] sm:$0xff]
        %v3405 = vld [vmem:[%s3401 + $0x18] sm:$0xff]
        %v3406 = vld [vmem:[%s3401 + $0x20] sm:$0xff]
        %v3407 = vld [vmem:[%s3401 + $0x28] sm:$0xff]
        %v3408 = vld [vmem:[%s3401 + $0x30] sm:$0xff]
        %v3409 = vld [vmem:[%s3401 + $0x38] sm:$0xff]
        %v3410 = vld [vmem:[%s3401 + $0x40] sm:$0xff]
        %v3411 = vld [vmem:[%s3401 + $0x48] sm:$0xff]
        %v3412 = vld [vmem:[%s3401 + $0x50] sm:$0xff]
        %v3413 = vld [vmem:[%s3401 + $0x58] sm:$0xff]
        %v3414 = vld [vmem:[%s3401 + $0x60] sm:$0xff]
        %v3415 = vld [vmem:[%s3401 + $0x68] sm:$0xff]
        %v3416 = vld [vmem:[%s3401 + $0x70] sm:$0xff]
        %v3417 = vld [vmem:[%s3401 + $0x78] sm:$0xff]
        %3418 = vmatprep.subr.mxu0 0.0
        %3419 = vmatpush1.msra.mxu0 %v3402
        %3420 = vmatprep.subr.mxu0 0.0
        %3421 = vmatpush1.msra.mxu0 %v3403
        %3422 = vmatprep.subr.mxu0 0.0
        %3423 = vmatpush1.msra.mxu0 %v3404
        %3424 = vmatprep.subr.mxu0 0.0
        %3425 = vmatpush1.msra.mxu0 %v3405
        %3426 = vmatprep.subr.mxu0 0.0
        %3427 = vmatpush1.msra.mxu0 %v3406
        %3428 = vmatprep.subr.mxu0 0.0
        %3429 = vmatpush1.msra.mxu0 %v3407
        %3430 = vmatprep.subr.mxu0 0.0
        %3431 = vmatpush1.msra.mxu0 %v3408
        %3432 = vmatprep.subr.mxu0 0.0
        %3433 = vmatpush1.msra.mxu0 %v3409
        %3434 = vmatprep.subr.mxu0 0.0
        %3435 = vmatpush1.msra.mxu0 %v3410
        %3436 = vmatprep.subr.mxu0 0.0
        %3437 = vmatpush1.msra.mxu0 %v3411
        %3438 = vmatprep.subr.mxu0 0.0
        %3439 = vmatpush1.msra.mxu0 %v3412
        %3440 = vmatprep.subr.mxu0 0.0
        %3441 = vmatpush1.msra.mxu0 %v3413
        %3442 = vmatprep.subr.mxu0 0.0
        %3443 = vmatpush1.msra.mxu0 %v3414
        %3444 = vmatprep.subr.mxu0 0.0
        %3445 = vmatpush1.msra.mxu0 %v3415
        %3446 = vmatprep.subr.mxu0 0.0
        %3447 = vmatpush1.msra.mxu0 %v3416
        %3448 = vmatprep.subr.mxu0 0.0
        %3449 = vmatpush1.msra.mxu0 %v3417
        %3450 = vmatprep.subr.mxu0 0.0
        %3451 = vmatpush1.msra.mxu0 0.0
        %3452 = vmatprep.subr.mxu0 0.0
        %3453 = vmatpush1.msra.mxu0 0.0
        %3454 = vmatprep.subr.mxu0 0.0
        %3455 = vmatpush1.msra.mxu0 0.0
        %3456 = vmatprep.subr.mxu0 0.0
        %3457 = vmatpush1.msra.mxu0 0.0
        %3458 = vmatprep.subr.mxu0 0.0
        %3459 = vmatpush1.msra.mxu0 0.0
        %3460 = vmatprep.subr.mxu0 0.0
        %3461 = vmatpush1.msra.mxu0 0.0
        %3462 = vmatprep.subr.mxu0 0.0
        %3463 = vmatpush1.msra.mxu0 0.0
        %3464 = vmatprep.subr.mxu0 0.0
        %3465 = vmatpush1.msra.mxu0 0.0
        %3466 = vmatprep.subr.mxu0 0.0
        %3467 = vmatpush1.msra.mxu0 0.0
        %3468 = vmatprep.subr.mxu0 0.0
        %3469 = vmatpush1.msra.mxu0 0.0
        %3470 = vmatprep.subr.mxu0 0.0
        %3471 = vmatpush1.msra.mxu0 0.0
        %3472 = vmatprep.subr.mxu0 0.0
        %3473 = vmatpush1.msra.mxu0 0.0
        %3474 = vmatprep.subr.mxu0 0.0
        %3475 = vmatpush1.msra.mxu0 0.0
        %3476 = vmatprep.subr.mxu0 0.0
        %3477 = vmatpush1.msra.mxu0 0.0
        %3478 = vmatprep.subr.mxu0 0.0
        %3479 = vmatpush1.msra.mxu0 0.0
        %3480 = vmatprep.subr.mxu0 0.0
        %3481 = vmatpush1.msra.mxu0 0.0
        %3482 = vmatprep.mubr.f32.mxu0 0.0
        %3483 = vmatmul.mubr.f32.gmra.mrb[0].mxu0 %v3365
        %v3484 = vpop.f32.mrb[0].mxu0
        %v3485 = vadd.f32 0.0, %v3484
        %v3486 = vpop.f32.mrb[0].mxu0
        %3487 = vmatprep.mubr.f32.mxu0 0.0
        %3488 = vmatmul.mubr.f32.gmra.mrb[0].mxu0 %v3366
        %v3489 = vpop.f32.mrb[0].mxu0
        %v3490 = vadd.f32 0.0, %v3489
        %v3491 = vpop.f32.mrb[0].mxu0
        %3492 = vmatprep.mubr.f32.mxu0 0.0
        %3493 = vmatmul.mubr.f32.gmra.mrb[0].mxu0 %v3367
        %v3494 = vpop.f32.mrb[0].mxu0
        %v3495 = vadd.f32 0.0, %v3494
        %v3496 = vpop.f32.mrb[0].mxu0
        %3497 = vmatprep.mubr.f32.mxu0 0.0
        %3498 = vmatmul.mubr.f32.gmra.mrb[0].mxu0 %v3368
        %v3499 = vpop.f32.mrb[0].mxu0
        %v3500 = vadd.f32 0.0, %v3499
        %v3501 = vpop.f32.mrb[0].mxu0
        %3502 = vmatprep.mubr.f32.mxu0 0.0
        %3503 = vmatmul.mubr.f32.gmra.mrb[0].mxu0 %v3369
        %v3504 = vpop.f32.mrb[0].mxu0
        %v3505 = vadd.f32 0.0, %v3504
        %v3506 = vpop.f32.mrb[0].mxu0
        %3507 = vmatprep.mubr.f32.mxu0 0.0
        %3508 = vmatmul.mubr.f32.gmra.mrb[0].mxu0 %v3370
        %v3509 = vpop.f32.mrb[0].mxu0
        %v3510 = vadd.f32 0.0, %v3509
        %v3511 = vpop.f32.mrb[0].mxu0
        %3512 = vmatprep.mubr.f32.mxu0 0.0
        %3513 = vmatmul.mubr.f32.gmra.mrb[0].mxu0 %v3371
        %v3514 = vpop.f32.mrb[0].mxu0
        %v3515 = vadd.f32 0.0, %v3514
        %v3516 = vpop.f32.mrb[0].mxu0
        %3517 = vmatprep.mubr.f32.mxu0 0.0
        %3518 = vmatmul.mubr.f32.gmra.mrb[0].mxu0 %v3372
        %v3519 = vpop.f32.mrb[0].mxu0
        %v3520 = vadd.f32 0.0, %v3519
        %v3521 = vpop.f32.mrb[0].mxu0
        %3522 = vmatprep.mubr.f32.mxu0 0.0
        %3523 = vmatmul.mubr.f32.gmra.mrb[0].mxu0 %v3373
        %v3524 = vpop.f32.mrb[0].mxu0
        %v3525 = vadd.f32 0.0, %v3524
        %v3526 = vpop.f32.mrb[0].mxu0
        %3527 = vmatprep.mubr.f32.mxu0 0.0
        %3528 = vmatmul.mubr.f32.gmra.mrb[0].mxu0 %v3374
        %v3529 = vpop.f32.mrb[0].mxu0
        %v3530 = vadd.f32 0.0, %v3529
        %v3531 = vpop.f32.mrb[0].mxu0
        %3532 = vmatprep.mubr.f32.mxu0 0.0
        %3533 = vmatmul.mubr.f32.gmra.mrb[0].mxu0 %v3375
        %v3534 = vpop.f32.mrb[0].mxu0
        %v3535 = vadd.f32 0.0, %v3534
        %v3536 = vpop.f32.mrb[0].mxu0
        %3537 = vmatprep.mubr.f32.mxu0 0.0
        %3538 = vmatmul.mubr.f32.gmra.mrb[0].mxu0 %v3376
        %v3539 = vpop.f32.mrb[0].mxu0
        %v3540 = vadd.f32 0.0, %v3539
        %v3541 = vpop.f32.mrb[0].mxu0
        %3542 = vmatprep.mubr.f32.mxu0 0.0
        %3543 = vmatmul.mubr.f32.gmra.mrb[0].mxu0 %v3377
        %v3544 = vpop.f32.mrb[0].mxu0
        %v3545 = vadd.f32 0.0, %v3544
        %v3546 = vpop.f32.mrb[0].mxu0
        %3547 = vmatprep.mubr.f32.mxu0 0.0
        %3548 = vmatmul.mubr.f32.gmra.mrb[0].mxu0 %v3378
        %v3549 = vpop.f32.mrb[0].mxu0
        %v3550 = vadd.f32 0.0, %v3549
        %v3551 = vpop.f32.mrb[0].mxu0
        %3552 = vmatprep.mubr.f32.mxu0 0.0
        %3553 = vmatmul.mubr.f32.gmra.mrb[0].mxu0 %v3379
        %v3554 = vpop.f32.mrb[0].mxu0
        %v3555 = vadd.f32 0.0, %v3554
        %v3556 = vpop.f32.mrb[0].mxu0
        %3557 = vmatprep.mubr.f32.mxu0 0.0
        %3558 = vmatmul.mubr.f32.gmra.mrb[0].mxu0 %v3380
        %v3559 = vpop.f32.mrb[0].mxu0
        %v3560 = vadd.f32 0.0, %v3559
        %v3561 = vpop.f32.mrb[0].mxu0
        %3562 = vmatprep.mubr.f32.mxu0 0.0
        %3563 = vmatmul.mubr.f32.gmra.mrb[0].mxu0 %v3381
        %v3564 = vpop.f32.mrb[0].mxu0
        %v3565 = vadd.f32 0.0, %v3564
        %v3566 = vpop.f32.mrb[0].mxu0
        %3567 = vmatprep.mubr.f32.mxu0 0.0
        %3568 = vmatmul.mubr.f32.gmra.mrb[0].mxu0 %v3382
        %v3569 = vpop.f32.mrb[0].mxu0
        %v3570 = vadd.f32 0.0, %v3569
        %v3571 = vpop.f32.mrb[0].mxu0
        %3572 = vmatprep.mubr.f32.mxu0 0.0
        %3573 = vmatmul.mubr.f32.gmra.mrb[0].mxu0 %v3383
        %v3574 = vpop.f32.mrb[0].mxu0
        %v3575 = vadd.f32 0.0, %v3574
        %v3576 = vpop.f32.mrb[0].mxu0
        %3577 = vmatprep.mubr.f32.mxu0 0.0
        %3578 = vmatmul.mubr.f32.gmra.mrb[0].mxu0 %v3384
        %v3579 = vpop.f32.mrb[0].mxu0
        %v3580 = vadd.f32 0.0, %v3579
        %v3581 = vpop.f32.mrb[0].mxu0
        %3582 = vmatprep.mubr.f32.mxu0 0.0
        %3583 = vmatmul.mubr.f32.gmra.mrb[0].mxu0 %v3385
        %v3584 = vpop.f32.mrb[0].mxu0
        %v3585 = vadd.f32 0.0, %v3584
        %v3586 = vpop.f32.mrb[0].mxu0
        %3587 = vmatprep.mubr.f32.mxu0 0.0
        %3588 = vmatmul.mubr.f32.gmra.mrb[0].mxu0 %v3386
        %v3589 = vpop.f32.mrb[0].mxu0
        %v3590 = vadd.f32 0.0, %v3589
        %v3591 = vpop.f32.mrb[0].mxu0
        %3592 = vmatprep.mubr.f32.mxu0 0.0
        %3593 = vmatmul.mubr.f32.gmra.mrb[0].mxu0 %v3387
        %v3594 = vpop.f32.mrb[0].mxu0
        %v3595 = vadd.f32 0.0, %v3594
        %v3596 = vpop.f32.mrb[0].mxu0
        %3597 = vmatprep.mubr.f32.mxu0 0.0
        %3598 = vmatmul.mubr.f32.gmra.mrb[0].mxu0 %v3388
        %v3599 = vpop.f32.mrb[0].mxu0
        %v3600 = vadd.f32 0.0, %v3599
        %v3601 = vpop.f32.mrb[0].mxu0
        %3602 = vmatprep.mubr.f32.mxu0 0.0
        %3603 = vmatmul.mubr.f32.gmra.mrb[0].mxu0 %v3389
        %v3604 = vpop.f32.mrb[0].mxu0
        %v3605 = vadd.f32 0.0, %v3604
        %v3606 = vpop.f32.mrb[0].mxu0
        %3607 = vmatprep.mubr.f32.mxu0 0.0
        %3608 = vmatmul.mubr.f32.gmra.mrb[0].mxu0 %v3390
        %v3609 = vpop.f32.mrb[0].mxu0
        %v3610 = vadd.f32 0.0, %v3609
        %v3611 = vpop.f32.mrb[0].mxu0
        %3612 = vmatprep.mubr.f32.mxu0 0.0
        %3613 = vmatmul.mubr.f32.gmra.mrb[0].mxu0 %v3391
        %v3614 = vpop.f32.mrb[0].mxu0
        %v3615 = vadd.f32 0.0, %v3614
        %v3616 = vpop.f32.mrb[0].mxu0
        %3617 = vmatprep.mubr.f32.mxu0 0.0
        %3618 = vmatmul.mubr.f32.gmra.mrb[0].mxu0 %v3392
        %v3619 = vpop.f32.mrb[0].mxu0
        %v3620 = vadd.f32 0.0, %v3619
        %v3621 = vpop.f32.mrb[0].mxu0
        %3622 = vmatprep.mubr.f32.mxu0 0.0
        %3623 = vmatmul.mubr.f32.gmra.mrb[0].mxu0 %v3393
        %v3624 = vpop.f32.mrb[0].mxu0
        %v3625 = vadd.f32 0.0, %v3624
        %v3626 = vpop.f32.mrb[0].mxu0
        %3627 = vmatprep.mubr.f32.mxu0 0.0
        %3628 = vmatmul.mubr.f32.gmra.mrb[0].mxu0 %v3394
        %v3629 = vpop.f32.mrb[0].mxu0
        %v3630 = vadd.f32 0.0, %v3629
        %v3631 = vpop.f32.mrb[0].mxu0
        %3632 = vmatprep.mubr.f32.mxu0 0.0
        %3633 = vmatmul.mubr.f32.gmra.mrb[0].mxu0 %v3395
        %v3634 = vpop.f32.mrb[0].mxu0
        %v3635 = vadd.f32 0.0, %v3634
        %v3636 = vpop.f32.mrb[0].mxu0
        %3637 = vmatprep.mubr.f32.mxu0 0.0
        %3638 = vmatmul.mubr.f32.gmra.mrb[0].mxu0 %v3396
        %v3639 = vpop.f32.mrb[0].mxu0
        %v3640 = vadd.f32 0.0, %v3639
        %v3641 = vpop.f32.mrb[0].mxu0
        %3642 = vmatprep.mubr.f32.mxu0 0.0
        %3643 = vmatmul.mubr.f32.gmra.mrb[0].mxu0 %v3397
        %v3644 = vpop.f32.mrb[0].mxu0
        %v3645 = vadd.f32 0.0, %v3644
        %v3646 = vpop.f32.mrb[0].mxu0
        %3647 = vmatprep.mubr.f32.mxu0 0.0
        %3648 = vmatmul.mubr.f32.gmra.mrb[0].mxu0 %v3398
        %v3649 = vpop.f32.mrb[0].mxu0
        %v3650 = vadd.f32 0.0, %v3649
        %v3651 = vpop.f32.mrb[0].mxu0
        %3652 = vmatprep.mubr.f32.mxu0 0.0
        %3653 = vmatmul.mubr.f32.gmra.mrb[0].mxu0 %v3399
        %v3654 = vpop.f32.mrb[0].mxu0
        %v3655 = vadd.f32 0.0, %v3654
        %v3656 = vpop.f32.mrb[0].mxu0
        %3657 = vmatprep.mubr.f32.mxu0 0.0
        %3658 = vmatmul.mubr.f32.gmra.mrb[0].mxu0 %v3400
        %v3659 = vpop.f32.mrb[0].mxu0
        %v3660 = vadd.f32 0.0, %v3659
        %v3661 = vpop.f32.mrb[0].mxu0
        %3662 = vdwg.mxu0
        %v3663 = vadd.f32 %v3329, %v3485
        %v3664 = vadd.f32 %v3330, %v3490
        %v3665 = vadd.f32 %v3331, %v3495
        %v3666 = vadd.f32 %v3332, %v3500
        %v3667 = vadd.f32 %v3333, %v3505
        %v3668 = vadd.f32 %v3334, %v3510
        %v3669 = vadd.f32 %v3335, %v3515
        %v3670 = vadd.f32 %v3336, %v3520
        %v3671 = vadd.f32 %v3337, %v3525
        %v3672 = vadd.f32 %v3338, %v3530
        %v3673 = vadd.f32 %v3339, %v3535
        %v3674 = vadd.f32 %v3340, %v3540
        %v3675 = vadd.f32 %v3341, %v3545
        %v3676 = vadd.f32 %v3342, %v3550
        %v3677 = vadd.f32 %v3343, %v3555
        %v3678 = vadd.f32 %v3344, %v3560
        %v3679 = vadd.f32 %v3345, %v3565
        %v3680 = vadd.f32 %v3346, %v3570
        %v3681 = vadd.f32 %v3347, %v3575
        %v3682 = vadd.f32 %v3348, %v3580
        %v3683 = vadd.f32 %v3349, %v3585
        %v3684 = vadd.f32 %v3350, %v3590
        %v3685 = vadd.f32 %v3351, %v3595
        %v3686 = vadd.f32 %v3352, %v3600
        %v3687 = vadd.f32 %v3353, %v3605
        %v3688 = vadd.f32 %v3354, %v3610
        %v3689 = vadd.f32 %v3355, %v3615
        %v3690 = vadd.f32 %v3356, %v3620
        %v3691 = vadd.f32 %v3357, %v3625
        %v3692 = vadd.f32 %v3358, %v3630
        %v3693 = vadd.f32 %v3359, %v3635
        %v3694 = vadd.f32 %v3360, %v3640
        %v3695 = vadd.f32 %v3361, %v3645
        %v3696 = vadd.f32 %v3362, %v3650
        %v3697 = vadd.f32 %v3363, %v3655
        %v3698 = vadd.f32 %v3364, %v3660
        %3699 = vst [vmem:[#allocation3] sm:$0x1] 0.0
        %3700 = vst [vmem:[#allocation3 + $0x18] sm:$0x1] 0.0
        %3701 = vst [vmem:[#allocation3 + $0x30] sm:$0x1] 0.0
        %3702 = vst [vmem:[#allocation3 + $0x48] sm:$0x1] 0.0
        %3703 = vst [vmem:[#allocation3 + $0x60] sm:$0x1] 0.0
        %3704 = vst [vmem:[#allocation3 + $0x78] sm:$0x1] 0.0
        %3705 = vst [vmem:[#allocation3 + $0x90] sm:$0x1] 0.0
        %3706 = vst [vmem:[#allocation3 + $0xa8] sm:$0x1] 0.0
        %3707 = vst [vmem:[#allocation3 + $0xc0] sm:$0x1] 0.0
        %3708 = vst [vmem:[#allocation3 + $0xd8] sm:$0x1] 0.0
        %3709 = vst [vmem:[#allocation3 + $0xf0] sm:$0x1] 0.0
        %3710 = vst [vmem:[#allocation3 + $0x108] sm:$0x1] 0.0
        %3711 = vst [vmem:[#allocation3 + $0x120] sm:$0x1] 0.0
        %3712 = vst [vmem:[#allocation3 + $0x138] sm:$0x1] 0.0
        %3713 = vst [vmem:[#allocation3 + $0x150] sm:$0x1] 0.0
        %3714 = vst [vmem:[#allocation3 + $0x168] sm:$0x1] 0.0
        %3715 = vst [vmem:[#allocation3 + $0x180] sm:$0x1] 0.0
        %3716 = vst [vmem:[#allocation3 + $0x198] sm:$0x1] 0.0
        %3717 = vst [vmem:[#allocation3 + $0x11] sm:$0x1] 0.0
        %3718 = vst [vmem:[#allocation3 + $0x29] sm:$0x1] 0.0
        %3719 = vst [vmem:[#allocation3 + $0x41] sm:$0x1] 0.0
        %3720 = vst [vmem:[#allocation3 + $0x59] sm:$0x1] 0.0
        %3721 = vst [vmem:[#allocation3 + $0x71] sm:$0x1] 0.0
        %3722 = vst [vmem:[#allocation3 + $0x89] sm:$0x1] 0.0
        %3723 = vst [vmem:[#allocation3 + $0xa1] sm:$0x1] 0.0
        %3724 = vst [vmem:[#allocation3 + $0xb9] sm:$0x1] 0.0
        %3725 = vst [vmem:[#allocation3 + $0xd1] sm:$0x1] 0.0
        %3726 = vst [vmem:[#allocation3 + $0xe9] sm:$0x1] 0.0
        %3727 = vst [vmem:[#allocation3 + $0x101] sm:$0x1] 0.0
        %3728 = vst [vmem:[#allocation3 + $0x119] sm:$0x1] 0.0
        %3729 = vst [vmem:[#allocation3 + $0x131] sm:$0x1] 0.0
        %3730 = vst [vmem:[#allocation3 + $0x149] sm:$0x1] 0.0
        %3731 = vst [vmem:[#allocation3 + $0x161] sm:$0x1] 0.0
        %3732 = vst [vmem:[#allocation3 + $0x179] sm:$0x1] 0.0
        %3733 = vst [vmem:[#allocation3 + $0x191] sm:$0x1] 0.0
        %3734 = vst [vmem:[#allocation3 + $0x1a9] sm:$0x1] 0.0
        %v3735 = vld [vmem:[%s4] sm:$0x1]
        %v3737 = vlaneseq
        %v3738 = vshrl.u32 %v3737, 7
        %v3739 = vsub.s32 0, %v3738
        %v3740 = vrot.slane %v3735, %v3739
        %v3742 = vmul.f32 %v3663, %v3740
        %v3743 = vmul.f32 %v3664, %v3740
        %v3744 = vmul.f32 %v3665, %v3740
        %v3745 = vmul.f32 %v3666, %v3740
        %v3746 = vmul.f32 %v3667, %v3740
        %v3747 = vmul.f32 %v3668, %v3740
        %v3748 = vmul.f32 %v3669, %v3740
        %v3749 = vmul.f32 %v3670, %v3740
        %v3750 = vmul.f32 %v3671, %v3740
        %v3751 = vmul.f32 %v3672, %v3740
        %v3752 = vmul.f32 %v3673, %v3740
        %v3753 = vmul.f32 %v3674, %v3740
        %v3754 = vmul.f32 %v3675, %v3740
        %v3755 = vmul.f32 %v3676, %v3740
        %v3756 = vmul.f32 %v3677, %v3740
        %v3757 = vmul.f32 %v3678, %v3740
        %v3758 = vmul.f32 %v3679, %v3740
        %v3759 = vmul.f32 %v3680, %v3740
        %v3760 = vmul.f32 %v3681, %v3740
        %v3761 = vmul.f32 %v3682, %v3740
        %v3762 = vmul.f32 %v3683, %v3740
        %v3763 = vmul.f32 %v3684, %v3740
        %v3764 = vmul.f32 %v3685, %v3740
        %v3765 = vmul.f32 %v3686, %v3740
        %v3766 = vmul.f32 %v3687, %v3740
        %v3767 = vmul.f32 %v3688, %v3740
        %v3768 = vmul.f32 %v3689, %v3740
        %v3769 = vmul.f32 %v3690, %v3740
        %v3770 = vmul.f32 %v3691, %v3740
        %v3771 = vmul.f32 %v3692, %v3740
        %v3772 = vmul.f32 %v3693, %v3740
        %v3773 = vmul.f32 %v3694, %v3740
        %v3774 = vmul.f32 %v3695, %v3740
        %v3775 = vmul.f32 %v3696, %v3740
        %v3776 = vmul.f32 %v3697, %v3740
        %v3777 = vmul.f32 %v3698, %v3740
        %v3778 = vld [vmem:[%s5] sm:$0x1]
        %v3780 = vlaneseq
        %v3781 = vshrl.u32 %v3780, 7
        %v3782 = vsub.s32 0, %v3781
        %v3783 = vrot.slane %v3778, %v3782
        %v3785 = vadd.f32 %v3742, %v3783
        %v3786 = vadd.f32 %v3743, %v3783
        %v3787 = vadd.f32 %v3744, %v3783
        %v3788 = vadd.f32 %v3745, %v3783
        %v3789 = vadd.f32 %v3746, %v3783
        %v3790 = vadd.f32 %v3747, %v3783
        %v3791 = vadd.f32 %v3748, %v3783
        %v3792 = vadd.f32 %v3749, %v3783
        %v3793 = vadd.f32 %v3750, %v3783
        %v3794 = vadd.f32 %v3751, %v3783
        %v3795 = vadd.f32 %v3752, %v3783
        %v3796 = vadd.f32 %v3753, %v3783
        %v3797 = vadd.f32 %v3754, %v3783
        %v3798 = vadd.f32 %v3755, %v3783
        %v3799 = vadd.f32 %v3756, %v3783
        %v3800 = vadd.f32 %v3757, %v3783
        %v3801 = vadd.f32 %v3758, %v3783
        %v3802 = vadd.f32 %v3759, %v3783
        %v3803 = vadd.f32 %v3760, %v3783
        %v3804 = vadd.f32 %v3761, %v3783
        %v3805 = vadd.f32 %v3762, %v3783
        %v3806 = vadd.f32 %v3763, %v3783
        %v3807 = vadd.f32 %v3764, %v3783
        %v3808 = vadd.f32 %v3765, %v3783
        %v3809 = vadd.f32 %v3766, %v3783
        %v3810 = vadd.f32 %v3767, %v3783
        %v3811 = vadd.f32 %v3768, %v3783
        %v3812 = vadd.f32 %v3769, %v3783
        %v3813 = vadd.f32 %v3770, %v3783
        %v3814 = vadd.f32 %v3771, %v3783
        %v3815 = vadd.f32 %v3772, %v3783
        %v3816 = vadd.f32 %v3773, %v3783
        %v3817 = vadd.f32 %v3774, %v3783
        %v3818 = vadd.f32 %v3775, %v3783
        %v3819 = vadd.f32 %v3776, %v3783
        %v3820 = vadd.f32 %v3777, %v3783
        %3821 = vst [vmem:[#allocation3 + $0x1] sm:$0xff] %v3785
        %3822 = vst [vmem:[#allocation3 + $0x9] sm:$0xff] %v3786
        %3823 = vst [vmem:[#allocation3 + $0x19] sm:$0xff] %v3787
        %3824 = vst [vmem:[#allocation3 + $0x21] sm:$0xff] %v3788
        %3825 = vst [vmem:[#allocation3 + $0x31] sm:$0xff] %v3789
        %3826 = vst [vmem:[#allocation3 + $0x39] sm:$0xff] %v3790
        %3827 = vst [vmem:[#allocation3 + $0x49] sm:$0xff] %v3791
        %3828 = vst [vmem:[#allocation3 + $0x51] sm:$0xff] %v3792
        %3829 = vst [vmem:[#allocation3 + $0x61] sm:$0xff] %v3793
        %3830 = vst [vmem:[#allocation3 + $0x69] sm:$0xff] %v3794
        %3831 = vst [vmem:[#allocation3 + $0x79] sm:$0xff] %v3795
        %3832 = vst [vmem:[#allocation3 + $0x81] sm:$0xff] %v3796
        %3833 = vst [vmem:[#allocation3 + $0x91] sm:$0xff] %v3797
        %3834 = vst [vmem:[#allocation3 + $0x99] sm:$0xff] %v3798
        %3835 = vst [vmem:[#allocation3 + $0xa9] sm:$0xff] %v3799
        %3836 = vst [vmem:[#allocation3 + $0xb1] sm:$0xff] %v3800
        %3837 = vst [vmem:[#allocation3 + $0xc1] sm:$0xff] %v3801
        %3838 = vst [vmem:[#allocation3 + $0xc9] sm:$0xff] %v3802
        %3839 = vst [vmem:[#allocation3 + $0xd9] sm:$0xff] %v3803
        %3840 = vst [vmem:[#allocation3 + $0xe1] sm:$0xff] %v3804
        %3841 = vst [vmem:[#allocation3 + $0xf1] sm:$0xff] %v3805
        %3842 = vst [vmem:[#allocation3 + $0xf9] sm:$0xff] %v3806
        %3843 = vst [vmem:[#allocation3 + $0x109] sm:$0xff] %v3807
        %3844 = vst [vmem:[#allocation3 + $0x111] sm:$0xff] %v3808
        %3845 = vst [vmem:[#allocation3 + $0x121] sm:$0xff] %v3809
        %3846 = vst [vmem:[#allocation3 + $0x129] sm:$0xff] %v3810
        %3847 = vst [vmem:[#allocation3 + $0x139] sm:$0xff] %v3811
        %3848 = vst [vmem:[#allocation3 + $0x141] sm:$0xff] %v3812
        %3849 = vst [vmem:[#allocation3 + $0x151] sm:$0xff] %v3813
        %3850 = vst [vmem:[#allocation3 + $0x159] sm:$0xff] %v3814
        %3851 = vst [vmem:[#allocation3 + $0x169] sm:$0xff] %v3815
        %3852 = vst [vmem:[#allocation3 + $0x171] sm:$0xff] %v3816
        %3853 = vst [vmem:[#allocation3 + $0x181] sm:$0xff] %v3817
        %3854 = vst [vmem:[#allocation3 + $0x189] sm:$0xff] %v3818
        %3855 = vst [vmem:[#allocation3 + $0x199] sm:$0xff] %v3819
        %3856 = vst [vmem:[#allocation3 + $0x1a1] sm:$0xff] %v3820
        // Predicated region
        $region81: #{tpu_custom_call.1} parent=51 // pred_check
          %p3857 = pneg %p650
        $region82: #{tpu_custom_call.1} parent=51 // pred_check_branch
          %3859 = sbr.rel (%p3857) target = $region84
        $region83: #{tpu_custom_call.1} parent=51 // pred_region
          %3860 = vst [vmem:[#allocation3 + $0x1] sm:$0xff] 0.0
          %3861 = vst [vmem:[#allocation3 + $0x9] sm:$0xff] 0.0
          %s3862 = scalar_lea.vmem [#allocation3], 408
          %3863 = vst [vmem:[%s3862 + $0x1] sm:$0xff] 0.0
          %3864 = vst [vmem:[%s3862 + $0x9] sm:$0xff] 0.0
        $region84: #{tpu_custom_call.1} parent=51 // pred_fallthru
          _
        %v3865 = vld [vmem:[#allocation3] sm:$0xff]
        %v3866 = vld [vmem:[#allocation3 + $0x8] sm:$0xff]
        %v3867 = vld [vmem:[#allocation3 + $0x18] sm:$0xff]
        %v3868 = vld [vmem:[#allocation3 + $0x20] sm:$0xff]
        %v3869 = vld [vmem:[#allocation3 + $0x30] sm:$0xff]
        %v3870 = vld [vmem:[#allocation3 + $0x38] sm:$0xff]
        %v3871 = vld [vmem:[#allocation3 + $0x48] sm:$0xff]
        %v3872 = vld [vmem:[#allocation3 + $0x50] sm:$0xff]
        %v3873 = vld [vmem:[#allocation3 + $0x60] sm:$0xff]
        %v3874 = vld [vmem:[#allocation3 + $0x68] sm:$0xff]
        %v3875 = vld [vmem:[#allocation3 + $0x78] sm:$0xff]
        %v3876 = vld [vmem:[#allocation3 + $0x80] sm:$0xff]
        %v3877 = vld [vmem:[#allocation3 + $0x90] sm:$0xff]
        %v3878 = vld [vmem:[#allocation3 + $0x98] sm:$0xff]
        %v3879 = vld [vmem:[#allocation3 + $0xa8] sm:$0xff]
        %v3880 = vld [vmem:[#allocation3 + $0xb0] sm:$0xff]
        %v3881 = vld [vmem:[#allocation3 + $0xc0] sm:$0xff]
        %v3882 = vld [vmem:[#allocation3 + $0xc8] sm:$0xff]
        %v3883 = vld [vmem:[#allocation3 + $0xd8] sm:$0xff]
        %v3884 = vld [vmem:[#allocation3 + $0xe0] sm:$0xff]
        %v3885 = vld [vmem:[#allocation3 + $0xf0] sm:$0xff]
        %v3886 = vld [vmem:[#allocation3 + $0xf8] sm:$0xff]
        %v3887 = vld [vmem:[#allocation3 + $0x108] sm:$0xff]
        %v3888 = vld [vmem:[#allocation3 + $0x110] sm:$0xff]
        %v3889 = vld [vmem:[#allocation3 + $0x120] sm:$0xff]
        %v3890 = vld [vmem:[#allocation3 + $0x128] sm:$0xff]
        %v3891 = vld [vmem:[#allocation3 + $0x138] sm:$0xff]
        %v3892 = vld [vmem:[#allocation3 + $0x140] sm:$0xff]
        %v3893 = vld [vmem:[#allocation3 + $0x150] sm:$0xff]
        %v3894 = vld [vmem:[#allocation3 + $0x158] sm:$0xff]
        %v3895 = vld [vmem:[#allocation3 + $0x168] sm:$0xff]
        %v3896 = vld [vmem:[#allocation3 + $0x170] sm:$0xff]
        %v3897 = vld [vmem:[#allocation9] sm:$0xff]
        %v3898 = vld [vmem:[#allocation9 + $0x8] sm:$0xff]
        %v3899 = vld [vmem:[#allocation9 + $0x10] sm:$0xff]
        %v3900 = vld [vmem:[#allocation9 + $0x18] sm:$0xff]
        %v3901 = vld [vmem:[#allocation9 + $0x20] sm:$0xff]
        %v3902 = vld [vmem:[#allocation9 + $0x28] sm:$0xff]
        %v3903 = vld [vmem:[#allocation9 + $0x30] sm:$0xff]
        %v3904 = vld [vmem:[#allocation9 + $0x38] sm:$0xff]
        %v3905 = vld [vmem:[#allocation9 + $0x40] sm:$0xff]
        %v3906 = vld [vmem:[#allocation9 + $0x48] sm:$0xff]
        %v3907 = vld [vmem:[#allocation9 + $0x50] sm:$0xff]
        %v3908 = vld [vmem:[#allocation9 + $0x58] sm:$0xff]
        %v3909 = vld [vmem:[#allocation9 + $0x60] sm:$0xff]
        %v3910 = vld [vmem:[#allocation9 + $0x68] sm:$0xff]
        %v3911 = vld [vmem:[#allocation9 + $0x70] sm:$0xff]
        %v3912 = vld [vmem:[#allocation9 + $0x78] sm:$0xff]
        %v3913 = vld [vmem:[#allocation3 + $0x1] sm:$0xff]
        %v3914 = vld [vmem:[#allocation3 + $0x9] sm:$0xff]
        %v3915 = vld [vmem:[#allocation3 + $0x19] sm:$0xff]
        %v3916 = vld [vmem:[#allocation3 + $0x21] sm:$0xff]
        %v3917 = vld [vmem:[#allocation3 + $0x31] sm:$0xff]
        %v3918 = vld [vmem:[#allocation3 + $0x39] sm:$0xff]
        %v3919 = vld [vmem:[#allocation3 + $0x49] sm:$0xff]
        %v3920 = vld [vmem:[#allocation3 + $0x51] sm:$0xff]
        %v3921 = vld [vmem:[#allocation3 + $0x61] sm:$0xff]
        %v3922 = vld [vmem:[#allocation3 + $0x69] sm:$0xff]
        %v3923 = vld [vmem:[#allocation3 + $0x79] sm:$0xff]
        %v3924 = vld [vmem:[#allocation3 + $0x81] sm:$0xff]
        %v3925 = vld [vmem:[#allocation3 + $0x91] sm:$0xff]
        %v3926 = vld [vmem:[#allocation3 + $0x99] sm:$0xff]
        %v3927 = vld [vmem:[#allocation3 + $0xa9] sm:$0xff]
        %v3928 = vld [vmem:[#allocation3 + $0xb1] sm:$0xff]
        %v3929 = vld [vmem:[#allocation3 + $0xc1] sm:$0xff]
        %v3930 = vld [vmem:[#allocation3 + $0xc9] sm:$0xff]
        %v3931 = vld [vmem:[#allocation3 + $0xd9] sm:$0xff]
        %v3932 = vld [vmem:[#allocation3 + $0xe1] sm:$0xff]
        %v3933 = vld [vmem:[#allocation3 + $0xf1] sm:$0xff]
        %v3934 = vld [vmem:[#allocation3 + $0xf9] sm:$0xff]
        %v3935 = vld [vmem:[#allocation3 + $0x109] sm:$0xff]
        %v3936 = vld [vmem:[#allocation3 + $0x111] sm:$0xff]
        %v3937 = vld [vmem:[#allocation3 + $0x121] sm:$0xff]
        %v3938 = vld [vmem:[#allocation3 + $0x129] sm:$0xff]
        %v3939 = vld [vmem:[#allocation3 + $0x139] sm:$0xff]
        %v3940 = vld [vmem:[#allocation3 + $0x141] sm:$0xff]
        %v3941 = vld [vmem:[#allocation3 + $0x151] sm:$0xff]
        %v3942 = vld [vmem:[#allocation3 + $0x159] sm:$0xff]
        %v3943 = vld [vmem:[#allocation3 + $0x169] sm:$0xff]
        %v3944 = vld [vmem:[#allocation3 + $0x171] sm:$0xff]
        %s3945 = scalar_lea.vmem [#allocation9], 128
        %v3946 = vld [vmem:[%s3945] sm:$0xff]
        %v3947 = vld [vmem:[%s3945 + $0x8] sm:$0xff]
        %v3948 = vld [vmem:[%s3945 + $0x10] sm:$0xff]
        %v3949 = vld [vmem:[%s3945 + $0x18] sm:$0xff]
        %v3950 = vld [vmem:[%s3945 + $0x20] sm:$0xff]
        %v3951 = vld [vmem:[%s3945 + $0x28] sm:$0xff]
        %v3952 = vld [vmem:[%s3945 + $0x30] sm:$0xff]
        %v3953 = vld [vmem:[%s3945 + $0x38] sm:$0xff]
        %v3954 = vld [vmem:[%s3945 + $0x40] sm:$0xff]
        %v3955 = vld [vmem:[%s3945 + $0x48] sm:$0xff]
        %v3956 = vld [vmem:[%s3945 + $0x50] sm:$0xff]
        %v3957 = vld [vmem:[%s3945 + $0x58] sm:$0xff]
        %v3958 = vld [vmem:[%s3945 + $0x60] sm:$0xff]
        %v3959 = vld [vmem:[%s3945 + $0x68] sm:$0xff]
        %v3960 = vld [vmem:[%s3945 + $0x70] sm:$0xff]
        %v3961 = vld [vmem:[%s3945 + $0x78] sm:$0xff]
        %3962 = vmatprep.subr.mxu0 0.0
        %3963 = vmatpush1.msra.mxu0 %v3946
        %3964 = vmatprep.subr.mxu0 0.0
        %3965 = vmatpush1.msra.mxu0 %v3947
        %3966 = vmatprep.subr.mxu0 0.0
        %3967 = vmatpush1.msra.mxu0 %v3948
        %3968 = vmatprep.subr.mxu0 0.0
        %3969 = vmatpush1.msra.mxu0 %v3949
        %3970 = vmatprep.subr.mxu0 0.0
        %3971 = vmatpush1.msra.mxu0 %v3950
        %3972 = vmatprep.subr.mxu0 0.0
        %3973 = vmatpush1.msra.mxu0 %v3951
        %3974 = vmatprep.subr.mxu0 0.0
        %3975 = vmatpush1.msra.mxu0 %v3952
        %3976 = vmatprep.subr.mxu0 0.0
        %3977 = vmatpush1.msra.mxu0 %v3953
        %3978 = vmatprep.subr.mxu0 0.0
        %3979 = vmatpush1.msra.mxu0 %v3954
        %3980 = vmatprep.subr.mxu0 0.0
        %3981 = vmatpush1.msra.mxu0 %v3955
        %3982 = vmatprep.subr.mxu0 0.0
        %3983 = vmatpush1.msra.mxu0 %v3956
        %3984 = vmatprep.subr.mxu0 0.0
        %3985 = vmatpush1.msra.mxu0 %v3957
        %3986 = vmatprep.subr.mxu0 0.0
        %3987 = vmatpush1.msra.mxu0 %v3958
        %3988 = vmatprep.subr.mxu0 0.0
        %3989 = vmatpush1.msra.mxu0 %v3959
        %3990 = vmatprep.subr.mxu0 0.0
        %3991 = vmatpush1.msra.mxu0 %v3960
        %3992 = vmatprep.subr.mxu0 0.0
        %3993 = vmatpush1.msra.mxu0 %v3961
        %3994 = vmatprep.subr.mxu0 0.0
        %3995 = vmatpush1.msra.mxu0 0.0
        %3996 = vmatprep.subr.mxu0 0.0
        %3997 = vmatpush1.msra.mxu0 0.0
        %3998 = vmatprep.subr.mxu0 0.0
        %3999 = vmatpush1.msra.mxu0 0.0
        %4000 = vmatprep.subr.mxu0 0.0
        %4001 = vmatpush1.msra.mxu0 0.0
        %4002 = vmatprep.subr.mxu0 0.0
        %4003 = vmatpush1.msra.mxu0 0.0
        %4004 = vmatprep.subr.mxu0 0.0
        %4005 = vmatpush1.msra.mxu0 0.0
        %4006 = vmatprep.subr.mxu0 0.0
        %4007 = vmatpush1.msra.mxu0 0.0
        %4008 = vmatprep.subr.mxu0 0.0
        %4009 = vmatpush1.msra.mxu0 0.0
        %4010 = vmatprep.subr.mxu0 0.0
        %4011 = vmatpush1.msra.mxu0 0.0
        %4012 = vmatprep.subr.mxu0 0.0
        %4013 = vmatpush1.msra.mxu0 0.0
        %4014 = vmatprep.subr.mxu0 0.0
        %4015 = vmatpush1.msra.mxu0 0.0
        %4016 = vmatprep.subr.mxu0 0.0
        %4017 = vmatpush1.msra.mxu0 0.0
        %4018 = vmatprep.subr.mxu0 0.0
        %4019 = vmatpush1.msra.mxu0 0.0
        %4020 = vmatprep.subr.mxu0 0.0
        %4021 = vmatpush1.msra.mxu0 0.0
        %4022 = vmatprep.subr.mxu0 0.0
        %4023 = vmatpush1.msra.mxu0 0.0
        %4024 = vmatprep.subr.mxu0 0.0
        %4025 = vmatpush1.msra.mxu0 0.0
        %4026 = vmatprep.mubr.f32.mxu0 0.0
        %4027 = vmatmul.mubr.f32.gmra.mrb[0].mxu0 %v3913
        %v4028 = vpop.f32.mrb[0].mxu0
        %v4029 = vadd.f32 0.0, %v4028
        %v4030 = vpop.f32.mrb[0].mxu0
        %4031 = vmatprep.mubr.f32.mxu0 0.0
        %4032 = vmatmul.mubr.f32.gmra.mrb[0].mxu0 %v3914
        %v4033 = vpop.f32.mrb[0].mxu0
        %v4034 = vadd.f32 0.0, %v4033
        %v4035 = vpop.f32.mrb[0].mxu0
        %4036 = vmatprep.mubr.f32.mxu0 0.0
        %4037 = vmatmul.mubr.f32.gmra.mrb[0].mxu0 %v3915
        %v4038 = vpop.f32.mrb[0].mxu0
        %v4039 = vadd.f32 0.0, %v4038
        %v4040 = vpop.f32.mrb[0].mxu0
        %4041 = vmatprep.mubr.f32.mxu0 0.0
        %4042 = vmatmul.mubr.f32.gmra.mrb[0].mxu0 %v3916
        %v4043 = vpop.f32.mrb[0].mxu0
        %v4044 = vadd.f32 0.0, %v4043
        %v4045 = vpop.f32.mrb[0].mxu0
        %4046 = vmatprep.mubr.f32.mxu0 0.0
        %4047 = vmatmul.mubr.f32.gmra.mrb[0].mxu0 %v3917
        %v4048 = vpop.f32.mrb[0].mxu0
        %v4049 = vadd.f32 0.0, %v4048
        %v4050 = vpop.f32.mrb[0].mxu0
        %4051 = vmatprep.mubr.f32.mxu0 0.0
        %4052 = vmatmul.mubr.f32.gmra.mrb[0].mxu0 %v3918
        %v4053 = vpop.f32.mrb[0].mxu0
        %v4054 = vadd.f32 0.0, %v4053
        %v4055 = vpop.f32.mrb[0].mxu0
        %4056 = vmatprep.mubr.f32.mxu0 0.0
        %4057 = vmatmul.mubr.f32.gmra.mrb[0].mxu0 %v3919
        %v4058 = vpop.f32.mrb[0].mxu0
        %v4059 = vadd.f32 0.0, %v4058
        %v4060 = vpop.f32.mrb[0].mxu0
        %4061 = vmatprep.mubr.f32.mxu0 0.0
        %4062 = vmatmul.mubr.f32.gmra.mrb[0].mxu0 %v3920
        %v4063 = vpop.f32.mrb[0].mxu0
        %v4064 = vadd.f32 0.0, %v4063
        %v4065 = vpop.f32.mrb[0].mxu0
        %4066 = vmatprep.mubr.f32.mxu0 0.0
        %4067 = vmatmul.mubr.f32.gmra.mrb[0].mxu0 %v3921
        %v4068 = vpop.f32.mrb[0].mxu0
        %v4069 = vadd.f32 0.0, %v4068
        %v4070 = vpop.f32.mrb[0].mxu0
        %4071 = vmatprep.mubr.f32.mxu0 0.0
        %4072 = vmatmul.mubr.f32.gmra.mrb[0].mxu0 %v3922
        %v4073 = vpop.f32.mrb[0].mxu0
        %v4074 = vadd.f32 0.0, %v4073
        %v4075 = vpop.f32.mrb[0].mxu0
        %4076 = vmatprep.mubr.f32.mxu0 0.0
        %4077 = vmatmul.mubr.f32.gmra.mrb[0].mxu0 %v3923
        %v4078 = vpop.f32.mrb[0].mxu0
        %v4079 = vadd.f32 0.0, %v4078
        %v4080 = vpop.f32.mrb[0].mxu0
        %4081 = vmatprep.mubr.f32.mxu0 0.0
        %4082 = vmatmul.mubr.f32.gmra.mrb[0].mxu0 %v3924
        %v4083 = vpop.f32.mrb[0].mxu0
        %v4084 = vadd.f32 0.0, %v4083
        %v4085 = vpop.f32.mrb[0].mxu0
        %4086 = vmatprep.mubr.f32.mxu0 0.0
        %4087 = vmatmul.mubr.f32.gmra.mrb[0].mxu0 %v3925
        %v4088 = vpop.f32.mrb[0].mxu0
        %v4089 = vadd.f32 0.0, %v4088
        %v4090 = vpop.f32.mrb[0].mxu0
        %4091 = vmatprep.mubr.f32.mxu0 0.0
        %4092 = vmatmul.mubr.f32.gmra.mrb[0].mxu0 %v3926
        %v4093 = vpop.f32.mrb[0].mxu0
        %v4094 = vadd.f32 0.0, %v4093
        %v4095 = vpop.f32.mrb[0].mxu0
        %4096 = vmatprep.mubr.f32.mxu0 0.0
        %4097 = vmatmul.mubr.f32.gmra.mrb[0].mxu0 %v3927
        %v4098 = vpop.f32.mrb[0].mxu0
        %v4099 = vadd.f32 0.0, %v4098
        %v4100 = vpop.f32.mrb[0].mxu0
        %4101 = vmatprep.mubr.f32.mxu0 0.0
        %4102 = vmatmul.mubr.f32.gmra.mrb[0].mxu0 %v3928
        %v4103 = vpop.f32.mrb[0].mxu0
        %v4104 = vadd.f32 0.0, %v4103
        %v4105 = vpop.f32.mrb[0].mxu0
        %4106 = vmatprep.mubr.f32.mxu0 0.0
        %4107 = vmatmul.mubr.f32.gmra.mrb[0].mxu0 %v3929
        %v4108 = vpop.f32.mrb[0].mxu0
        %v4109 = vadd.f32 0.0, %v4108
        %v4110 = vpop.f32.mrb[0].mxu0
        %4111 = vmatprep.mubr.f32.mxu0 0.0
        %4112 = vmatmul.mubr.f32.gmra.mrb[0].mxu0 %v3930
        %v4113 = vpop.f32.mrb[0].mxu0
        %v4114 = vadd.f32 0.0, %v4113
        %v4115 = vpop.f32.mrb[0].mxu0
        %4116 = vmatprep.mubr.f32.mxu0 0.0
        %4117 = vmatmul.mubr.f32.gmra.mrb[0].mxu0 %v3931
        %v4118 = vpop.f32.mrb[0].mxu0
        %v4119 = vadd.f32 0.0, %v4118
        %v4120 = vpop.f32.mrb[0].mxu0
        %4121 = vmatprep.mubr.f32.mxu0 0.0
        %4122 = vmatmul.mubr.f32.gmra.mrb[0].mxu0 %v3932
        %v4123 = vpop.f32.mrb[0].mxu0
        %v4124 = vadd.f32 0.0, %v4123
        %v4125 = vpop.f32.mrb[0].mxu0
        %4126 = vmatprep.mubr.f32.mxu0 0.0
        %4127 = vmatmul.mubr.f32.gmra.mrb[0].mxu0 %v3933
        %v4128 = vpop.f32.mrb[0].mxu0
        %v4129 = vadd.f32 0.0, %v4128
        %v4130 = vpop.f32.mrb[0].mxu0
        %4131 = vmatprep.mubr.f32.mxu0 0.0
        %4132 = vmatmul.mubr.f32.gmra.mrb[0].mxu0 %v3934
        %v4133 = vpop.f32.mrb[0].mxu0
        %v4134 = vadd.f32 0.0, %v4133
        %v4135 = vpop.f32.mrb[0].mxu0
        %4136 = vmatprep.mubr.f32.mxu0 0.0
        %4137 = vmatmul.mubr.f32.gmra.mrb[0].mxu0 %v3935
        %v4138 = vpop.f32.mrb[0].mxu0
        %v4139 = vadd.f32 0.0, %v4138
        %v4140 = vpop.f32.mrb[0].mxu0
        %4141 = vmatprep.mubr.f32.mxu0 0.0
        %4142 = vmatmul.mubr.f32.gmra.mrb[0].mxu0 %v3936
        %v4143 = vpop.f32.mrb[0].mxu0
        %v4144 = vadd.f32 0.0, %v4143
        %v4145 = vpop.f32.mrb[0].mxu0
        %4146 = vmatprep.mubr.f32.mxu0 0.0
        %4147 = vmatmul.mubr.f32.gmra.mrb[0].mxu0 %v3937
        %v4148 = vpop.f32.mrb[0].mxu0
        %v4149 = vadd.f32 0.0, %v4148
        %v4150 = vpop.f32.mrb[0].mxu0
        %4151 = vmatprep.mubr.f32.mxu0 0.0
        %4152 = vmatmul.mubr.f32.gmra.mrb[0].mxu0 %v3938
        %v4153 = vpop.f32.mrb[0].mxu0
        %v4154 = vadd.f32 0.0, %v4153
        %v4155 = vpop.f32.mrb[0].mxu0
        %4156 = vmatprep.mubr.f32.mxu0 0.0
        %4157 = vmatmul.mubr.f32.gmra.mrb[0].mxu0 %v3939
        %v4158 = vpop.f32.mrb[0].mxu0
        %v4159 = vadd.f32 0.0, %v4158
        %v4160 = vpop.f32.mrb[0].mxu0
        %4161 = vmatprep.mubr.f32.mxu0 0.0
        %4162 = vmatmul.mubr.f32.gmra.mrb[0].mxu0 %v3940
        %v4163 = vpop.f32.mrb[0].mxu0
        %v4164 = vadd.f32 0.0, %v4163
        %v4165 = vpop.f32.mrb[0].mxu0
        %4166 = vmatprep.mubr.f32.mxu0 0.0
        %4167 = vmatmul.mubr.f32.gmra.mrb[0].mxu0 %v3941
        %v4168 = vpop.f32.mrb[0].mxu0
        %v4169 = vadd.f32 0.0, %v4168
        %v4170 = vpop.f32.mrb[0].mxu0
        %4171 = vmatprep.mubr.f32.mxu0 0.0
        %4172 = vmatmul.mubr.f32.gmra.mrb[0].mxu0 %v3942
        %v4173 = vpop.f32.mrb[0].mxu0
        %v4174 = vadd.f32 0.0, %v4173
        %v4175 = vpop.f32.mrb[0].mxu0
        %4176 = vmatprep.mubr.f32.mxu0 0.0
        %4177 = vmatmul.mubr.f32.gmra.mrb[0].mxu0 %v3943
        %v4178 = vpop.f32.mrb[0].mxu0
        %v4179 = vadd.f32 0.0, %v4178
        %v4180 = vpop.f32.mrb[0].mxu0
        %4181 = vmatprep.mubr.f32.mxu0 0.0
        %4182 = vmatmul.mubr.f32.gmra.mrb[0].mxu0 %v3944
        %v4183 = vpop.f32.mrb[0].mxu0
        %v4184 = vadd.f32 0.0, %v4183
        %v4185 = vpop.f32.mrb[0].mxu0
        %4186 = vdwg.mxu0
        %4187 = vmatprep.subr.mxu0 0.0
        %4188 = vmatpush1.msra.mxu0 %v3897
        %4189 = vmatprep.subr.mxu0 0.0
        %4190 = vmatpush1.msra.mxu0 %v3898
        %4191 = vmatprep.subr.mxu0 0.0
        %4192 = vmatpush1.msra.mxu0 %v3899
        %4193 = vmatprep.subr.mxu0 0.0
        %4194 = vmatpush1.msra.mxu0 %v3900
        %4195 = vmatprep.subr.mxu0 0.0
        %4196 = vmatpush1.msra.mxu0 %v3901
        %4197 = vmatprep.subr.mxu0 0.0
        %4198 = vmatpush1.msra.mxu0 %v3902
        %4199 = vmatprep.subr.mxu0 0.0
        %4200 = vmatpush1.msra.mxu0 %v3903
        %4201 = vmatprep.subr.mxu0 0.0
        %4202 = vmatpush1.msra.mxu0 %v3904
        %4203 = vmatprep.subr.mxu0 0.0
        %4204 = vmatpush1.msra.mxu0 %v3905
        %4205 = vmatprep.subr.mxu0 0.0
        %4206 = vmatpush1.msra.mxu0 %v3906
        %4207 = vmatprep.subr.mxu0 0.0
        %4208 = vmatpush1.msra.mxu0 %v3907
        %4209 = vmatprep.subr.mxu0 0.0
        %4210 = vmatpush1.msra.mxu0 %v3908
        %4211 = vmatprep.subr.mxu0 0.0
        %4212 = vmatpush1.msra.mxu0 %v3909
        %4213 = vmatprep.subr.mxu0 0.0
        %4214 = vmatpush1.msra.mxu0 %v3910
        %4215 = vmatprep.subr.mxu0 0.0
        %4216 = vmatpush1.msra.mxu0 %v3911
        %4217 = vmatprep.subr.mxu0 0.0
        %4218 = vmatpush1.msra.mxu0 %v3912
        %4219 = vmatprep.subr.mxu0 0.0
        %4220 = vmatpush1.msra.mxu0 0.0
        %4221 = vmatprep.subr.mxu0 0.0
        %4222 = vmatpush1.msra.mxu0 0.0
        %4223 = vmatprep.subr.mxu0 0.0
        %4224 = vmatpush1.msra.mxu0 0.0
        %4225 = vmatprep.subr.mxu0 0.0
        %4226 = vmatpush1.msra.mxu0 0.0
        %4227 = vmatprep.subr.mxu0 0.0
        %4228 = vmatpush1.msra.mxu0 0.0
        %4229 = vmatprep.subr.mxu0 0.0
        %4230 = vmatpush1.msra.mxu0 0.0
        %4231 = vmatprep.subr.mxu0 0.0
        %4232 = vmatpush1.msra.mxu0 0.0
        %4233 = vmatprep.subr.mxu0 0.0
        %4234 = vmatpush1.msra.mxu0 0.0
        %4235 = vmatprep.subr.mxu0 0.0
        %4236 = vmatpush1.msra.mxu0 0.0
        %4237 = vmatprep.subr.mxu0 0.0
        %4238 = vmatpush1.msra.mxu0 0.0
        %4239 = vmatprep.subr.mxu0 0.0
        %4240 = vmatpush1.msra.mxu0 0.0
        %4241 = vmatprep.subr.mxu0 0.0
        %4242 = vmatpush1.msra.mxu0 0.0
        %4243 = vmatprep.subr.mxu0 0.0
        %4244 = vmatpush1.msra.mxu0 0.0
        %4245 = vmatprep.subr.mxu0 0.0
        %4246 = vmatpush1.msra.mxu0 0.0
        %4247 = vmatprep.subr.mxu0 0.0
        %4248 = vmatpush1.msra.mxu0 0.0
        %4249 = vmatprep.subr.mxu0 0.0
        %4250 = vmatpush1.msra.mxu0 0.0
        %4251 = vmatprep.mubr.f32.mxu0 0.0
        %4252 = vmatmul.mubr.f32.gmra.mrb[0].mxu0 %v3865
        %v4253 = vpop.f32.mrb[0].mxu0
        %v4254 = vadd.f32 %v4029, %v4253
        %v4255 = vpop.f32.mrb[0].mxu0
        %4256 = vmatprep.mubr.f32.mxu0 0.0
        %4257 = vmatmul.mubr.f32.gmra.mrb[0].mxu0 %v3866
        %v4258 = vpop.f32.mrb[0].mxu0
        %v4259 = vadd.f32 %v4034, %v4258
        %v4260 = vpop.f32.mrb[0].mxu0
        %4261 = vmatprep.mubr.f32.mxu0 0.0
        %4262 = vmatmul.mubr.f32.gmra.mrb[0].mxu0 %v3867
        %v4263 = vpop.f32.mrb[0].mxu0
        %v4264 = vadd.f32 %v4039, %v4263
        %v4265 = vpop.f32.mrb[0].mxu0
        %4266 = vmatprep.mubr.f32.mxu0 0.0
        %4267 = vmatmul.mubr.f32.gmra.mrb[0].mxu0 %v3868
        %v4268 = vpop.f32.mrb[0].mxu0
        %v4269 = vadd.f32 %v4044, %v4268
        %v4270 = vpop.f32.mrb[0].mxu0
        %4271 = vmatprep.mubr.f32.mxu0 0.0
        %4272 = vmatmul.mubr.f32.gmra.mrb[0].mxu0 %v3869
        %v4273 = vpop.f32.mrb[0].mxu0
        %v4274 = vadd.f32 %v4049, %v4273
        %v4275 = vpop.f32.mrb[0].mxu0
        %4276 = vmatprep.mubr.f32.mxu0 0.0
        %4277 = vmatmul.mubr.f32.gmra.mrb[0].mxu0 %v3870
        %v4278 = vpop.f32.mrb[0].mxu0
        %v4279 = vadd.f32 %v4054, %v4278
        %v4280 = vpop.f32.mrb[0].mxu0
        %4281 = vmatprep.mubr.f32.mxu0 0.0
        %4282 = vmatmul.mubr.f32.gmra.mrb[0].mxu0 %v3871
        %v4283 = vpop.f32.mrb[0].mxu0
        %v4284 = vadd.f32 %v4059, %v4283
        %v4285 = vpop.f32.mrb[0].mxu0
        %4286 = vmatprep.mubr.f32.mxu0 0.0
        %4287 = vmatmul.mubr.f32.gmra.mrb[0].mxu0 %v3872
        %v4288 = vpop.f32.mrb[0].mxu0
        %v4289 = vadd.f32 %v4064, %v4288
        %v4290 = vpop.f32.mrb[0].mxu0
        %4291 = vmatprep.mubr.f32.mxu0 0.0
        %4292 = vmatmul.mubr.f32.gmra.mrb[0].mxu0 %v3873
        %v4293 = vpop.f32.mrb[0].mxu0
        %v4294 = vadd.f32 %v4069, %v4293
        %v4295 = vpop.f32.mrb[0].mxu0
        %4296 = vmatprep.mubr.f32.mxu0 0.0
        %4297 = vmatmul.mubr.f32.gmra.mrb[0].mxu0 %v3874
        %v4298 = vpop.f32.mrb[0].mxu0
        %v4299 = vadd.f32 %v4074, %v4298
        %v4300 = vpop.f32.mrb[0].mxu0
        %4301 = vmatprep.mubr.f32.mxu0 0.0
        %4302 = vmatmul.mubr.f32.gmra.mrb[0].mxu0 %v3875
        %v4303 = vpop.f32.mrb[0].mxu0
        %v4304 = vadd.f32 %v4079, %v4303
        %v4305 = vpop.f32.mrb[0].mxu0
        %4306 = vmatprep.mubr.f32.mxu0 0.0
        %4307 = vmatmul.mubr.f32.gmra.mrb[0].mxu0 %v3876
        %v4308 = vpop.f32.mrb[0].mxu0
        %v4309 = vadd.f32 %v4084, %v4308
        %v4310 = vpop.f32.mrb[0].mxu0
        %4311 = vmatprep.mubr.f32.mxu0 0.0
        %4312 = vmatmul.mubr.f32.gmra.mrb[0].mxu0 %v3877
        %v4313 = vpop.f32.mrb[0].mxu0
        %v4314 = vadd.f32 %v4089, %v4313
        %v4315 = vpop.f32.mrb[0].mxu0
        %4316 = vmatprep.mubr.f32.mxu0 0.0
        %4317 = vmatmul.mubr.f32.gmra.mrb[0].mxu0 %v3878
        %v4318 = vpop.f32.mrb[0].mxu0
        %v4319 = vadd.f32 %v4094, %v4318
        %v4320 = vpop.f32.mrb[0].mxu0
        %4321 = vmatprep.mubr.f32.mxu0 0.0
        %4322 = vmatmul.mubr.f32.gmra.mrb[0].mxu0 %v3879
        %v4323 = vpop.f32.mrb[0].mxu0
        %v4324 = vadd.f32 %v4099, %v4323
        %v4325 = vpop.f32.mrb[0].mxu0
        %4326 = vmatprep.mubr.f32.mxu0 0.0
        %4327 = vmatmul.mubr.f32.gmra.mrb[0].mxu0 %v3880
        %v4328 = vpop.f32.mrb[0].mxu0
        %v4329 = vadd.f32 %v4104, %v4328
        %v4330 = vpop.f32.mrb[0].mxu0
        %4331 = vmatprep.mubr.f32.mxu0 0.0
        %4332 = vmatmul.mubr.f32.gmra.mrb[0].mxu0 %v3881
        %v4333 = vpop.f32.mrb[0].mxu0
        %v4334 = vadd.f32 %v4109, %v4333
        %v4335 = vpop.f32.mrb[0].mxu0
        %4336 = vmatprep.mubr.f32.mxu0 0.0
        %4337 = vmatmul.mubr.f32.gmra.mrb[0].mxu0 %v3882
        %v4338 = vpop.f32.mrb[0].mxu0
        %v4339 = vadd.f32 %v4114, %v4338
        %v4340 = vpop.f32.mrb[0].mxu0
        %4341 = vmatprep.mubr.f32.mxu0 0.0
        %4342 = vmatmul.mubr.f32.gmra.mrb[0].mxu0 %v3883
        %v4343 = vpop.f32.mrb[0].mxu0
        %v4344 = vadd.f32 %v4119, %v4343
        %v4345 = vpop.f32.mrb[0].mxu0
        %4346 = vmatprep.mubr.f32.mxu0 0.0
        %4347 = vmatmul.mubr.f32.gmra.mrb[0].mxu0 %v3884
        %v4348 = vpop.f32.mrb[0].mxu0
        %v4349 = vadd.f32 %v4124, %v4348
        %v4350 = vpop.f32.mrb[0].mxu0
        %4351 = vmatprep.mubr.f32.mxu0 0.0
        %4352 = vmatmul.mubr.f32.gmra.mrb[0].mxu0 %v3885
        %v4353 = vpop.f32.mrb[0].mxu0
        %v4354 = vadd.f32 %v4129, %v4353
        %v4355 = vpop.f32.mrb[0].mxu0
        %4356 = vmatprep.mubr.f32.mxu0 0.0
        %4357 = vmatmul.mubr.f32.gmra.mrb[0].mxu0 %v3886
        %v4358 = vpop.f32.mrb[0].mxu0
        %v4359 = vadd.f32 %v4134, %v4358
        %v4360 = vpop.f32.mrb[0].mxu0
        %4361 = vmatprep.mubr.f32.mxu0 0.0
        %4362 = vmatmul.mubr.f32.gmra.mrb[0].mxu0 %v3887
        %v4363 = vpop.f32.mrb[0].mxu0
        %v4364 = vadd.f32 %v4139, %v4363
        %v4365 = vpop.f32.mrb[0].mxu0
        %4366 = vmatprep.mubr.f32.mxu0 0.0
        %4367 = vmatmul.mubr.f32.gmra.mrb[0].mxu0 %v3888
        %v4368 = vpop.f32.mrb[0].mxu0
        %v4369 = vadd.f32 %v4144, %v4368
        %v4370 = vpop.f32.mrb[0].mxu0
        %4371 = vmatprep.mubr.f32.mxu0 0.0
        %4372 = vmatmul.mubr.f32.gmra.mrb[0].mxu0 %v3889
        %v4373 = vpop.f32.mrb[0].mxu0
        %v4374 = vadd.f32 %v4149, %v4373
        %v4375 = vpop.f32.mrb[0].mxu0
        %4376 = vmatprep.mubr.f32.mxu0 0.0
        %4377 = vmatmul.mubr.f32.gmra.mrb[0].mxu0 %v3890
        %v4378 = vpop.f32.mrb[0].mxu0
        %v4379 = vadd.f32 %v4154, %v4378
        %v4380 = vpop.f32.mrb[0].mxu0
        %4381 = vmatprep.mubr.f32.mxu0 0.0
        %4382 = vmatmul.mubr.f32.gmra.mrb[0].mxu0 %v3891
        %v4383 = vpop.f32.mrb[0].mxu0
        %v4384 = vadd.f32 %v4159, %v4383
        %v4385 = vpop.f32.mrb[0].mxu0
        %4386 = vmatprep.mubr.f32.mxu0 0.0
        %4387 = vmatmul.mubr.f32.gmra.mrb[0].mxu0 %v3892
        %v4388 = vpop.f32.mrb[0].mxu0
        %v4389 = vadd.f32 %v4164, %v4388
        %v4390 = vpop.f32.mrb[0].mxu0
        %4391 = vmatprep.mubr.f32.mxu0 0.0
        %4392 = vmatmul.mubr.f32.gmra.mrb[0].mxu0 %v3893
        %v4393 = vpop.f32.mrb[0].mxu0
        %v4394 = vadd.f32 %v4169, %v4393
        %v4395 = vpop.f32.mrb[0].mxu0
        %4396 = vmatprep.mubr.f32.mxu0 0.0
        %4397 = vmatmul.mubr.f32.gmra.mrb[0].mxu0 %v3894
        %v4398 = vpop.f32.mrb[0].mxu0
        %v4399 = vadd.f32 %v4174, %v4398
        %v4400 = vpop.f32.mrb[0].mxu0
        %4401 = vmatprep.mubr.f32.mxu0 0.0
        %4402 = vmatmul.mubr.f32.gmra.mrb[0].mxu0 %v3895
        %v4403 = vpop.f32.mrb[0].mxu0
        %v4404 = vadd.f32 %v4179, %v4403
        %v4405 = vpop.f32.mrb[0].mxu0
        %4406 = vmatprep.mubr.f32.mxu0 0.0
        %4407 = vmatmul.mubr.f32.gmra.mrb[0].mxu0 %v3896
        %v4408 = vpop.f32.mrb[0].mxu0
        %v4409 = vadd.f32 %v4184, %v4408
        %v4410 = vpop.f32.mrb[0].mxu0
        %4411 = vdwg.mxu0
        %v4412 = vld [vmem:[#allocation3 + $0x2] sm:$0xff]
        %v4413 = vld [vmem:[#allocation3 + $0xa] sm:$0xff]
        %v4414 = vld [vmem:[#allocation3 + $0x1a] sm:$0xff]
        %v4415 = vld [vmem:[#allocation3 + $0x22] sm:$0xff]
        %v4416 = vld [vmem:[#allocation3 + $0x32] sm:$0xff]
        %v4417 = vld [vmem:[#allocation3 + $0x3a] sm:$0xff]
        %v4418 = vld [vmem:[#allocation3 + $0x4a] sm:$0xff]
        %v4419 = vld [vmem:[#allocation3 + $0x52] sm:$0xff]
        %v4420 = vld [vmem:[#allocation3 + $0x62] sm:$0xff]
        %v4421 = vld [vmem:[#allocation3 + $0x6a] sm:$0xff]
        %v4422 = vld [vmem:[#allocation3 + $0x7a] sm:$0xff]
        %v4423 = vld [vmem:[#allocation3 + $0x82] sm:$0xff]
        %v4424 = vld [vmem:[#allocation3 + $0x92] sm:$0xff]
        %v4425 = vld [vmem:[#allocation3 + $0x9a] sm:$0xff]
        %v4426 = vld [vmem:[#allocation3 + $0xaa] sm:$0xff]
        %v4427 = vld [vmem:[#allocation3 + $0xb2] sm:$0xff]
        %v4428 = vld [vmem:[#allocation3 + $0xc2] sm:$0xff]
        %v4429 = vld [vmem:[#allocation3 + $0xca] sm:$0xff]
        %v4430 = vld [vmem:[#allocation3 + $0xda] sm:$0xff]
        %v4431 = vld [vmem:[#allocation3 + $0xe2] sm:$0xff]
        %v4432 = vld [vmem:[#allocation3 + $0xf2] sm:$0xff]
        %v4433 = vld [vmem:[#allocation3 + $0xfa] sm:$0xff]
        %v4434 = vld [vmem:[#allocation3 + $0x10a] sm:$0xff]
        %v4435 = vld [vmem:[#allocation3 + $0x112] sm:$0xff]
        %v4436 = vld [vmem:[#allocation3 + $0x122] sm:$0xff]
        %v4437 = vld [vmem:[#allocation3 + $0x12a] sm:$0xff]
        %v4438 = vld [vmem:[#allocation3 + $0x13a] sm:$0xff]
        %v4439 = vld [vmem:[#allocation3 + $0x142] sm:$0xff]
        %v4440 = vld [vmem:[#allocation3 + $0x152] sm:$0xff]
        %v4441 = vld [vmem:[#allocation3 + $0x15a] sm:$0xff]
        %v4442 = vld [vmem:[#allocation3 + $0x16a] sm:$0xff]
        %v4443 = vld [vmem:[#allocation3 + $0x172] sm:$0xff]
        %s4444 = scalar_lea.vmem [#allocation9], 256
        %v4445 = vld [vmem:[%s4444] sm:$0xff]
        %v4446 = vld [vmem:[%s4444 + $0x8] sm:$0xff]
        %v4447 = vld [vmem:[%s4444 + $0x10] sm:$0xff]
        %v4448 = vld [vmem:[%s4444 + $0x18] sm:$0xff]
        %v4449 = vld [vmem:[%s4444 + $0x20] sm:$0xff]
        %v4450 = vld [vmem:[%s4444 + $0x28] sm:$0xff]
        %v4451 = vld [vmem:[%s4444 + $0x30] sm:$0xff]
        %v4452 = vld [vmem:[%s4444 + $0x38] sm:$0xff]
        %v4453 = vld [vmem:[%s4444 + $0x40] sm:$0xff]
        %v4454 = vld [vmem:[%s4444 + $0x48] sm:$0xff]
        %v4455 = vld [vmem:[%s4444 + $0x50] sm:$0xff]
        %v4456 = vld [vmem:[%s4444 + $0x58] sm:$0xff]
        %v4457 = vld [vmem:[%s4444 + $0x60] sm:$0xff]
        %v4458 = vld [vmem:[%s4444 + $0x68] sm:$0xff]
        %v4459 = vld [vmem:[%s4444 + $0x70] sm:$0xff]
        %v4460 = vld [vmem:[%s4444 + $0x78] sm:$0xff]
        %4461 = vmatprep.subr.mxu0 0.0
        %4462 = vmatpush1.msra.mxu0 %v4445
        %4463 = vmatprep.subr.mxu0 0.0
        %4464 = vmatpush1.msra.mxu0 %v4446
        %4465 = vmatprep.subr.mxu0 0.0
        %4466 = vmatpush1.msra.mxu0 %v4447
        %4467 = vmatprep.subr.mxu0 0.0
        %4468 = vmatpush1.msra.mxu0 %v4448
        %4469 = vmatprep.subr.mxu0 0.0
        %4470 = vmatpush1.msra.mxu0 %v4449
        %4471 = vmatprep.subr.mxu0 0.0
        %4472 = vmatpush1.msra.mxu0 %v4450
        %4473 = vmatprep.subr.mxu0 0.0
        %4474 = vmatpush1.msra.mxu0 %v4451
        %4475 = vmatprep.subr.mxu0 0.0
        %4476 = vmatpush1.msra.mxu0 %v4452
        %4477 = vmatprep.subr.mxu0 0.0
        %4478 = vmatpush1.msra.mxu0 %v4453
        %4479 = vmatprep.subr.mxu0 0.0
        %4480 = vmatpush1.msra.mxu0 %v4454
        %4481 = vmatprep.subr.mxu0 0.0
        %4482 = vmatpush1.msra.mxu0 %v4455
        %4483 = vmatprep.subr.mxu0 0.0
        %4484 = vmatpush1.msra.mxu0 %v4456
        %4485 = vmatprep.subr.mxu0 0.0
        %4486 = vmatpush1.msra.mxu0 %v4457
        %4487 = vmatprep.subr.mxu0 0.0
        %4488 = vmatpush1.msra.mxu0 %v4458
        %4489 = vmatprep.subr.mxu0 0.0
        %4490 = vmatpush1.msra.mxu0 %v4459
        %4491 = vmatprep.subr.mxu0 0.0
        %4492 = vmatpush1.msra.mxu0 %v4460
        %4493 = vmatprep.subr.mxu0 0.0
        %4494 = vmatpush1.msra.mxu0 0.0
        %4495 = vmatprep.subr.mxu0 0.0
        %4496 = vmatpush1.msra.mxu0 0.0
        %4497 = vmatprep.subr.mxu0 0.0
        %4498 = vmatpush1.msra.mxu0 0.0
        %4499 = vmatprep.subr.mxu0 0.0
        %4500 = vmatpush1.msra.mxu0 0.0
        %4501 = vmatprep.subr.mxu0 0.0
        %4502 = vmatpush1.msra.mxu0 0.0
        %4503 = vmatprep.subr.mxu0 0.0
        %4504 = vmatpush1.msra.mxu0 0.0
        %4505 = vmatprep.subr.mxu0 0.0
        %4506 = vmatpush1.msra.mxu0 0.0
        %4507 = vmatprep.subr.mxu0 0.0
        %4508 = vmatpush1.msra.mxu0 0.0
        %4509 = vmatprep.subr.mxu0 0.0
        %4510 = vmatpush1.msra.mxu0 0.0
        %4511 = vmatprep.subr.mxu0 0.0
        %4512 = vmatpush1.msra.mxu0 0.0
        %4513 = vmatprep.subr.mxu0 0.0
        %4514 = vmatpush1.msra.mxu0 0.0
        %4515 = vmatprep.subr.mxu0 0.0
        %4516 = vmatpush1.msra.mxu0 0.0
        %4517 = vmatprep.subr.mxu0 0.0
        %4518 = vmatpush1.msra.mxu0 0.0
        %4519 = vmatprep.subr.mxu0 0.0
        %4520 = vmatpush1.msra.mxu0 0.0
        %4521 = vmatprep.subr.mxu0 0.0
        %4522 = vmatpush1.msra.mxu0 0.0
        %4523 = vmatprep.subr.mxu0 0.0
        %4524 = vmatpush1.msra.mxu0 0.0
        %4525 = vmatprep.mubr.f32.mxu0 0.0
        %4526 = vmatmul.mubr.f32.gmra.mrb[0].mxu0 %v4412
        %v4527 = vpop.f32.mrb[0].mxu0
        %v4528 = vadd.f32 0.0, %v4527
        %v4529 = vpop.f32.mrb[0].mxu0
        %4530 = vmatprep.mubr.f32.mxu0 0.0
        %4531 = vmatmul.mubr.f32.gmra.mrb[0].mxu0 %v4413
        %v4532 = vpop.f32.mrb[0].mxu0
        %v4533 = vadd.f32 0.0, %v4532
        %v4534 = vpop.f32.mrb[0].mxu0
        %4535 = vmatprep.mubr.f32.mxu0 0.0
        %4536 = vmatmul.mubr.f32.gmra.mrb[0].mxu0 %v4414
        %v4537 = vpop.f32.mrb[0].mxu0
        %v4538 = vadd.f32 0.0, %v4537
        %v4539 = vpop.f32.mrb[0].mxu0
        %4540 = vmatprep.mubr.f32.mxu0 0.0
        %4541 = vmatmul.mubr.f32.gmra.mrb[0].mxu0 %v4415
        %v4542 = vpop.f32.mrb[0].mxu0
        %v4543 = vadd.f32 0.0, %v4542
        %v4544 = vpop.f32.mrb[0].mxu0
        %4545 = vmatprep.mubr.f32.mxu0 0.0
        %4546 = vmatmul.mubr.f32.gmra.mrb[0].mxu0 %v4416
        %v4547 = vpop.f32.mrb[0].mxu0
        %v4548 = vadd.f32 0.0, %v4547
        %v4549 = vpop.f32.mrb[0].mxu0
        %4550 = vmatprep.mubr.f32.mxu0 0.0
        %4551 = vmatmul.mubr.f32.gmra.mrb[0].mxu0 %v4417
        %v4552 = vpop.f32.mrb[0].mxu0
        %v4553 = vadd.f32 0.0, %v4552
        %v4554 = vpop.f32.mrb[0].mxu0
        %4555 = vmatprep.mubr.f32.mxu0 0.0
        %4556 = vmatmul.mubr.f32.gmra.mrb[0].mxu0 %v4418
        %v4557 = vpop.f32.mrb[0].mxu0
        %v4558 = vadd.f32 0.0, %v4557
        %v4559 = vpop.f32.mrb[0].mxu0
        %4560 = vmatprep.mubr.f32.mxu0 0.0
        %4561 = vmatmul.mubr.f32.gmra.mrb[0].mxu0 %v4419
        %v4562 = vpop.f32.mrb[0].mxu0
        %v4563 = vadd.f32 0.0, %v4562
        %v4564 = vpop.f32.mrb[0].mxu0
        %4565 = vmatprep.mubr.f32.mxu0 0.0
        %4566 = vmatmul.mubr.f32.gmra.mrb[0].mxu0 %v4420
        %v4567 = vpop.f32.mrb[0].mxu0
        %v4568 = vadd.f32 0.0, %v4567
        %v4569 = vpop.f32.mrb[0].mxu0
        %4570 = vmatprep.mubr.f32.mxu0 0.0
        %4571 = vmatmul.mubr.f32.gmra.mrb[0].mxu0 %v4421
        %v4572 = vpop.f32.mrb[0].mxu0
        %v4573 = vadd.f32 0.0, %v4572
        %v4574 = vpop.f32.mrb[0].mxu0
        %4575 = vmatprep.mubr.f32.mxu0 0.0
        %4576 = vmatmul.mubr.f32.gmra.mrb[0].mxu0 %v4422
        %v4577 = vpop.f32.mrb[0].mxu0
        %v4578 = vadd.f32 0.0, %v4577
        %v4579 = vpop.f32.mrb[0].mxu0
        %4580 = vmatprep.mubr.f32.mxu0 0.0
        %4581 = vmatmul.mubr.f32.gmra.mrb[0].mxu0 %v4423
        %v4582 = vpop.f32.mrb[0].mxu0
        %v4583 = vadd.f32 0.0, %v4582
        %v4584 = vpop.f32.mrb[0].mxu0
        %4585 = vmatprep.mubr.f32.mxu0 0.0
        %4586 = vmatmul.mubr.f32.gmra.mrb[0].mxu0 %v4424
        %v4587 = vpop.f32.mrb[0].mxu0
        %v4588 = vadd.f32 0.0, %v4587
        %v4589 = vpop.f32.mrb[0].mxu0
        %4590 = vmatprep.mubr.f32.mxu0 0.0
        %4591 = vmatmul.mubr.f32.gmra.mrb[0].mxu0 %v4425
        %v4592 = vpop.f32.mrb[0].mxu0
        %v4593 = vadd.f32 0.0, %v4592
        %v4594 = vpop.f32.mrb[0].mxu0
        %4595 = vmatprep.mubr.f32.mxu0 0.0
        %4596 = vmatmul.mubr.f32.gmra.mrb[0].mxu0 %v4426
        %v4597 = vpop.f32.mrb[0].mxu0
        %v4598 = vadd.f32 0.0, %v4597
        %v4599 = vpop.f32.mrb[0].mxu0
        %4600 = vmatprep.mubr.f32.mxu0 0.0
        %4601 = vmatmul.mubr.f32.gmra.mrb[0].mxu0 %v4427
        %v4602 = vpop.f32.mrb[0].mxu0
        %v4603 = vadd.f32 0.0, %v4602
        %v4604 = vpop.f32.mrb[0].mxu0
        %4605 = vmatprep.mubr.f32.mxu0 0.0
        %4606 = vmatmul.mubr.f32.gmra.mrb[0].mxu0 %v4428
        %v4607 = vpop.f32.mrb[0].mxu0
        %v4608 = vadd.f32 0.0, %v4607
        %v4609 = vpop.f32.mrb[0].mxu0
        %4610 = vmatprep.mubr.f32.mxu0 0.0
        %4611 = vmatmul.mubr.f32.gmra.mrb[0].mxu0 %v4429
        %v4612 = vpop.f32.mrb[0].mxu0
        %v4613 = vadd.f32 0.0, %v4612
        %v4614 = vpop.f32.mrb[0].mxu0
        %4615 = vmatprep.mubr.f32.mxu0 0.0
        %4616 = vmatmul.mubr.f32.gmra.mrb[0].mxu0 %v4430
        %v4617 = vpop.f32.mrb[0].mxu0
        %v4618 = vadd.f32 0.0, %v4617
        %v4619 = vpop.f32.mrb[0].mxu0
        %4620 = vmatprep.mubr.f32.mxu0 0.0
        %4621 = vmatmul.mubr.f32.gmra.mrb[0].mxu0 %v4431
        %v4622 = vpop.f32.mrb[0].mxu0
        %v4623 = vadd.f32 0.0, %v4622
        %v4624 = vpop.f32.mrb[0].mxu0
        %4625 = vmatprep.mubr.f32.mxu0 0.0
        %4626 = vmatmul.mubr.f32.gmra.mrb[0].mxu0 %v4432
        %v4627 = vpop.f32.mrb[0].mxu0
        %v4628 = vadd.f32 0.0, %v4627
        %v4629 = vpop.f32.mrb[0].mxu0
        %4630 = vmatprep.mubr.f32.mxu0 0.0
        %4631 = vmatmul.mubr.f32.gmra.mrb[0].mxu0 %v4433
        %v4632 = vpop.f32.mrb[0].mxu0
        %v4633 = vadd.f32 0.0, %v4632
        %v4634 = vpop.f32.mrb[0].mxu0
        %4635 = vmatprep.mubr.f32.mxu0 0.0
        %4636 = vmatmul.mubr.f32.gmra.mrb[0].mxu0 %v4434
        %v4637 = vpop.f32.mrb[0].mxu0
        %v4638 = vadd.f32 0.0, %v4637
        %v4639 = vpop.f32.mrb[0].mxu0
        %4640 = vmatprep.mubr.f32.mxu0 0.0
        %4641 = vmatmul.mubr.f32.gmra.mrb[0].mxu0 %v4435
        %v4642 = vpop.f32.mrb[0].mxu0
        %v4643 = vadd.f32 0.0, %v4642
        %v4644 = vpop.f32.mrb[0].mxu0
        %4645 = vmatprep.mubr.f32.mxu0 0.0
        %4646 = vmatmul.mubr.f32.gmra.mrb[0].mxu0 %v4436
        %v4647 = vpop.f32.mrb[0].mxu0
        %v4648 = vadd.f32 0.0, %v4647
        %v4649 = vpop.f32.mrb[0].mxu0
        %4650 = vmatprep.mubr.f32.mxu0 0.0
        %4651 = vmatmul.mubr.f32.gmra.mrb[0].mxu0 %v4437
        %v4652 = vpop.f32.mrb[0].mxu0
        %v4653 = vadd.f32 0.0, %v4652
        %v4654 = vpop.f32.mrb[0].mxu0
        %4655 = vmatprep.mubr.f32.mxu0 0.0
        %4656 = vmatmul.mubr.f32.gmra.mrb[0].mxu0 %v4438
        %v4657 = vpop.f32.mrb[0].mxu0
        %v4658 = vadd.f32 0.0, %v4657
        %v4659 = vpop.f32.mrb[0].mxu0
        %4660 = vmatprep.mubr.f32.mxu0 0.0
        %4661 = vmatmul.mubr.f32.gmra.mrb[0].mxu0 %v4439
        %v4662 = vpop.f32.mrb[0].mxu0
        %v4663 = vadd.f32 0.0, %v4662
        %v4664 = vpop.f32.mrb[0].mxu0
        %4665 = vmatprep.mubr.f32.mxu0 0.0
        %4666 = vmatmul.mubr.f32.gmra.mrb[0].mxu0 %v4440
        %v4667 = vpop.f32.mrb[0].mxu0
        %v4668 = vadd.f32 0.0, %v4667
        %v4669 = vpop.f32.mrb[0].mxu0
        %4670 = vmatprep.mubr.f32.mxu0 0.0
        %4671 = vmatmul.mubr.f32.gmra.mrb[0].mxu0 %v4441
        %v4672 = vpop.f32.mrb[0].mxu0
        %v4673 = vadd.f32 0.0, %v4672
        %v4674 = vpop.f32.mrb[0].mxu0
        %4675 = vmatprep.mubr.f32.mxu0 0.0
        %4676 = vmatmul.mubr.f32.gmra.mrb[0].mxu0 %v4442
        %v4677 = vpop.f32.mrb[0].mxu0
        %v4678 = vadd.f32 0.0, %v4677
        %v4679 = vpop.f32.mrb[0].mxu0
        %4680 = vmatprep.mubr.f32.mxu0 0.0
        %4681 = vmatmul.mubr.f32.gmra.mrb[0].mxu0 %v4443
        %v4682 = vpop.f32.mrb[0].mxu0
        %v4683 = vadd.f32 0.0, %v4682
        %v4684 = vpop.f32.mrb[0].mxu0
        %4685 = vdwg.mxu0
        %v4686 = vadd.f32 %v4254, %v4528
        %v4687 = vadd.f32 %v4259, %v4533
        %v4688 = vadd.f32 %v4264, %v4538
        %v4689 = vadd.f32 %v4269, %v4543
        %v4690 = vadd.f32 %v4274, %v4548
        %v4691 = vadd.f32 %v4279, %v4553
        %v4692 = vadd.f32 %v4284, %v4558
        %v4693 = vadd.f32 %v4289, %v4563
        %v4694 = vadd.f32 %v4294, %v4568
        %v4695 = vadd.f32 %v4299, %v4573
        %v4696 = vadd.f32 %v4304, %v4578
        %v4697 = vadd.f32 %v4309, %v4583
        %v4698 = vadd.f32 %v4314, %v4588
        %v4699 = vadd.f32 %v4319, %v4593
        %v4700 = vadd.f32 %v4324, %v4598
        %v4701 = vadd.f32 %v4329, %v4603
        %v4702 = vadd.f32 %v4334, %v4608
        %v4703 = vadd.f32 %v4339, %v4613
        %v4704 = vadd.f32 %v4344, %v4618
        %v4705 = vadd.f32 %v4349, %v4623
        %v4706 = vadd.f32 %v4354, %v4628
        %v4707 = vadd.f32 %v4359, %v4633
        %v4708 = vadd.f32 %v4364, %v4638
        %v4709 = vadd.f32 %v4369, %v4643
        %v4710 = vadd.f32 %v4374, %v4648
        %v4711 = vadd.f32 %v4379, %v4653
        %v4712 = vadd.f32 %v4384, %v4658
        %v4713 = vadd.f32 %v4389, %v4663
        %v4714 = vadd.f32 %v4394, %v4668
        %v4715 = vadd.f32 %v4399, %v4673
        %v4716 = vadd.f32 %v4404, %v4678
        %v4717 = vadd.f32 %v4409, %v4683
        %s4718 = scalar_lea.vmem [#allocation3], 24
        %v4719 = vld [vmem:[%s4718] sm:$0xff]
        %v4720 = vld [vmem:[%s4718 + $0x8] sm:$0xff]
        %v4721 = vld [vmem:[%s4718 + $0x18] sm:$0xff]
        %v4722 = vld [vmem:[%s4718 + $0x20] sm:$0xff]
        %v4723 = vld [vmem:[%s4718 + $0x30] sm:$0xff]
        %v4724 = vld [vmem:[%s4718 + $0x38] sm:$0xff]
        %v4725 = vld [vmem:[%s4718 + $0x48] sm:$0xff]
        %v4726 = vld [vmem:[%s4718 + $0x50] sm:$0xff]
        %v4727 = vld [vmem:[%s4718 + $0x60] sm:$0xff]
        %v4728 = vld [vmem:[%s4718 + $0x68] sm:$0xff]
        %v4729 = vld [vmem:[%s4718 + $0x78] sm:$0xff]
        %v4730 = vld [vmem:[%s4718 + $0x80] sm:$0xff]
        %v4731 = vld [vmem:[%s4718 + $0x90] sm:$0xff]
        %v4732 = vld [vmem:[%s4718 + $0x98] sm:$0xff]
        %v4733 = vld [vmem:[%s4718 + $0xa8] sm:$0xff]
        %v4734 = vld [vmem:[%s4718 + $0xb0] sm:$0xff]
        %v4735 = vld [vmem:[%s4718 + $0xc0] sm:$0xff]
        %v4736 = vld [vmem:[%s4718 + $0xc8] sm:$0xff]
        %v4737 = vld [vmem:[%s4718 + $0xd8] sm:$0xff]
        %v4738 = vld [vmem:[%s4718 + $0xe0] sm:$0xff]
        %v4739 = vld [vmem:[%s4718 + $0xf0] sm:$0xff]
        %v4740 = vld [vmem:[%s4718 + $0xf8] sm:$0xff]
        %v4741 = vld [vmem:[%s4718 + $0x108] sm:$0xff]
        %v4742 = vld [vmem:[%s4718 + $0x110] sm:$0xff]
        %v4743 = vld [vmem:[%s4718 + $0x120] sm:$0xff]
        %v4744 = vld [vmem:[%s4718 + $0x128] sm:$0xff]
        %v4745 = vld [vmem:[%s4718 + $0x138] sm:$0xff]
        %v4746 = vld [vmem:[%s4718 + $0x140] sm:$0xff]
        %v4747 = vld [vmem:[%s4718 + $0x150] sm:$0xff]
        %v4748 = vld [vmem:[%s4718 + $0x158] sm:$0xff]
        %v4749 = vld [vmem:[%s4718 + $0x168] sm:$0xff]
        %v4750 = vld [vmem:[%s4718 + $0x170] sm:$0xff]
        %s4751 = scalar_lea.vmem [#allocation9], 384
        %v4752 = vld [vmem:[%s4751] sm:$0xff]
        %v4753 = vld [vmem:[%s4751 + $0x8] sm:$0xff]
        %v4754 = vld [vmem:[%s4751 + $0x10] sm:$0xff]
        %v4755 = vld [vmem:[%s4751 + $0x18] sm:$0xff]
        %v4756 = vld [vmem:[%s4751 + $0x20] sm:$0xff]
        %v4757 = vld [vmem:[%s4751 + $0x28] sm:$0xff]
        %v4758 = vld [vmem:[%s4751 + $0x30] sm:$0xff]
        %v4759 = vld [vmem:[%s4751 + $0x38] sm:$0xff]
        %v4760 = vld [vmem:[%s4751 + $0x40] sm:$0xff]
        %v4761 = vld [vmem:[%s4751 + $0x48] sm:$0xff]
        %v4762 = vld [vmem:[%s4751 + $0x50] sm:$0xff]
        %v4763 = vld [vmem:[%s4751 + $0x58] sm:$0xff]
        %v4764 = vld [vmem:[%s4751 + $0x60] sm:$0xff]
        %v4765 = vld [vmem:[%s4751 + $0x68] sm:$0xff]
        %v4766 = vld [vmem:[%s4751 + $0x70] sm:$0xff]
        %v4767 = vld [vmem:[%s4751 + $0x78] sm:$0xff]
        %4768 = vmatprep.subr.mxu0 0.0
        %4769 = vmatpush1.msra.mxu0 %v4752
        %4770 = vmatprep.subr.mxu0 0.0
        %4771 = vmatpush1.msra.mxu0 %v4753
        %4772 = vmatprep.subr.mxu0 0.0
        %4773 = vmatpush1.msra.mxu0 %v4754
        %4774 = vmatprep.subr.mxu0 0.0
        %4775 = vmatpush1.msra.mxu0 %v4755
        %4776 = vmatprep.subr.mxu0 0.0
        %4777 = vmatpush1.msra.mxu0 %v4756
        %4778 = vmatprep.subr.mxu0 0.0
        %4779 = vmatpush1.msra.mxu0 %v4757
        %4780 = vmatprep.subr.mxu0 0.0
        %4781 = vmatpush1.msra.mxu0 %v4758
        %4782 = vmatprep.subr.mxu0 0.0
        %4783 = vmatpush1.msra.mxu0 %v4759
        %4784 = vmatprep.subr.mxu0 0.0
        %4785 = vmatpush1.msra.mxu0 %v4760
        %4786 = vmatprep.subr.mxu0 0.0
        %4787 = vmatpush1.msra.mxu0 %v4761
        %4788 = vmatprep.subr.mxu0 0.0
        %4789 = vmatpush1.msra.mxu0 %v4762
        %4790 = vmatprep.subr.mxu0 0.0
        %4791 = vmatpush1.msra.mxu0 %v4763
        %4792 = vmatprep.subr.mxu0 0.0
        %4793 = vmatpush1.msra.mxu0 %v4764
        %4794 = vmatprep.subr.mxu0 0.0
        %4795 = vmatpush1.msra.mxu0 %v4765
        %4796 = vmatprep.subr.mxu0 0.0
        %4797 = vmatpush1.msra.mxu0 %v4766
        %4798 = vmatprep.subr.mxu0 0.0
        %4799 = vmatpush1.msra.mxu0 %v4767
        %4800 = vmatprep.subr.mxu0 0.0
        %4801 = vmatpush1.msra.mxu0 0.0
        %4802 = vmatprep.subr.mxu0 0.0
        %4803 = vmatpush1.msra.mxu0 0.0
        %4804 = vmatprep.subr.mxu0 0.0
        %4805 = vmatpush1.msra.mxu0 0.0
        %4806 = vmatprep.subr.mxu0 0.0
        %4807 = vmatpush1.msra.mxu0 0.0
        %4808 = vmatprep.subr.mxu0 0.0
        %4809 = vmatpush1.msra.mxu0 0.0
        %4810 = vmatprep.subr.mxu0 0.0
        %4811 = vmatpush1.msra.mxu0 0.0
        %4812 = vmatprep.subr.mxu0 0.0
        %4813 = vmatpush1.msra.mxu0 0.0
        %4814 = vmatprep.subr.mxu0 0.0
        %4815 = vmatpush1.msra.mxu0 0.0
        %4816 = vmatprep.subr.mxu0 0.0
        %4817 = vmatpush1.msra.mxu0 0.0
        %4818 = vmatprep.subr.mxu0 0.0
        %4819 = vmatpush1.msra.mxu0 0.0
        %4820 = vmatprep.subr.mxu0 0.0
        %4821 = vmatpush1.msra.mxu0 0.0
        %4822 = vmatprep.subr.mxu0 0.0
        %4823 = vmatpush1.msra.mxu0 0.0
        %4824 = vmatprep.subr.mxu0 0.0
        %4825 = vmatpush1.msra.mxu0 0.0
        %4826 = vmatprep.subr.mxu0 0.0
        %4827 = vmatpush1.msra.mxu0 0.0
        %4828 = vmatprep.subr.mxu0 0.0
        %4829 = vmatpush1.msra.mxu0 0.0
        %4830 = vmatprep.subr.mxu0 0.0
        %4831 = vmatpush1.msra.mxu0 0.0
        %4832 = vmatprep.mubr.f32.mxu0 0.0
        %4833 = vmatmul.mubr.f32.gmra.mrb[0].mxu0 %v4719
        %v4834 = vpop.f32.mrb[0].mxu0
        %v4835 = vadd.f32 0.0, %v4834
        %v4836 = vpop.f32.mrb[0].mxu0
        %4837 = vmatprep.mubr.f32.mxu0 0.0
        %4838 = vmatmul.mubr.f32.gmra.mrb[0].mxu0 %v4720
        %v4839 = vpop.f32.mrb[0].mxu0
        %v4840 = vadd.f32 0.0, %v4839
        %v4841 = vpop.f32.mrb[0].mxu0
        %4842 = vmatprep.mubr.f32.mxu0 0.0
        %4843 = vmatmul.mubr.f32.gmra.mrb[0].mxu0 %v4721
        %v4844 = vpop.f32.mrb[0].mxu0
        %v4845 = vadd.f32 0.0, %v4844
        %v4846 = vpop.f32.mrb[0].mxu0
        %4847 = vmatprep.mubr.f32.mxu0 0.0
        %4848 = vmatmul.mubr.f32.gmra.mrb[0].mxu0 %v4722
        %v4849 = vpop.f32.mrb[0].mxu0
        %v4850 = vadd.f32 0.0, %v4849
        %v4851 = vpop.f32.mrb[0].mxu0
        %4852 = vmatprep.mubr.f32.mxu0 0.0
        %4853 = vmatmul.mubr.f32.gmra.mrb[0].mxu0 %v4723
        %v4854 = vpop.f32.mrb[0].mxu0
        %v4855 = vadd.f32 0.0, %v4854
        %v4856 = vpop.f32.mrb[0].mxu0
        %4857 = vmatprep.mubr.f32.mxu0 0.0
        %4858 = vmatmul.mubr.f32.gmra.mrb[0].mxu0 %v4724
        %v4859 = vpop.f32.mrb[0].mxu0
        %v4860 = vadd.f32 0.0, %v4859
        %v4861 = vpop.f32.mrb[0].mxu0
        %4862 = vmatprep.mubr.f32.mxu0 0.0
        %4863 = vmatmul.mubr.f32.gmra.mrb[0].mxu0 %v4725
        %v4864 = vpop.f32.mrb[0].mxu0
        %v4865 = vadd.f32 0.0, %v4864
        %v4866 = vpop.f32.mrb[0].mxu0
        %4867 = vmatprep.mubr.f32.mxu0 0.0
        %4868 = vmatmul.mubr.f32.gmra.mrb[0].mxu0 %v4726
        %v4869 = vpop.f32.mrb[0].mxu0
        %v4870 = vadd.f32 0.0, %v4869
        %v4871 = vpop.f32.mrb[0].mxu0
        %4872 = vmatprep.mubr.f32.mxu0 0.0
        %4873 = vmatmul.mubr.f32.gmra.mrb[0].mxu0 %v4727
        %v4874 = vpop.f32.mrb[0].mxu0
        %v4875 = vadd.f32 0.0, %v4874
        %v4876 = vpop.f32.mrb[0].mxu0
        %4877 = vmatprep.mubr.f32.mxu0 0.0
        %4878 = vmatmul.mubr.f32.gmra.mrb[0].mxu0 %v4728
        %v4879 = vpop.f32.mrb[0].mxu0
        %v4880 = vadd.f32 0.0, %v4879
        %v4881 = vpop.f32.mrb[0].mxu0
        %4882 = vmatprep.mubr.f32.mxu0 0.0
        %4883 = vmatmul.mubr.f32.gmra.mrb[0].mxu0 %v4729
        %v4884 = vpop.f32.mrb[0].mxu0
        %v4885 = vadd.f32 0.0, %v4884
        %v4886 = vpop.f32.mrb[0].mxu0
        %4887 = vmatprep.mubr.f32.mxu0 0.0
        %4888 = vmatmul.mubr.f32.gmra.mrb[0].mxu0 %v4730
        %v4889 = vpop.f32.mrb[0].mxu0
        %v4890 = vadd.f32 0.0, %v4889
        %v4891 = vpop.f32.mrb[0].mxu0
        %4892 = vmatprep.mubr.f32.mxu0 0.0
        %4893 = vmatmul.mubr.f32.gmra.mrb[0].mxu0 %v4731
        %v4894 = vpop.f32.mrb[0].mxu0
        %v4895 = vadd.f32 0.0, %v4894
        %v4896 = vpop.f32.mrb[0].mxu0
        %4897 = vmatprep.mubr.f32.mxu0 0.0
        %4898 = vmatmul.mubr.f32.gmra.mrb[0].mxu0 %v4732
        %v4899 = vpop.f32.mrb[0].mxu0
        %v4900 = vadd.f32 0.0, %v4899
        %v4901 = vpop.f32.mrb[0].mxu0
        %4902 = vmatprep.mubr.f32.mxu0 0.0
        %4903 = vmatmul.mubr.f32.gmra.mrb[0].mxu0 %v4733
        %v4904 = vpop.f32.mrb[0].mxu0
        %v4905 = vadd.f32 0.0, %v4904
        %v4906 = vpop.f32.mrb[0].mxu0
        %4907 = vmatprep.mubr.f32.mxu0 0.0
        %4908 = vmatmul.mubr.f32.gmra.mrb[0].mxu0 %v4734
        %v4909 = vpop.f32.mrb[0].mxu0
        %v4910 = vadd.f32 0.0, %v4909
        %v4911 = vpop.f32.mrb[0].mxu0
        %4912 = vmatprep.mubr.f32.mxu0 0.0
        %4913 = vmatmul.mubr.f32.gmra.mrb[0].mxu0 %v4735
        %v4914 = vpop.f32.mrb[0].mxu0
        %v4915 = vadd.f32 0.0, %v4914
        %v4916 = vpop.f32.mrb[0].mxu0
        %4917 = vmatprep.mubr.f32.mxu0 0.0
        %4918 = vmatmul.mubr.f32.gmra.mrb[0].mxu0 %v4736
        %v4919 = vpop.f32.mrb[0].mxu0
        %v4920 = vadd.f32 0.0, %v4919
        %v4921 = vpop.f32.mrb[0].mxu0
        %4922 = vmatprep.mubr.f32.mxu0 0.0
        %4923 = vmatmul.mubr.f32.gmra.mrb[0].mxu0 %v4737
        %v4924 = vpop.f32.mrb[0].mxu0
        %v4925 = vadd.f32 0.0, %v4924
        %v4926 = vpop.f32.mrb[0].mxu0
        %4927 = vmatprep.mubr.f32.mxu0 0.0
        %4928 = vmatmul.mubr.f32.gmra.mrb[0].mxu0 %v4738
        %v4929 = vpop.f32.mrb[0].mxu0
        %v4930 = vadd.f32 0.0, %v4929
        %v4931 = vpop.f32.mrb[0].mxu0
        %4932 = vmatprep.mubr.f32.mxu0 0.0
        %4933 = vmatmul.mubr.f32.gmra.mrb[0].mxu0 %v4739
        %v4934 = vpop.f32.mrb[0].mxu0
        %v4935 = vadd.f32 0.0, %v4934
        %v4936 = vpop.f32.mrb[0].mxu0
        %4937 = vmatprep.mubr.f32.mxu0 0.0
        %4938 = vmatmul.mubr.f32.gmra.mrb[0].mxu0 %v4740
        %v4939 = vpop.f32.mrb[0].mxu0
        %v4940 = vadd.f32 0.0, %v4939
        %v4941 = vpop.f32.mrb[0].mxu0
        %4942 = vmatprep.mubr.f32.mxu0 0.0
        %4943 = vmatmul.mubr.f32.gmra.mrb[0].mxu0 %v4741
        %v4944 = vpop.f32.mrb[0].mxu0
        %v4945 = vadd.f32 0.0, %v4944
        %v4946 = vpop.f32.mrb[0].mxu0
        %4947 = vmatprep.mubr.f32.mxu0 0.0
        %4948 = vmatmul.mubr.f32.gmra.mrb[0].mxu0 %v4742
        %v4949 = vpop.f32.mrb[0].mxu0
        %v4950 = vadd.f32 0.0, %v4949
        %v4951 = vpop.f32.mrb[0].mxu0
        %4952 = vmatprep.mubr.f32.mxu0 0.0
        %4953 = vmatmul.mubr.f32.gmra.mrb[0].mxu0 %v4743
        %v4954 = vpop.f32.mrb[0].mxu0
        %v4955 = vadd.f32 0.0, %v4954
        %v4956 = vpop.f32.mrb[0].mxu0
        %4957 = vmatprep.mubr.f32.mxu0 0.0
        %4958 = vmatmul.mubr.f32.gmra.mrb[0].mxu0 %v4744
        %v4959 = vpop.f32.mrb[0].mxu0
        %v4960 = vadd.f32 0.0, %v4959
        %v4961 = vpop.f32.mrb[0].mxu0
        %4962 = vmatprep.mubr.f32.mxu0 0.0
        %4963 = vmatmul.mubr.f32.gmra.mrb[0].mxu0 %v4745
        %v4964 = vpop.f32.mrb[0].mxu0
        %v4965 = vadd.f32 0.0, %v4964
        %v4966 = vpop.f32.mrb[0].mxu0
        %4967 = vmatprep.mubr.f32.mxu0 0.0
        %4968 = vmatmul.mubr.f32.gmra.mrb[0].mxu0 %v4746
        %v4969 = vpop.f32.mrb[0].mxu0
        %v4970 = vadd.f32 0.0, %v4969
        %v4971 = vpop.f32.mrb[0].mxu0
        %4972 = vmatprep.mubr.f32.mxu0 0.0
        %4973 = vmatmul.mubr.f32.gmra.mrb[0].mxu0 %v4747
        %v4974 = vpop.f32.mrb[0].mxu0
        %v4975 = vadd.f32 0.0, %v4974
        %v4976 = vpop.f32.mrb[0].mxu0
        %4977 = vmatprep.mubr.f32.mxu0 0.0
        %4978 = vmatmul.mubr.f32.gmra.mrb[0].mxu0 %v4748
        %v4979 = vpop.f32.mrb[0].mxu0
        %v4980 = vadd.f32 0.0, %v4979
        %v4981 = vpop.f32.mrb[0].mxu0
        %4982 = vmatprep.mubr.f32.mxu0 0.0
        %4983 = vmatmul.mubr.f32.gmra.mrb[0].mxu0 %v4749
        %v4984 = vpop.f32.mrb[0].mxu0
        %v4985 = vadd.f32 0.0, %v4984
        %v4986 = vpop.f32.mrb[0].mxu0
        %4987 = vmatprep.mubr.f32.mxu0 0.0
        %4988 = vmatmul.mubr.f32.gmra.mrb[0].mxu0 %v4750
        %v4989 = vpop.f32.mrb[0].mxu0
        %v4990 = vadd.f32 0.0, %v4989
        %v4991 = vpop.f32.mrb[0].mxu0
        %4992 = vdwg.mxu0
        %v4993 = vadd.f32 %v4686, %v4835
        %v4994 = vadd.f32 %v4687, %v4840
        %v4995 = vadd.f32 %v4688, %v4845
        %v4996 = vadd.f32 %v4689, %v4850
        %v4997 = vadd.f32 %v4690, %v4855
        %v4998 = vadd.f32 %v4691, %v4860
        %v4999 = vadd.f32 %v4692, %v4865
        %v5000 = vadd.f32 %v4693, %v4870
        %v5001 = vadd.f32 %v4694, %v4875
        %v5002 = vadd.f32 %v4695, %v4880
        %v5003 = vadd.f32 %v4696, %v4885
        %v5004 = vadd.f32 %v4697, %v4890
        %v5005 = vadd.f32 %v4698, %v4895
        %v5006 = vadd.f32 %v4699, %v4900
        %v5007 = vadd.f32 %v4700, %v4905
        %v5008 = vadd.f32 %v4701, %v4910
        %v5009 = vadd.f32 %v4702, %v4915
        %v5010 = vadd.f32 %v4703, %v4920
        %v5011 = vadd.f32 %v4704, %v4925
        %v5012 = vadd.f32 %v4705, %v4930
        %v5013 = vadd.f32 %v4706, %v4935
        %v5014 = vadd.f32 %v4707, %v4940
        %v5015 = vadd.f32 %v4708, %v4945
        %v5016 = vadd.f32 %v4709, %v4950
        %v5017 = vadd.f32 %v4710, %v4955
        %v5018 = vadd.f32 %v4711, %v4960
        %v5019 = vadd.f32 %v4712, %v4965
        %v5020 = vadd.f32 %v4713, %v4970
        %v5021 = vadd.f32 %v4714, %v4975
        %v5022 = vadd.f32 %v4715, %v4980
        %v5023 = vadd.f32 %v4716, %v4985
        %v5024 = vadd.f32 %v4717, %v4990
        %v5025 = vld [vmem:[%s4718 + $0x1] sm:$0xff]
        %v5026 = vld [vmem:[%s4718 + $0x9] sm:$0xff]
        %v5027 = vld [vmem:[%s4718 + $0x19] sm:$0xff]
        %v5028 = vld [vmem:[%s4718 + $0x21] sm:$0xff]
        %v5029 = vld [vmem:[%s4718 + $0x31] sm:$0xff]
        %v5030 = vld [vmem:[%s4718 + $0x39] sm:$0xff]
        %v5031 = vld [vmem:[%s4718 + $0x49] sm:$0xff]
        %v5032 = vld [vmem:[%s4718 + $0x51] sm:$0xff]
        %v5033 = vld [vmem:[%s4718 + $0x61] sm:$0xff]
        %v5034 = vld [vmem:[%s4718 + $0x69] sm:$0xff]
        %v5035 = vld [vmem:[%s4718 + $0x79] sm:$0xff]
        %v5036 = vld [vmem:[%s4718 + $0x81] sm:$0xff]
        %v5037 = vld [vmem:[%s4718 + $0x91] sm:$0xff]
        %v5038 = vld [vmem:[%s4718 + $0x99] sm:$0xff]
        %v5039 = vld [vmem:[%s4718 + $0xa9] sm:$0xff]
        %v5040 = vld [vmem:[%s4718 + $0xb1] sm:$0xff]
        %v5041 = vld [vmem:[%s4718 + $0xc1] sm:$0xff]
        %v5042 = vld [vmem:[%s4718 + $0xc9] sm:$0xff]
        %v5043 = vld [vmem:[%s4718 + $0xd9] sm:$0xff]
        %v5044 = vld [vmem:[%s4718 + $0xe1] sm:$0xff]
        %v5045 = vld [vmem:[%s4718 + $0xf1] sm:$0xff]
        %v5046 = vld [vmem:[%s4718 + $0xf9] sm:$0xff]
        %v5047 = vld [vmem:[%s4718 + $0x109] sm:$0xff]
        %v5048 = vld [vmem:[%s4718 + $0x111] sm:$0xff]
        %v5049 = vld [vmem:[%s4718 + $0x121] sm:$0xff]
        %v5050 = vld [vmem:[%s4718 + $0x129] sm:$0xff]
        %v5051 = vld [vmem:[%s4718 + $0x139] sm:$0xff]
        %v5052 = vld [vmem:[%s4718 + $0x141] sm:$0xff]
        %v5053 = vld [vmem:[%s4718 + $0x151] sm:$0xff]
        %v5054 = vld [vmem:[%s4718 + $0x159] sm:$0xff]
        %v5055 = vld [vmem:[%s4718 + $0x169] sm:$0xff]
        %v5056 = vld [vmem:[%s4718 + $0x171] sm:$0xff]
        %s5057 = scalar_lea.vmem [#allocation9], 512
        %v5058 = vld [vmem:[%s5057] sm:$0xff]
        %v5059 = vld [vmem:[%s5057 + $0x8] sm:$0xff]
        %v5060 = vld [vmem:[%s5057 + $0x10] sm:$0xff]
        %v5061 = vld [vmem:[%s5057 + $0x18] sm:$0xff]
        %v5062 = vld [vmem:[%s5057 + $0x20] sm:$0xff]
        %v5063 = vld [vmem:[%s5057 + $0x28] sm:$0xff]
        %v5064 = vld [vmem:[%s5057 + $0x30] sm:$0xff]
        %v5065 = vld [vmem:[%s5057 + $0x38] sm:$0xff]
        %v5066 = vld [vmem:[%s5057 + $0x40] sm:$0xff]
        %v5067 = vld [vmem:[%s5057 + $0x48] sm:$0xff]
        %v5068 = vld [vmem:[%s5057 + $0x50] sm:$0xff]
        %v5069 = vld [vmem:[%s5057 + $0x58] sm:$0xff]
        %v5070 = vld [vmem:[%s5057 + $0x60] sm:$0xff]
        %v5071 = vld [vmem:[%s5057 + $0x68] sm:$0xff]
        %v5072 = vld [vmem:[%s5057 + $0x70] sm:$0xff]
        %v5073 = vld [vmem:[%s5057 + $0x78] sm:$0xff]
        %5074 = vmatprep.subr.mxu0 0.0
        %5075 = vmatpush1.msra.mxu0 %v5058
        %5076 = vmatprep.subr.mxu0 0.0
        %5077 = vmatpush1.msra.mxu0 %v5059
        %5078 = vmatprep.subr.mxu0 0.0
        %5079 = vmatpush1.msra.mxu0 %v5060
        %5080 = vmatprep.subr.mxu0 0.0
        %5081 = vmatpush1.msra.mxu0 %v5061
        %5082 = vmatprep.subr.mxu0 0.0
        %5083 = vmatpush1.msra.mxu0 %v5062
        %5084 = vmatprep.subr.mxu0 0.0
        %5085 = vmatpush1.msra.mxu0 %v5063
        %5086 = vmatprep.subr.mxu0 0.0
        %5087 = vmatpush1.msra.mxu0 %v5064
        %5088 = vmatprep.subr.mxu0 0.0
        %5089 = vmatpush1.msra.mxu0 %v5065
        %5090 = vmatprep.subr.mxu0 0.0
        %5091 = vmatpush1.msra.mxu0 %v5066
        %5092 = vmatprep.subr.mxu0 0.0
        %5093 = vmatpush1.msra.mxu0 %v5067
        %5094 = vmatprep.subr.mxu0 0.0
        %5095 = vmatpush1.msra.mxu0 %v5068
        %5096 = vmatprep.subr.mxu0 0.0
        %5097 = vmatpush1.msra.mxu0 %v5069
        %5098 = vmatprep.subr.mxu0 0.0
        %5099 = vmatpush1.msra.mxu0 %v5070
        %5100 = vmatprep.subr.mxu0 0.0
        %5101 = vmatpush1.msra.mxu0 %v5071
        %5102 = vmatprep.subr.mxu0 0.0
        %5103 = vmatpush1.msra.mxu0 %v5072
        %5104 = vmatprep.subr.mxu0 0.0
        %5105 = vmatpush1.msra.mxu0 %v5073
        %5106 = vmatprep.subr.mxu0 0.0
        %5107 = vmatpush1.msra.mxu0 0.0
        %5108 = vmatprep.subr.mxu0 0.0
        %5109 = vmatpush1.msra.mxu0 0.0
        %5110 = vmatprep.subr.mxu0 0.0
        %5111 = vmatpush1.msra.mxu0 0.0
        %5112 = vmatprep.subr.mxu0 0.0
        %5113 = vmatpush1.msra.mxu0 0.0
        %5114 = vmatprep.subr.mxu0 0.0
        %5115 = vmatpush1.msra.mxu0 0.0
        %5116 = vmatprep.subr.mxu0 0.0
        %5117 = vmatpush1.msra.mxu0 0.0
        %5118 = vmatprep.subr.mxu0 0.0
        %5119 = vmatpush1.msra.mxu0 0.0
        %5120 = vmatprep.subr.mxu0 0.0
        %5121 = vmatpush1.msra.mxu0 0.0
        %5122 = vmatprep.subr.mxu0 0.0
        %5123 = vmatpush1.msra.mxu0 0.0
        %5124 = vmatprep.subr.mxu0 0.0
        %5125 = vmatpush1.msra.mxu0 0.0
        %5126 = vmatprep.subr.mxu0 0.0
        %5127 = vmatpush1.msra.mxu0 0.0
        %5128 = vmatprep.subr.mxu0 0.0
        %5129 = vmatpush1.msra.mxu0 0.0
        %5130 = vmatprep.subr.mxu0 0.0
        %5131 = vmatpush1.msra.mxu0 0.0
        %5132 = vmatprep.subr.mxu0 0.0
        %5133 = vmatpush1.msra.mxu0 0.0
        %5134 = vmatprep.subr.mxu0 0.0
        %5135 = vmatpush1.msra.mxu0 0.0
        %5136 = vmatprep.subr.mxu0 0.0
        %5137 = vmatpush1.msra.mxu0 0.0
        %5138 = vmatprep.mubr.f32.mxu0 0.0
        %5139 = vmatmul.mubr.f32.gmra.mrb[0].mxu0 %v5025
        %v5140 = vpop.f32.mrb[0].mxu0
        %v5141 = vadd.f32 0.0, %v5140
        %v5142 = vpop.f32.mrb[0].mxu0
        %5143 = vmatprep.mubr.f32.mxu0 0.0
        %5144 = vmatmul.mubr.f32.gmra.mrb[0].mxu0 %v5026
        %v5145 = vpop.f32.mrb[0].mxu0
        %v5146 = vadd.f32 0.0, %v5145
        %v5147 = vpop.f32.mrb[0].mxu0
        %5148 = vmatprep.mubr.f32.mxu0 0.0
        %5149 = vmatmul.mubr.f32.gmra.mrb[0].mxu0 %v5027
        %v5150 = vpop.f32.mrb[0].mxu0
        %v5151 = vadd.f32 0.0, %v5150
        %v5152 = vpop.f32.mrb[0].mxu0
        %5153 = vmatprep.mubr.f32.mxu0 0.0
        %5154 = vmatmul.mubr.f32.gmra.mrb[0].mxu0 %v5028
        %v5155 = vpop.f32.mrb[0].mxu0
        %v5156 = vadd.f32 0.0, %v5155
        %v5157 = vpop.f32.mrb[0].mxu0
        %5158 = vmatprep.mubr.f32.mxu0 0.0
        %5159 = vmatmul.mubr.f32.gmra.mrb[0].mxu0 %v5029
        %v5160 = vpop.f32.mrb[0].mxu0
        %v5161 = vadd.f32 0.0, %v5160
        %v5162 = vpop.f32.mrb[0].mxu0
        %5163 = vmatprep.mubr.f32.mxu0 0.0
        %5164 = vmatmul.mubr.f32.gmra.mrb[0].mxu0 %v5030
        %v5165 = vpop.f32.mrb[0].mxu0
        %v5166 = vadd.f32 0.0, %v5165
        %v5167 = vpop.f32.mrb[0].mxu0
        %5168 = vmatprep.mubr.f32.mxu0 0.0
        %5169 = vmatmul.mubr.f32.gmra.mrb[0].mxu0 %v5031
        %v5170 = vpop.f32.mrb[0].mxu0
        %v5171 = vadd.f32 0.0, %v5170
        %v5172 = vpop.f32.mrb[0].mxu0
        %5173 = vmatprep.mubr.f32.mxu0 0.0
        %5174 = vmatmul.mubr.f32.gmra.mrb[0].mxu0 %v5032
        %v5175 = vpop.f32.mrb[0].mxu0
        %v5176 = vadd.f32 0.0, %v5175
        %v5177 = vpop.f32.mrb[0].mxu0
        %5178 = vmatprep.mubr.f32.mxu0 0.0
        %5179 = vmatmul.mubr.f32.gmra.mrb[0].mxu0 %v5033
        %v5180 = vpop.f32.mrb[0].mxu0
        %v5181 = vadd.f32 0.0, %v5180
        %v5182 = vpop.f32.mrb[0].mxu0
        %5183 = vmatprep.mubr.f32.mxu0 0.0
        %5184 = vmatmul.mubr.f32.gmra.mrb[0].mxu0 %v5034
        %v5185 = vpop.f32.mrb[0].mxu0
        %v5186 = vadd.f32 0.0, %v5185
        %v5187 = vpop.f32.mrb[0].mxu0
        %5188 = vmatprep.mubr.f32.mxu0 0.0
        %5189 = vmatmul.mubr.f32.gmra.mrb[0].mxu0 %v5035
        %v5190 = vpop.f32.mrb[0].mxu0
        %v5191 = vadd.f32 0.0, %v5190
        %v5192 = vpop.f32.mrb[0].mxu0
        %5193 = vmatprep.mubr.f32.mxu0 0.0
        %5194 = vmatmul.mubr.f32.gmra.mrb[0].mxu0 %v5036
        %v5195 = vpop.f32.mrb[0].mxu0
        %v5196 = vadd.f32 0.0, %v5195
        %v5197 = vpop.f32.mrb[0].mxu0
        %5198 = vmatprep.mubr.f32.mxu0 0.0
        %5199 = vmatmul.mubr.f32.gmra.mrb[0].mxu0 %v5037
        %v5200 = vpop.f32.mrb[0].mxu0
        %v5201 = vadd.f32 0.0, %v5200
        %v5202 = vpop.f32.mrb[0].mxu0
        %5203 = vmatprep.mubr.f32.mxu0 0.0
        %5204 = vmatmul.mubr.f32.gmra.mrb[0].mxu0 %v5038
        %v5205 = vpop.f32.mrb[0].mxu0
        %v5206 = vadd.f32 0.0, %v5205
        %v5207 = vpop.f32.mrb[0].mxu0
        %5208 = vmatprep.mubr.f32.mxu0 0.0
        %5209 = vmatmul.mubr.f32.gmra.mrb[0].mxu0 %v5039
        %v5210 = vpop.f32.mrb[0].mxu0
        %v5211 = vadd.f32 0.0, %v5210
        %v5212 = vpop.f32.mrb[0].mxu0
        %5213 = vmatprep.mubr.f32.mxu0 0.0
        %5214 = vmatmul.mubr.f32.gmra.mrb[0].mxu0 %v5040
        %v5215 = vpop.f32.mrb[0].mxu0
        %v5216 = vadd.f32 0.0, %v5215
        %v5217 = vpop.f32.mrb[0].mxu0
        %5218 = vmatprep.mubr.f32.mxu0 0.0
        %5219 = vmatmul.mubr.f32.gmra.mrb[0].mxu0 %v5041
        %v5220 = vpop.f32.mrb[0].mxu0
        %v5221 = vadd.f32 0.0, %v5220
        %v5222 = vpop.f32.mrb[0].mxu0
        %5223 = vmatprep.mubr.f32.mxu0 0.0
        %5224 = vmatmul.mubr.f32.gmra.mrb[0].mxu0 %v5042
        %v5225 = vpop.f32.mrb[0].mxu0
        %v5226 = vadd.f32 0.0, %v5225
        %v5227 = vpop.f32.mrb[0].mxu0
        %5228 = vmatprep.mubr.f32.mxu0 0.0
        %5229 = vmatmul.mubr.f32.gmra.mrb[0].mxu0 %v5043
        %v5230 = vpop.f32.mrb[0].mxu0
        %v5231 = vadd.f32 0.0, %v5230
        %v5232 = vpop.f32.mrb[0].mxu0
        %5233 = vmatprep.mubr.f32.mxu0 0.0
        %5234 = vmatmul.mubr.f32.gmra.mrb[0].mxu0 %v5044
        %v5235 = vpop.f32.mrb[0].mxu0
        %v5236 = vadd.f32 0.0, %v5235
        %v5237 = vpop.f32.mrb[0].mxu0
        %5238 = vmatprep.mubr.f32.mxu0 0.0
        %5239 = vmatmul.mubr.f32.gmra.mrb[0].mxu0 %v5045
        %v5240 = vpop.f32.mrb[0].mxu0
        %v5241 = vadd.f32 0.0, %v5240
        %v5242 = vpop.f32.mrb[0].mxu0
        %5243 = vmatprep.mubr.f32.mxu0 0.0
        %5244 = vmatmul.mubr.f32.gmra.mrb[0].mxu0 %v5046
        %v5245 = vpop.f32.mrb[0].mxu0
        %v5246 = vadd.f32 0.0, %v5245
        %v5247 = vpop.f32.mrb[0].mxu0
        %5248 = vmatprep.mubr.f32.mxu0 0.0
        %5249 = vmatmul.mubr.f32.gmra.mrb[0].mxu0 %v5047
        %v5250 = vpop.f32.mrb[0].mxu0
        %v5251 = vadd.f32 0.0, %v5250
        %v5252 = vpop.f32.mrb[0].mxu0
        %5253 = vmatprep.mubr.f32.mxu0 0.0
        %5254 = vmatmul.mubr.f32.gmra.mrb[0].mxu0 %v5048
        %v5255 = vpop.f32.mrb[0].mxu0
        %v5256 = vadd.f32 0.0, %v5255
        %v5257 = vpop.f32.mrb[0].mxu0
        %5258 = vmatprep.mubr.f32.mxu0 0.0
        %5259 = vmatmul.mubr.f32.gmra.mrb[0].mxu0 %v5049
        %v5260 = vpop.f32.mrb[0].mxu0
        %v5261 = vadd.f32 0.0, %v5260
        %v5262 = vpop.f32.mrb[0].mxu0
        %5263 = vmatprep.mubr.f32.mxu0 0.0
        %5264 = vmatmul.mubr.f32.gmra.mrb[0].mxu0 %v5050
        %v5265 = vpop.f32.mrb[0].mxu0
        %v5266 = vadd.f32 0.0, %v5265
        %v5267 = vpop.f32.mrb[0].mxu0
        %5268 = vmatprep.mubr.f32.mxu0 0.0
        %5269 = vmatmul.mubr.f32.gmra.mrb[0].mxu0 %v5051
        %v5270 = vpop.f32.mrb[0].mxu0
        %v5271 = vadd.f32 0.0, %v5270
        %v5272 = vpop.f32.mrb[0].mxu0
        %5273 = vmatprep.mubr.f32.mxu0 0.0
        %5274 = vmatmul.mubr.f32.gmra.mrb[0].mxu0 %v5052
        %v5275 = vpop.f32.mrb[0].mxu0
        %v5276 = vadd.f32 0.0, %v5275
        %v5277 = vpop.f32.mrb[0].mxu0
        %5278 = vmatprep.mubr.f32.mxu0 0.0
        %5279 = vmatmul.mubr.f32.gmra.mrb[0].mxu0 %v5053
        %v5280 = vpop.f32.mrb[0].mxu0
        %v5281 = vadd.f32 0.0, %v5280
        %v5282 = vpop.f32.mrb[0].mxu0
        %5283 = vmatprep.mubr.f32.mxu0 0.0
        %5284 = vmatmul.mubr.f32.gmra.mrb[0].mxu0 %v5054
        %v5285 = vpop.f32.mrb[0].mxu0
        %v5286 = vadd.f32 0.0, %v5285
        %v5287 = vpop.f32.mrb[0].mxu0
        %5288 = vmatprep.mubr.f32.mxu0 0.0
        %5289 = vmatmul.mubr.f32.gmra.mrb[0].mxu0 %v5055
        %v5290 = vpop.f32.mrb[0].mxu0
        %v5291 = vadd.f32 0.0, %v5290
        %v5292 = vpop.f32.mrb[0].mxu0
        %5293 = vmatprep.mubr.f32.mxu0 0.0
        %5294 = vmatmul.mubr.f32.gmra.mrb[0].mxu0 %v5056
        %v5295 = vpop.f32.mrb[0].mxu0
        %v5296 = vadd.f32 0.0, %v5295
        %v5297 = vpop.f32.mrb[0].mxu0
        %5298 = vdwg.mxu0
        %v5299 = vadd.f32 %v4993, %v5141
        %v5300 = vadd.f32 %v4994, %v5146
        %v5301 = vadd.f32 %v4995, %v5151
        %v5302 = vadd.f32 %v4996, %v5156
        %v5303 = vadd.f32 %v4997, %v5161
        %v5304 = vadd.f32 %v4998, %v5166
        %v5305 = vadd.f32 %v4999, %v5171
        %v5306 = vadd.f32 %v5000, %v5176
        %v5307 = vadd.f32 %v5001, %v5181
        %v5308 = vadd.f32 %v5002, %v5186
        %v5309 = vadd.f32 %v5003, %v5191
        %v5310 = vadd.f32 %v5004, %v5196
        %v5311 = vadd.f32 %v5005, %v5201
        %v5312 = vadd.f32 %v5006, %v5206
        %v5313 = vadd.f32 %v5007, %v5211
        %v5314 = vadd.f32 %v5008, %v5216
        %v5315 = vadd.f32 %v5009, %v5221
        %v5316 = vadd.f32 %v5010, %v5226
        %v5317 = vadd.f32 %v5011, %v5231
        %v5318 = vadd.f32 %v5012, %v5236
        %v5319 = vadd.f32 %v5013, %v5241
        %v5320 = vadd.f32 %v5014, %v5246
        %v5321 = vadd.f32 %v5015, %v5251
        %v5322 = vadd.f32 %v5016, %v5256
        %v5323 = vadd.f32 %v5017, %v5261
        %v5324 = vadd.f32 %v5018, %v5266
        %v5325 = vadd.f32 %v5019, %v5271
        %v5326 = vadd.f32 %v5020, %v5276
        %v5327 = vadd.f32 %v5021, %v5281
        %v5328 = vadd.f32 %v5022, %v5286
        %v5329 = vadd.f32 %v5023, %v5291
        %v5330 = vadd.f32 %v5024, %v5296
        %v5331 = vld [vmem:[%s4718 + $0x2] sm:$0xff]
        %v5332 = vld [vmem:[%s4718 + $0xa] sm:$0xff]
        %v5333 = vld [vmem:[%s4718 + $0x1a] sm:$0xff]
        %v5334 = vld [vmem:[%s4718 + $0x22] sm:$0xff]
        %v5335 = vld [vmem:[%s4718 + $0x32] sm:$0xff]
        %v5336 = vld [vmem:[%s4718 + $0x3a] sm:$0xff]
        %v5337 = vld [vmem:[%s4718 + $0x4a] sm:$0xff]
        %v5338 = vld [vmem:[%s4718 + $0x52] sm:$0xff]
        %v5339 = vld [vmem:[%s4718 + $0x62] sm:$0xff]
        %v5340 = vld [vmem:[%s4718 + $0x6a] sm:$0xff]
        %v5341 = vld [vmem:[%s4718 + $0x7a] sm:$0xff]
        %v5342 = vld [vmem:[%s4718 + $0x82] sm:$0xff]
        %v5343 = vld [vmem:[%s4718 + $0x92] sm:$0xff]
        %v5344 = vld [vmem:[%s4718 + $0x9a] sm:$0xff]
        %v5345 = vld [vmem:[%s4718 + $0xaa] sm:$0xff]
        %v5346 = vld [vmem:[%s4718 + $0xb2] sm:$0xff]
        %v5347 = vld [vmem:[%s4718 + $0xc2] sm:$0xff]
        %v5348 = vld [vmem:[%s4718 + $0xca] sm:$0xff]
        %v5349 = vld [vmem:[%s4718 + $0xda] sm:$0xff]
        %v5350 = vld [vmem:[%s4718 + $0xe2] sm:$0xff]
        %v5351 = vld [vmem:[%s4718 + $0xf2] sm:$0xff]
        %v5352 = vld [vmem:[%s4718 + $0xfa] sm:$0xff]
        %v5353 = vld [vmem:[%s4718 + $0x10a] sm:$0xff]
        %v5354 = vld [vmem:[%s4718 + $0x112] sm:$0xff]
        %v5355 = vld [vmem:[%s4718 + $0x122] sm:$0xff]
        %v5356 = vld [vmem:[%s4718 + $0x12a] sm:$0xff]
        %v5357 = vld [vmem:[%s4718 + $0x13a] sm:$0xff]
        %v5358 = vld [vmem:[%s4718 + $0x142] sm:$0xff]
        %v5359 = vld [vmem:[%s4718 + $0x152] sm:$0xff]
        %v5360 = vld [vmem:[%s4718 + $0x15a] sm:$0xff]
        %v5361 = vld [vmem:[%s4718 + $0x16a] sm:$0xff]
        %v5362 = vld [vmem:[%s4718 + $0x172] sm:$0xff]
        %s5363 = scalar_lea.vmem [#allocation9], 640
        %v5364 = vld [vmem:[%s5363] sm:$0xff]
        %v5365 = vld [vmem:[%s5363 + $0x8] sm:$0xff]
        %v5366 = vld [vmem:[%s5363 + $0x10] sm:$0xff]
        %v5367 = vld [vmem:[%s5363 + $0x18] sm:$0xff]
        %v5368 = vld [vmem:[%s5363 + $0x20] sm:$0xff]
        %v5369 = vld [vmem:[%s5363 + $0x28] sm:$0xff]
        %v5370 = vld [vmem:[%s5363 + $0x30] sm:$0xff]
        %v5371 = vld [vmem:[%s5363 + $0x38] sm:$0xff]
        %v5372 = vld [vmem:[%s5363 + $0x40] sm:$0xff]
        %v5373 = vld [vmem:[%s5363 + $0x48] sm:$0xff]
        %v5374 = vld [vmem:[%s5363 + $0x50] sm:$0xff]
        %v5375 = vld [vmem:[%s5363 + $0x58] sm:$0xff]
        %v5376 = vld [vmem:[%s5363 + $0x60] sm:$0xff]
        %v5377 = vld [vmem:[%s5363 + $0x68] sm:$0xff]
        %v5378 = vld [vmem:[%s5363 + $0x70] sm:$0xff]
        %v5379 = vld [vmem:[%s5363 + $0x78] sm:$0xff]
        %5380 = vmatprep.subr.mxu0 0.0
        %5381 = vmatpush1.msra.mxu0 %v5364
        %5382 = vmatprep.subr.mxu0 0.0
        %5383 = vmatpush1.msra.mxu0 %v5365
        %5384 = vmatprep.subr.mxu0 0.0
        %5385 = vmatpush1.msra.mxu0 %v5366
        %5386 = vmatprep.subr.mxu0 0.0
        %5387 = vmatpush1.msra.mxu0 %v5367
        %5388 = vmatprep.subr.mxu0 0.0
        %5389 = vmatpush1.msra.mxu0 %v5368
        %5390 = vmatprep.subr.mxu0 0.0
        %5391 = vmatpush1.msra.mxu0 %v5369
        %5392 = vmatprep.subr.mxu0 0.0
        %5393 = vmatpush1.msra.mxu0 %v5370
        %5394 = vmatprep.subr.mxu0 0.0
        %5395 = vmatpush1.msra.mxu0 %v5371
        %5396 = vmatprep.subr.mxu0 0.0
        %5397 = vmatpush1.msra.mxu0 %v5372
        %5398 = vmatprep.subr.mxu0 0.0
        %5399 = vmatpush1.msra.mxu0 %v5373
        %5400 = vmatprep.subr.mxu0 0.0
        %5401 = vmatpush1.msra.mxu0 %v5374
        %5402 = vmatprep.subr.mxu0 0.0
        %5403 = vmatpush1.msra.mxu0 %v5375
        %5404 = vmatprep.subr.mxu0 0.0
        %5405 = vmatpush1.msra.mxu0 %v5376
        %5406 = vmatprep.subr.mxu0 0.0
        %5407 = vmatpush1.msra.mxu0 %v5377
        %5408 = vmatprep.subr.mxu0 0.0
        %5409 = vmatpush1.msra.mxu0 %v5378
        %5410 = vmatprep.subr.mxu0 0.0
        %5411 = vmatpush1.msra.mxu0 %v5379
        %5412 = vmatprep.subr.mxu0 0.0
        %5413 = vmatpush1.msra.mxu0 0.0
        %5414 = vmatprep.subr.mxu0 0.0
        %5415 = vmatpush1.msra.mxu0 0.0
        %5416 = vmatprep.subr.mxu0 0.0
        %5417 = vmatpush1.msra.mxu0 0.0
        %5418 = vmatprep.subr.mxu0 0.0
        %5419 = vmatpush1.msra.mxu0 0.0
        %5420 = vmatprep.subr.mxu0 0.0
        %5421 = vmatpush1.msra.mxu0 0.0
        %5422 = vmatprep.subr.mxu0 0.0
        %5423 = vmatpush1.msra.mxu0 0.0
        %5424 = vmatprep.subr.mxu0 0.0
        %5425 = vmatpush1.msra.mxu0 0.0
        %5426 = vmatprep.subr.mxu0 0.0
        %5427 = vmatpush1.msra.mxu0 0.0
        %5428 = vmatprep.subr.mxu0 0.0
        %5429 = vmatpush1.msra.mxu0 0.0
        %5430 = vmatprep.subr.mxu0 0.0
        %5431 = vmatpush1.msra.mxu0 0.0
        %5432 = vmatprep.subr.mxu0 0.0
        %5433 = vmatpush1.msra.mxu0 0.0
        %5434 = vmatprep.subr.mxu0 0.0
        %5435 = vmatpush1.msra.mxu0 0.0
        %5436 = vmatprep.subr.mxu0 0.0
        %5437 = vmatpush1.msra.mxu0 0.0
        %5438 = vmatprep.subr.mxu0 0.0
        %5439 = vmatpush1.msra.mxu0 0.0
        %5440 = vmatprep.subr.mxu0 0.0
        %5441 = vmatpush1.msra.mxu0 0.0
        %5442 = vmatprep.subr.mxu0 0.0
        %5443 = vmatpush1.msra.mxu0 0.0
        %5444 = vmatprep.mubr.f32.mxu0 0.0
        %5445 = vmatmul.mubr.f32.gmra.mrb[0].mxu0 %v5331
        %v5446 = vpop.f32.mrb[0].mxu0
        %v5447 = vadd.f32 0.0, %v5446
        %v5448 = vpop.f32.mrb[0].mxu0
        %5449 = vmatprep.mubr.f32.mxu0 0.0
        %5450 = vmatmul.mubr.f32.gmra.mrb[0].mxu0 %v5332
        %v5451 = vpop.f32.mrb[0].mxu0
        %v5452 = vadd.f32 0.0, %v5451
        %v5453 = vpop.f32.mrb[0].mxu0
        %5454 = vmatprep.mubr.f32.mxu0 0.0
        %5455 = vmatmul.mubr.f32.gmra.mrb[0].mxu0 %v5333
        %v5456 = vpop.f32.mrb[0].mxu0
        %v5457 = vadd.f32 0.0, %v5456
        %v5458 = vpop.f32.mrb[0].mxu0
        %5459 = vmatprep.mubr.f32.mxu0 0.0
        %5460 = vmatmul.mubr.f32.gmra.mrb[0].mxu0 %v5334
        %v5461 = vpop.f32.mrb[0].mxu0
        %v5462 = vadd.f32 0.0, %v5461
        %v5463 = vpop.f32.mrb[0].mxu0
        %5464 = vmatprep.mubr.f32.mxu0 0.0
        %5465 = vmatmul.mubr.f32.gmra.mrb[0].mxu0 %v5335
        %v5466 = vpop.f32.mrb[0].mxu0
        %v5467 = vadd.f32 0.0, %v5466
        %v5468 = vpop.f32.mrb[0].mxu0
        %5469 = vmatprep.mubr.f32.mxu0 0.0
        %5470 = vmatmul.mubr.f32.gmra.mrb[0].mxu0 %v5336
        %v5471 = vpop.f32.mrb[0].mxu0
        %v5472 = vadd.f32 0.0, %v5471
        %v5473 = vpop.f32.mrb[0].mxu0
        %5474 = vmatprep.mubr.f32.mxu0 0.0
        %5475 = vmatmul.mubr.f32.gmra.mrb[0].mxu0 %v5337
        %v5476 = vpop.f32.mrb[0].mxu0
        %v5477 = vadd.f32 0.0, %v5476
        %v5478 = vpop.f32.mrb[0].mxu0
        %5479 = vmatprep.mubr.f32.mxu0 0.0
        %5480 = vmatmul.mubr.f32.gmra.mrb[0].mxu0 %v5338
        %v5481 = vpop.f32.mrb[0].mxu0
        %v5482 = vadd.f32 0.0, %v5481
        %v5483 = vpop.f32.mrb[0].mxu0
        %5484 = vmatprep.mubr.f32.mxu0 0.0
        %5485 = vmatmul.mubr.f32.gmra.mrb[0].mxu0 %v5339
        %v5486 = vpop.f32.mrb[0].mxu0
        %v5487 = vadd.f32 0.0, %v5486
        %v5488 = vpop.f32.mrb[0].mxu0
        %5489 = vmatprep.mubr.f32.mxu0 0.0
        %5490 = vmatmul.mubr.f32.gmra.mrb[0].mxu0 %v5340
        %v5491 = vpop.f32.mrb[0].mxu0
        %v5492 = vadd.f32 0.0, %v5491
        %v5493 = vpop.f32.mrb[0].mxu0
        %5494 = vmatprep.mubr.f32.mxu0 0.0
        %5495 = vmatmul.mubr.f32.gmra.mrb[0].mxu0 %v5341
        %v5496 = vpop.f32.mrb[0].mxu0
        %v5497 = vadd.f32 0.0, %v5496
        %v5498 = vpop.f32.mrb[0].mxu0
        %5499 = vmatprep.mubr.f32.mxu0 0.0
        %5500 = vmatmul.mubr.f32.gmra.mrb[0].mxu0 %v5342
        %v5501 = vpop.f32.mrb[0].mxu0
        %v5502 = vadd.f32 0.0, %v5501
        %v5503 = vpop.f32.mrb[0].mxu0
        %5504 = vmatprep.mubr.f32.mxu0 0.0
        %5505 = vmatmul.mubr.f32.gmra.mrb[0].mxu0 %v5343
        %v5506 = vpop.f32.mrb[0].mxu0
        %v5507 = vadd.f32 0.0, %v5506
        %v5508 = vpop.f32.mrb[0].mxu0
        %5509 = vmatprep.mubr.f32.mxu0 0.0
        %5510 = vmatmul.mubr.f32.gmra.mrb[0].mxu0 %v5344
        %v5511 = vpop.f32.mrb[0].mxu0
        %v5512 = vadd.f32 0.0, %v5511
        %v5513 = vpop.f32.mrb[0].mxu0
        %5514 = vmatprep.mubr.f32.mxu0 0.0
        %5515 = vmatmul.mubr.f32.gmra.mrb[0].mxu0 %v5345
        %v5516 = vpop.f32.mrb[0].mxu0
        %v5517 = vadd.f32 0.0, %v5516
        %v5518 = vpop.f32.mrb[0].mxu0
        %5519 = vmatprep.mubr.f32.mxu0 0.0
        %5520 = vmatmul.mubr.f32.gmra.mrb[0].mxu0 %v5346
        %v5521 = vpop.f32.mrb[0].mxu0
        %v5522 = vadd.f32 0.0, %v5521
        %v5523 = vpop.f32.mrb[0].mxu0
        %5524 = vmatprep.mubr.f32.mxu0 0.0
        %5525 = vmatmul.mubr.f32.gmra.mrb[0].mxu0 %v5347
        %v5526 = vpop.f32.mrb[0].mxu0
        %v5527 = vadd.f32 0.0, %v5526
        %v5528 = vpop.f32.mrb[0].mxu0
        %5529 = vmatprep.mubr.f32.mxu0 0.0
        %5530 = vmatmul.mubr.f32.gmra.mrb[0].mxu0 %v5348
        %v5531 = vpop.f32.mrb[0].mxu0
        %v5532 = vadd.f32 0.0, %v5531
        %v5533 = vpop.f32.mrb[0].mxu0
        %5534 = vmatprep.mubr.f32.mxu0 0.0
        %5535 = vmatmul.mubr.f32.gmra.mrb[0].mxu0 %v5349
        %v5536 = vpop.f32.mrb[0].mxu0
        %v5537 = vadd.f32 0.0, %v5536
        %v5538 = vpop.f32.mrb[0].mxu0
        %5539 = vmatprep.mubr.f32.mxu0 0.0
        %5540 = vmatmul.mubr.f32.gmra.mrb[0].mxu0 %v5350
        %v5541 = vpop.f32.mrb[0].mxu0
        %v5542 = vadd.f32 0.0, %v5541
        %v5543 = vpop.f32.mrb[0].mxu0
        %5544 = vmatprep.mubr.f32.mxu0 0.0
        %5545 = vmatmul.mubr.f32.gmra.mrb[0].mxu0 %v5351
        %v5546 = vpop.f32.mrb[0].mxu0
        %v5547 = vadd.f32 0.0, %v5546
        %v5548 = vpop.f32.mrb[0].mxu0
        %5549 = vmatprep.mubr.f32.mxu0 0.0
        %5550 = vmatmul.mubr.f32.gmra.mrb[0].mxu0 %v5352
        %v5551 = vpop.f32.mrb[0].mxu0
        %v5552 = vadd.f32 0.0, %v5551
        %v5553 = vpop.f32.mrb[0].mxu0
        %5554 = vmatprep.mubr.f32.mxu0 0.0
        %5555 = vmatmul.mubr.f32.gmra.mrb[0].mxu0 %v5353
        %v5556 = vpop.f32.mrb[0].mxu0
        %v5557 = vadd.f32 0.0, %v5556
        %v5558 = vpop.f32.mrb[0].mxu0
        %5559 = vmatprep.mubr.f32.mxu0 0.0
        %5560 = vmatmul.mubr.f32.gmra.mrb[0].mxu0 %v5354
        %v5561 = vpop.f32.mrb[0].mxu0
        %v5562 = vadd.f32 0.0, %v5561
        %v5563 = vpop.f32.mrb[0].mxu0
        %5564 = vmatprep.mubr.f32.mxu0 0.0
        %5565 = vmatmul.mubr.f32.gmra.mrb[0].mxu0 %v5355
        %v5566 = vpop.f32.mrb[0].mxu0
        %v5567 = vadd.f32 0.0, %v5566
        %v5568 = vpop.f32.mrb[0].mxu0
        %5569 = vmatprep.mubr.f32.mxu0 0.0
        %5570 = vmatmul.mubr.f32.gmra.mrb[0].mxu0 %v5356
        %v5571 = vpop.f32.mrb[0].mxu0
        %v5572 = vadd.f32 0.0, %v5571
        %v5573 = vpop.f32.mrb[0].mxu0
        %5574 = vmatprep.mubr.f32.mxu0 0.0
        %5575 = vmatmul.mubr.f32.gmra.mrb[0].mxu0 %v5357
        %v5576 = vpop.f32.mrb[0].mxu0
        %v5577 = vadd.f32 0.0, %v5576
        %v5578 = vpop.f32.mrb[0].mxu0
        %5579 = vmatprep.mubr.f32.mxu0 0.0
        %5580 = vmatmul.mubr.f32.gmra.mrb[0].mxu0 %v5358
        %v5581 = vpop.f32.mrb[0].mxu0
        %v5582 = vadd.f32 0.0, %v5581
        %v5583 = vpop.f32.mrb[0].mxu0
        %5584 = vmatprep.mubr.f32.mxu0 0.0
        %5585 = vmatmul.mubr.f32.gmra.mrb[0].mxu0 %v5359
        %v5586 = vpop.f32.mrb[0].mxu0
        %v5587 = vadd.f32 0.0, %v5586
        %v5588 = vpop.f32.mrb[0].mxu0
        %5589 = vmatprep.mubr.f32.mxu0 0.0
        %5590 = vmatmul.mubr.f32.gmra.mrb[0].mxu0 %v5360
        %v5591 = vpop.f32.mrb[0].mxu0
        %v5592 = vadd.f32 0.0, %v5591
        %v5593 = vpop.f32.mrb[0].mxu0
        %5594 = vmatprep.mubr.f32.mxu0 0.0
        %5595 = vmatmul.mubr.f32.gmra.mrb[0].mxu0 %v5361
        %v5596 = vpop.f32.mrb[0].mxu0
        %v5597 = vadd.f32 0.0, %v5596
        %v5598 = vpop.f32.mrb[0].mxu0
        %5599 = vmatprep.mubr.f32.mxu0 0.0
        %5600 = vmatmul.mubr.f32.gmra.mrb[0].mxu0 %v5362
        %v5601 = vpop.f32.mrb[0].mxu0
        %v5602 = vadd.f32 0.0, %v5601
        %v5603 = vpop.f32.mrb[0].mxu0
        %5604 = vdwg.mxu0
        %v5605 = vadd.f32 %v5299, %v5447
        %v5606 = vadd.f32 %v5300, %v5452
        %v5607 = vadd.f32 %v5301, %v5457
        %v5608 = vadd.f32 %v5302, %v5462
        %v5609 = vadd.f32 %v5303, %v5467
        %v5610 = vadd.f32 %v5304, %v5472
        %v5611 = vadd.f32 %v5305, %v5477
        %v5612 = vadd.f32 %v5306, %v5482
        %v5613 = vadd.f32 %v5307, %v5487
        %v5614 = vadd.f32 %v5308, %v5492
        %v5615 = vadd.f32 %v5309, %v5497
        %v5616 = vadd.f32 %v5310, %v5502
        %v5617 = vadd.f32 %v5311, %v5507
        %v5618 = vadd.f32 %v5312, %v5512
        %v5619 = vadd.f32 %v5313, %v5517
        %v5620 = vadd.f32 %v5314, %v5522
        %v5621 = vadd.f32 %v5315, %v5527
        %v5622 = vadd.f32 %v5316, %v5532
        %v5623 = vadd.f32 %v5317, %v5537
        %v5624 = vadd.f32 %v5318, %v5542
        %v5625 = vadd.f32 %v5319, %v5547
        %v5626 = vadd.f32 %v5320, %v5552
        %v5627 = vadd.f32 %v5321, %v5557
        %v5628 = vadd.f32 %v5322, %v5562
        %v5629 = vadd.f32 %v5323, %v5567
        %v5630 = vadd.f32 %v5324, %v5572
        %v5631 = vadd.f32 %v5325, %v5577
        %v5632 = vadd.f32 %v5326, %v5582
        %v5633 = vadd.f32 %v5327, %v5587
        %v5634 = vadd.f32 %v5328, %v5592
        %v5635 = vadd.f32 %v5329, %v5597
        %v5636 = vadd.f32 %v5330, %v5602
        %s5637 = scalar_lea.vmem [#allocation3], 48
        %v5638 = vld [vmem:[%s5637] sm:$0xff]
        %v5639 = vld [vmem:[%s5637 + $0x8] sm:$0xff]
        %v5640 = vld [vmem:[%s5637 + $0x18] sm:$0xff]
        %v5641 = vld [vmem:[%s5637 + $0x20] sm:$0xff]
        %v5642 = vld [vmem:[%s5637 + $0x30] sm:$0xff]
        %v5643 = vld [vmem:[%s5637 + $0x38] sm:$0xff]
        %v5644 = vld [vmem:[%s5637 + $0x48] sm:$0xff]
        %v5645 = vld [vmem:[%s5637 + $0x50] sm:$0xff]
        %v5646 = vld [vmem:[%s5637 + $0x60] sm:$0xff]
        %v5647 = vld [vmem:[%s5637 + $0x68] sm:$0xff]
        %v5648 = vld [vmem:[%s5637 + $0x78] sm:$0xff]
        %v5649 = vld [vmem:[%s5637 + $0x80] sm:$0xff]
        %v5650 = vld [vmem:[%s5637 + $0x90] sm:$0xff]
        %v5651 = vld [vmem:[%s5637 + $0x98] sm:$0xff]
        %v5652 = vld [vmem:[%s5637 + $0xa8] sm:$0xff]
        %v5653 = vld [vmem:[%s5637 + $0xb0] sm:$0xff]
        %v5654 = vld [vmem:[%s5637 + $0xc0] sm:$0xff]
        %v5655 = vld [vmem:[%s5637 + $0xc8] sm:$0xff]
        %v5656 = vld [vmem:[%s5637 + $0xd8] sm:$0xff]
        %v5657 = vld [vmem:[%s5637 + $0xe0] sm:$0xff]
        %v5658 = vld [vmem:[%s5637 + $0xf0] sm:$0xff]
        %v5659 = vld [vmem:[%s5637 + $0xf8] sm:$0xff]
        %v5660 = vld [vmem:[%s5637 + $0x108] sm:$0xff]
        %v5661 = vld [vmem:[%s5637 + $0x110] sm:$0xff]
        %v5662 = vld [vmem:[%s5637 + $0x120] sm:$0xff]
        %v5663 = vld [vmem:[%s5637 + $0x128] sm:$0xff]
        %v5664 = vld [vmem:[%s5637 + $0x138] sm:$0xff]
        %v5665 = vld [vmem:[%s5637 + $0x140] sm:$0xff]
        %v5666 = vld [vmem:[%s5637 + $0x150] sm:$0xff]
        %v5667 = vld [vmem:[%s5637 + $0x158] sm:$0xff]
        %v5668 = vld [vmem:[%s5637 + $0x168] sm:$0xff]
        %v5669 = vld [vmem:[%s5637 + $0x170] sm:$0xff]
        %s5670 = scalar_lea.vmem [#allocation9], 768
        %v5671 = vld [vmem:[%s5670] sm:$0xff]
        %v5672 = vld [vmem:[%s5670 + $0x8] sm:$0xff]
        %v5673 = vld [vmem:[%s5670 + $0x10] sm:$0xff]
        %v5674 = vld [vmem:[%s5670 + $0x18] sm:$0xff]
        %v5675 = vld [vmem:[%s5670 + $0x20] sm:$0xff]
        %v5676 = vld [vmem:[%s5670 + $0x28] sm:$0xff]
        %v5677 = vld [vmem:[%s5670 + $0x30] sm:$0xff]
        %v5678 = vld [vmem:[%s5670 + $0x38] sm:$0xff]
        %v5679 = vld [vmem:[%s5670 + $0x40] sm:$0xff]
        %v5680 = vld [vmem:[%s5670 + $0x48] sm:$0xff]
        %v5681 = vld [vmem:[%s5670 + $0x50] sm:$0xff]
        %v5682 = vld [vmem:[%s5670 + $0x58] sm:$0xff]
        %v5683 = vld [vmem:[%s5670 + $0x60] sm:$0xff]
        %v5684 = vld [vmem:[%s5670 + $0x68] sm:$0xff]
        %v5685 = vld [vmem:[%s5670 + $0x70] sm:$0xff]
        %v5686 = vld [vmem:[%s5670 + $0x78] sm:$0xff]
        %5687 = vmatprep.subr.mxu0 0.0
        %5688 = vmatpush1.msra.mxu0 %v5671
        %5689 = vmatprep.subr.mxu0 0.0
        %5690 = vmatpush1.msra.mxu0 %v5672
        %5691 = vmatprep.subr.mxu0 0.0
        %5692 = vmatpush1.msra.mxu0 %v5673
        %5693 = vmatprep.subr.mxu0 0.0
        %5694 = vmatpush1.msra.mxu0 %v5674
        %5695 = vmatprep.subr.mxu0 0.0
        %5696 = vmatpush1.msra.mxu0 %v5675
        %5697 = vmatprep.subr.mxu0 0.0
        %5698 = vmatpush1.msra.mxu0 %v5676
        %5699 = vmatprep.subr.mxu0 0.0
        %5700 = vmatpush1.msra.mxu0 %v5677
        %5701 = vmatprep.subr.mxu0 0.0
        %5702 = vmatpush1.msra.mxu0 %v5678
        %5703 = vmatprep.subr.mxu0 0.0
        %5704 = vmatpush1.msra.mxu0 %v5679
        %5705 = vmatprep.subr.mxu0 0.0
        %5706 = vmatpush1.msra.mxu0 %v5680
        %5707 = vmatprep.subr.mxu0 0.0
        %5708 = vmatpush1.msra.mxu0 %v5681
        %5709 = vmatprep.subr.mxu0 0.0
        %5710 = vmatpush1.msra.mxu0 %v5682
        %5711 = vmatprep.subr.mxu0 0.0
        %5712 = vmatpush1.msra.mxu0 %v5683
        %5713 = vmatprep.subr.mxu0 0.0
        %5714 = vmatpush1.msra.mxu0 %v5684
        %5715 = vmatprep.subr.mxu0 0.0
        %5716 = vmatpush1.msra.mxu0 %v5685
        %5717 = vmatprep.subr.mxu0 0.0
        %5718 = vmatpush1.msra.mxu0 %v5686
        %5719 = vmatprep.subr.mxu0 0.0
        %5720 = vmatpush1.msra.mxu0 0.0
        %5721 = vmatprep.subr.mxu0 0.0
        %5722 = vmatpush1.msra.mxu0 0.0
        %5723 = vmatprep.subr.mxu0 0.0
        %5724 = vmatpush1.msra.mxu0 0.0
        %5725 = vmatprep.subr.mxu0 0.0
        %5726 = vmatpush1.msra.mxu0 0.0
        %5727 = vmatprep.subr.mxu0 0.0
        %5728 = vmatpush1.msra.mxu0 0.0
        %5729 = vmatprep.subr.mxu0 0.0
        %5730 = vmatpush1.msra.mxu0 0.0
        %5731 = vmatprep.subr.mxu0 0.0
        %5732 = vmatpush1.msra.mxu0 0.0
        %5733 = vmatprep.subr.mxu0 0.0
        %5734 = vmatpush1.msra.mxu0 0.0
        %5735 = vmatprep.subr.mxu0 0.0
        %5736 = vmatpush1.msra.mxu0 0.0
        %5737 = vmatprep.subr.mxu0 0.0
        %5738 = vmatpush1.msra.mxu0 0.0
        %5739 = vmatprep.subr.mxu0 0.0
        %5740 = vmatpush1.msra.mxu0 0.0
        %5741 = vmatprep.subr.mxu0 0.0
        %5742 = vmatpush1.msra.mxu0 0.0
        %5743 = vmatprep.subr.mxu0 0.0
        %5744 = vmatpush1.msra.mxu0 0.0
        %5745 = vmatprep.subr.mxu0 0.0
        %5746 = vmatpush1.msra.mxu0 0.0
        %5747 = vmatprep.subr.mxu0 0.0
        %5748 = vmatpush1.msra.mxu0 0.0
        %5749 = vmatprep.subr.mxu0 0.0
        %5750 = vmatpush1.msra.mxu0 0.0
        %5751 = vmatprep.mubr.f32.mxu0 0.0
        %5752 = vmatmul.mubr.f32.gmra.mrb[0].mxu0 %v5638
        %v5753 = vpop.f32.mrb[0].mxu0
        %v5754 = vadd.f32 0.0, %v5753
        %v5755 = vpop.f32.mrb[0].mxu0
        %5756 = vmatprep.mubr.f32.mxu0 0.0
        %5757 = vmatmul.mubr.f32.gmra.mrb[0].mxu0 %v5639
        %v5758 = vpop.f32.mrb[0].mxu0
        %v5759 = vadd.f32 0.0, %v5758
        %v5760 = vpop.f32.mrb[0].mxu0
        %5761 = vmatprep.mubr.f32.mxu0 0.0
        %5762 = vmatmul.mubr.f32.gmra.mrb[0].mxu0 %v5640
        %v5763 = vpop.f32.mrb[0].mxu0
        %v5764 = vadd.f32 0.0, %v5763
        %v5765 = vpop.f32.mrb[0].mxu0
        %5766 = vmatprep.mubr.f32.mxu0 0.0
        %5767 = vmatmul.mubr.f32.gmra.mrb[0].mxu0 %v5641
        %v5768 = vpop.f32.mrb[0].mxu0
        %v5769 = vadd.f32 0.0, %v5768
        %v5770 = vpop.f32.mrb[0].mxu0
        %5771 = vmatprep.mubr.f32.mxu0 0.0
        %5772 = vmatmul.mubr.f32.gmra.mrb[0].mxu0 %v5642
        %v5773 = vpop.f32.mrb[0].mxu0
        %v5774 = vadd.f32 0.0, %v5773
        %v5775 = vpop.f32.mrb[0].mxu0
        %5776 = vmatprep.mubr.f32.mxu0 0.0
        %5777 = vmatmul.mubr.f32.gmra.mrb[0].mxu0 %v5643
        %v5778 = vpop.f32.mrb[0].mxu0
        %v5779 = vadd.f32 0.0, %v5778
        %v5780 = vpop.f32.mrb[0].mxu0
        %5781 = vmatprep.mubr.f32.mxu0 0.0
        %5782 = vmatmul.mubr.f32.gmra.mrb[0].mxu0 %v5644
        %v5783 = vpop.f32.mrb[0].mxu0
        %v5784 = vadd.f32 0.0, %v5783
        %v5785 = vpop.f32.mrb[0].mxu0
        %5786 = vmatprep.mubr.f32.mxu0 0.0
        %5787 = vmatmul.mubr.f32.gmra.mrb[0].mxu0 %v5645
        %v5788 = vpop.f32.mrb[0].mxu0
        %v5789 = vadd.f32 0.0, %v5788
        %v5790 = vpop.f32.mrb[0].mxu0
        %5791 = vmatprep.mubr.f32.mxu0 0.0
        %5792 = vmatmul.mubr.f32.gmra.mrb[0].mxu0 %v5646
        %v5793 = vpop.f32.mrb[0].mxu0
        %v5794 = vadd.f32 0.0, %v5793
        %v5795 = vpop.f32.mrb[0].mxu0
        %5796 = vmatprep.mubr.f32.mxu0 0.0
        %5797 = vmatmul.mubr.f32.gmra.mrb[0].mxu0 %v5647
        %v5798 = vpop.f32.mrb[0].mxu0
        %v5799 = vadd.f32 0.0, %v5798
        %v5800 = vpop.f32.mrb[0].mxu0
        %5801 = vmatprep.mubr.f32.mxu0 0.0
        %5802 = vmatmul.mubr.f32.gmra.mrb[0].mxu0 %v5648
        %v5803 = vpop.f32.mrb[0].mxu0
        %v5804 = vadd.f32 0.0, %v5803
        %v5805 = vpop.f32.mrb[0].mxu0
        %5806 = vmatprep.mubr.f32.mxu0 0.0
        %5807 = vmatmul.mubr.f32.gmra.mrb[0].mxu0 %v5649
        %v5808 = vpop.f32.mrb[0].mxu0
        %v5809 = vadd.f32 0.0, %v5808
        %v5810 = vpop.f32.mrb[0].mxu0
        %5811 = vmatprep.mubr.f32.mxu0 0.0
        %5812 = vmatmul.mubr.f32.gmra.mrb[0].mxu0 %v5650
        %v5813 = vpop.f32.mrb[0].mxu0
        %v5814 = vadd.f32 0.0, %v5813
        %v5815 = vpop.f32.mrb[0].mxu0
        %5816 = vmatprep.mubr.f32.mxu0 0.0
        %5817 = vmatmul.mubr.f32.gmra.mrb[0].mxu0 %v5651
        %v5818 = vpop.f32.mrb[0].mxu0
        %v5819 = vadd.f32 0.0, %v5818
        %v5820 = vpop.f32.mrb[0].mxu0
        %5821 = vmatprep.mubr.f32.mxu0 0.0
        %5822 = vmatmul.mubr.f32.gmra.mrb[0].mxu0 %v5652
        %v5823 = vpop.f32.mrb[0].mxu0
        %v5824 = vadd.f32 0.0, %v5823
        %v5825 = vpop.f32.mrb[0].mxu0
        %5826 = vmatprep.mubr.f32.mxu0 0.0
        %5827 = vmatmul.mubr.f32.gmra.mrb[0].mxu0 %v5653
        %v5828 = vpop.f32.mrb[0].mxu0
        %v5829 = vadd.f32 0.0, %v5828
        %v5830 = vpop.f32.mrb[0].mxu0
        %5831 = vmatprep.mubr.f32.mxu0 0.0
        %5832 = vmatmul.mubr.f32.gmra.mrb[0].mxu0 %v5654
        %v5833 = vpop.f32.mrb[0].mxu0
        %v5834 = vadd.f32 0.0, %v5833
        %v5835 = vpop.f32.mrb[0].mxu0
        %5836 = vmatprep.mubr.f32.mxu0 0.0
        %5837 = vmatmul.mubr.f32.gmra.mrb[0].mxu0 %v5655
        %v5838 = vpop.f32.mrb[0].mxu0
        %v5839 = vadd.f32 0.0, %v5838
        %v5840 = vpop.f32.mrb[0].mxu0
        %5841 = vmatprep.mubr.f32.mxu0 0.0
        %5842 = vmatmul.mubr.f32.gmra.mrb[0].mxu0 %v5656
        %v5843 = vpop.f32.mrb[0].mxu0
        %v5844 = vadd.f32 0.0, %v5843
        %v5845 = vpop.f32.mrb[0].mxu0
        %5846 = vmatprep.mubr.f32.mxu0 0.0
        %5847 = vmatmul.mubr.f32.gmra.mrb[0].mxu0 %v5657
        %v5848 = vpop.f32.mrb[0].mxu0
        %v5849 = vadd.f32 0.0, %v5848
        %v5850 = vpop.f32.mrb[0].mxu0
        %5851 = vmatprep.mubr.f32.mxu0 0.0
        %5852 = vmatmul.mubr.f32.gmra.mrb[0].mxu0 %v5658
        %v5853 = vpop.f32.mrb[0].mxu0
        %v5854 = vadd.f32 0.0, %v5853
        %v5855 = vpop.f32.mrb[0].mxu0
        %5856 = vmatprep.mubr.f32.mxu0 0.0
        %5857 = vmatmul.mubr.f32.gmra.mrb[0].mxu0 %v5659
        %v5858 = vpop.f32.mrb[0].mxu0
        %v5859 = vadd.f32 0.0, %v5858
        %v5860 = vpop.f32.mrb[0].mxu0
        %5861 = vmatprep.mubr.f32.mxu0 0.0
        %5862 = vmatmul.mubr.f32.gmra.mrb[0].mxu0 %v5660
        %v5863 = vpop.f32.mrb[0].mxu0
        %v5864 = vadd.f32 0.0, %v5863
        %v5865 = vpop.f32.mrb[0].mxu0
        %5866 = vmatprep.mubr.f32.mxu0 0.0
        %5867 = vmatmul.mubr.f32.gmra.mrb[0].mxu0 %v5661
        %v5868 = vpop.f32.mrb[0].mxu0
        %v5869 = vadd.f32 0.0, %v5868
        %v5870 = vpop.f32.mrb[0].mxu0
        %5871 = vmatprep.mubr.f32.mxu0 0.0
        %5872 = vmatmul.mubr.f32.gmra.mrb[0].mxu0 %v5662
        %v5873 = vpop.f32.mrb[0].mxu0
        %v5874 = vadd.f32 0.0, %v5873
        %v5875 = vpop.f32.mrb[0].mxu0
        %5876 = vmatprep.mubr.f32.mxu0 0.0
        %5877 = vmatmul.mubr.f32.gmra.mrb[0].mxu0 %v5663
        %v5878 = vpop.f32.mrb[0].mxu0
        %v5879 = vadd.f32 0.0, %v5878
        %v5880 = vpop.f32.mrb[0].mxu0
        %5881 = vmatprep.mubr.f32.mxu0 0.0
        %5882 = vmatmul.mubr.f32.gmra.mrb[0].mxu0 %v5664
        %v5883 = vpop.f32.mrb[0].mxu0
        %v5884 = vadd.f32 0.0, %v5883
        %v5885 = vpop.f32.mrb[0].mxu0
        %5886 = vmatprep.mubr.f32.mxu0 0.0
        %5887 = vmatmul.mubr.f32.gmra.mrb[0].mxu0 %v5665
        %v5888 = vpop.f32.mrb[0].mxu0
        %v5889 = vadd.f32 0.0, %v5888
        %v5890 = vpop.f32.mrb[0].mxu0
        %5891 = vmatprep.mubr.f32.mxu0 0.0
        %5892 = vmatmul.mubr.f32.gmra.mrb[0].mxu0 %v5666
        %v5893 = vpop.f32.mrb[0].mxu0
        %v5894 = vadd.f32 0.0, %v5893
        %v5895 = vpop.f32.mrb[0].mxu0
        %5896 = vmatprep.mubr.f32.mxu0 0.0
        %5897 = vmatmul.mubr.f32.gmra.mrb[0].mxu0 %v5667
        %v5898 = vpop.f32.mrb[0].mxu0
        %v5899 = vadd.f32 0.0, %v5898
        %v5900 = vpop.f32.mrb[0].mxu0
        %5901 = vmatprep.mubr.f32.mxu0 0.0
        %5902 = vmatmul.mubr.f32.gmra.mrb[0].mxu0 %v5668
        %v5903 = vpop.f32.mrb[0].mxu0
        %v5904 = vadd.f32 0.0, %v5903
        %v5905 = vpop.f32.mrb[0].mxu0
        %5906 = vmatprep.mubr.f32.mxu0 0.0
        %5907 = vmatmul.mubr.f32.gmra.mrb[0].mxu0 %v5669
        %v5908 = vpop.f32.mrb[0].mxu0
        %v5909 = vadd.f32 0.0, %v5908
        %v5910 = vpop.f32.mrb[0].mxu0
        %5911 = vdwg.mxu0
        %v5912 = vadd.f32 %v5605, %v5754
        %v5913 = vadd.f32 %v5606, %v5759
        %v5914 = vadd.f32 %v5607, %v5764
        %v5915 = vadd.f32 %v5608, %v5769
        %v5916 = vadd.f32 %v5609, %v5774
        %v5917 = vadd.f32 %v5610, %v5779
        %v5918 = vadd.f32 %v5611, %v5784
        %v5919 = vadd.f32 %v5612, %v5789
        %v5920 = vadd.f32 %v5613, %v5794
        %v5921 = vadd.f32 %v5614, %v5799
        %v5922 = vadd.f32 %v5615, %v5804
        %v5923 = vadd.f32 %v5616, %v5809
        %v5924 = vadd.f32 %v5617, %v5814
        %v5925 = vadd.f32 %v5618, %v5819
        %v5926 = vadd.f32 %v5619, %v5824
        %v5927 = vadd.f32 %v5620, %v5829
        %v5928 = vadd.f32 %v5621, %v5834
        %v5929 = vadd.f32 %v5622, %v5839
        %v5930 = vadd.f32 %v5623, %v5844
        %v5931 = vadd.f32 %v5624, %v5849
        %v5932 = vadd.f32 %v5625, %v5854
        %v5933 = vadd.f32 %v5626, %v5859
        %v5934 = vadd.f32 %v5627, %v5864
        %v5935 = vadd.f32 %v5628, %v5869
        %v5936 = vadd.f32 %v5629, %v5874
        %v5937 = vadd.f32 %v5630, %v5879
        %v5938 = vadd.f32 %v5631, %v5884
        %v5939 = vadd.f32 %v5632, %v5889
        %v5940 = vadd.f32 %v5633, %v5894
        %v5941 = vadd.f32 %v5634, %v5899
        %v5942 = vadd.f32 %v5635, %v5904
        %v5943 = vadd.f32 %v5636, %v5909
        %v5944 = vld [vmem:[%s5637 + $0x1] sm:$0xff]
        %v5945 = vld [vmem:[%s5637 + $0x9] sm:$0xff]
        %v5946 = vld [vmem:[%s5637 + $0x19] sm:$0xff]
        %v5947 = vld [vmem:[%s5637 + $0x21] sm:$0xff]
        %v5948 = vld [vmem:[%s5637 + $0x31] sm:$0xff]
        %v5949 = vld [vmem:[%s5637 + $0x39] sm:$0xff]
        %v5950 = vld [vmem:[%s5637 + $0x49] sm:$0xff]
        %v5951 = vld [vmem:[%s5637 + $0x51] sm:$0xff]
        %v5952 = vld [vmem:[%s5637 + $0x61] sm:$0xff]
        %v5953 = vld [vmem:[%s5637 + $0x69] sm:$0xff]
        %v5954 = vld [vmem:[%s5637 + $0x79] sm:$0xff]
        %v5955 = vld [vmem:[%s5637 + $0x81] sm:$0xff]
        %v5956 = vld [vmem:[%s5637 + $0x91] sm:$0xff]
        %v5957 = vld [vmem:[%s5637 + $0x99] sm:$0xff]
        %v5958 = vld [vmem:[%s5637 + $0xa9] sm:$0xff]
        %v5959 = vld [vmem:[%s5637 + $0xb1] sm:$0xff]
        %v5960 = vld [vmem:[%s5637 + $0xc1] sm:$0xff]
        %v5961 = vld [vmem:[%s5637 + $0xc9] sm:$0xff]
        %v5962 = vld [vmem:[%s5637 + $0xd9] sm:$0xff]
        %v5963 = vld [vmem:[%s5637 + $0xe1] sm:$0xff]
        %v5964 = vld [vmem:[%s5637 + $0xf1] sm:$0xff]
        %v5965 = vld [vmem:[%s5637 + $0xf9] sm:$0xff]
        %v5966 = vld [vmem:[%s5637 + $0x109] sm:$0xff]
        %v5967 = vld [vmem:[%s5637 + $0x111] sm:$0xff]
        %v5968 = vld [vmem:[%s5637 + $0x121] sm:$0xff]
        %v5969 = vld [vmem:[%s5637 + $0x129] sm:$0xff]
        %v5970 = vld [vmem:[%s5637 + $0x139] sm:$0xff]
        %v5971 = vld [vmem:[%s5637 + $0x141] sm:$0xff]
        %v5972 = vld [vmem:[%s5637 + $0x151] sm:$0xff]
        %v5973 = vld [vmem:[%s5637 + $0x159] sm:$0xff]
        %v5974 = vld [vmem:[%s5637 + $0x169] sm:$0xff]
        %v5975 = vld [vmem:[%s5637 + $0x171] sm:$0xff]
        %s5976 = scalar_lea.vmem [#allocation9], 896
        %v5977 = vld [vmem:[%s5976] sm:$0xff]
        %v5978 = vld [vmem:[%s5976 + $0x8] sm:$0xff]
        %v5979 = vld [vmem:[%s5976 + $0x10] sm:$0xff]
        %v5980 = vld [vmem:[%s5976 + $0x18] sm:$0xff]
        %v5981 = vld [vmem:[%s5976 + $0x20] sm:$0xff]
        %v5982 = vld [vmem:[%s5976 + $0x28] sm:$0xff]
        %v5983 = vld [vmem:[%s5976 + $0x30] sm:$0xff]
        %v5984 = vld [vmem:[%s5976 + $0x38] sm:$0xff]
        %v5985 = vld [vmem:[%s5976 + $0x40] sm:$0xff]
        %v5986 = vld [vmem:[%s5976 + $0x48] sm:$0xff]
        %v5987 = vld [vmem:[%s5976 + $0x50] sm:$0xff]
        %v5988 = vld [vmem:[%s5976 + $0x58] sm:$0xff]
        %v5989 = vld [vmem:[%s5976 + $0x60] sm:$0xff]
        %v5990 = vld [vmem:[%s5976 + $0x68] sm:$0xff]
        %v5991 = vld [vmem:[%s5976 + $0x70] sm:$0xff]
        %v5992 = vld [vmem:[%s5976 + $0x78] sm:$0xff]
        %5993 = vmatprep.subr.mxu0 0.0
        %5994 = vmatpush1.msra.mxu0 %v5977
        %5995 = vmatprep.subr.mxu0 0.0
        %5996 = vmatpush1.msra.mxu0 %v5978
        %5997 = vmatprep.subr.mxu0 0.0
        %5998 = vmatpush1.msra.mxu0 %v5979
        %5999 = vmatprep.subr.mxu0 0.0
        %6000 = vmatpush1.msra.mxu0 %v5980
        %6001 = vmatprep.subr.mxu0 0.0
        %6002 = vmatpush1.msra.mxu0 %v5981
        %6003 = vmatprep.subr.mxu0 0.0
        %6004 = vmatpush1.msra.mxu0 %v5982
        %6005 = vmatprep.subr.mxu0 0.0
        %6006 = vmatpush1.msra.mxu0 %v5983
        %6007 = vmatprep.subr.mxu0 0.0
        %6008 = vmatpush1.msra.mxu0 %v5984
        %6009 = vmatprep.subr.mxu0 0.0
        %6010 = vmatpush1.msra.mxu0 %v5985
        %6011 = vmatprep.subr.mxu0 0.0
        %6012 = vmatpush1.msra.mxu0 %v5986
        %6013 = vmatprep.subr.mxu0 0.0
        %6014 = vmatpush1.msra.mxu0 %v5987
        %6015 = vmatprep.subr.mxu0 0.0
        %6016 = vmatpush1.msra.mxu0 %v5988
        %6017 = vmatprep.subr.mxu0 0.0
        %6018 = vmatpush1.msra.mxu0 %v5989
        %6019 = vmatprep.subr.mxu0 0.0
        %6020 = vmatpush1.msra.mxu0 %v5990
        %6021 = vmatprep.subr.mxu0 0.0
        %6022 = vmatpush1.msra.mxu0 %v5991
        %6023 = vmatprep.subr.mxu0 0.0
        %6024 = vmatpush1.msra.mxu0 %v5992
        %6025 = vmatprep.subr.mxu0 0.0
        %6026 = vmatpush1.msra.mxu0 0.0
        %6027 = vmatprep.subr.mxu0 0.0
        %6028 = vmatpush1.msra.mxu0 0.0
        %6029 = vmatprep.subr.mxu0 0.0
        %6030 = vmatpush1.msra.mxu0 0.0
        %6031 = vmatprep.subr.mxu0 0.0
        %6032 = vmatpush1.msra.mxu0 0.0
        %6033 = vmatprep.subr.mxu0 0.0
        %6034 = vmatpush1.msra.mxu0 0.0
        %6035 = vmatprep.subr.mxu0 0.0
        %6036 = vmatpush1.msra.mxu0 0.0
        %6037 = vmatprep.subr.mxu0 0.0
        %6038 = vmatpush1.msra.mxu0 0.0
        %6039 = vmatprep.subr.mxu0 0.0
        %6040 = vmatpush1.msra.mxu0 0.0
        %6041 = vmatprep.subr.mxu0 0.0
        %6042 = vmatpush1.msra.mxu0 0.0
        %6043 = vmatprep.subr.mxu0 0.0
        %6044 = vmatpush1.msra.mxu0 0.0
        %6045 = vmatprep.subr.mxu0 0.0
        %6046 = vmatpush1.msra.mxu0 0.0
        %6047 = vmatprep.subr.mxu0 0.0
        %6048 = vmatpush1.msra.mxu0 0.0
        %6049 = vmatprep.subr.mxu0 0.0
        %6050 = vmatpush1.msra.mxu0 0.0
        %6051 = vmatprep.subr.mxu0 0.0
        %6052 = vmatpush1.msra.mxu0 0.0
        %6053 = vmatprep.subr.mxu0 0.0
        %6054 = vmatpush1.msra.mxu0 0.0
        %6055 = vmatprep.subr.mxu0 0.0
        %6056 = vmatpush1.msra.mxu0 0.0
        %6057 = vmatprep.mubr.f32.mxu0 0.0
        %6058 = vmatmul.mubr.f32.gmra.mrb[0].mxu0 %v5944
        %v6059 = vpop.f32.mrb[0].mxu0
        %v6060 = vadd.f32 0.0, %v6059
        %v6061 = vpop.f32.mrb[0].mxu0
        %6062 = vmatprep.mubr.f32.mxu0 0.0
        %6063 = vmatmul.mubr.f32.gmra.mrb[0].mxu0 %v5945
        %v6064 = vpop.f32.mrb[0].mxu0
        %v6065 = vadd.f32 0.0, %v6064
        %v6066 = vpop.f32.mrb[0].mxu0
        %6067 = vmatprep.mubr.f32.mxu0 0.0
        %6068 = vmatmul.mubr.f32.gmra.mrb[0].mxu0 %v5946
        %v6069 = vpop.f32.mrb[0].mxu0
        %v6070 = vadd.f32 0.0, %v6069
        %v6071 = vpop.f32.mrb[0].mxu0
        %6072 = vmatprep.mubr.f32.mxu0 0.0
        %6073 = vmatmul.mubr.f32.gmra.mrb[0].mxu0 %v5947
        %v6074 = vpop.f32.mrb[0].mxu0
        %v6075 = vadd.f32 0.0, %v6074
        %v6076 = vpop.f32.mrb[0].mxu0
        %6077 = vmatprep.mubr.f32.mxu0 0.0
        %6078 = vmatmul.mubr.f32.gmra.mrb[0].mxu0 %v5948
        %v6079 = vpop.f32.mrb[0].mxu0
        %v6080 = vadd.f32 0.0, %v6079
        %v6081 = vpop.f32.mrb[0].mxu0
        %6082 = vmatprep.mubr.f32.mxu0 0.0
        %6083 = vmatmul.mubr.f32.gmra.mrb[0].mxu0 %v5949
        %v6084 = vpop.f32.mrb[0].mxu0
        %v6085 = vadd.f32 0.0, %v6084
        %v6086 = vpop.f32.mrb[0].mxu0
        %6087 = vmatprep.mubr.f32.mxu0 0.0
        %6088 = vmatmul.mubr.f32.gmra.mrb[0].mxu0 %v5950
        %v6089 = vpop.f32.mrb[0].mxu0
        %v6090 = vadd.f32 0.0, %v6089
        %v6091 = vpop.f32.mrb[0].mxu0
        %6092 = vmatprep.mubr.f32.mxu0 0.0
        %6093 = vmatmul.mubr.f32.gmra.mrb[0].mxu0 %v5951
        %v6094 = vpop.f32.mrb[0].mxu0
        %v6095 = vadd.f32 0.0, %v6094
        %v6096 = vpop.f32.mrb[0].mxu0
        %6097 = vmatprep.mubr.f32.mxu0 0.0
        %6098 = vmatmul.mubr.f32.gmra.mrb[0].mxu0 %v5952
        %v6099 = vpop.f32.mrb[0].mxu0
        %v6100 = vadd.f32 0.0, %v6099
        %v6101 = vpop.f32.mrb[0].mxu0
        %6102 = vmatprep.mubr.f32.mxu0 0.0
        %6103 = vmatmul.mubr.f32.gmra.mrb[0].mxu0 %v5953
        %v6104 = vpop.f32.mrb[0].mxu0
        %v6105 = vadd.f32 0.0, %v6104
        %v6106 = vpop.f32.mrb[0].mxu0
        %6107 = vmatprep.mubr.f32.mxu0 0.0
        %6108 = vmatmul.mubr.f32.gmra.mrb[0].mxu0 %v5954
        %v6109 = vpop.f32.mrb[0].mxu0
        %v6110 = vadd.f32 0.0, %v6109
        %v6111 = vpop.f32.mrb[0].mxu0
        %6112 = vmatprep.mubr.f32.mxu0 0.0
        %6113 = vmatmul.mubr.f32.gmra.mrb[0].mxu0 %v5955
        %v6114 = vpop.f32.mrb[0].mxu0
        %v6115 = vadd.f32 0.0, %v6114
        %v6116 = vpop.f32.mrb[0].mxu0
        %6117 = vmatprep.mubr.f32.mxu0 0.0
        %6118 = vmatmul.mubr.f32.gmra.mrb[0].mxu0 %v5956
        %v6119 = vpop.f32.mrb[0].mxu0
        %v6120 = vadd.f32 0.0, %v6119
        %v6121 = vpop.f32.mrb[0].mxu0
        %6122 = vmatprep.mubr.f32.mxu0 0.0
        %6123 = vmatmul.mubr.f32.gmra.mrb[0].mxu0 %v5957
        %v6124 = vpop.f32.mrb[0].mxu0
        %v6125 = vadd.f32 0.0, %v6124
        %v6126 = vpop.f32.mrb[0].mxu0
        %6127 = vmatprep.mubr.f32.mxu0 0.0
        %6128 = vmatmul.mubr.f32.gmra.mrb[0].mxu0 %v5958
        %v6129 = vpop.f32.mrb[0].mxu0
        %v6130 = vadd.f32 0.0, %v6129
        %v6131 = vpop.f32.mrb[0].mxu0
        %6132 = vmatprep.mubr.f32.mxu0 0.0
        %6133 = vmatmul.mubr.f32.gmra.mrb[0].mxu0 %v5959
        %v6134 = vpop.f32.mrb[0].mxu0
        %v6135 = vadd.f32 0.0, %v6134
        %v6136 = vpop.f32.mrb[0].mxu0
        %6137 = vmatprep.mubr.f32.mxu0 0.0
        %6138 = vmatmul.mubr.f32.gmra.mrb[0].mxu0 %v5960
        %v6139 = vpop.f32.mrb[0].mxu0
        %v6140 = vadd.f32 0.0, %v6139
        %v6141 = vpop.f32.mrb[0].mxu0
        %6142 = vmatprep.mubr.f32.mxu0 0.0
        %6143 = vmatmul.mubr.f32.gmra.mrb[0].mxu0 %v5961
        %v6144 = vpop.f32.mrb[0].mxu0
        %v6145 = vadd.f32 0.0, %v6144
        %v6146 = vpop.f32.mrb[0].mxu0
        %6147 = vmatprep.mubr.f32.mxu0 0.0
        %6148 = vmatmul.mubr.f32.gmra.mrb[0].mxu0 %v5962
        %v6149 = vpop.f32.mrb[0].mxu0
        %v6150 = vadd.f32 0.0, %v6149
        %v6151 = vpop.f32.mrb[0].mxu0
        %6152 = vmatprep.mubr.f32.mxu0 0.0
        %6153 = vmatmul.mubr.f32.gmra.mrb[0].mxu0 %v5963
        %v6154 = vpop.f32.mrb[0].mxu0
        %v6155 = vadd.f32 0.0, %v6154
        %v6156 = vpop.f32.mrb[0].mxu0
        %6157 = vmatprep.mubr.f32.mxu0 0.0
        %6158 = vmatmul.mubr.f32.gmra.mrb[0].mxu0 %v5964
        %v6159 = vpop.f32.mrb[0].mxu0
        %v6160 = vadd.f32 0.0, %v6159
        %v6161 = vpop.f32.mrb[0].mxu0
        %6162 = vmatprep.mubr.f32.mxu0 0.0
        %6163 = vmatmul.mubr.f32.gmra.mrb[0].mxu0 %v5965
        %v6164 = vpop.f32.mrb[0].mxu0
        %v6165 = vadd.f32 0.0, %v6164
        %v6166 = vpop.f32.mrb[0].mxu0
        %6167 = vmatprep.mubr.f32.mxu0 0.0
        %6168 = vmatmul.mubr.f32.gmra.mrb[0].mxu0 %v5966
        %v6169 = vpop.f32.mrb[0].mxu0
        %v6170 = vadd.f32 0.0, %v6169
        %v6171 = vpop.f32.mrb[0].mxu0
        %6172 = vmatprep.mubr.f32.mxu0 0.0
        %6173 = vmatmul.mubr.f32.gmra.mrb[0].mxu0 %v5967
        %v6174 = vpop.f32.mrb[0].mxu0
        %v6175 = vadd.f32 0.0, %v6174
        %v6176 = vpop.f32.mrb[0].mxu0
        %6177 = vmatprep.mubr.f32.mxu0 0.0
        %6178 = vmatmul.mubr.f32.gmra.mrb[0].mxu0 %v5968
        %v6179 = vpop.f32.mrb[0].mxu0
        %v6180 = vadd.f32 0.0, %v6179
        %v6181 = vpop.f32.mrb[0].mxu0
        %6182 = vmatprep.mubr.f32.mxu0 0.0
        %6183 = vmatmul.mubr.f32.gmra.mrb[0].mxu0 %v5969
        %v6184 = vpop.f32.mrb[0].mxu0
        %v6185 = vadd.f32 0.0, %v6184
        %v6186 = vpop.f32.mrb[0].mxu0
        %6187 = vmatprep.mubr.f32.mxu0 0.0
        %6188 = vmatmul.mubr.f32.gmra.mrb[0].mxu0 %v5970
        %v6189 = vpop.f32.mrb[0].mxu0
        %v6190 = vadd.f32 0.0, %v6189
        %v6191 = vpop.f32.mrb[0].mxu0
        %6192 = vmatprep.mubr.f32.mxu0 0.0
        %6193 = vmatmul.mubr.f32.gmra.mrb[0].mxu0 %v5971
        %v6194 = vpop.f32.mrb[0].mxu0
        %v6195 = vadd.f32 0.0, %v6194
        %v6196 = vpop.f32.mrb[0].mxu0
        %6197 = vmatprep.mubr.f32.mxu0 0.0
        %6198 = vmatmul.mubr.f32.gmra.mrb[0].mxu0 %v5972
        %v6199 = vpop.f32.mrb[0].mxu0
        %v6200 = vadd.f32 0.0, %v6199
        %v6201 = vpop.f32.mrb[0].mxu0
        %6202 = vmatprep.mubr.f32.mxu0 0.0
        %6203 = vmatmul.mubr.f32.gmra.mrb[0].mxu0 %v5973
        %v6204 = vpop.f32.mrb[0].mxu0
        %v6205 = vadd.f32 0.0, %v6204
        %v6206 = vpop.f32.mrb[0].mxu0
        %6207 = vmatprep.mubr.f32.mxu0 0.0
        %6208 = vmatmul.mubr.f32.gmra.mrb[0].mxu0 %v5974
        %v6209 = vpop.f32.mrb[0].mxu0
        %v6210 = vadd.f32 0.0, %v6209
        %v6211 = vpop.f32.mrb[0].mxu0
        %6212 = vmatprep.mubr.f32.mxu0 0.0
        %6213 = vmatmul.mubr.f32.gmra.mrb[0].mxu0 %v5975
        %v6214 = vpop.f32.mrb[0].mxu0
        %v6215 = vadd.f32 0.0, %v6214
        %v6216 = vpop.f32.mrb[0].mxu0
        %6217 = vdwg.mxu0
        %v6218 = vadd.f32 %v5912, %v6060
        %v6219 = vadd.f32 %v5913, %v6065
        %v6220 = vadd.f32 %v5914, %v6070
        %v6221 = vadd.f32 %v5915, %v6075
        %v6222 = vadd.f32 %v5916, %v6080
        %v6223 = vadd.f32 %v5917, %v6085
        %v6224 = vadd.f32 %v5918, %v6090
        %v6225 = vadd.f32 %v5919, %v6095
        %v6226 = vadd.f32 %v5920, %v6100
        %v6227 = vadd.f32 %v5921, %v6105
        %v6228 = vadd.f32 %v5922, %v6110
        %v6229 = vadd.f32 %v5923, %v6115
        %v6230 = vadd.f32 %v5924, %v6120
        %v6231 = vadd.f32 %v5925, %v6125
        %v6232 = vadd.f32 %v5926, %v6130
        %v6233 = vadd.f32 %v5927, %v6135
        %v6234 = vadd.f32 %v5928, %v6140
        %v6235 = vadd.f32 %v5929, %v6145
        %v6236 = vadd.f32 %v5930, %v6150
        %v6237 = vadd.f32 %v5931, %v6155
        %v6238 = vadd.f32 %v5932, %v6160
        %v6239 = vadd.f32 %v5933, %v6165
        %v6240 = vadd.f32 %v5934, %v6170
        %v6241 = vadd.f32 %v5935, %v6175
        %v6242 = vadd.f32 %v5936, %v6180
        %v6243 = vadd.f32 %v5937, %v6185
        %v6244 = vadd.f32 %v5938, %v6190
        %v6245 = vadd.f32 %v5939, %v6195
        %v6246 = vadd.f32 %v5940, %v6200
        %v6247 = vadd.f32 %v5941, %v6205
        %v6248 = vadd.f32 %v5942, %v6210
        %v6249 = vadd.f32 %v5943, %v6215
        %v6250 = vld [vmem:[%s5637 + $0x2] sm:$0xff]
        %v6251 = vld [vmem:[%s5637 + $0xa] sm:$0xff]
        %v6252 = vld [vmem:[%s5637 + $0x1a] sm:$0xff]
        %v6253 = vld [vmem:[%s5637 + $0x22] sm:$0xff]
        %v6254 = vld [vmem:[%s5637 + $0x32] sm:$0xff]
        %v6255 = vld [vmem:[%s5637 + $0x3a] sm:$0xff]
        %v6256 = vld [vmem:[%s5637 + $0x4a] sm:$0xff]
        %v6257 = vld [vmem:[%s5637 + $0x52] sm:$0xff]
        %v6258 = vld [vmem:[%s5637 + $0x62] sm:$0xff]
        %v6259 = vld [vmem:[%s5637 + $0x6a] sm:$0xff]
        %v6260 = vld [vmem:[%s5637 + $0x7a] sm:$0xff]
        %v6261 = vld [vmem:[%s5637 + $0x82] sm:$0xff]
        %v6262 = vld [vmem:[%s5637 + $0x92] sm:$0xff]
        %v6263 = vld [vmem:[%s5637 + $0x9a] sm:$0xff]
        %v6264 = vld [vmem:[%s5637 + $0xaa] sm:$0xff]
        %v6265 = vld [vmem:[%s5637 + $0xb2] sm:$0xff]
        %v6266 = vld [vmem:[%s5637 + $0xc2] sm:$0xff]
        %v6267 = vld [vmem:[%s5637 + $0xca] sm:$0xff]
        %v6268 = vld [vmem:[%s5637 + $0xda] sm:$0xff]
        %v6269 = vld [vmem:[%s5637 + $0xe2] sm:$0xff]
        %v6270 = vld [vmem:[%s5637 + $0xf2] sm:$0xff]
        %v6271 = vld [vmem:[%s5637 + $0xfa] sm:$0xff]
        %v6272 = vld [vmem:[%s5637 + $0x10a] sm:$0xff]
        %v6273 = vld [vmem:[%s5637 + $0x112] sm:$0xff]
        %v6274 = vld [vmem:[%s5637 + $0x122] sm:$0xff]
        %v6275 = vld [vmem:[%s5637 + $0x12a] sm:$0xff]
        %v6276 = vld [vmem:[%s5637 + $0x13a] sm:$0xff]
        %v6277 = vld [vmem:[%s5637 + $0x142] sm:$0xff]
        %v6278 = vld [vmem:[%s5637 + $0x152] sm:$0xff]
        %v6279 = vld [vmem:[%s5637 + $0x15a] sm:$0xff]
        %v6280 = vld [vmem:[%s5637 + $0x16a] sm:$0xff]
        %v6281 = vld [vmem:[%s5637 + $0x172] sm:$0xff]
        %s6282 = scalar_lea.vmem [#allocation9], 1024
        %v6283 = vld [vmem:[%s6282] sm:$0xff]
        %v6284 = vld [vmem:[%s6282 + $0x8] sm:$0xff]
        %v6285 = vld [vmem:[%s6282 + $0x10] sm:$0xff]
        %v6286 = vld [vmem:[%s6282 + $0x18] sm:$0xff]
        %v6287 = vld [vmem:[%s6282 + $0x20] sm:$0xff]
        %v6288 = vld [vmem:[%s6282 + $0x28] sm:$0xff]
        %v6289 = vld [vmem:[%s6282 + $0x30] sm:$0xff]
        %v6290 = vld [vmem:[%s6282 + $0x38] sm:$0xff]
        %v6291 = vld [vmem:[%s6282 + $0x40] sm:$0xff]
        %v6292 = vld [vmem:[%s6282 + $0x48] sm:$0xff]
        %v6293 = vld [vmem:[%s6282 + $0x50] sm:$0xff]
        %v6294 = vld [vmem:[%s6282 + $0x58] sm:$0xff]
        %v6295 = vld [vmem:[%s6282 + $0x60] sm:$0xff]
        %v6296 = vld [vmem:[%s6282 + $0x68] sm:$0xff]
        %v6297 = vld [vmem:[%s6282 + $0x70] sm:$0xff]
        %v6298 = vld [vmem:[%s6282 + $0x78] sm:$0xff]
        %6299 = vmatprep.subr.mxu0 0.0
        %6300 = vmatpush1.msra.mxu0 %v6283
        %6301 = vmatprep.subr.mxu0 0.0
        %6302 = vmatpush1.msra.mxu0 %v6284
        %6303 = vmatprep.subr.mxu0 0.0
        %6304 = vmatpush1.msra.mxu0 %v6285
        %6305 = vmatprep.subr.mxu0 0.0
        %6306 = vmatpush1.msra.mxu0 %v6286
        %6307 = vmatprep.subr.mxu0 0.0
        %6308 = vmatpush1.msra.mxu0 %v6287
        %6309 = vmatprep.subr.mxu0 0.0
        %6310 = vmatpush1.msra.mxu0 %v6288
        %6311 = vmatprep.subr.mxu0 0.0
        %6312 = vmatpush1.msra.mxu0 %v6289
        %6313 = vmatprep.subr.mxu0 0.0
        %6314 = vmatpush1.msra.mxu0 %v6290
        %6315 = vmatprep.subr.mxu0 0.0
        %6316 = vmatpush1.msra.mxu0 %v6291
        %6317 = vmatprep.subr.mxu0 0.0
        %6318 = vmatpush1.msra.mxu0 %v6292
        %6319 = vmatprep.subr.mxu0 0.0
        %6320 = vmatpush1.msra.mxu0 %v6293
        %6321 = vmatprep.subr.mxu0 0.0
        %6322 = vmatpush1.msra.mxu0 %v6294
        %6323 = vmatprep.subr.mxu0 0.0
        %6324 = vmatpush1.msra.mxu0 %v6295
        %6325 = vmatprep.subr.mxu0 0.0
        %6326 = vmatpush1.msra.mxu0 %v6296
        %6327 = vmatprep.subr.mxu0 0.0
        %6328 = vmatpush1.msra.mxu0 %v6297
        %6329 = vmatprep.subr.mxu0 0.0
        %6330 = vmatpush1.msra.mxu0 %v6298
        %6331 = vmatprep.subr.mxu0 0.0
        %6332 = vmatpush1.msra.mxu0 0.0
        %6333 = vmatprep.subr.mxu0 0.0
        %6334 = vmatpush1.msra.mxu0 0.0
        %6335 = vmatprep.subr.mxu0 0.0
        %6336 = vmatpush1.msra.mxu0 0.0
        %6337 = vmatprep.subr.mxu0 0.0
        %6338 = vmatpush1.msra.mxu0 0.0
        %6339 = vmatprep.subr.mxu0 0.0
        %6340 = vmatpush1.msra.mxu0 0.0
        %6341 = vmatprep.subr.mxu0 0.0
        %6342 = vmatpush1.msra.mxu0 0.0
        %6343 = vmatprep.subr.mxu0 0.0
        %6344 = vmatpush1.msra.mxu0 0.0
        %6345 = vmatprep.subr.mxu0 0.0
        %6346 = vmatpush1.msra.mxu0 0.0
        %6347 = vmatprep.subr.mxu0 0.0
        %6348 = vmatpush1.msra.mxu0 0.0
        %6349 = vmatprep.subr.mxu0 0.0
        %6350 = vmatpush1.msra.mxu0 0.0
        %6351 = vmatprep.subr.mxu0 0.0
        %6352 = vmatpush1.msra.mxu0 0.0
        %6353 = vmatprep.subr.mxu0 0.0
        %6354 = vmatpush1.msra.mxu0 0.0
        %6355 = vmatprep.subr.mxu0 0.0
        %6356 = vmatpush1.msra.mxu0 0.0
        %6357 = vmatprep.subr.mxu0 0.0
        %6358 = vmatpush1.msra.mxu0 0.0
        %6359 = vmatprep.subr.mxu0 0.0
        %6360 = vmatpush1.msra.mxu0 0.0
        %6361 = vmatprep.subr.mxu0 0.0
        %6362 = vmatpush1.msra.mxu0 0.0
        %6363 = vmatprep.mubr.f32.mxu0 0.0
        %6364 = vmatmul.mubr.f32.gmra.mrb[0].mxu0 %v6250
        %v6365 = vpop.f32.mrb[0].mxu0
        %v6366 = vadd.f32 0.0, %v6365
        %v6367 = vpop.f32.mrb[0].mxu0
        %6368 = vmatprep.mubr.f32.mxu0 0.0
        %6369 = vmatmul.mubr.f32.gmra.mrb[0].mxu0 %v6251
        %v6370 = vpop.f32.mrb[0].mxu0
        %v6371 = vadd.f32 0.0, %v6370
        %v6372 = vpop.f32.mrb[0].mxu0
        %6373 = vmatprep.mubr.f32.mxu0 0.0
        %6374 = vmatmul.mubr.f32.gmra.mrb[0].mxu0 %v6252
        %v6375 = vpop.f32.mrb[0].mxu0
        %v6376 = vadd.f32 0.0, %v6375
        %v6377 = vpop.f32.mrb[0].mxu0
        %6378 = vmatprep.mubr.f32.mxu0 0.0
        %6379 = vmatmul.mubr.f32.gmra.mrb[0].mxu0 %v6253
        %v6380 = vpop.f32.mrb[0].mxu0
        %v6381 = vadd.f32 0.0, %v6380
        %v6382 = vpop.f32.mrb[0].mxu0
        %6383 = vmatprep.mubr.f32.mxu0 0.0
        %6384 = vmatmul.mubr.f32.gmra.mrb[0].mxu0 %v6254
        %v6385 = vpop.f32.mrb[0].mxu0
        %v6386 = vadd.f32 0.0, %v6385
        %v6387 = vpop.f32.mrb[0].mxu0
        %6388 = vmatprep.mubr.f32.mxu0 0.0
        %6389 = vmatmul.mubr.f32.gmra.mrb[0].mxu0 %v6255
        %v6390 = vpop.f32.mrb[0].mxu0
        %v6391 = vadd.f32 0.0, %v6390
        %v6392 = vpop.f32.mrb[0].mxu0
        %6393 = vmatprep.mubr.f32.mxu0 0.0
        %6394 = vmatmul.mubr.f32.gmra.mrb[0].mxu0 %v6256
        %v6395 = vpop.f32.mrb[0].mxu0
        %v6396 = vadd.f32 0.0, %v6395
        %v6397 = vpop.f32.mrb[0].mxu0
        %6398 = vmatprep.mubr.f32.mxu0 0.0
        %6399 = vmatmul.mubr.f32.gmra.mrb[0].mxu0 %v6257
        %v6400 = vpop.f32.mrb[0].mxu0
        %v6401 = vadd.f32 0.0, %v6400
        %v6402 = vpop.f32.mrb[0].mxu0
        %6403 = vmatprep.mubr.f32.mxu0 0.0
        %6404 = vmatmul.mubr.f32.gmra.mrb[0].mxu0 %v6258
        %v6405 = vpop.f32.mrb[0].mxu0
        %v6406 = vadd.f32 0.0, %v6405
        %v6407 = vpop.f32.mrb[0].mxu0
        %6408 = vmatprep.mubr.f32.mxu0 0.0
        %6409 = vmatmul.mubr.f32.gmra.mrb[0].mxu0 %v6259
        %v6410 = vpop.f32.mrb[0].mxu0
        %v6411 = vadd.f32 0.0, %v6410
        %v6412 = vpop.f32.mrb[0].mxu0
        %6413 = vmatprep.mubr.f32.mxu0 0.0
        %6414 = vmatmul.mubr.f32.gmra.mrb[0].mxu0 %v6260
        %v6415 = vpop.f32.mrb[0].mxu0
        %v6416 = vadd.f32 0.0, %v6415
        %v6417 = vpop.f32.mrb[0].mxu0
        %6418 = vmatprep.mubr.f32.mxu0 0.0
        %6419 = vmatmul.mubr.f32.gmra.mrb[0].mxu0 %v6261
        %v6420 = vpop.f32.mrb[0].mxu0
        %v6421 = vadd.f32 0.0, %v6420
        %v6422 = vpop.f32.mrb[0].mxu0
        %6423 = vmatprep.mubr.f32.mxu0 0.0
        %6424 = vmatmul.mubr.f32.gmra.mrb[0].mxu0 %v6262
        %v6425 = vpop.f32.mrb[0].mxu0
        %v6426 = vadd.f32 0.0, %v6425
        %v6427 = vpop.f32.mrb[0].mxu0
        %6428 = vmatprep.mubr.f32.mxu0 0.0
        %6429 = vmatmul.mubr.f32.gmra.mrb[0].mxu0 %v6263
        %v6430 = vpop.f32.mrb[0].mxu0
        %v6431 = vadd.f32 0.0, %v6430
        %v6432 = vpop.f32.mrb[0].mxu0
        %6433 = vmatprep.mubr.f32.mxu0 0.0
        %6434 = vmatmul.mubr.f32.gmra.mrb[0].mxu0 %v6264
        %v6435 = vpop.f32.mrb[0].mxu0
        %v6436 = vadd.f32 0.0, %v6435
        %v6437 = vpop.f32.mrb[0].mxu0
        %6438 = vmatprep.mubr.f32.mxu0 0.0
        %6439 = vmatmul.mubr.f32.gmra.mrb[0].mxu0 %v6265
        %v6440 = vpop.f32.mrb[0].mxu0
        %v6441 = vadd.f32 0.0, %v6440
        %v6442 = vpop.f32.mrb[0].mxu0
        %6443 = vmatprep.mubr.f32.mxu0 0.0
        %6444 = vmatmul.mubr.f32.gmra.mrb[0].mxu0 %v6266
        %v6445 = vpop.f32.mrb[0].mxu0
        %v6446 = vadd.f32 0.0, %v6445
        %v6447 = vpop.f32.mrb[0].mxu0
        %6448 = vmatprep.mubr.f32.mxu0 0.0
        %6449 = vmatmul.mubr.f32.gmra.mrb[0].mxu0 %v6267
        %v6450 = vpop.f32.mrb[0].mxu0
        %v6451 = vadd.f32 0.0, %v6450
        %v6452 = vpop.f32.mrb[0].mxu0
        %6453 = vmatprep.mubr.f32.mxu0 0.0
        %6454 = vmatmul.mubr.f32.gmra.mrb[0].mxu0 %v6268
        %v6455 = vpop.f32.mrb[0].mxu0
        %v6456 = vadd.f32 0.0, %v6455
        %v6457 = vpop.f32.mrb[0].mxu0
        %6458 = vmatprep.mubr.f32.mxu0 0.0
        %6459 = vmatmul.mubr.f32.gmra.mrb[0].mxu0 %v6269
        %v6460 = vpop.f32.mrb[0].mxu0
        %v6461 = vadd.f32 0.0, %v6460
        %v6462 = vpop.f32.mrb[0].mxu0
        %6463 = vmatprep.mubr.f32.mxu0 0.0
        %6464 = vmatmul.mubr.f32.gmra.mrb[0].mxu0 %v6270
        %v6465 = vpop.f32.mrb[0].mxu0
        %v6466 = vadd.f32 0.0, %v6465
        %v6467 = vpop.f32.mrb[0].mxu0
        %6468 = vmatprep.mubr.f32.mxu0 0.0
        %6469 = vmatmul.mubr.f32.gmra.mrb[0].mxu0 %v6271
        %v6470 = vpop.f32.mrb[0].mxu0
        %v6471 = vadd.f32 0.0, %v6470
        %v6472 = vpop.f32.mrb[0].mxu0
        %6473 = vmatprep.mubr.f32.mxu0 0.0
        %6474 = vmatmul.mubr.f32.gmra.mrb[0].mxu0 %v6272
        %v6475 = vpop.f32.mrb[0].mxu0
        %v6476 = vadd.f32 0.0, %v6475
        %v6477 = vpop.f32.mrb[0].mxu0
        %6478 = vmatprep.mubr.f32.mxu0 0.0
        %6479 = vmatmul.mubr.f32.gmra.mrb[0].mxu0 %v6273
        %v6480 = vpop.f32.mrb[0].mxu0
        %v6481 = vadd.f32 0.0, %v6480
        %v6482 = vpop.f32.mrb[0].mxu0
        %6483 = vmatprep.mubr.f32.mxu0 0.0
        %6484 = vmatmul.mubr.f32.gmra.mrb[0].mxu0 %v6274
        %v6485 = vpop.f32.mrb[0].mxu0
        %v6486 = vadd.f32 0.0, %v6485
        %v6487 = vpop.f32.mrb[0].mxu0
        %6488 = vmatprep.mubr.f32.mxu0 0.0
        %6489 = vmatmul.mubr.f32.gmra.mrb[0].mxu0 %v6275
        %v6490 = vpop.f32.mrb[0].mxu0
        %v6491 = vadd.f32 0.0, %v6490
        %v6492 = vpop.f32.mrb[0].mxu0
        %6493 = vmatprep.mubr.f32.mxu0 0.0
        %6494 = vmatmul.mubr.f32.gmra.mrb[0].mxu0 %v6276
        %v6495 = vpop.f32.mrb[0].mxu0
        %v6496 = vadd.f32 0.0, %v6495
        %v6497 = vpop.f32.mrb[0].mxu0
        %6498 = vmatprep.mubr.f32.mxu0 0.0
        %6499 = vmatmul.mubr.f32.gmra.mrb[0].mxu0 %v6277
        %v6500 = vpop.f32.mrb[0].mxu0
        %v6501 = vadd.f32 0.0, %v6500
        %v6502 = vpop.f32.mrb[0].mxu0
        %6503 = vmatprep.mubr.f32.mxu0 0.0
        %6504 = vmatmul.mubr.f32.gmra.mrb[0].mxu0 %v6278
        %v6505 = vpop.f32.mrb[0].mxu0
        %v6506 = vadd.f32 0.0, %v6505
        %v6507 = vpop.f32.mrb[0].mxu0
        %6508 = vmatprep.mubr.f32.mxu0 0.0
        %6509 = vmatmul.mubr.f32.gmra.mrb[0].mxu0 %v6279
        %v6510 = vpop.f32.mrb[0].mxu0
        %v6511 = vadd.f32 0.0, %v6510
        %v6512 = vpop.f32.mrb[0].mxu0
        %6513 = vmatprep.mubr.f32.mxu0 0.0
        %6514 = vmatmul.mubr.f32.gmra.mrb[0].mxu0 %v6280
        %v6515 = vpop.f32.mrb[0].mxu0
        %v6516 = vadd.f32 0.0, %v6515
        %v6517 = vpop.f32.mrb[0].mxu0
        %6518 = vmatprep.mubr.f32.mxu0 0.0
        %6519 = vmatmul.mubr.f32.gmra.mrb[0].mxu0 %v6281
        %v6520 = vpop.f32.mrb[0].mxu0
        %v6521 = vadd.f32 0.0, %v6520
        %v6522 = vpop.f32.mrb[0].mxu0
        %6523 = vdwg.mxu0
        %v6524 = vadd.f32 %v6218, %v6366
        %v6525 = vadd.f32 %v6219, %v6371
        %v6526 = vadd.f32 %v6220, %v6376
        %v6527 = vadd.f32 %v6221, %v6381
        %v6528 = vadd.f32 %v6222, %v6386
        %v6529 = vadd.f32 %v6223, %v6391
        %v6530 = vadd.f32 %v6224, %v6396
        %v6531 = vadd.f32 %v6225, %v6401
        %v6532 = vadd.f32 %v6226, %v6406
        %v6533 = vadd.f32 %v6227, %v6411
        %v6534 = vadd.f32 %v6228, %v6416
        %v6535 = vadd.f32 %v6229, %v6421
        %v6536 = vadd.f32 %v6230, %v6426
        %v6537 = vadd.f32 %v6231, %v6431
        %v6538 = vadd.f32 %v6232, %v6436
        %v6539 = vadd.f32 %v6233, %v6441
        %v6540 = vadd.f32 %v6234, %v6446
        %v6541 = vadd.f32 %v6235, %v6451
        %v6542 = vadd.f32 %v6236, %v6456
        %v6543 = vadd.f32 %v6237, %v6461
        %v6544 = vadd.f32 %v6238, %v6466
        %v6545 = vadd.f32 %v6239, %v6471
        %v6546 = vadd.f32 %v6240, %v6476
        %v6547 = vadd.f32 %v6241, %v6481
        %v6548 = vadd.f32 %v6242, %v6486
        %v6549 = vadd.f32 %v6243, %v6491
        %v6550 = vadd.f32 %v6244, %v6496
        %v6551 = vadd.f32 %v6245, %v6501
        %v6552 = vadd.f32 %v6246, %v6506
        %v6553 = vadd.f32 %v6247, %v6511
        %v6554 = vadd.f32 %v6248, %v6516
        %v6555 = vadd.f32 %v6249, %v6521
        %v6556 = vld [vmem:[%s410] sm:$0xff]
        %v6557 = vld [vmem:[%s410 + $0x8] sm:$0xff]
        %v6558 = vld [vmem:[%s410 + $0x10] sm:$0xff]
        %v6559 = vld [vmem:[%s410 + $0x18] sm:$0xff]
        %v6560 = vld [vmem:[%s410 + $0x20] sm:$0xff]
        %v6561 = vld [vmem:[%s410 + $0x28] sm:$0xff]
        %v6562 = vld [vmem:[%s410 + $0x30] sm:$0xff]
        %v6563 = vld [vmem:[%s410 + $0x38] sm:$0xff]
        %v6564 = vld [vmem:[%s410 + $0x40] sm:$0xff]
        %v6565 = vld [vmem:[%s410 + $0x48] sm:$0xff]
        %v6566 = vld [vmem:[%s410 + $0x50] sm:$0xff]
        %v6567 = vld [vmem:[%s410 + $0x58] sm:$0xff]
        %v6568 = vld [vmem:[%s410 + $0x60] sm:$0xff]
        %v6569 = vld [vmem:[%s410 + $0x68] sm:$0xff]
        %v6570 = vld [vmem:[%s410 + $0x70] sm:$0xff]
        %v6571 = vld [vmem:[%s410 + $0x78] sm:$0xff]
        %v6572 = vld [vmem:[%s410 + $0x80] sm:$0xff]
        %v6573 = vld [vmem:[%s410 + $0x88] sm:$0xff]
        %v6574 = vld [vmem:[%s410 + $0x90] sm:$0xff]
        %v6575 = vld [vmem:[%s410 + $0x98] sm:$0xff]
        %v6576 = vld [vmem:[%s410 + $0xa0] sm:$0xff]
        %v6577 = vld [vmem:[%s410 + $0xa8] sm:$0xff]
        %v6578 = vld [vmem:[%s410 + $0xb0] sm:$0xff]
        %v6579 = vld [vmem:[%s410 + $0xb8] sm:$0xff]
        %v6580 = vld [vmem:[%s410 + $0xc0] sm:$0xff]
        %v6581 = vld [vmem:[%s410 + $0xc8] sm:$0xff]
        %v6582 = vld [vmem:[%s410 + $0xd0] sm:$0xff]
        %v6583 = vld [vmem:[%s410 + $0xd8] sm:$0xff]
        %v6584 = vld [vmem:[%s410 + $0xe0] sm:$0xff]
        %v6585 = vld [vmem:[%s410 + $0xe8] sm:$0xff]
        %v6586 = vld [vmem:[%s410 + $0xf0] sm:$0xff]
        %v6587 = vld [vmem:[%s410 + $0xf8] sm:$0xff]
        %v6588 = vadd.f32 %v6556, %v6524
        %v6589 = vadd.f32 %v6557, %v6525
        %v6590 = vadd.f32 %v6558, %v6526
        %v6591 = vadd.f32 %v6559, %v6527
        %v6592 = vadd.f32 %v6560, %v6528
        %v6593 = vadd.f32 %v6561, %v6529
        %v6594 = vadd.f32 %v6562, %v6530
        %v6595 = vadd.f32 %v6563, %v6531
        %v6596 = vadd.f32 %v6564, %v6532
        %v6597 = vadd.f32 %v6565, %v6533
        %v6598 = vadd.f32 %v6566, %v6534
        %v6599 = vadd.f32 %v6567, %v6535
        %v6600 = vadd.f32 %v6568, %v6536
        %v6601 = vadd.f32 %v6569, %v6537
        %v6602 = vadd.f32 %v6570, %v6538
        %v6603 = vadd.f32 %v6571, %v6539
        %v6604 = vadd.f32 %v6572, %v6540
        %v6605 = vadd.f32 %v6573, %v6541
        %v6606 = vadd.f32 %v6574, %v6542
        %v6607 = vadd.f32 %v6575, %v6543
        %v6608 = vadd.f32 %v6576, %v6544
        %v6609 = vadd.f32 %v6577, %v6545
        %v6610 = vadd.f32 %v6578, %v6546
        %v6611 = vadd.f32 %v6579, %v6547
        %v6612 = vadd.f32 %v6580, %v6548
        %v6613 = vadd.f32 %v6581, %v6549
        %v6614 = vadd.f32 %v6582, %v6550
        %v6615 = vadd.f32 %v6583, %v6551
        %v6616 = vadd.f32 %v6584, %v6552
        %v6617 = vadd.f32 %v6585, %v6553
        %v6618 = vadd.f32 %v6586, %v6554
        %v6619 = vadd.f32 %v6587, %v6555
        %v6620 = vld [vmem:[%s7] sm:$0x1]
        %v6622 = vlaneseq
        %v6623 = vshrl.u32 %v6622, 7
        %v6624 = vsub.s32 0, %v6623
        %v6625 = vrot.slane %v6620, %v6624
        %v6627 = vadd.f32 %v6588, %v6625
        %v6628 = vadd.f32 %v6589, %v6625
        %v6629 = vadd.f32 %v6590, %v6625
        %v6630 = vadd.f32 %v6591, %v6625
        %v6631 = vadd.f32 %v6592, %v6625
        %v6632 = vadd.f32 %v6593, %v6625
        %v6633 = vadd.f32 %v6594, %v6625
        %v6634 = vadd.f32 %v6595, %v6625
        %v6635 = vadd.f32 %v6596, %v6625
        %v6636 = vadd.f32 %v6597, %v6625
        %v6637 = vadd.f32 %v6598, %v6625
        %v6638 = vadd.f32 %v6599, %v6625
        %v6639 = vadd.f32 %v6600, %v6625
        %v6640 = vadd.f32 %v6601, %v6625
        %v6641 = vadd.f32 %v6602, %v6625
        %v6642 = vadd.f32 %v6603, %v6625
        %v6643 = vadd.f32 %v6604, %v6625
        %v6644 = vadd.f32 %v6605, %v6625
        %v6645 = vadd.f32 %v6606, %v6625
        %v6646 = vadd.f32 %v6607, %v6625
        %v6647 = vadd.f32 %v6608, %v6625
        %v6648 = vadd.f32 %v6609, %v6625
        %v6649 = vadd.f32 %v6610, %v6625
        %v6650 = vadd.f32 %v6611, %v6625
        %v6651 = vadd.f32 %v6612, %v6625
        %v6652 = vadd.f32 %v6613, %v6625
        %v6653 = vadd.f32 %v6614, %v6625
        %v6654 = vadd.f32 %v6615, %v6625
        %v6655 = vadd.f32 %v6616, %v6625
        %v6656 = vadd.f32 %v6617, %v6625
        %v6657 = vadd.f32 %v6618, %v6625
        %v6658 = vadd.f32 %v6619, %v6625
        %6659 = vst [vmem:[%s366] sm:$0xff] %v6627
        %6660 = vst [vmem:[%s366 + $0x8] sm:$0xff] %v6628
        %6661 = vst [vmem:[%s366 + $0x10] sm:$0xff] %v6629
        %6662 = vst [vmem:[%s366 + $0x18] sm:$0xff] %v6630
        %6663 = vst [vmem:[%s366 + $0x20] sm:$0xff] %v6631
        %6664 = vst [vmem:[%s366 + $0x28] sm:$0xff] %v6632
        %6665 = vst [vmem:[%s366 + $0x30] sm:$0xff] %v6633
        %6666 = vst [vmem:[%s366 + $0x38] sm:$0xff] %v6634
        %6667 = vst [vmem:[%s366 + $0x40] sm:$0xff] %v6635
        %6668 = vst [vmem:[%s366 + $0x48] sm:$0xff] %v6636
        %6669 = vst [vmem:[%s366 + $0x50] sm:$0xff] %v6637
        %6670 = vst [vmem:[%s366 + $0x58] sm:$0xff] %v6638
        %6671 = vst [vmem:[%s366 + $0x60] sm:$0xff] %v6639
        %6672 = vst [vmem:[%s366 + $0x68] sm:$0xff] %v6640
        %6673 = vst [vmem:[%s366 + $0x70] sm:$0xff] %v6641
        %6674 = vst [vmem:[%s366 + $0x78] sm:$0xff] %v6642
        %6675 = vst [vmem:[%s366 + $0x80] sm:$0xff] %v6643
        %6676 = vst [vmem:[%s366 + $0x88] sm:$0xff] %v6644
        %6677 = vst [vmem:[%s366 + $0x90] sm:$0xff] %v6645
        %6678 = vst [vmem:[%s366 + $0x98] sm:$0xff] %v6646
        %6679 = vst [vmem:[%s366 + $0xa0] sm:$0xff] %v6647
        %6680 = vst [vmem:[%s366 + $0xa8] sm:$0xff] %v6648
        %6681 = vst [vmem:[%s366 + $0xb0] sm:$0xff] %v6649
        %6682 = vst [vmem:[%s366 + $0xb8] sm:$0xff] %v6650
        %6683 = vst [vmem:[%s366 + $0xc0] sm:$0xff] %v6651
        %6684 = vst [vmem:[%s366 + $0xc8] sm:$0xff] %v6652
        %6685 = vst [vmem:[%s366 + $0xd0] sm:$0xff] %v6653
        %6686 = vst [vmem:[%s366 + $0xd8] sm:$0xff] %v6654
        %6687 = vst [vmem:[%s366 + $0xe0] sm:$0xff] %v6655
        %6688 = vst [vmem:[%s366 + $0xe8] sm:$0xff] %v6656
        %6689 = vst [vmem:[%s366 + $0xf0] sm:$0xff] %v6657
        %6690 = vst [vmem:[%s366 + $0xf8] sm:$0xff] %v6658
        %s6691 = sand.u32 %s221, 1
        %s6692 = scalar_lea.sflag [#allocation6], %s6691
        %s6693 = sand.u32 %s221, 1
        %s6694 = smul.addr %s6693, 256
        %s6695 = scalar_lea.vmem [#allocation10], %s6694
        // Predicated region
        $region85: #{tpu_custom_call.1} parent=51 // pred_check
          %p6696 = pneg %p231
        $region86: #{tpu_custom_call.1} parent=51 // pred_check_branch
          %6698 = sbr.rel (%p6696) target = $region88
        $region87: #{tpu_custom_call.1} parent=51 // pred_region
          %s6699 = smul.u32 16, %s31
          %s6701 = ssub.s32 4096, 4096
          %6702 = vsyncadd %s6692, %s6701
          %s6703 = smul.addr %s6699, 2
          %s6704 = smul.addr %s30, 32
          %s6705 = sadd.s32 %s6703, %s6704
          %s6706 = smul.addr %s6705, 128
          %s6707 = scalar_lea.hbm %s8, %s6706
          %s6708 = sshll.u32 %s6695, 4
          %s6709 = int_to_ptr.vmem [resolvable:$true] %s6708
          %6714 = dma.vmem_to_hbm [thread:$0]  %s6709, 4096, %s6707, %s6692, 128, 128, 8
        $region88: #{tpu_custom_call.1} parent=51 // pred_fallthru
          _
      $region52: #{tpu_custom_call.1} parent=5 // pred_fallthru
        _
      %p6715 = scmp.le.s32.totalorder 2, %s21
      // Predicated region
      $region89: #{tpu_custom_call.1} parent=5 // pred_check
        %p6716 = pneg %p6715
      $region90: #{tpu_custom_call.1} parent=5 // pred_check_branch
        %6718 = sbr.rel (%p6716) target = $region92
      $region91: #{tpu_custom_call.1} parent=5 // pred_region
        %s6719 = ssub.s32 %s21, 2
        // Predicated region
        $region93: #{tpu_custom_call.1} parent=91 // pred_check
          %p6720 = pneg %p237
        $region94: #{tpu_custom_call.1} parent=91 // pred_check_branch
          %6722 = sbr.rel (%p6720) target = $region96
        $region95: #{tpu_custom_call.1} parent=91 // pred_region
          %s6723 = sand.u32 %s222, 1
          %s6724 = scalar_lea.sflag [#allocation6], %s6723
          %s6725 = sand.u32 %s222, 1
          %s6726 = smul.addr %s6725, 256
          %s6727 = scalar_lea.vmem [#allocation10], %s6726
          %6728 = dma.done %s6724, 4096
        $region96: #{tpu_custom_call.1} parent=91 // pred_fallthru
          _
      $region92: #{tpu_custom_call.1} parent=5 // pred_fallthru
        _
    $region6: #{tpu_custom_call.1} parent=1 // loop_footer
      %s25 = sadd.s32 1, %s21
    $region7: #{tpu_custom_call.1} parent=1 // loop_footer_branch
      %20 = sbr.rel target = $region3
    $region8: #{tpu_custom_call.1} parent=1 // loop_exit
      _
    %6729 = vsyncpa [#allocation5], 1
    %s6730 = scalar_lea.sflag [#allocation5], 1
    %6731 = vsyncpa %s6730, 1
    %6732 = vsyncpa [#allocation8], 1
    %6733 = vsyncpa [#allocation6], 1
    %s6734 = scalar_lea.sflag [#allocation6], 1
    %6735 = vsyncpa %s6734, 1

</llo_original>
